<compile_context>
chip_gen: v6e
topology: v6e:2x2x1
jax: 0.10.0
libtpu: 0.0.40
codegen_flags: <defaults>
</compile_context>

<pallas_src>
import functools

import jax
import jax.numpy as jnp
import numpy as np
from jax.experimental import pallas as pl
from jax.experimental.pallas import tpu as pltpu

_F32 = jnp.float32
_VMEM = pl.BlockSpec(memory_space=pltpu.MemorySpace.VMEM)


def _pad8(n):
    return int(-(-int(n) // 8) * 8)


def _dot(a, b):
    return jnp.dot(a, b, preferred_element_type=jnp.float32)


# -----------------------------------------------------------------------------
# In-kernel GRU chain (PyTorch gate convention), fused gates + fused directions
# -----------------------------------------------------------------------------
def _gru_chain(gi_steps, whh, bhn, HH):
    """Statically-unrolled GRU chain.

    gi_steps[i] : (B, 3*HH) input-path gate pre-activations for step i with
                  lane layout [r | z | n].  For bidirectional layers HH = 2*H
                  and each slab packs both directions ([*_f | *_b]); b_hr/b_hz
                  are already folded in.
    whh         : (HH, 3*HH) recurrent weight (block-diagonal for packed
                  bidirectional chains), same column layout.
    bhn         : (1, HH) recurrent bias of the n gate.
    Returns the list of per-step hidden states, each (B, HH), kept in registers.
    """
    hs = []
    h = None
    for i, gi in enumerate(gi_steps):
        if i == 0:
            # h == 0  =>  the recurrent matmul contributes nothing; skip it.
            rz = jax.nn.sigmoid(gi[:, :2 * HH])
            n = jnp.tanh(gi[:, 2 * HH:] + rz[:, :HH] * bhn)
            h = (1.0 - rz[:, HH:]) * n
        else:
            gh = _dot(h, whh)                                   # 1 MXU push/step
            rz = jax.nn.sigmoid(gi[:, :2 * HH] + gh[:, :2 * HH])  # packed r|z
            n = jnp.tanh(gi[:, 2 * HH:] + rz[:, :HH] * (gh[:, 2 * HH:] + bhn))
            h = (1.0 - rz[:, HH:]) * n + rz[:, HH:] * h
        hs.append(h)
    return hs


# -----------------------------------------------------------------------------
# The single fused forward kernel
# -----------------------------------------------------------------------------
def _rnn_vae_kernel(x_ref, wrec_ref, win_ref, wlat_ref, wout_ref, bias_ref,
                    *out_refs, T, B, seq_len, future_steps, cfg):
    F = cfg["F"]; H1 = cfg["H1"]; H2 = cfg["H2"]; Z = cfg["Z"]
    HREC = cfg["HREC"]; HP = cfg["HP"]; hid = cfg["hid"]; zg_w = cfg["zg_w"]
    fd = cfg["future_decoder"]

    if fd:
        pred_ref, fut_ref, latent_ref, mu_ref, logvar_ref = out_refs
    else:
        pred_ref, latent_ref, mu_ref, logvar_ref = out_refs

    # ---- Load the packed parameter blobs once; carve out pieces (static) ----
    wrec = wrec_ref[...]
    win = win_ref[...]
    wlat = wlat_ref[...]
    wout = wout_ref[...]
    bias = bias_ref[...]

    r1, r2, rd, rf = cfg["r_enc1"], cfg["r_enc2"], cfg["r_dec"], cfg["r_fut"]
    whh1 = wrec[r1:r1 + 2 * H1, 0:6 * H1]      # block-diag fwd/bwd, enc layer 1
    whh2 = wrec[r2:r2 + 2 * H2, 0:6 * H2]      # block-diag fwd/bwd, enc layer 2
    whhd = wrec[rd:rd + HREC, 0:3 * HREC]      # unidirectional decoder

    W1_in = win[cfg["win_r1"]:cfg["win_r1"] + F, 0:12 * H1]
    W2_in = win[cfg["win_r2"]:cfg["win_r2"] + 2 * H1, 0:12 * H2]
    W2_f_rows = W2_in[:H1, :]                  # rows acting on layer-1 fwd half
    W2_b_rows = W2_in[H1:, :]                  # rows acting on layer-1 bwd half

    W_ml = wlat[cfg["wlat_rml"]:cfg["wlat_rml"] + hid, 0:2 * Z]   # [mean|logvar]
    W_zg = wlat[cfg["wlat_rzg"]:cfg["wlat_rzg"] + Z, 0:zg_w]      # latent->gates

    W_dout = wout[cfg["wout_rdec"]:cfg["wout_rdec"] + HREC, 0:F]

    b1 = bias[0:1, 0:6 * H1]
    bhn1 = bias[1:2, 0:2 * H1]
    b2 = bias[2:3, 0:6 * H2]
    bhn2 = bias[3:4, 0:2 * H2]
    b_ml = bias[4:5, 0:2 * Z]
    b_zg = bias[5:6, 0:zg_w]
    bhn_dec = bias[6:7, 0:HREC]
    b_dout = bias[8:9, 0:F]
    if fd:
        whhf = wrec[rf:rf + 2 * HP, 0:6 * HP]
        W_fout = wout[cfg["wout_rfut"]:cfg["wout_rfut"] + 2 * HP, 0:F]
        W_fout_f = W_fout[:HP, :]
        W_fout_b = W_fout[HP:, :]
        bhn_fut = bias[7:8, 0:2 * HP]
        b_fout = bias[9:10, 0:F]

    x = x_ref[...]                             # (T*B, F), time-major rows

    # ---- Encoder layer 1: bidirectional GRU, both directions in one chain ---
    gi1_all = _dot(x, W1_in)                   # hoisted input proj (T*B, 12*H1)
    gi1f = gi1_all[:, :6 * H1]                 # fwd-direction slots
    gi1b = gi1_all[:, 6 * H1:]                 # bwd-direction slots
    gi1_steps = [gi1f[t * B:(t + 1) * B, :]
                 + gi1b[(T - 1 - t) * B:(T - t) * B, :] + b1
                 for t in range(T)]
    h1 = _gru_chain(gi1_steps, whh1, bhn1, 2 * H1)   # packed [h_f | h_b] / step

    # ---- Encoder layer 2 (input projections are off the recurrent chain) ----
    # outputs_1(t) = [h1_fwd(t) | h1_bwd(t)]; h1_bwd(t) lives in h1[T-1-t][:,H1:].
    c2 = []
    for s in range(T):
        o1f = h1[s][:, :H1]
        o1b = h1[T - 1 - s][:, H1:]
        c2.append(_dot(o1f, W2_f_rows) + _dot(o1b, W2_b_rows))    # (B, 12*H2)
    gi2_steps = [c2[t][:, :6 * H2] + c2[T - 1 - t][:, 6 * H2:] + b2
                 for t in range(T)]
    h2 = _gru_chain(gi2_steps, whh2, bhn2, 2 * H2)

    # ---- Lambda (eval mode: latent == mean).  h_n = cat([h1_f,h1_b,h2_f,h2_b])
    #      which is exactly cat([h1[-1], h2[-1]]) in the packed layout. --------
    ml = _dot(h1[-1], W_ml[:2 * H1, :]) + _dot(h2[-1], W_ml[2 * H1:, :]) + b_ml
    mu = ml[:, :Z]
    logvar = jnp.logaddexp(ml[:, Z:], 0.0)     # Softplus on the logvar head
    latent = mu                                # TODO(synk): train-mode reparam
    latent_ref[...] = latent
    mu_ref[...] = mu
    logvar_ref[...] = logvar

    # ---- Decoders: z == latent repeated over time, so the input projection is
    #      one constant (B, 3*HREC [+6*HP]) row set shared by every step.  The
    #      dec / future chains are independent given `latent`; the fully
    #      unrolled kernel is one basic block, so the scheduler interleaves
    #      them without explicit reordering. ----------------------------------
    gi_zg = _dot(latent, W_zg) + b_zg
    gi_dec = gi_zg[:, :3 * HREC]
    dec_h = _gru_chain([gi_dec] * seq_len, whhd, bhn_dec, HREC)
    for t in range(seq_len):                   # fused output Linear, written
        pred_ref[t * B:(t + 1) * B, :] = _dot(dec_h[t], W_dout) + b_dout

    if fd:
        gi_fut = gi_zg[:, 3 * HREC:]           # both directions packed
        fut_h = _gru_chain([gi_fut] * future_steps, whhf, bhn_fut, 2 * HP)
        for t in range(future_steps):
            # bidirectional output at time t = [fwd(t) | bwd(t)];
            # bwd(t) is the bwd chain after (future_steps - t) steps.
            fut_ref[t * B:(t + 1) * B, :] = (
                _dot(fut_h[t][:, :HP], W_fout_f)
                + _dot(fut_h[future_steps - 1 - t][:, HP:], W_fout_b)
                + b_fout)


# -----------------------------------------------------------------------------
# Cost estimate (advisory; helps XLA schedule around the custom call)
# -----------------------------------------------------------------------------
def _cost_estimate(T, B, S, FS, cfg, param_bytes):
    F, H1, H2, Z = cfg["F"], cfg["H1"], cfg["H2"], cfg["Z"]
    HREC, HP = cfg["HREC"], cfg["HP"]
    fd = cfg["future_decoder"]
    mm = T * B * F * 12 * H1                       # enc1 hoisted input proj
    mm += 2 * T * B * H1 * 12 * H2                 # enc1->enc2 glue projections
    mm += (T - 1) * B * 2 * H1 * 6 * H1            # enc1 recurrent chain
    mm += (T - 1) * B * 2 * H2 * 6 * H2            # enc2 recurrent chain
    mm += B * (2 * H1 + 2 * H2) * 2 * Z            # Lambda heads
    mm += B * Z * cfg["zg_w"]                      # latent -> decoder gates
    mm += (S - 1) * B * HREC * 3 * HREC + S * B * HREC * F
    trans = T * B * 6 * H1 + T * B * 6 * H2 + S * B * 3 * HREC
    if fd:
        mm += (FS - 1) * B * 2 * HP * 6 * HP + FS * B * 2 * HP * F
        trans += FS * B * 6 * HP
    io_bytes = 4 * (T * B * F + S * B * F + (FS * B * F if fd else 0) + 3 * B * Z)
    return pl.CostEstimate(flops=2 * mm, transcendentals=trans,
                           bytes_accessed=io_bytes + param_bytes)


# -----------------------------------------------------------------------------
# Wrapper: one pallas_call for the whole forward pass
# -----------------------------------------------------------------------------
def rnn_vae_legacy_forward(seq, blobs, *, seq_len, future_steps, cfg):
    """seq: (B, T, NUM_FEATURES) float32, batch_first (PyTorch convention)."""
    B, T, F = seq.shape
    fd = cfg["future_decoder"]
    Z = cfg["Z"]

    # Single tiny layout change at the model boundary (batch-first -> time-major
    # rows).  Kept outside the kernel on purpose: the equivalent in-kernel
    # sublane permute would risk relayout copies, while time-major rows keep
    # every per-step slice/store contiguous.
    x2d = jnp.transpose(seq, (1, 0, 2)).reshape(T * B, F)

    out_shape = [jax.ShapeDtypeStruct((seq_len * B, F), _F32)]
    if fd:
        out_shape.append(jax.ShapeDtypeStruct((future_steps * B, F), _F32))
    out_shape += [jax.ShapeDtypeStruct((B, Z), _F32)] * 3
    out_shape = tuple(out_shape)

    kernel = functools.partial(
        _rnn_vae_kernel, T=T, B=B, seq_len=seq_len,
        future_steps=future_steps, cfg=cfg)

    param_bytes = 4 * sum(int(v.size) for v in blobs.values())
    cost = _cost_estimate(T, B, seq_len, future_steps, cfg, param_bytes)

    outs = pl.pallas_call(
        kernel,
        out_shape=out_shape,
        in_specs=[_VMEM] * 6,
        out_specs=tuple([_VMEM] * len(out_shape)),
        cost_estimate=cost,
    )(x2d, blobs["wrec"], blobs["win"], blobs["wlat"], blobs["wout"],
      blobs["bias"])

    if fd:
        pred2d, fut2d, latent, mu, logvar = outs
        prediction = jnp.transpose(pred2d.reshape(seq_len, B, F), (1, 0, 2))
        future = jnp.transpose(fut2d.reshape(future_steps, B, F), (1, 0, 2))
        return prediction, future, latent, mu, logvar

    pred2d, latent, mu, logvar = outs
    prediction = jnp.transpose(pred2d.reshape(seq_len, B, F), (1, 0, 2))
    return prediction, latent, mu, logvar


# -----------------------------------------------------------------------------
# Parameter packing (numpy, outside jit): ~35 tiny arrays -> 5 VMEM blobs.
# Gate/direction slot layout for bidirectional GRUs: [r_f,r_b,z_f,z_b,n_f,n_b];
# b_hr/b_hz folded into the input-path biases; recurrent weights block-diagonal.
# -----------------------------------------------------------------------------
def pack_params(params, *, future_decoder=True):
    A = lambda t: np.asarray(t, dtype=np.float32)

    F = A(params["enc1_fwd"]["wih"]).shape[0]
    H1 = A(params["enc1_fwd"]["whh"]).shape[0]
    H2 = A(params["enc2_fwd"]["whh"]).shape[0]
    Z = A(params["to_mean"]["w"]).shape[1]
    HREC = A(params["dec_gru"]["whh"]).shape[0]
    HP = A(params["fut_gru_fwd"]["whh"]).shape[0] if future_decoder else 0
    hid = 2 * H1 + 2 * H2

    def place_in(w, H, side):          # (Din, 3H) [r|z|n] -> (Din, 6H) packed
        o = 0 if side == "f" else H
        out = np.zeros((w.shape[0], 6 * H), np.float32)
        out[:, o:o + H] = w[:, 0:H]
        out[:, 2 * H + o:3 * H + o] = w[:, H:2 * H]
        out[:, 4 * H + o:5 * H + o] = w[:, 2 * H:3 * H]
        return out

    def place_rec(whh, H, side):       # (H, 3H) -> block-diag piece of (2H, 6H)
        ro = 0 if side == "f" else H
        o = 0 if side == "f" else H
        out = np.zeros((2 * H, 6 * H), np.float32)
        out[ro:ro + H, o:o + H] = whh[:, 0:H]
        out[ro:ro + H, 2 * H + o:3 * H + o] = whh[:, H:2 * H]
        out[ro:ro + H, 4 * H + o:5 * H + o] = whh[:, 2 * H:3 * H]
        return out

    def place_bias(bih, bhh, H, side):  # fold b_hr/b_hz; n slot keeps b_in only
        o = 0 if side == "f" else H
        out = np.zeros((1, 6 * H), np.float32)
        out[:, o:o + H] = bih[:, 0:H] + bhh[:, 0:H]
        out[:, 2 * H + o:3 * H + o] = bih[:, H:2 * H] + bhh[:, H:2 * H]
        out[:, 4 * H + o:5 * H + o] = bih[:, 2 * H:3 * H]
        return out

    def place_bhn(bhh, H, side):        # (1, 3H) -> (1, 2H) packed b_hn
        o = 0 if side == "f" else H
        out = np.zeros((1, 2 * H), np.float32)
        out[:, o:o + H] = bhh[:, 2 * H:3 * H]
        return out

    e1f, e1b = params["enc1_fwd"], params["enc1_bwd"]
    e2f, e2b = params["enc2_fwd"], params["enc2_bwd"]
    dg = params["dec_gru"]

    W1_in = np.concatenate([place_in(A(e1f["wih"]), H1, "f"),
                            place_in(A(e1b["wih"]), H1, "b")], axis=1)
    b1 = (place_bias(A(e1f["bih"]), A(e1f["bhh"]), H1, "f")
          + place_bias(A(e1b["bih"]), A(e1b["bhh"]), H1, "b"))
    bhn1 = place_bhn(A(e1f["bhh"]), H1, "f") + place_bhn(A(e1b["bhh"]), H1, "b")
    whh1 = place_rec(A(e1f["whh"]), H1, "f") + place_rec(A(e1b["whh"]), H1, "b")

    W2_in = np.concatenate([place_in(A(e2f["wih"]), H2, "f"),
                            place_in(A(e2b["wih"]), H2, "b")], axis=1)
    b2 = (place_bias(A(e2f["bih"]), A(e2f["bhh"]), H2, "f")
          + place_bias(A(e2b["bih"]), A(e2b["bhh"]), H2, "b"))
    bhn2 = place_bhn(A(e2f["bhh"]), H2, "f") + place_bhn(A(e2b["bhh"]), H2, "b")
    whh2 = place_rec(A(e2f["whh"]), H2, "f") + place_rec(A(e2b["whh"]), H2, "b")

    W_ml = np.concatenate([A(params["to_mean"]["w"]),
                           A(params["to_logvar"]["w"])], axis=1)
    b_ml = np.concatenate([A(params["to_mean"]["b"]),
                           A(params["to_logvar"]["b"])], axis=1)

    whh_dec = A(dg["whh"])
    bih_d, bhh_d = A(dg["bih"]), A(dg["bhh"])
    b_dec = bih_d.copy()
    b_dec[:, 0:2 * HREC] += bhh_d[:, 0:2 * HREC]
    bhn_dec = bhh_d[:, 2 * HREC:3 * HREC]
    W_dec_in = A(dg["wih"])
    W_dout, b_dout = A(params["dec_out"]["w"]), A(params["dec_out"]["b"])

    if future_decoder:
        ff, fb = params["fut_gru_fwd"], params["fut_gru_bwd"]
        # Both directions see the same constant input (latent), so their packed
        # input weights can be summed into one (Z, 6*HP) matrix.
        W_fut_in = place_in(A(ff["wih"]), HP, "f") + place_in(A(fb["wih"]), HP, "b")
        b_fut = (place_bias(A(ff["bih"]), A(ff["bhh"]), HP, "f")
                 + place_bias(A(fb["bih"]), A(fb["bhh"]), HP, "b"))
        bhn_fut = place_bhn(A(ff["bhh"]), HP, "f") + place_bhn(A(fb["bhh"]), HP, "b")
        whh_fut = place_rec(A(ff["whh"]), HP, "f") + place_rec(A(fb["whh"]), HP, "b")
        W_zg = np.concatenate([W_dec_in, W_fut_in], axis=1)
        b_zg = np.concatenate([b_dec, b_fut], axis=1)
        W_fout, b_fout = A(params["fut_out"]["w"]), A(params["fut_out"]["b"])
    else:
        W_zg, b_zg = W_dec_in, b_dec
    zg_w = W_zg.shape[1]

    # blob: block-diagonal recurrent weights (8-aligned row offsets)
    r_enc1 = 0
    r_enc2 = r_enc1 + _pad8(2 * H1)
    r_dec = r_enc2 + _pad8(2 * H2)
    r_fut = r_dec + _pad8(HREC)
    rec_rows = r_fut + (_pad8(2 * HP) if future_decoder else 0)
    rec_cols = max(6 * H1, 6 * H2, 3 * HREC, 6 * HP if future_decoder else 0)
    wrec = np.zeros((max(rec_rows, r_fut), rec_cols), np.float32)
    wrec[r_enc1:r_enc1 + 2 * H1, :6 * H1] = whh1
    wrec[r_enc2:r_enc2 + 2 * H2, :6 * H2] = whh2
    wrec[r_dec:r_dec + HREC, :3 * HREC] = whh_dec
    if future_decoder:
        wrec[r_fut:r_fut + 2 * HP, :6 * HP] = whh_fut

    # blob: hoisted input-projection weights
    win_r1, win_r2 = 0, _pad8(F)
    win = np.zeros((win_r2 + 2 * H1, max(12 * H1, 12 * H2)), np.float32)
    win[win_r1:win_r1 + F, :12 * H1] = W1_in
    win[win_r2:win_r2 + 2 * H1, :12 * H2] = W2_in

    # blob: latent-path weights (Lambda heads + latent->decoder gates)
    wlat_rml, wlat_rzg = 0, _pad8(hid)
    wlat = np.zeros((wlat_rzg + Z, max(2 * Z, zg_w)), np.float32)
    wlat[wlat_rml:wlat_rml + hid, :2 * Z] = W_ml
    wlat[wlat_rzg:wlat_rzg + Z, :zg_w] = W_zg

    # blob: output Linear weights
    wout_rdec, wout_rfut = 0, _pad8(HREC)
    wout_rows = wout_rfut + (2 * HP if future_decoder else 0)
    wout = np.zeros((max(wout_rows, wout_rfut), F), np.float32)
    wout[wout_rdec:wout_rdec + HREC, :] = W_dout
    if future_decoder:
        wout[wout_rfut:wout_rfut + 2 * HP, :] = W_fout

    # blob: all biases, one group per row
    widths = [6 * H1, 2 * H1, 6 * H2, 2 * H2, 2 * Z, zg_w, HREC, 2 * HP, F, F]
    bias = np.zeros((10, max(w for w in widths if w > 0)), np.float32)
    bias[0, :6 * H1] = b1[0]
    bias[1, :2 * H1] = bhn1[0]
    bias[2, :6 * H2] = b2[0]
    bias[3, :2 * H2] = bhn2[0]
    bias[4, :2 * Z] = b_ml[0]
    bias[5, :zg_w] = b_zg[0]
    bias[6, :HREC] = bhn_dec[0]
    if future_decoder:
        bias[7, :2 * HP] = bhn_fut[0]
    bias[8, :F] = b_dout[0]
    if future_decoder:
        bias[9, :F] = b_fout[0]

    blobs = {"wrec": jnp.asarray(wrec), "win": jnp.asarray(win),
             "wlat": jnp.asarray(wlat), "wout": jnp.asarray(wout),
             "bias": jnp.asarray(bias)}
    cfg = dict(F=F, H1=H1, H2=H2, Z=Z, HREC=HREC, HP=HP, hid=hid, zg_w=zg_w,
               future_decoder=future_decoder,
               r_enc1=r_enc1, r_enc2=r_enc2, r_dec=r_dec, r_fut=r_fut,
               win_r1=win_r1, win_r2=win_r2,
               wlat_rml=wlat_rml, wlat_rzg=wlat_rzg,
               wout_rdec=wout_rdec, wout_rfut=wout_rfut)
    return blobs, cfg


# -----------------------------------------------------------------------------
# Parameter construction (deterministic, PyTorch-style uniform init)
# -----------------------------------------------------------------------------
def _uniform(key, shape, bound):
    return jax.random.uniform(key, shape, _F32, -bound, bound)


def init_gru(key, d_in, hidden):
    k = 1.0 / jnp.sqrt(hidden)
    k1, k2, k3, k4 = jax.random.split(key, 4)
    return {
        "wih": _uniform(k1, (d_in, 3 * hidden), k),    # torch (3H, D_in)^T
        "whh": _uniform(k2, (hidden, 3 * hidden), k),  # torch (3H, H)^T
        "bih": _uniform(k3, (1, 3 * hidden), k),
        "bhh": _uniform(k4, (1, 3 * hidden), k),
    }


def init_linear(key, d_in, d_out):
    k = 1.0 / jnp.sqrt(d_in)
    k1, k2 = jax.random.split(key)
    return {
        "w": _uniform(k1, (d_in, d_out), k),           # torch (D_out, D_in)^T
        "b": _uniform(k2, (1, d_out), k),
    }


def init_params(key, NUM_FEATURES, ZDIMS, h1, h2, h_rec, h_pred):
    ks = jax.random.split(key, 12)
    hid_dim = 2 * h1 + 2 * h2
    return {
        # Encoder_LEGACY
        "enc1_fwd": init_gru(ks[0], NUM_FEATURES, h1),
        "enc1_bwd": init_gru(ks[1], NUM_FEATURES, h1),
        "enc2_fwd": init_gru(ks[2], 2 * h1, h2),
        "enc2_bwd": init_gru(ks[3], 2 * h1, h2),
        # Lambda_LEGACY (hidden_to_linear is unused in forward -> omitted)
        "to_mean": init_linear(ks[4], hid_dim, ZDIMS),
        "to_logvar": init_linear(ks[5], hid_dim, ZDIMS),
        # Decoder_LEGACY
        "dec_gru": init_gru(ks[6], ZDIMS, h_rec),
        "dec_out": init_linear(ks[7], h_rec, NUM_FEATURES),
        # Decoder_Future_LEGACY
        "fut_gru_fwd": init_gru(ks[8], ZDIMS, h_pred),
        "fut_gru_bwd": init_gru(ks[9], ZDIMS, h_pred),
        "fut_out": init_linear(ks[10], 2 * h_pred, NUM_FEATURES),
    }


# -----------------------------------------------------------------------------
# Main
# -----------------------------------------------------------------------------
if __name__ == "__main__":
    TEMPORAL_WINDOW = 16
    SEQ_LEN = TEMPORAL_WINDOW // 2          # = 8
    NUM_FEATURES = 12
    ZDIMS = 16
    FUTURE_DECODER = True
    FUTURE_STEPS = 4
    H1, H2 = 32, 32                         # encoder hidden sizes
    H_REC, H_PRED = 32, 32                  # decoder hidden sizes
    B = 2

    root = jax.random.PRNGKey(0)
    k_data, k_params = jax.random.split(root)

    params = init_params(k_params, NUM_FEATURES, ZDIMS, H1, H2, H_REC, H_PRED)
    blobs, cfg = pack_params(params, future_decoder=FUTURE_DECODER)

    # Input sequence (B, seq_len, NUM_FEATURES) -- batch_first like PyTorch
    seq = jax.random.normal(k_data, (B, SEQ_LEN, NUM_FEATURES), _F32)

    fwd = jax.jit(functools.partial(
        rnn_vae_legacy_forward,
        seq_len=SEQ_LEN, future_steps=FUTURE_STEPS, cfg=cfg))

    prediction, future, latent, mu, logvar = fwd(seq, blobs)
    jax.block_until_ready((prediction, future, latent, mu, logvar))

    assert prediction.shape == (B, SEQ_LEN, NUM_FEATURES)
    assert future.shape == (B, FUTURE_STEPS, NUM_FEATURES)
    assert latent.shape == (B, ZDIMS)
    assert mu.shape == (B, ZDIMS)
    assert logvar.shape == (B, ZDIMS)
    assert bool(jnp.all(jnp.isfinite(prediction)))
    assert bool(jnp.all(jnp.isfinite(future)))
    assert bool(jnp.all(jnp.isfinite(latent)))
    assert bool(jnp.all(jnp.isfinite(logvar)))

    print("KERNEL_OK")
</pallas_src>

<mosaic_0001>
module attributes {stable_mosaic.version = 11 : i64} {
  func.func @_rnn_vae_kernel(%arg0: memref<16x12xf32, #tpu.memory_space<vmem>>, %arg1: memref<224x192xf32, #tpu.memory_space<vmem>>, %arg2: memref<80x384xf32, #tpu.memory_space<vmem>>, %arg3: memref<144x288xf32, #tpu.memory_space<vmem>>, %arg4: memref<96x12xf32, #tpu.memory_space<vmem>>, %arg5: memref<10x288xf32, #tpu.memory_space<vmem>>, %arg6: memref<16x12xf32, #tpu.memory_space<vmem>>, %arg7: memref<8x12xf32, #tpu.memory_space<vmem>>, %arg8: memref<2x16xf32, #tpu.memory_space<vmem>>, %arg9: memref<2x16xf32, #tpu.memory_space<vmem>>, %arg10: memref<2x16xf32, #tpu.memory_space<vmem>>) attributes {dimension_semantics = [], scalar_prefetch = 0 : i64, scratch_operands = 0 : i64, tpu.core_type = #tpu.core_type<tc>} {
    %c0 = arith.constant 0 : index
    %c0_0 = arith.constant 0 : index
    %0 = vector.load %arg1[%c0, %c0_0] : memref<224x192xf32, #tpu.memory_space<vmem>>, vector<224x192xf32>
    %c0_1 = arith.constant 0 : index
    %c0_2 = arith.constant 0 : index
    %1 = vector.load %arg2[%c0_1, %c0_2] : memref<80x384xf32, #tpu.memory_space<vmem>>, vector<80x384xf32>
    %c0_3 = arith.constant 0 : index
    %c0_4 = arith.constant 0 : index
    %2 = vector.load %arg3[%c0_3, %c0_4] : memref<144x288xf32, #tpu.memory_space<vmem>>, vector<144x288xf32>
    %c0_5 = arith.constant 0 : index
    %c0_6 = arith.constant 0 : index
    %3 = vector.load %arg4[%c0_5, %c0_6] : memref<96x12xf32, #tpu.memory_space<vmem>>, vector<96x12xf32>
    %c0_7 = arith.constant 0 : index
    %c0_8 = arith.constant 0 : index
    %4 = vector.load %arg5[%c0_7, %c0_8] : memref<10x288xf32, #tpu.memory_space<vmem>>, vector<10x288xf32>
    %5 = vector.extract_strided_slice %0 {offsets = [0, 0], sizes = [64, 192], strides = [1, 1]} : vector<224x192xf32> to vector<64x192xf32>
    %6 = vector.extract_strided_slice %0 {offsets = [64, 0], sizes = [64, 192], strides = [1, 1]} : vector<224x192xf32> to vector<64x192xf32>
    %7 = vector.extract_strided_slice %0 {offsets = [128, 0], sizes = [32, 96], strides = [1, 1]} : vector<224x192xf32> to vector<32x96xf32>
    %8 = vector.extract_strided_slice %1 {offsets = [0, 0], sizes = [12, 384], strides = [1, 1]} : vector<80x384xf32> to vector<12x384xf32>
    %9 = vector.extract_strided_slice %1 {offsets = [16, 0], sizes = [64, 384], strides = [1, 1]} : vector<80x384xf32> to vector<64x384xf32>
    %10 = vector.extract_strided_slice %9 {offsets = [0, 0], sizes = [32, 384], strides = [1, 1]} : vector<64x384xf32> to vector<32x384xf32>
    %11 = vector.extract_strided_slice %9 {offsets = [32, 0], sizes = [32, 384], strides = [1, 1]} : vector<64x384xf32> to vector<32x384xf32>
    %12 = vector.extract_strided_slice %2 {offsets = [0, 0], sizes = [128, 32], strides = [1, 1]} : vector<144x288xf32> to vector<128x32xf32>
    %13 = vector.extract_strided_slice %2 {offsets = [128, 0], sizes = [16, 288], strides = [1, 1]} : vector<144x288xf32> to vector<16x288xf32>
    %14 = vector.extract_strided_slice %3 {offsets = [0, 0], sizes = [32, 12], strides = [1, 1]} : vector<96x12xf32> to vector<32x12xf32>
    %15 = vector.extract_strided_slice %4 {offsets = [0, 0], sizes = [1, 192], strides = [1, 1]} : vector<10x288xf32> to vector<1x192xf32>
    %16 = vector.extract_strided_slice %4 {offsets = [1, 0], sizes = [1, 64], strides = [1, 1]} : vector<10x288xf32> to vector<1x64xf32>
    %17 = vector.extract_strided_slice %4 {offsets = [2, 0], sizes = [1, 192], strides = [1, 1]} : vector<10x288xf32> to vector<1x192xf32>
    %18 = vector.extract_strided_slice %4 {offsets = [3, 0], sizes = [1, 64], strides = [1, 1]} : vector<10x288xf32> to vector<1x64xf32>
    %19 = vector.extract_strided_slice %4 {offsets = [4, 0], sizes = [1, 32], strides = [1, 1]} : vector<10x288xf32> to vector<1x32xf32>
    %20 = vector.extract_strided_slice %4 {offsets = [5, 0], sizes = [1, 288], strides = [1, 1]} : vector<10x288xf32> to vector<1x288xf32>
    %21 = vector.extract_strided_slice %4 {offsets = [6, 0], sizes = [1, 32], strides = [1, 1]} : vector<10x288xf32> to vector<1x32xf32>
    %22 = vector.extract_strided_slice %4 {offsets = [8, 0], sizes = [1, 12], strides = [1, 1]} : vector<10x288xf32> to vector<1x12xf32>
    %23 = vector.extract_strided_slice %0 {offsets = [160, 0], sizes = [64, 192], strides = [1, 1]} : vector<224x192xf32> to vector<64x192xf32>
    %24 = vector.extract_strided_slice %3 {offsets = [32, 0], sizes = [64, 12], strides = [1, 1]} : vector<96x12xf32> to vector<64x12xf32>
    %25 = vector.extract_strided_slice %24 {offsets = [0, 0], sizes = [32, 12], strides = [1, 1]} : vector<64x12xf32> to vector<32x12xf32>
    %26 = vector.extract_strided_slice %24 {offsets = [32, 0], sizes = [32, 12], strides = [1, 1]} : vector<64x12xf32> to vector<32x12xf32>
    %27 = vector.extract_strided_slice %4 {offsets = [7, 0], sizes = [1, 64], strides = [1, 1]} : vector<10x288xf32> to vector<1x64xf32>
    %28 = vector.extract_strided_slice %4 {offsets = [9, 0], sizes = [1, 12], strides = [1, 1]} : vector<10x288xf32> to vector<1x12xf32>
    %c0_9 = arith.constant 0 : index
    %c0_10 = arith.constant 0 : index
    %29 = vector.load %arg0[%c0_9, %c0_10] : memref<16x12xf32, #tpu.memory_space<vmem>>, vector<16x12xf32>
    %cst = arith.constant dense<0.000000e+00> : vector<16x384xf32>
    %30 = tpu.matmul %29, %8, %cst {dimension_numbers = #tpu.dot_dimension_numbers<[1], [0], [0], [1], [0, 0, 1, 1], [], []>} : vector<16x12xf32>, vector<12x384xf32>, vector<16x384xf32> -> vector<16x384xf32>
    %31 = vector.extract_strided_slice %30 {offsets = [0, 0], sizes = [16, 192], strides = [1, 1]} : vector<16x384xf32> to vector<16x192xf32>
    %32 = vector.extract_strided_slice %30 {offsets = [0, 192], sizes = [16, 192], strides = [1, 1]} : vector<16x384xf32> to vector<16x192xf32>
    %33 = vector.extract_strided_slice %31 {offsets = [0, 0], sizes = [2, 192], strides = [1, 1]} : vector<16x192xf32> to vector<2x192xf32>
    %34 = vector.extract_strided_slice %32 {offsets = [14, 0], sizes = [2, 192], strides = [1, 1]} : vector<16x192xf32> to vector<2x192xf32>
    %35 = arith.addf %33, %34 : vector<2x192xf32>
    %36 = vector.broadcast %15 : vector<1x192xf32> to vector<2x192xf32>
    %37 = arith.addf %35, %36 : vector<2x192xf32>
    %38 = vector.extract_strided_slice %31 {offsets = [2, 0], sizes = [2, 192], strides = [1, 1]} : vector<16x192xf32> to vector<2x192xf32>
    %39 = vector.extract_strided_slice %32 {offsets = [12, 0], sizes = [2, 192], strides = [1, 1]} : vector<16x192xf32> to vector<2x192xf32>
    %40 = arith.addf %38, %39 : vector<2x192xf32>
    %41 = vector.broadcast %15 : vector<1x192xf32> to vector<2x192xf32>
    %42 = arith.addf %40, %41 : vector<2x192xf32>
    %43 = vector.extract_strided_slice %31 {offsets = [4, 0], sizes = [2, 192], strides = [1, 1]} : vector<16x192xf32> to vector<2x192xf32>
    %44 = vector.extract_strided_slice %32 {offsets = [10, 0], sizes = [2, 192], strides = [1, 1]} : vector<16x192xf32> to vector<2x192xf32>
    %45 = arith.addf %43, %44 : vector<2x192xf32>
    %46 = vector.broadcast %15 : vector<1x192xf32> to vector<2x192xf32>
    %47 = arith.addf %45, %46 : vector<2x192xf32>
    %48 = vector.extract_strided_slice %31 {offsets = [6, 0], sizes = [2, 192], strides = [1, 1]} : vector<16x192xf32> to vector<2x192xf32>
    %49 = vector.extract_strided_slice %32 {offsets = [8, 0], sizes = [2, 192], strides = [1, 1]} : vector<16x192xf32> to vector<2x192xf32>
    %50 = arith.addf %48, %49 : vector<2x192xf32>
    %51 = vector.broadcast %15 : vector<1x192xf32> to vector<2x192xf32>
    %52 = arith.addf %50, %51 : vector<2x192xf32>
    %53 = vector.extract_strided_slice %31 {offsets = [8, 0], sizes = [2, 192], strides = [1, 1]} : vector<16x192xf32> to vector<2x192xf32>
    %54 = vector.extract_strided_slice %32 {offsets = [6, 0], sizes = [2, 192], strides = [1, 1]} : vector<16x192xf32> to vector<2x192xf32>
    %55 = arith.addf %53, %54 : vector<2x192xf32>
    %56 = vector.broadcast %15 : vector<1x192xf32> to vector<2x192xf32>
    %57 = arith.addf %55, %56 : vector<2x192xf32>
    %58 = vector.extract_strided_slice %31 {offsets = [10, 0], sizes = [2, 192], strides = [1, 1]} : vector<16x192xf32> to vector<2x192xf32>
    %59 = vector.extract_strided_slice %32 {offsets = [4, 0], sizes = [2, 192], strides = [1, 1]} : vector<16x192xf32> to vector<2x192xf32>
    %60 = arith.addf %58, %59 : vector<2x192xf32>
    %61 = vector.broadcast %15 : vector<1x192xf32> to vector<2x192xf32>
    %62 = arith.addf %60, %61 : vector<2x192xf32>
    %63 = vector.extract_strided_slice %31 {offsets = [12, 0], sizes = [2, 192], strides = [1, 1]} : vector<16x192xf32> to vector<2x192xf32>
    %64 = vector.extract_strided_slice %32 {offsets = [2, 0], sizes = [2, 192], strides = [1, 1]} : vector<16x192xf32> to vector<2x192xf32>
    %65 = arith.addf %63, %64 : vector<2x192xf32>
    %66 = vector.broadcast %15 : vector<1x192xf32> to vector<2x192xf32>
    %67 = arith.addf %65, %66 : vector<2x192xf32>
    %68 = vector.extract_strided_slice %31 {offsets = [14, 0], sizes = [2, 192], strides = [1, 1]} : vector<16x192xf32> to vector<2x192xf32>
    %69 = vector.extract_strided_slice %32 {offsets = [0, 0], sizes = [2, 192], strides = [1, 1]} : vector<16x192xf32> to vector<2x192xf32>
    %70 = arith.addf %68, %69 : vector<2x192xf32>
    %71 = vector.broadcast %15 : vector<1x192xf32> to vector<2x192xf32>
    %72 = arith.addf %70, %71 : vector<2x192xf32>
    %73 = vector.extract_strided_slice %37 {offsets = [0, 0], sizes = [2, 128], strides = [1, 1]} : vector<2x192xf32> to vector<2x128xf32>
    %74 = arith.negf %73 : vector<2x128xf32>
    %75 = math.exp %74 : vector<2x128xf32>
    %cst_11 = arith.constant 1.000000e+00 : f32
    %76 = vector.broadcast %cst_11 : f32 to vector<2x128xf32>
    %77 = arith.addf %76, %75 : vector<2x128xf32>
    %78 = arith.divf %76, %77 : vector<2x128xf32>
    %79 = vector.extract_strided_slice %37 {offsets = [0, 128], sizes = [2, 64], strides = [1, 1]} : vector<2x192xf32> to vector<2x64xf32>
    %80 = vector.extract_strided_slice %78 {offsets = [0, 0], sizes = [2, 64], strides = [1, 1]} : vector<2x128xf32> to vector<2x64xf32>
    %81 = vector.broadcast %16 : vector<1x64xf32> to vector<2x64xf32>
    %82 = arith.mulf %80, %81 : vector<2x64xf32>
    %83 = arith.addf %79, %82 : vector<2x64xf32>
    %84 = math.tanh %83 : vector<2x64xf32>
    %85 = vector.extract_strided_slice %78 {offsets = [0, 64], sizes = [2, 64], strides = [1, 1]} : vector<2x128xf32> to vector<2x64xf32>
    %cst_12 = arith.constant 1.000000e+00 : f32
    %86 = vector.broadcast %cst_12 : f32 to vector<2x64xf32>
    %87 = arith.subf %86, %85 : vector<2x64xf32>
    %88 = arith.mulf %87, %84 : vector<2x64xf32>
    %cst_13 = arith.constant dense<0.000000e+00> : vector<2x192xf32>
    %89 = tpu.matmul %88, %5, %cst_13 {dimension_numbers = #tpu.dot_dimension_numbers<[1], [0], [0], [1], [0, 0, 1, 1], [], []>} : vector<2x64xf32>, vector<64x192xf32>, vector<2x192xf32> -> vector<2x192xf32>
    %90 = vector.extract_strided_slice %42 {offsets = [0, 0], sizes = [2, 128], strides = [1, 1]} : vector<2x192xf32> to vector<2x128xf32>
    %91 = vector.extract_strided_slice %89 {offsets = [0, 0], sizes = [2, 128], strides = [1, 1]} : vector<2x192xf32> to vector<2x128xf32>
    %92 = arith.addf %90, %91 : vector<2x128xf32>
    %93 = arith.negf %92 : vector<2x128xf32>
    %94 = math.exp %93 : vector<2x128xf32>
    %cst_14 = arith.constant 1.000000e+00 : f32
    %95 = vector.broadcast %cst_14 : f32 to vector<2x128xf32>
    %96 = arith.addf %95, %94 : vector<2x128xf32>
    %97 = arith.divf %95, %96 : vector<2x128xf32>
    %98 = vector.extract_strided_slice %42 {offsets = [0, 128], sizes = [2, 64], strides = [1, 1]} : vector<2x192xf32> to vector<2x64xf32>
    %99 = vector.extract_strided_slice %97 {offsets = [0, 0], sizes = [2, 64], strides = [1, 1]} : vector<2x128xf32> to vector<2x64xf32>
    %100 = vector.extract_strided_slice %89 {offsets = [0, 128], sizes = [2, 64], strides = [1, 1]} : vector<2x192xf32> to vector<2x64xf32>
    %101 = vector.broadcast %16 : vector<1x64xf32> to vector<2x64xf32>
    %102 = arith.addf %100, %101 : vector<2x64xf32>
    %103 = arith.mulf %99, %102 : vector<2x64xf32>
    %104 = arith.addf %98, %103 : vector<2x64xf32>
    %105 = math.tanh %104 : vector<2x64xf32>
    %106 = vector.extract_strided_slice %97 {offsets = [0, 64], sizes = [2, 64], strides = [1, 1]} : vector<2x128xf32> to vector<2x64xf32>
    %cst_15 = arith.constant 1.000000e+00 : f32
    %107 = vector.broadcast %cst_15 : f32 to vector<2x64xf32>
    %108 = arith.subf %107, %106 : vector<2x64xf32>
    %109 = arith.mulf %108, %105 : vector<2x64xf32>
    %110 = vector.extract_strided_slice %97 {offsets = [0, 64], sizes = [2, 64], strides = [1, 1]} : vector<2x128xf32> to vector<2x64xf32>
    %111 = arith.mulf %110, %88 : vector<2x64xf32>
    %112 = arith.addf %109, %111 : vector<2x64xf32>
    %cst_16 = arith.constant dense<0.000000e+00> : vector<2x192xf32>
    %113 = tpu.matmul %112, %5, %cst_16 {dimension_numbers = #tpu.dot_dimension_numbers<[1], [0], [0], [1], [0, 0, 1, 1], [], []>} : vector<2x64xf32>, vector<64x192xf32>, vector<2x192xf32> -> vector<2x192xf32>
    %114 = vector.extract_strided_slice %47 {offsets = [0, 0], sizes = [2, 128], strides = [1, 1]} : vector<2x192xf32> to vector<2x128xf32>
    %115 = vector.extract_strided_slice %113 {offsets = [0, 0], sizes = [2, 128], strides = [1, 1]} : vector<2x192xf32> to vector<2x128xf32>
    %116 = arith.addf %114, %115 : vector<2x128xf32>
    %117 = arith.negf %116 : vector<2x128xf32>
    %118 = math.exp %117 : vector<2x128xf32>
    %cst_17 = arith.constant 1.000000e+00 : f32
    %119 = vector.broadcast %cst_17 : f32 to vector<2x128xf32>
    %120 = arith.addf %119, %118 : vector<2x128xf32>
    %121 = arith.divf %119, %120 : vector<2x128xf32>
    %122 = vector.extract_strided_slice %47 {offsets = [0, 128], sizes = [2, 64], strides = [1, 1]} : vector<2x192xf32> to vector<2x64xf32>
    %123 = vector.extract_strided_slice %121 {offsets = [0, 0], sizes = [2, 64], strides = [1, 1]} : vector<2x128xf32> to vector<2x64xf32>
    %124 = vector.extract_strided_slice %113 {offsets = [0, 128], sizes = [2, 64], strides = [1, 1]} : vector<2x192xf32> to vector<2x64xf32>
    %125 = vector.broadcast %16 : vector<1x64xf32> to vector<2x64xf32>
    %126 = arith.addf %124, %125 : vector<2x64xf32>
    %127 = arith.mulf %123, %126 : vector<2x64xf32>
    %128 = arith.addf %122, %127 : vector<2x64xf32>
    %129 = math.tanh %128 : vector<2x64xf32>
    %130 = vector.extract_strided_slice %121 {offsets = [0, 64], sizes = [2, 64], strides = [1, 1]} : vector<2x128xf32> to vector<2x64xf32>
    %cst_18 = arith.constant 1.000000e+00 : f32
    %131 = vector.broadcast %cst_18 : f32 to vector<2x64xf32>
    %132 = arith.subf %131, %130 : vector<2x64xf32>
    %133 = arith.mulf %132, %129 : vector<2x64xf32>
    %134 = vector.extract_strided_slice %121 {offsets = [0, 64], sizes = [2, 64], strides = [1, 1]} : vector<2x128xf32> to vector<2x64xf32>
    %135 = arith.mulf %134, %112 : vector<2x64xf32>
    %136 = arith.addf %133, %135 : vector<2x64xf32>
    %cst_19 = arith.constant dense<0.000000e+00> : vector<2x192xf32>
    %137 = tpu.matmul %136, %5, %cst_19 {dimension_numbers = #tpu.dot_dimension_numbers<[1], [0], [0], [1], [0, 0, 1, 1], [], []>} : vector<2x64xf32>, vector<64x192xf32>, vector<2x192xf32> -> vector<2x192xf32>
    %138 = vector.extract_strided_slice %52 {offsets = [0, 0], sizes = [2, 128], strides = [1, 1]} : vector<2x192xf32> to vector<2x128xf32>
    %139 = vector.extract_strided_slice %137 {offsets = [0, 0], sizes = [2, 128], strides = [1, 1]} : vector<2x192xf32> to vector<2x128xf32>
    %140 = arith.addf %138, %139 : vector<2x128xf32>
    %141 = arith.negf %140 : vector<2x128xf32>
    %142 = math.exp %141 : vector<2x128xf32>
    %cst_20 = arith.constant 1.000000e+00 : f32
    %143 = vector.broadcast %cst_20 : f32 to vector<2x128xf32>
    %144 = arith.addf %143, %142 : vector<2x128xf32>
    %145 = arith.divf %143, %144 : vector<2x128xf32>
    %146 = vector.extract_strided_slice %52 {offsets = [0, 128], sizes = [2, 64], strides = [1, 1]} : vector<2x192xf32> to vector<2x64xf32>
    %147 = vector.extract_strided_slice %145 {offsets = [0, 0], sizes = [2, 64], strides = [1, 1]} : vector<2x128xf32> to vector<2x64xf32>
    %148 = vector.extract_strided_slice %137 {offsets = [0, 128], sizes = [2, 64], strides = [1, 1]} : vector<2x192xf32> to vector<2x64xf32>
    %149 = vector.broadcast %16 : vector<1x64xf32> to vector<2x64xf32>
    %150 = arith.addf %148, %149 : vector<2x64xf32>
    %151 = arith.mulf %147, %150 : vector<2x64xf32>
    %152 = arith.addf %146, %151 : vector<2x64xf32>
    %153 = math.tanh %152 : vector<2x64xf32>
    %154 = vector.extract_strided_slice %145 {offsets = [0, 64], sizes = [2, 64], strides = [1, 1]} : vector<2x128xf32> to vector<2x64xf32>
    %cst_21 = arith.constant 1.000000e+00 : f32
    %155 = vector.broadcast %cst_21 : f32 to vector<2x64xf32>
    %156 = arith.subf %155, %154 : vector<2x64xf32>
    %157 = arith.mulf %156, %153 : vector<2x64xf32>
    %158 = vector.extract_strided_slice %145 {offsets = [0, 64], sizes = [2, 64], strides = [1, 1]} : vector<2x128xf32> to vector<2x64xf32>
    %159 = arith.mulf %158, %136 : vector<2x64xf32>
    %160 = arith.addf %157, %159 : vector<2x64xf32>
    %cst_22 = arith.constant dense<0.000000e+00> : vector<2x192xf32>
    %161 = tpu.matmul %160, %5, %cst_22 {dimension_numbers = #tpu.dot_dimension_numbers<[1], [0], [0], [1], [0, 0, 1, 1], [], []>} : vector<2x64xf32>, vector<64x192xf32>, vector<2x192xf32> -> vector<2x192xf32>
    %162 = vector.extract_strided_slice %57 {offsets = [0, 0], sizes = [2, 128], strides = [1, 1]} : vector<2x192xf32> to vector<2x128xf32>
    %163 = vector.extract_strided_slice %161 {offsets = [0, 0], sizes = [2, 128], strides = [1, 1]} : vector<2x192xf32> to vector<2x128xf32>
    %164 = arith.addf %162, %163 : vector<2x128xf32>
    %165 = arith.negf %164 : vector<2x128xf32>
    %166 = math.exp %165 : vector<2x128xf32>
    %cst_23 = arith.constant 1.000000e+00 : f32
    %167 = vector.broadcast %cst_23 : f32 to vector<2x128xf32>
    %168 = arith.addf %167, %166 : vector<2x128xf32>
    %169 = arith.divf %167, %168 : vector<2x128xf32>
    %170 = vector.extract_strided_slice %57 {offsets = [0, 128], sizes = [2, 64], strides = [1, 1]} : vector<2x192xf32> to vector<2x64xf32>
    %171 = vector.extract_strided_slice %169 {offsets = [0, 0], sizes = [2, 64], strides = [1, 1]} : vector<2x128xf32> to vector<2x64xf32>
    %172 = vector.extract_strided_slice %161 {offsets = [0, 128], sizes = [2, 64], strides = [1, 1]} : vector<2x192xf32> to vector<2x64xf32>
    %173 = vector.broadcast %16 : vector<1x64xf32> to vector<2x64xf32>
    %174 = arith.addf %172, %173 : vector<2x64xf32>
    %175 = arith.mulf %171, %174 : vector<2x64xf32>
    %176 = arith.addf %170, %175 : vector<2x64xf32>
    %177 = math.tanh %176 : vector<2x64xf32>
    %178 = vector.extract_strided_slice %169 {offsets = [0, 64], sizes = [2, 64], strides = [1, 1]} : vector<2x128xf32> to vector<2x64xf32>
    %cst_24 = arith.constant 1.000000e+00 : f32
    %179 = vector.broadcast %cst_24 : f32 to vector<2x64xf32>
    %180 = arith.subf %179, %178 : vector<2x64xf32>
    %181 = arith.mulf %180, %177 : vector<2x64xf32>
    %182 = vector.extract_strided_slice %169 {offsets = [0, 64], sizes = [2, 64], strides = [1, 1]} : vector<2x128xf32> to vector<2x64xf32>
    %183 = arith.mulf %182, %160 : vector<2x64xf32>
    %184 = arith.addf %181, %183 : vector<2x64xf32>
    %cst_25 = arith.constant dense<0.000000e+00> : vector<2x192xf32>
    %185 = tpu.matmul %184, %5, %cst_25 {dimension_numbers = #tpu.dot_dimension_numbers<[1], [0], [0], [1], [0, 0, 1, 1], [], []>} : vector<2x64xf32>, vector<64x192xf32>, vector<2x192xf32> -> vector<2x192xf32>
    %186 = vector.extract_strided_slice %62 {offsets = [0, 0], sizes = [2, 128], strides = [1, 1]} : vector<2x192xf32> to vector<2x128xf32>
    %187 = vector.extract_strided_slice %185 {offsets = [0, 0], sizes = [2, 128], strides = [1, 1]} : vector<2x192xf32> to vector<2x128xf32>
    %188 = arith.addf %186, %187 : vector<2x128xf32>
    %189 = arith.negf %188 : vector<2x128xf32>
    %190 = math.exp %189 : vector<2x128xf32>
    %cst_26 = arith.constant 1.000000e+00 : f32
    %191 = vector.broadcast %cst_26 : f32 to vector<2x128xf32>
    %192 = arith.addf %191, %190 : vector<2x128xf32>
    %193 = arith.divf %191, %192 : vector<2x128xf32>
    %194 = vector.extract_strided_slice %62 {offsets = [0, 128], sizes = [2, 64], strides = [1, 1]} : vector<2x192xf32> to vector<2x64xf32>
    %195 = vector.extract_strided_slice %193 {offsets = [0, 0], sizes = [2, 64], strides = [1, 1]} : vector<2x128xf32> to vector<2x64xf32>
    %196 = vector.extract_strided_slice %185 {offsets = [0, 128], sizes = [2, 64], strides = [1, 1]} : vector<2x192xf32> to vector<2x64xf32>
    %197 = vector.broadcast %16 : vector<1x64xf32> to vector<2x64xf32>
    %198 = arith.addf %196, %197 : vector<2x64xf32>
    %199 = arith.mulf %195, %198 : vector<2x64xf32>
    %200 = arith.addf %194, %199 : vector<2x64xf32>
    %201 = math.tanh %200 : vector<2x64xf32>
    %202 = vector.extract_strided_slice %193 {offsets = [0, 64], sizes = [2, 64], strides = [1, 1]} : vector<2x128xf32> to vector<2x64xf32>
    %cst_27 = arith.constant 1.000000e+00 : f32
    %203 = vector.broadcast %cst_27 : f32 to vector<2x64xf32>
    %204 = arith.subf %203, %202 : vector<2x64xf32>
    %205 = arith.mulf %204, %201 : vector<2x64xf32>
    %206 = vector.extract_strided_slice %193 {offsets = [0, 64], sizes = [2, 64], strides = [1, 1]} : vector<2x128xf32> to vector<2x64xf32>
    %207 = arith.mulf %206, %184 : vector<2x64xf32>
    %208 = arith.addf %205, %207 : vector<2x64xf32>
    %cst_28 = arith.constant dense<0.000000e+00> : vector<2x192xf32>
    %209 = tpu.matmul %208, %5, %cst_28 {dimension_numbers = #tpu.dot_dimension_numbers<[1], [0], [0], [1], [0, 0, 1, 1], [], []>} : vector<2x64xf32>, vector<64x192xf32>, vector<2x192xf32> -> vector<2x192xf32>
    %210 = vector.extract_strided_slice %67 {offsets = [0, 0], sizes = [2, 128], strides = [1, 1]} : vector<2x192xf32> to vector<2x128xf32>
    %211 = vector.extract_strided_slice %209 {offsets = [0, 0], sizes = [2, 128], strides = [1, 1]} : vector<2x192xf32> to vector<2x128xf32>
    %212 = arith.addf %210, %211 : vector<2x128xf32>
    %213 = arith.negf %212 : vector<2x128xf32>
    %214 = math.exp %213 : vector<2x128xf32>
    %cst_29 = arith.constant 1.000000e+00 : f32
    %215 = vector.broadcast %cst_29 : f32 to vector<2x128xf32>
    %216 = arith.addf %215, %214 : vector<2x128xf32>
    %217 = arith.divf %215, %216 : vector<2x128xf32>
    %218 = vector.extract_strided_slice %67 {offsets = [0, 128], sizes = [2, 64], strides = [1, 1]} : vector<2x192xf32> to vector<2x64xf32>
    %219 = vector.extract_strided_slice %217 {offsets = [0, 0], sizes = [2, 64], strides = [1, 1]} : vector<2x128xf32> to vector<2x64xf32>
    %220 = vector.extract_strided_slice %209 {offsets = [0, 128], sizes = [2, 64], strides = [1, 1]} : vector<2x192xf32> to vector<2x64xf32>
    %221 = vector.broadcast %16 : vector<1x64xf32> to vector<2x64xf32>
    %222 = arith.addf %220, %221 : vector<2x64xf32>
    %223 = arith.mulf %219, %222 : vector<2x64xf32>
    %224 = arith.addf %218, %223 : vector<2x64xf32>
    %225 = math.tanh %224 : vector<2x64xf32>
    %226 = vector.extract_strided_slice %217 {offsets = [0, 64], sizes = [2, 64], strides = [1, 1]} : vector<2x128xf32> to vector<2x64xf32>
    %cst_30 = arith.constant 1.000000e+00 : f32
    %227 = vector.broadcast %cst_30 : f32 to vector<2x64xf32>
    %228 = arith.subf %227, %226 : vector<2x64xf32>
    %229 = arith.mulf %228, %225 : vector<2x64xf32>
    %230 = vector.extract_strided_slice %217 {offsets = [0, 64], sizes = [2, 64], strides = [1, 1]} : vector<2x128xf32> to vector<2x64xf32>
    %231 = arith.mulf %230, %208 : vector<2x64xf32>
    %232 = arith.addf %229, %231 : vector<2x64xf32>
    %cst_31 = arith.constant dense<0.000000e+00> : vector<2x192xf32>
    %233 = tpu.matmul %232, %5, %cst_31 {dimension_numbers = #tpu.dot_dimension_numbers<[1], [0], [0], [1], [0, 0, 1, 1], [], []>} : vector<2x64xf32>, vector<64x192xf32>, vector<2x192xf32> -> vector<2x192xf32>
    %234 = vector.extract_strided_slice %72 {offsets = [0, 0], sizes = [2, 128], strides = [1, 1]} : vector<2x192xf32> to vector<2x128xf32>
    %235 = vector.extract_strided_slice %233 {offsets = [0, 0], sizes = [2, 128], strides = [1, 1]} : vector<2x192xf32> to vector<2x128xf32>
    %236 = arith.addf %234, %235 : vector<2x128xf32>
    %237 = arith.negf %236 : vector<2x128xf32>
    %238 = math.exp %237 : vector<2x128xf32>
    %cst_32 = arith.constant 1.000000e+00 : f32
    %239 = vector.broadcast %cst_32 : f32 to vector<2x128xf32>
    %240 = arith.addf %239, %238 : vector<2x128xf32>
    %241 = arith.divf %239, %240 : vector<2x128xf32>
    %242 = vector.extract_strided_slice %72 {offsets = [0, 128], sizes = [2, 64], strides = [1, 1]} : vector<2x192xf32> to vector<2x64xf32>
    %243 = vector.extract_strided_slice %241 {offsets = [0, 0], sizes = [2, 64], strides = [1, 1]} : vector<2x128xf32> to vector<2x64xf32>
    %244 = vector.extract_strided_slice %233 {offsets = [0, 128], sizes = [2, 64], strides = [1, 1]} : vector<2x192xf32> to vector<2x64xf32>
    %245 = vector.broadcast %16 : vector<1x64xf32> to vector<2x64xf32>
    %246 = arith.addf %244, %245 : vector<2x64xf32>
    %247 = arith.mulf %243, %246 : vector<2x64xf32>
    %248 = arith.addf %242, %247 : vector<2x64xf32>
    %249 = math.tanh %248 : vector<2x64xf32>
    %250 = vector.extract_strided_slice %241 {offsets = [0, 64], sizes = [2, 64], strides = [1, 1]} : vector<2x128xf32> to vector<2x64xf32>
    %cst_33 = arith.constant 1.000000e+00 : f32
    %251 = vector.broadcast %cst_33 : f32 to vector<2x64xf32>
    %252 = arith.subf %251, %250 : vector<2x64xf32>
    %253 = arith.mulf %252, %249 : vector<2x64xf32>
    %254 = vector.extract_strided_slice %241 {offsets = [0, 64], sizes = [2, 64], strides = [1, 1]} : vector<2x128xf32> to vector<2x64xf32>
    %255 = arith.mulf %254, %232 : vector<2x64xf32>
    %256 = arith.addf %253, %255 : vector<2x64xf32>
    %257 = vector.extract_strided_slice %88 {offsets = [0, 0], sizes = [2, 32], strides = [1, 1]} : vector<2x64xf32> to vector<2x32xf32>
    %258 = vector.extract_strided_slice %256 {offsets = [0, 32], sizes = [2, 32], strides = [1, 1]} : vector<2x64xf32> to vector<2x32xf32>
    %cst_34 = arith.constant dense<0.000000e+00> : vector<2x384xf32>
    %259 = tpu.matmul %257, %10, %cst_34 {dimension_numbers = #tpu.dot_dimension_numbers<[1], [0], [0], [1], [0, 0, 1, 1], [], []>} : vector<2x32xf32>, vector<32x384xf32>, vector<2x384xf32> -> vector<2x384xf32>
    %cst_35 = arith.constant dense<0.000000e+00> : vector<2x384xf32>
    %260 = tpu.matmul %258, %11, %cst_35 {dimension_numbers = #tpu.dot_dimension_numbers<[1], [0], [0], [1], [0, 0, 1, 1], [], []>} : vector<2x32xf32>, vector<32x384xf32>, vector<2x384xf32> -> vector<2x384xf32>
    %261 = arith.addf %259, %260 : vector<2x384xf32>
    %262 = vector.extract_strided_slice %112 {offsets = [0, 0], sizes = [2, 32], strides = [1, 1]} : vector<2x64xf32> to vector<2x32xf32>
    %263 = vector.extract_strided_slice %232 {offsets = [0, 32], sizes = [2, 32], strides = [1, 1]} : vector<2x64xf32> to vector<2x32xf32>
    %cst_36 = arith.constant dense<0.000000e+00> : vector<2x384xf32>
    %264 = tpu.matmul %262, %10, %cst_36 {dimension_numbers = #tpu.dot_dimension_numbers<[1], [0], [0], [1], [0, 0, 1, 1], [], []>} : vector<2x32xf32>, vector<32x384xf32>, vector<2x384xf32> -> vector<2x384xf32>
    %cst_37 = arith.constant dense<0.000000e+00> : vector<2x384xf32>
    %265 = tpu.matmul %263, %11, %cst_37 {dimension_numbers = #tpu.dot_dimension_numbers<[1], [0], [0], [1], [0, 0, 1, 1], [], []>} : vector<2x32xf32>, vector<32x384xf32>, vector<2x384xf32> -> vector<2x384xf32>
    %266 = arith.addf %264, %265 : vector<2x384xf32>
    %267 = vector.extract_strided_slice %136 {offsets = [0, 0], sizes = [2, 32], strides = [1, 1]} : vector<2x64xf32> to vector<2x32xf32>
    %268 = vector.extract_strided_slice %208 {offsets = [0, 32], sizes = [2, 32], strides = [1, 1]} : vector<2x64xf32> to vector<2x32xf32>
    %cst_38 = arith.constant dense<0.000000e+00> : vector<2x384xf32>
    %269 = tpu.matmul %267, %10, %cst_38 {dimension_numbers = #tpu.dot_dimension_numbers<[1], [0], [0], [1], [0, 0, 1, 1], [], []>} : vector<2x32xf32>, vector<32x384xf32>, vector<2x384xf32> -> vector<2x384xf32>
    %cst_39 = arith.constant dense<0.000000e+00> : vector<2x384xf32>
    %270 = tpu.matmul %268, %11, %cst_39 {dimension_numbers = #tpu.dot_dimension_numbers<[1], [0], [0], [1], [0, 0, 1, 1], [], []>} : vector<2x32xf32>, vector<32x384xf32>, vector<2x384xf32> -> vector<2x384xf32>
    %271 = arith.addf %269, %270 : vector<2x384xf32>
    %272 = vector.extract_strided_slice %160 {offsets = [0, 0], sizes = [2, 32], strides = [1, 1]} : vector<2x64xf32> to vector<2x32xf32>
    %273 = vector.extract_strided_slice %184 {offsets = [0, 32], sizes = [2, 32], strides = [1, 1]} : vector<2x64xf32> to vector<2x32xf32>
    %cst_40 = arith.constant dense<0.000000e+00> : vector<2x384xf32>
    %274 = tpu.matmul %272, %10, %cst_40 {dimension_numbers = #tpu.dot_dimension_numbers<[1], [0], [0], [1], [0, 0, 1, 1], [], []>} : vector<2x32xf32>, vector<32x384xf32>, vector<2x384xf32> -> vector<2x384xf32>
    %cst_41 = arith.constant dense<0.000000e+00> : vector<2x384xf32>
    %275 = tpu.matmul %273, %11, %cst_41 {dimension_numbers = #tpu.dot_dimension_numbers<[1], [0], [0], [1], [0, 0, 1, 1], [], []>} : vector<2x32xf32>, vector<32x384xf32>, vector<2x384xf32> -> vector<2x384xf32>
    %276 = arith.addf %274, %275 : vector<2x384xf32>
    %277 = vector.extract_strided_slice %184 {offsets = [0, 0], sizes = [2, 32], strides = [1, 1]} : vector<2x64xf32> to vector<2x32xf32>
    %278 = vector.extract_strided_slice %160 {offsets = [0, 32], sizes = [2, 32], strides = [1, 1]} : vector<2x64xf32> to vector<2x32xf32>
    %cst_42 = arith.constant dense<0.000000e+00> : vector<2x384xf32>
    %279 = tpu.matmul %277, %10, %cst_42 {dimension_numbers = #tpu.dot_dimension_numbers<[1], [0], [0], [1], [0, 0, 1, 1], [], []>} : vector<2x32xf32>, vector<32x384xf32>, vector<2x384xf32> -> vector<2x384xf32>
    %cst_43 = arith.constant dense<0.000000e+00> : vector<2x384xf32>
    %280 = tpu.matmul %278, %11, %cst_43 {dimension_numbers = #tpu.dot_dimension_numbers<[1], [0], [0], [1], [0, 0, 1, 1], [], []>} : vector<2x32xf32>, vector<32x384xf32>, vector<2x384xf32> -> vector<2x384xf32>
    %281 = arith.addf %279, %280 : vector<2x384xf32>
    %282 = vector.extract_strided_slice %208 {offsets = [0, 0], sizes = [2, 32], strides = [1, 1]} : vector<2x64xf32> to vector<2x32xf32>
    %283 = vector.extract_strided_slice %136 {offsets = [0, 32], sizes = [2, 32], strides = [1, 1]} : vector<2x64xf32> to vector<2x32xf32>
    %cst_44 = arith.constant dense<0.000000e+00> : vector<2x384xf32>
    %284 = tpu.matmul %282, %10, %cst_44 {dimension_numbers = #tpu.dot_dimension_numbers<[1], [0], [0], [1], [0, 0, 1, 1], [], []>} : vector<2x32xf32>, vector<32x384xf32>, vector<2x384xf32> -> vector<2x384xf32>
    %cst_45 = arith.constant dense<0.000000e+00> : vector<2x384xf32>
    %285 = tpu.matmul %283, %11, %cst_45 {dimension_numbers = #tpu.dot_dimension_numbers<[1], [0], [0], [1], [0, 0, 1, 1], [], []>} : vector<2x32xf32>, vector<32x384xf32>, vector<2x384xf32> -> vector<2x384xf32>
    %286 = arith.addf %284, %285 : vector<2x384xf32>
    %287 = vector.extract_strided_slice %232 {offsets = [0, 0], sizes = [2, 32], strides = [1, 1]} : vector<2x64xf32> to vector<2x32xf32>
    %288 = vector.extract_strided_slice %112 {offsets = [0, 32], sizes = [2, 32], strides = [1, 1]} : vector<2x64xf32> to vector<2x32xf32>
    %cst_46 = arith.constant dense<0.000000e+00> : vector<2x384xf32>
    %289 = tpu.matmul %287, %10, %cst_46 {dimension_numbers = #tpu.dot_dimension_numbers<[1], [0], [0], [1], [0, 0, 1, 1], [], []>} : vector<2x32xf32>, vector<32x384xf32>, vector<2x384xf32> -> vector<2x384xf32>
    %cst_47 = arith.constant dense<0.000000e+00> : vector<2x384xf32>
    %290 = tpu.matmul %288, %11, %cst_47 {dimension_numbers = #tpu.dot_dimension_numbers<[1], [0], [0], [1], [0, 0, 1, 1], [], []>} : vector<2x32xf32>, vector<32x384xf32>, vector<2x384xf32> -> vector<2x384xf32>
    %291 = arith.addf %289, %290 : vector<2x384xf32>
    %292 = vector.extract_strided_slice %256 {offsets = [0, 0], sizes = [2, 32], strides = [1, 1]} : vector<2x64xf32> to vector<2x32xf32>
    %293 = vector.extract_strided_slice %88 {offsets = [0, 32], sizes = [2, 32], strides = [1, 1]} : vector<2x64xf32> to vector<2x32xf32>
    %cst_48 = arith.constant dense<0.000000e+00> : vector<2x384xf32>
    %294 = tpu.matmul %292, %10, %cst_48 {dimension_numbers = #tpu.dot_dimension_numbers<[1], [0], [0], [1], [0, 0, 1, 1], [], []>} : vector<2x32xf32>, vector<32x384xf32>, vector<2x384xf32> -> vector<2x384xf32>
    %cst_49 = arith.constant dense<0.000000e+00> : vector<2x384xf32>
    %295 = tpu.matmul %293, %11, %cst_49 {dimension_numbers = #tpu.dot_dimension_numbers<[1], [0], [0], [1], [0, 0, 1, 1], [], []>} : vector<2x32xf32>, vector<32x384xf32>, vector<2x384xf32> -> vector<2x384xf32>
    %296 = arith.addf %294, %295 : vector<2x384xf32>
    %297 = vector.extract_strided_slice %261 {offsets = [0, 0], sizes = [2, 192], strides = [1, 1]} : vector<2x384xf32> to vector<2x192xf32>
    %298 = vector.extract_strided_slice %296 {offsets = [0, 192], sizes = [2, 192], strides = [1, 1]} : vector<2x384xf32> to vector<2x192xf32>
    %299 = arith.addf %297, %298 : vector<2x192xf32>
    %300 = vector.broadcast %17 : vector<1x192xf32> to vector<2x192xf32>
    %301 = arith.addf %299, %300 : vector<2x192xf32>
    %302 = vector.extract_strided_slice %266 {offsets = [0, 0], sizes = [2, 192], strides = [1, 1]} : vector<2x384xf32> to vector<2x192xf32>
    %303 = vector.extract_strided_slice %291 {offsets = [0, 192], sizes = [2, 192], strides = [1, 1]} : vector<2x384xf32> to vector<2x192xf32>
    %304 = arith.addf %302, %303 : vector<2x192xf32>
    %305 = vector.broadcast %17 : vector<1x192xf32> to vector<2x192xf32>
    %306 = arith.addf %304, %305 : vector<2x192xf32>
    %307 = vector.extract_strided_slice %271 {offsets = [0, 0], sizes = [2, 192], strides = [1, 1]} : vector<2x384xf32> to vector<2x192xf32>
    %308 = vector.extract_strided_slice %286 {offsets = [0, 192], sizes = [2, 192], strides = [1, 1]} : vector<2x384xf32> to vector<2x192xf32>
    %309 = arith.addf %307, %308 : vector<2x192xf32>
    %310 = vector.broadcast %17 : vector<1x192xf32> to vector<2x192xf32>
    %311 = arith.addf %309, %310 : vector<2x192xf32>
    %312 = vector.extract_strided_slice %276 {offsets = [0, 0], sizes = [2, 192], strides = [1, 1]} : vector<2x384xf32> to vector<2x192xf32>
    %313 = vector.extract_strided_slice %281 {offsets = [0, 192], sizes = [2, 192], strides = [1, 1]} : vector<2x384xf32> to vector<2x192xf32>
    %314 = arith.addf %312, %313 : vector<2x192xf32>
    %315 = vector.broadcast %17 : vector<1x192xf32> to vector<2x192xf32>
    %316 = arith.addf %314, %315 : vector<2x192xf32>
    %317 = vector.extract_strided_slice %281 {offsets = [0, 0], sizes = [2, 192], strides = [1, 1]} : vector<2x384xf32> to vector<2x192xf32>
    %318 = vector.extract_strided_slice %276 {offsets = [0, 192], sizes = [2, 192], strides = [1, 1]} : vector<2x384xf32> to vector<2x192xf32>
    %319 = arith.addf %317, %318 : vector<2x192xf32>
    %320 = vector.broadcast %17 : vector<1x192xf32> to vector<2x192xf32>
    %321 = arith.addf %319, %320 : vector<2x192xf32>
    %322 = vector.extract_strided_slice %286 {offsets = [0, 0], sizes = [2, 192], strides = [1, 1]} : vector<2x384xf32> to vector<2x192xf32>
    %323 = vector.extract_strided_slice %271 {offsets = [0, 192], sizes = [2, 192], strides = [1, 1]} : vector<2x384xf32> to vector<2x192xf32>
    %324 = arith.addf %322, %323 : vector<2x192xf32>
    %325 = vector.broadcast %17 : vector<1x192xf32> to vector<2x192xf32>
    %326 = arith.addf %324, %325 : vector<2x192xf32>
    %327 = vector.extract_strided_slice %291 {offsets = [0, 0], sizes = [2, 192], strides = [1, 1]} : vector<2x384xf32> to vector<2x192xf32>
    %328 = vector.extract_strided_slice %266 {offsets = [0, 192], sizes = [2, 192], strides = [1, 1]} : vector<2x384xf32> to vector<2x192xf32>
    %329 = arith.addf %327, %328 : vector<2x192xf32>
    %330 = vector.broadcast %17 : vector<1x192xf32> to vector<2x192xf32>
    %331 = arith.addf %329, %330 : vector<2x192xf32>
    %332 = vector.extract_strided_slice %296 {offsets = [0, 0], sizes = [2, 192], strides = [1, 1]} : vector<2x384xf32> to vector<2x192xf32>
    %333 = vector.extract_strided_slice %261 {offsets = [0, 192], sizes = [2, 192], strides = [1, 1]} : vector<2x384xf32> to vector<2x192xf32>
    %334 = arith.addf %332, %333 : vector<2x192xf32>
    %335 = vector.broadcast %17 : vector<1x192xf32> to vector<2x192xf32>
    %336 = arith.addf %334, %335 : vector<2x192xf32>
    %337 = vector.extract_strided_slice %301 {offsets = [0, 0], sizes = [2, 128], strides = [1, 1]} : vector<2x192xf32> to vector<2x128xf32>
    %338 = arith.negf %337 : vector<2x128xf32>
    %339 = math.exp %338 : vector<2x128xf32>
    %cst_50 = arith.constant 1.000000e+00 : f32
    %340 = vector.broadcast %cst_50 : f32 to vector<2x128xf32>
    %341 = arith.addf %340, %339 : vector<2x128xf32>
    %342 = arith.divf %340, %341 : vector<2x128xf32>
    %343 = vector.extract_strided_slice %301 {offsets = [0, 128], sizes = [2, 64], strides = [1, 1]} : vector<2x192xf32> to vector<2x64xf32>
    %344 = vector.extract_strided_slice %342 {offsets = [0, 0], sizes = [2, 64], strides = [1, 1]} : vector<2x128xf32> to vector<2x64xf32>
    %345 = vector.broadcast %18 : vector<1x64xf32> to vector<2x64xf32>
    %346 = arith.mulf %344, %345 : vector<2x64xf32>
    %347 = arith.addf %343, %346 : vector<2x64xf32>
    %348 = math.tanh %347 : vector<2x64xf32>
    %349 = vector.extract_strided_slice %342 {offsets = [0, 64], sizes = [2, 64], strides = [1, 1]} : vector<2x128xf32> to vector<2x64xf32>
    %cst_51 = arith.constant 1.000000e+00 : f32
    %350 = vector.broadcast %cst_51 : f32 to vector<2x64xf32>
    %351 = arith.subf %350, %349 : vector<2x64xf32>
    %352 = arith.mulf %351, %348 : vector<2x64xf32>
    %cst_52 = arith.constant dense<0.000000e+00> : vector<2x192xf32>
    %353 = tpu.matmul %352, %6, %cst_52 {dimension_numbers = #tpu.dot_dimension_numbers<[1], [0], [0], [1], [0, 0, 1, 1], [], []>} : vector<2x64xf32>, vector<64x192xf32>, vector<2x192xf32> -> vector<2x192xf32>
    %354 = vector.extract_strided_slice %306 {offsets = [0, 0], sizes = [2, 128], strides = [1, 1]} : vector<2x192xf32> to vector<2x128xf32>
    %355 = vector.extract_strided_slice %353 {offsets = [0, 0], sizes = [2, 128], strides = [1, 1]} : vector<2x192xf32> to vector<2x128xf32>
    %356 = arith.addf %354, %355 : vector<2x128xf32>
    %357 = arith.negf %356 : vector<2x128xf32>
    %358 = math.exp %357 : vector<2x128xf32>
    %cst_53 = arith.constant 1.000000e+00 : f32
    %359 = vector.broadcast %cst_53 : f32 to vector<2x128xf32>
    %360 = arith.addf %359, %358 : vector<2x128xf32>
    %361 = arith.divf %359, %360 : vector<2x128xf32>
    %362 = vector.extract_strided_slice %306 {offsets = [0, 128], sizes = [2, 64], strides = [1, 1]} : vector<2x192xf32> to vector<2x64xf32>
    %363 = vector.extract_strided_slice %361 {offsets = [0, 0], sizes = [2, 64], strides = [1, 1]} : vector<2x128xf32> to vector<2x64xf32>
    %364 = vector.extract_strided_slice %353 {offsets = [0, 128], sizes = [2, 64], strides = [1, 1]} : vector<2x192xf32> to vector<2x64xf32>
    %365 = vector.broadcast %18 : vector<1x64xf32> to vector<2x64xf32>
    %366 = arith.addf %364, %365 : vector<2x64xf32>
    %367 = arith.mulf %363, %366 : vector<2x64xf32>
    %368 = arith.addf %362, %367 : vector<2x64xf32>
    %369 = math.tanh %368 : vector<2x64xf32>
    %370 = vector.extract_strided_slice %361 {offsets = [0, 64], sizes = [2, 64], strides = [1, 1]} : vector<2x128xf32> to vector<2x64xf32>
    %cst_54 = arith.constant 1.000000e+00 : f32
    %371 = vector.broadcast %cst_54 : f32 to vector<2x64xf32>
    %372 = arith.subf %371, %370 : vector<2x64xf32>
    %373 = arith.mulf %372, %369 : vector<2x64xf32>
    %374 = vector.extract_strided_slice %361 {offsets = [0, 64], sizes = [2, 64], strides = [1, 1]} : vector<2x128xf32> to vector<2x64xf32>
    %375 = arith.mulf %374, %352 : vector<2x64xf32>
    %376 = arith.addf %373, %375 : vector<2x64xf32>
    %cst_55 = arith.constant dense<0.000000e+00> : vector<2x192xf32>
    %377 = tpu.matmul %376, %6, %cst_55 {dimension_numbers = #tpu.dot_dimension_numbers<[1], [0], [0], [1], [0, 0, 1, 1], [], []>} : vector<2x64xf32>, vector<64x192xf32>, vector<2x192xf32> -> vector<2x192xf32>
    %378 = vector.extract_strided_slice %311 {offsets = [0, 0], sizes = [2, 128], strides = [1, 1]} : vector<2x192xf32> to vector<2x128xf32>
    %379 = vector.extract_strided_slice %377 {offsets = [0, 0], sizes = [2, 128], strides = [1, 1]} : vector<2x192xf32> to vector<2x128xf32>
    %380 = arith.addf %378, %379 : vector<2x128xf32>
    %381 = arith.negf %380 : vector<2x128xf32>
    %382 = math.exp %381 : vector<2x128xf32>
    %cst_56 = arith.constant 1.000000e+00 : f32
    %383 = vector.broadcast %cst_56 : f32 to vector<2x128xf32>
    %384 = arith.addf %383, %382 : vector<2x128xf32>
    %385 = arith.divf %383, %384 : vector<2x128xf32>
    %386 = vector.extract_strided_slice %311 {offsets = [0, 128], sizes = [2, 64], strides = [1, 1]} : vector<2x192xf32> to vector<2x64xf32>
    %387 = vector.extract_strided_slice %385 {offsets = [0, 0], sizes = [2, 64], strides = [1, 1]} : vector<2x128xf32> to vector<2x64xf32>
    %388 = vector.extract_strided_slice %377 {offsets = [0, 128], sizes = [2, 64], strides = [1, 1]} : vector<2x192xf32> to vector<2x64xf32>
    %389 = vector.broadcast %18 : vector<1x64xf32> to vector<2x64xf32>
    %390 = arith.addf %388, %389 : vector<2x64xf32>
    %391 = arith.mulf %387, %390 : vector<2x64xf32>
    %392 = arith.addf %386, %391 : vector<2x64xf32>
    %393 = math.tanh %392 : vector<2x64xf32>
    %394 = vector.extract_strided_slice %385 {offsets = [0, 64], sizes = [2, 64], strides = [1, 1]} : vector<2x128xf32> to vector<2x64xf32>
    %cst_57 = arith.constant 1.000000e+00 : f32
    %395 = vector.broadcast %cst_57 : f32 to vector<2x64xf32>
    %396 = arith.subf %395, %394 : vector<2x64xf32>
    %397 = arith.mulf %396, %393 : vector<2x64xf32>
    %398 = vector.extract_strided_slice %385 {offsets = [0, 64], sizes = [2, 64], strides = [1, 1]} : vector<2x128xf32> to vector<2x64xf32>
    %399 = arith.mulf %398, %376 : vector<2x64xf32>
    %400 = arith.addf %397, %399 : vector<2x64xf32>
    %cst_58 = arith.constant dense<0.000000e+00> : vector<2x192xf32>
    %401 = tpu.matmul %400, %6, %cst_58 {dimension_numbers = #tpu.dot_dimension_numbers<[1], [0], [0], [1], [0, 0, 1, 1], [], []>} : vector<2x64xf32>, vector<64x192xf32>, vector<2x192xf32> -> vector<2x192xf32>
    %402 = vector.extract_strided_slice %316 {offsets = [0, 0], sizes = [2, 128], strides = [1, 1]} : vector<2x192xf32> to vector<2x128xf32>
    %403 = vector.extract_strided_slice %401 {offsets = [0, 0], sizes = [2, 128], strides = [1, 1]} : vector<2x192xf32> to vector<2x128xf32>
    %404 = arith.addf %402, %403 : vector<2x128xf32>
    %405 = arith.negf %404 : vector<2x128xf32>
    %406 = math.exp %405 : vector<2x128xf32>
    %cst_59 = arith.constant 1.000000e+00 : f32
    %407 = vector.broadcast %cst_59 : f32 to vector<2x128xf32>
    %408 = arith.addf %407, %406 : vector<2x128xf32>
    %409 = arith.divf %407, %408 : vector<2x128xf32>
    %410 = vector.extract_strided_slice %316 {offsets = [0, 128], sizes = [2, 64], strides = [1, 1]} : vector<2x192xf32> to vector<2x64xf32>
    %411 = vector.extract_strided_slice %409 {offsets = [0, 0], sizes = [2, 64], strides = [1, 1]} : vector<2x128xf32> to vector<2x64xf32>
    %412 = vector.extract_strided_slice %401 {offsets = [0, 128], sizes = [2, 64], strides = [1, 1]} : vector<2x192xf32> to vector<2x64xf32>
    %413 = vector.broadcast %18 : vector<1x64xf32> to vector<2x64xf32>
    %414 = arith.addf %412, %413 : vector<2x64xf32>
    %415 = arith.mulf %411, %414 : vector<2x64xf32>
    %416 = arith.addf %410, %415 : vector<2x64xf32>
    %417 = math.tanh %416 : vector<2x64xf32>
    %418 = vector.extract_strided_slice %409 {offsets = [0, 64], sizes = [2, 64], strides = [1, 1]} : vector<2x128xf32> to vector<2x64xf32>
    %cst_60 = arith.constant 1.000000e+00 : f32
    %419 = vector.broadcast %cst_60 : f32 to vector<2x64xf32>
    %420 = arith.subf %419, %418 : vector<2x64xf32>
    %421 = arith.mulf %420, %417 : vector<2x64xf32>
    %422 = vector.extract_strided_slice %409 {offsets = [0, 64], sizes = [2, 64], strides = [1, 1]} : vector<2x128xf32> to vector<2x64xf32>
    %423 = arith.mulf %422, %400 : vector<2x64xf32>
    %424 = arith.addf %421, %423 : vector<2x64xf32>
    %cst_61 = arith.constant dense<0.000000e+00> : vector<2x192xf32>
    %425 = tpu.matmul %424, %6, %cst_61 {dimension_numbers = #tpu.dot_dimension_numbers<[1], [0], [0], [1], [0, 0, 1, 1], [], []>} : vector<2x64xf32>, vector<64x192xf32>, vector<2x192xf32> -> vector<2x192xf32>
    %426 = vector.extract_strided_slice %321 {offsets = [0, 0], sizes = [2, 128], strides = [1, 1]} : vector<2x192xf32> to vector<2x128xf32>
    %427 = vector.extract_strided_slice %425 {offsets = [0, 0], sizes = [2, 128], strides = [1, 1]} : vector<2x192xf32> to vector<2x128xf32>
    %428 = arith.addf %426, %427 : vector<2x128xf32>
    %429 = arith.negf %428 : vector<2x128xf32>
    %430 = math.exp %429 : vector<2x128xf32>
    %cst_62 = arith.constant 1.000000e+00 : f32
    %431 = vector.broadcast %cst_62 : f32 to vector<2x128xf32>
    %432 = arith.addf %431, %430 : vector<2x128xf32>
    %433 = arith.divf %431, %432 : vector<2x128xf32>
    %434 = vector.extract_strided_slice %321 {offsets = [0, 128], sizes = [2, 64], strides = [1, 1]} : vector<2x192xf32> to vector<2x64xf32>
    %435 = vector.extract_strided_slice %433 {offsets = [0, 0], sizes = [2, 64], strides = [1, 1]} : vector<2x128xf32> to vector<2x64xf32>
    %436 = vector.extract_strided_slice %425 {offsets = [0, 128], sizes = [2, 64], strides = [1, 1]} : vector<2x192xf32> to vector<2x64xf32>
    %437 = vector.broadcast %18 : vector<1x64xf32> to vector<2x64xf32>
    %438 = arith.addf %436, %437 : vector<2x64xf32>
    %439 = arith.mulf %435, %438 : vector<2x64xf32>
    %440 = arith.addf %434, %439 : vector<2x64xf32>
    %441 = math.tanh %440 : vector<2x64xf32>
    %442 = vector.extract_strided_slice %433 {offsets = [0, 64], sizes = [2, 64], strides = [1, 1]} : vector<2x128xf32> to vector<2x64xf32>
    %cst_63 = arith.constant 1.000000e+00 : f32
    %443 = vector.broadcast %cst_63 : f32 to vector<2x64xf32>
    %444 = arith.subf %443, %442 : vector<2x64xf32>
    %445 = arith.mulf %444, %441 : vector<2x64xf32>
    %446 = vector.extract_strided_slice %433 {offsets = [0, 64], sizes = [2, 64], strides = [1, 1]} : vector<2x128xf32> to vector<2x64xf32>
    %447 = arith.mulf %446, %424 : vector<2x64xf32>
    %448 = arith.addf %445, %447 : vector<2x64xf32>
    %cst_64 = arith.constant dense<0.000000e+00> : vector<2x192xf32>
    %449 = tpu.matmul %448, %6, %cst_64 {dimension_numbers = #tpu.dot_dimension_numbers<[1], [0], [0], [1], [0, 0, 1, 1], [], []>} : vector<2x64xf32>, vector<64x192xf32>, vector<2x192xf32> -> vector<2x192xf32>
    %450 = vector.extract_strided_slice %326 {offsets = [0, 0], sizes = [2, 128], strides = [1, 1]} : vector<2x192xf32> to vector<2x128xf32>
    %451 = vector.extract_strided_slice %449 {offsets = [0, 0], sizes = [2, 128], strides = [1, 1]} : vector<2x192xf32> to vector<2x128xf32>
    %452 = arith.addf %450, %451 : vector<2x128xf32>
    %453 = arith.negf %452 : vector<2x128xf32>
    %454 = math.exp %453 : vector<2x128xf32>
    %cst_65 = arith.constant 1.000000e+00 : f32
    %455 = vector.broadcast %cst_65 : f32 to vector<2x128xf32>
    %456 = arith.addf %455, %454 : vector<2x128xf32>
    %457 = arith.divf %455, %456 : vector<2x128xf32>
    %458 = vector.extract_strided_slice %326 {offsets = [0, 128], sizes = [2, 64], strides = [1, 1]} : vector<2x192xf32> to vector<2x64xf32>
    %459 = vector.extract_strided_slice %457 {offsets = [0, 0], sizes = [2, 64], strides = [1, 1]} : vector<2x128xf32> to vector<2x64xf32>
    %460 = vector.extract_strided_slice %449 {offsets = [0, 128], sizes = [2, 64], strides = [1, 1]} : vector<2x192xf32> to vector<2x64xf32>
    %461 = vector.broadcast %18 : vector<1x64xf32> to vector<2x64xf32>
    %462 = arith.addf %460, %461 : vector<2x64xf32>
    %463 = arith.mulf %459, %462 : vector<2x64xf32>
    %464 = arith.addf %458, %463 : vector<2x64xf32>
    %465 = math.tanh %464 : vector<2x64xf32>
    %466 = vector.extract_strided_slice %457 {offsets = [0, 64], sizes = [2, 64], strides = [1, 1]} : vector<2x128xf32> to vector<2x64xf32>
    %cst_66 = arith.constant 1.000000e+00 : f32
    %467 = vector.broadcast %cst_66 : f32 to vector<2x64xf32>
    %468 = arith.subf %467, %466 : vector<2x64xf32>
    %469 = arith.mulf %468, %465 : vector<2x64xf32>
    %470 = vector.extract_strided_slice %457 {offsets = [0, 64], sizes = [2, 64], strides = [1, 1]} : vector<2x128xf32> to vector<2x64xf32>
    %471 = arith.mulf %470, %448 : vector<2x64xf32>
    %472 = arith.addf %469, %471 : vector<2x64xf32>
    %cst_67 = arith.constant dense<0.000000e+00> : vector<2x192xf32>
    %473 = tpu.matmul %472, %6, %cst_67 {dimension_numbers = #tpu.dot_dimension_numbers<[1], [0], [0], [1], [0, 0, 1, 1], [], []>} : vector<2x64xf32>, vector<64x192xf32>, vector<2x192xf32> -> vector<2x192xf32>
    %474 = vector.extract_strided_slice %331 {offsets = [0, 0], sizes = [2, 128], strides = [1, 1]} : vector<2x192xf32> to vector<2x128xf32>
    %475 = vector.extract_strided_slice %473 {offsets = [0, 0], sizes = [2, 128], strides = [1, 1]} : vector<2x192xf32> to vector<2x128xf32>
    %476 = arith.addf %474, %475 : vector<2x128xf32>
    %477 = arith.negf %476 : vector<2x128xf32>
    %478 = math.exp %477 : vector<2x128xf32>
    %cst_68 = arith.constant 1.000000e+00 : f32
    %479 = vector.broadcast %cst_68 : f32 to vector<2x128xf32>
    %480 = arith.addf %479, %478 : vector<2x128xf32>
    %481 = arith.divf %479, %480 : vector<2x128xf32>
    %482 = vector.extract_strided_slice %331 {offsets = [0, 128], sizes = [2, 64], strides = [1, 1]} : vector<2x192xf32> to vector<2x64xf32>
    %483 = vector.extract_strided_slice %481 {offsets = [0, 0], sizes = [2, 64], strides = [1, 1]} : vector<2x128xf32> to vector<2x64xf32>
    %484 = vector.extract_strided_slice %473 {offsets = [0, 128], sizes = [2, 64], strides = [1, 1]} : vector<2x192xf32> to vector<2x64xf32>
    %485 = vector.broadcast %18 : vector<1x64xf32> to vector<2x64xf32>
    %486 = arith.addf %484, %485 : vector<2x64xf32>
    %487 = arith.mulf %483, %486 : vector<2x64xf32>
    %488 = arith.addf %482, %487 : vector<2x64xf32>
    %489 = math.tanh %488 : vector<2x64xf32>
    %490 = vector.extract_strided_slice %481 {offsets = [0, 64], sizes = [2, 64], strides = [1, 1]} : vector<2x128xf32> to vector<2x64xf32>
    %cst_69 = arith.constant 1.000000e+00 : f32
    %491 = vector.broadcast %cst_69 : f32 to vector<2x64xf32>
    %492 = arith.subf %491, %490 : vector<2x64xf32>
    %493 = arith.mulf %492, %489 : vector<2x64xf32>
    %494 = vector.extract_strided_slice %481 {offsets = [0, 64], sizes = [2, 64], strides = [1, 1]} : vector<2x128xf32> to vector<2x64xf32>
    %495 = arith.mulf %494, %472 : vector<2x64xf32>
    %496 = arith.addf %493, %495 : vector<2x64xf32>
    %cst_70 = arith.constant dense<0.000000e+00> : vector<2x192xf32>
    %497 = tpu.matmul %496, %6, %cst_70 {dimension_numbers = #tpu.dot_dimension_numbers<[1], [0], [0], [1], [0, 0, 1, 1], [], []>} : vector<2x64xf32>, vector<64x192xf32>, vector<2x192xf32> -> vector<2x192xf32>
    %498 = vector.extract_strided_slice %336 {offsets = [0, 0], sizes = [2, 128], strides = [1, 1]} : vector<2x192xf32> to vector<2x128xf32>
    %499 = vector.extract_strided_slice %497 {offsets = [0, 0], sizes = [2, 128], strides = [1, 1]} : vector<2x192xf32> to vector<2x128xf32>
    %500 = arith.addf %498, %499 : vector<2x128xf32>
    %501 = arith.negf %500 : vector<2x128xf32>
    %502 = math.exp %501 : vector<2x128xf32>
    %cst_71 = arith.constant 1.000000e+00 : f32
    %503 = vector.broadcast %cst_71 : f32 to vector<2x128xf32>
    %504 = arith.addf %503, %502 : vector<2x128xf32>
    %505 = arith.divf %503, %504 : vector<2x128xf32>
    %506 = vector.extract_strided_slice %336 {offsets = [0, 128], sizes = [2, 64], strides = [1, 1]} : vector<2x192xf32> to vector<2x64xf32>
    %507 = vector.extract_strided_slice %505 {offsets = [0, 0], sizes = [2, 64], strides = [1, 1]} : vector<2x128xf32> to vector<2x64xf32>
    %508 = vector.extract_strided_slice %497 {offsets = [0, 128], sizes = [2, 64], strides = [1, 1]} : vector<2x192xf32> to vector<2x64xf32>
    %509 = vector.broadcast %18 : vector<1x64xf32> to vector<2x64xf32>
    %510 = arith.addf %508, %509 : vector<2x64xf32>
    %511 = arith.mulf %507, %510 : vector<2x64xf32>
    %512 = arith.addf %506, %511 : vector<2x64xf32>
    %513 = math.tanh %512 : vector<2x64xf32>
    %514 = vector.extract_strided_slice %505 {offsets = [0, 64], sizes = [2, 64], strides = [1, 1]} : vector<2x128xf32> to vector<2x64xf32>
    %cst_72 = arith.constant 1.000000e+00 : f32
    %515 = vector.broadcast %cst_72 : f32 to vector<2x64xf32>
    %516 = arith.subf %515, %514 : vector<2x64xf32>
    %517 = arith.mulf %516, %513 : vector<2x64xf32>
    %518 = vector.extract_strided_slice %505 {offsets = [0, 64], sizes = [2, 64], strides = [1, 1]} : vector<2x128xf32> to vector<2x64xf32>
    %519 = arith.mulf %518, %496 : vector<2x64xf32>
    %520 = arith.addf %517, %519 : vector<2x64xf32>
    %521 = vector.extract_strided_slice %12 {offsets = [0, 0], sizes = [64, 32], strides = [1, 1]} : vector<128x32xf32> to vector<64x32xf32>
    %cst_73 = arith.constant dense<0.000000e+00> : vector<2x32xf32>
    %522 = tpu.matmul %256, %521, %cst_73 {dimension_numbers = #tpu.dot_dimension_numbers<[1], [0], [0], [1], [0, 0, 1, 1], [], []>} : vector<2x64xf32>, vector<64x32xf32>, vector<2x32xf32> -> vector<2x32xf32>
    %523 = vector.extract_strided_slice %12 {offsets = [64, 0], sizes = [64, 32], strides = [1, 1]} : vector<128x32xf32> to vector<64x32xf32>
    %cst_74 = arith.constant dense<0.000000e+00> : vector<2x32xf32>
    %524 = tpu.matmul %520, %523, %cst_74 {dimension_numbers = #tpu.dot_dimension_numbers<[1], [0], [0], [1], [0, 0, 1, 1], [], []>} : vector<2x64xf32>, vector<64x32xf32>, vector<2x32xf32> -> vector<2x32xf32>
    %525 = arith.addf %522, %524 : vector<2x32xf32>
    %526 = vector.broadcast %19 : vector<1x32xf32> to vector<2x32xf32>
    %527 = arith.addf %525, %526 : vector<2x32xf32>
    %528 = vector.extract_strided_slice %527 {offsets = [0, 0], sizes = [2, 16], strides = [1, 1]} : vector<2x32xf32> to vector<2x16xf32>
    %529 = vector.extract_strided_slice %527 {offsets = [0, 16], sizes = [2, 16], strides = [1, 1]} : vector<2x32xf32> to vector<2x16xf32>
    %cst_75 = arith.constant 0.000000e+00 : f32
    %530 = vector.broadcast %cst_75 : f32 to vector<2x16xf32>
    %531 = arith.maximumf %529, %530 : vector<2x16xf32>
    %532 = vector.broadcast %cst_75 : f32 to vector<2x16xf32>
    %533 = arith.subf %529, %532 : vector<2x16xf32>
    %534 = arith.cmpf one, %533, %533 : vector<2x16xf32>
    %535 = vector.broadcast %cst_75 : f32 to vector<2x16xf32>
    %536 = arith.addf %529, %535 : vector<2x16xf32>
    %537 = math.absf %533 : vector<2x16xf32>
    %cst_76 = arith.constant 0.000000e+00 : f32
    %538 = vector.broadcast %cst_76 : f32 to vector<2x16xf32>
    %539 = arith.subf %538, %537 : vector<2x16xf32>
    %540 = math.exp %539 : vector<2x16xf32>
    %541 = math.log1p %540 : vector<2x16xf32>
    %542 = arith.addf %531, %541 : vector<2x16xf32>
    %543 = arith.select %534, %536, %542 : vector<2x16xi1>, vector<2x16xf32>
    %c0_77 = arith.constant 0 : index
    %c0_78 = arith.constant 0 : index
    %544 = vector.load %arg8[%c0_77, %c0_78] : memref<2x16xf32, #tpu.memory_space<vmem>>, vector<2x16xf32>
    tpu.vector_store %arg8[%c0_77, %c0_78], %528 {strides = array<i32>} : memref<2x16xf32, #tpu.memory_space<vmem>>, vector<2x16xf32>,
    %c0_79 = arith.constant 0 : index
    %c0_80 = arith.constant 0 : index
    %545 = vector.load %arg9[%c0_79, %c0_80] : memref<2x16xf32, #tpu.memory_space<vmem>>, vector<2x16xf32>
    tpu.vector_store %arg9[%c0_79, %c0_80], %528 {strides = array<i32>} : memref<2x16xf32, #tpu.memory_space<vmem>>, vector<2x16xf32>,
    %c0_81 = arith.constant 0 : index
    %c0_82 = arith.constant 0 : index
    %546 = vector.load %arg10[%c0_81, %c0_82] : memref<2x16xf32, #tpu.memory_space<vmem>>, vector<2x16xf32>
    tpu.vector_store %arg10[%c0_81, %c0_82], %543 {strides = array<i32>} : memref<2x16xf32, #tpu.memory_space<vmem>>, vector<2x16xf32>,
    %cst_83 = arith.constant dense<0.000000e+00> : vector<2x288xf32>
    %547 = tpu.matmul %528, %13, %cst_83 {dimension_numbers = #tpu.dot_dimension_numbers<[1], [0], [0], [1], [0, 0, 1, 1], [], []>} : vector<2x16xf32>, vector<16x288xf32>, vector<2x288xf32> -> vector<2x288xf32>
    %548 = vector.broadcast %20 : vector<1x288xf32> to vector<2x288xf32>
    %549 = arith.addf %547, %548 : vector<2x288xf32>
    %550 = vector.extract_strided_slice %549 {offsets = [0, 0], sizes = [2, 96], strides = [1, 1]} : vector<2x288xf32> to vector<2x96xf32>
    %551 = vector.extract_strided_slice %550 {offsets = [0, 0], sizes = [2, 64], strides = [1, 1]} : vector<2x96xf32> to vector<2x64xf32>
    %552 = arith.negf %551 : vector<2x64xf32>
    %553 = math.exp %552 : vector<2x64xf32>
    %cst_84 = arith.constant 1.000000e+00 : f32
    %554 = vector.broadcast %cst_84 : f32 to vector<2x64xf32>
    %555 = arith.addf %554, %553 : vector<2x64xf32>
    %556 = arith.divf %554, %555 : vector<2x64xf32>
    %557 = vector.extract_strided_slice %550 {offsets = [0, 64], sizes = [2, 32], strides = [1, 1]} : vector<2x96xf32> to vector<2x32xf32>
    %558 = vector.extract_strided_slice %556 {offsets = [0, 0], sizes = [2, 32], strides = [1, 1]} : vector<2x64xf32> to vector<2x32xf32>
    %559 = vector.broadcast %21 : vector<1x32xf32> to vector<2x32xf32>
    %560 = arith.mulf %558, %559 : vector<2x32xf32>
    %561 = arith.addf %557, %560 : vector<2x32xf32>
    %562 = math.tanh %561 : vector<2x32xf32>
    %563 = vector.extract_strided_slice %556 {offsets = [0, 32], sizes = [2, 32], strides = [1, 1]} : vector<2x64xf32> to vector<2x32xf32>
    %cst_85 = arith.constant 1.000000e+00 : f32
    %564 = vector.broadcast %cst_85 : f32 to vector<2x32xf32>
    %565 = arith.subf %564, %563 : vector<2x32xf32>
    %566 = arith.mulf %565, %562 : vector<2x32xf32>
    %cst_86 = arith.constant dense<0.000000e+00> : vector<2x96xf32>
    %567 = tpu.matmul %566, %7, %cst_86 {dimension_numbers = #tpu.dot_dimension_numbers<[1], [0], [0], [1], [0, 0, 1, 1], [], []>} : vector<2x32xf32>, vector<32x96xf32>, vector<2x96xf32> -> vector<2x96xf32>
    %568 = vector.extract_strided_slice %550 {offsets = [0, 0], sizes = [2, 64], strides = [1, 1]} : vector<2x96xf32> to vector<2x64xf32>
    %569 = vector.extract_strided_slice %567 {offsets = [0, 0], sizes = [2, 64], strides = [1, 1]} : vector<2x96xf32> to vector<2x64xf32>
    %570 = arith.addf %568, %569 : vector<2x64xf32>
    %571 = arith.negf %570 : vector<2x64xf32>
    %572 = math.exp %571 : vector<2x64xf32>
    %cst_87 = arith.constant 1.000000e+00 : f32
    %573 = vector.broadcast %cst_87 : f32 to vector<2x64xf32>
    %574 = arith.addf %573, %572 : vector<2x64xf32>
    %575 = arith.divf %573, %574 : vector<2x64xf32>
    %576 = vector.extract_strided_slice %550 {offsets = [0, 64], sizes = [2, 32], strides = [1, 1]} : vector<2x96xf32> to vector<2x32xf32>
    %577 = vector.extract_strided_slice %575 {offsets = [0, 0], sizes = [2, 32], strides = [1, 1]} : vector<2x64xf32> to vector<2x32xf32>
    %578 = vector.extract_strided_slice %567 {offsets = [0, 64], sizes = [2, 32], strides = [1, 1]} : vector<2x96xf32> to vector<2x32xf32>
    %579 = vector.broadcast %21 : vector<1x32xf32> to vector<2x32xf32>
    %580 = arith.addf %578, %579 : vector<2x32xf32>
    %581 = arith.mulf %577, %580 : vector<2x32xf32>
    %582 = arith.addf %576, %581 : vector<2x32xf32>
    %583 = math.tanh %582 : vector<2x32xf32>
    %584 = vector.extract_strided_slice %575 {offsets = [0, 32], sizes = [2, 32], strides = [1, 1]} : vector<2x64xf32> to vector<2x32xf32>
    %cst_88 = arith.constant 1.000000e+00 : f32
    %585 = vector.broadcast %cst_88 : f32 to vector<2x32xf32>
    %586 = arith.subf %585, %584 : vector<2x32xf32>
    %587 = arith.mulf %586, %583 : vector<2x32xf32>
    %588 = vector.extract_strided_slice %575 {offsets = [0, 32], sizes = [2, 32], strides = [1, 1]} : vector<2x64xf32> to vector<2x32xf32>
    %589 = arith.mulf %588, %566 : vector<2x32xf32>
    %590 = arith.addf %587, %589 : vector<2x32xf32>
    %cst_89 = arith.constant dense<0.000000e+00> : vector<2x96xf32>
    %591 = tpu.matmul %590, %7, %cst_89 {dimension_numbers = #tpu.dot_dimension_numbers<[1], [0], [0], [1], [0, 0, 1, 1], [], []>} : vector<2x32xf32>, vector<32x96xf32>, vector<2x96xf32> -> vector<2x96xf32>
    %592 = vector.extract_strided_slice %550 {offsets = [0, 0], sizes = [2, 64], strides = [1, 1]} : vector<2x96xf32> to vector<2x64xf32>
    %593 = vector.extract_strided_slice %591 {offsets = [0, 0], sizes = [2, 64], strides = [1, 1]} : vector<2x96xf32> to vector<2x64xf32>
    %594 = arith.addf %592, %593 : vector<2x64xf32>
    %595 = arith.negf %594 : vector<2x64xf32>
    %596 = math.exp %595 : vector<2x64xf32>
    %cst_90 = arith.constant 1.000000e+00 : f32
    %597 = vector.broadcast %cst_90 : f32 to vector<2x64xf32>
    %598 = arith.addf %597, %596 : vector<2x64xf32>
    %599 = arith.divf %597, %598 : vector<2x64xf32>
    %600 = vector.extract_strided_slice %550 {offsets = [0, 64], sizes = [2, 32], strides = [1, 1]} : vector<2x96xf32> to vector<2x32xf32>
    %601 = vector.extract_strided_slice %599 {offsets = [0, 0], sizes = [2, 32], strides = [1, 1]} : vector<2x64xf32> to vector<2x32xf32>
    %602 = vector.extract_strided_slice %591 {offsets = [0, 64], sizes = [2, 32], strides = [1, 1]} : vector<2x96xf32> to vector<2x32xf32>
    %603 = vector.broadcast %21 : vector<1x32xf32> to vector<2x32xf32>
    %604 = arith.addf %602, %603 : vector<2x32xf32>
    %605 = arith.mulf %601, %604 : vector<2x32xf32>
    %606 = arith.addf %600, %605 : vector<2x32xf32>
    %607 = math.tanh %606 : vector<2x32xf32>
    %608 = vector.extract_strided_slice %599 {offsets = [0, 32], sizes = [2, 32], strides = [1, 1]} : vector<2x64xf32> to vector<2x32xf32>
    %cst_91 = arith.constant 1.000000e+00 : f32
    %609 = vector.broadcast %cst_91 : f32 to vector<2x32xf32>
    %610 = arith.subf %609, %608 : vector<2x32xf32>
    %611 = arith.mulf %610, %607 : vector<2x32xf32>
    %612 = vector.extract_strided_slice %599 {offsets = [0, 32], sizes = [2, 32], strides = [1, 1]} : vector<2x64xf32> to vector<2x32xf32>
    %613 = arith.mulf %612, %590 : vector<2x32xf32>
    %614 = arith.addf %611, %613 : vector<2x32xf32>
    %cst_92 = arith.constant dense<0.000000e+00> : vector<2x96xf32>
    %615 = tpu.matmul %614, %7, %cst_92 {dimension_numbers = #tpu.dot_dimension_numbers<[1], [0], [0], [1], [0, 0, 1, 1], [], []>} : vector<2x32xf32>, vector<32x96xf32>, vector<2x96xf32> -> vector<2x96xf32>
    %616 = vector.extract_strided_slice %550 {offsets = [0, 0], sizes = [2, 64], strides = [1, 1]} : vector<2x96xf32> to vector<2x64xf32>
    %617 = vector.extract_strided_slice %615 {offsets = [0, 0], sizes = [2, 64], strides = [1, 1]} : vector<2x96xf32> to vector<2x64xf32>
    %618 = arith.addf %616, %617 : vector<2x64xf32>
    %619 = arith.negf %618 : vector<2x64xf32>
    %620 = math.exp %619 : vector<2x64xf32>
    %cst_93 = arith.constant 1.000000e+00 : f32
    %621 = vector.broadcast %cst_93 : f32 to vector<2x64xf32>
    %622 = arith.addf %621, %620 : vector<2x64xf32>
    %623 = arith.divf %621, %622 : vector<2x64xf32>
    %624 = vector.extract_strided_slice %550 {offsets = [0, 64], sizes = [2, 32], strides = [1, 1]} : vector<2x96xf32> to vector<2x32xf32>
    %625 = vector.extract_strided_slice %623 {offsets = [0, 0], sizes = [2, 32], strides = [1, 1]} : vector<2x64xf32> to vector<2x32xf32>
    %626 = vector.extract_strided_slice %615 {offsets = [0, 64], sizes = [2, 32], strides = [1, 1]} : vector<2x96xf32> to vector<2x32xf32>
    %627 = vector.broadcast %21 : vector<1x32xf32> to vector<2x32xf32>
    %628 = arith.addf %626, %627 : vector<2x32xf32>
    %629 = arith.mulf %625, %628 : vector<2x32xf32>
    %630 = arith.addf %624, %629 : vector<2x32xf32>
    %631 = math.tanh %630 : vector<2x32xf32>
    %632 = vector.extract_strided_slice %623 {offsets = [0, 32], sizes = [2, 32], strides = [1, 1]} : vector<2x64xf32> to vector<2x32xf32>
    %cst_94 = arith.constant 1.000000e+00 : f32
    %633 = vector.broadcast %cst_94 : f32 to vector<2x32xf32>
    %634 = arith.subf %633, %632 : vector<2x32xf32>
    %635 = arith.mulf %634, %631 : vector<2x32xf32>
    %636 = vector.extract_strided_slice %623 {offsets = [0, 32], sizes = [2, 32], strides = [1, 1]} : vector<2x64xf32> to vector<2x32xf32>
    %637 = arith.mulf %636, %614 : vector<2x32xf32>
    %638 = arith.addf %635, %637 : vector<2x32xf32>
    %cst_95 = arith.constant dense<0.000000e+00> : vector<2x96xf32>
    %639 = tpu.matmul %638, %7, %cst_95 {dimension_numbers = #tpu.dot_dimension_numbers<[1], [0], [0], [1], [0, 0, 1, 1], [], []>} : vector<2x32xf32>, vector<32x96xf32>, vector<2x96xf32> -> vector<2x96xf32>
    %640 = vector.extract_strided_slice %550 {offsets = [0, 0], sizes = [2, 64], strides = [1, 1]} : vector<2x96xf32> to vector<2x64xf32>
    %641 = vector.extract_strided_slice %639 {offsets = [0, 0], sizes = [2, 64], strides = [1, 1]} : vector<2x96xf32> to vector<2x64xf32>
    %642 = arith.addf %640, %641 : vector<2x64xf32>
    %643 = arith.negf %642 : vector<2x64xf32>
    %644 = math.exp %643 : vector<2x64xf32>
    %cst_96 = arith.constant 1.000000e+00 : f32
    %645 = vector.broadcast %cst_96 : f32 to vector<2x64xf32>
    %646 = arith.addf %645, %644 : vector<2x64xf32>
    %647 = arith.divf %645, %646 : vector<2x64xf32>
    %648 = vector.extract_strided_slice %550 {offsets = [0, 64], sizes = [2, 32], strides = [1, 1]} : vector<2x96xf32> to vector<2x32xf32>
    %649 = vector.extract_strided_slice %647 {offsets = [0, 0], sizes = [2, 32], strides = [1, 1]} : vector<2x64xf32> to vector<2x32xf32>
    %650 = vector.extract_strided_slice %639 {offsets = [0, 64], sizes = [2, 32], strides = [1, 1]} : vector<2x96xf32> to vector<2x32xf32>
    %651 = vector.broadcast %21 : vector<1x32xf32> to vector<2x32xf32>
    %652 = arith.addf %650, %651 : vector<2x32xf32>
    %653 = arith.mulf %649, %652 : vector<2x32xf32>
    %654 = arith.addf %648, %653 : vector<2x32xf32>
    %655 = math.tanh %654 : vector<2x32xf32>
    %656 = vector.extract_strided_slice %647 {offsets = [0, 32], sizes = [2, 32], strides = [1, 1]} : vector<2x64xf32> to vector<2x32xf32>
    %cst_97 = arith.constant 1.000000e+00 : f32
    %657 = vector.broadcast %cst_97 : f32 to vector<2x32xf32>
    %658 = arith.subf %657, %656 : vector<2x32xf32>
    %659 = arith.mulf %658, %655 : vector<2x32xf32>
    %660 = vector.extract_strided_slice %647 {offsets = [0, 32], sizes = [2, 32], strides = [1, 1]} : vector<2x64xf32> to vector<2x32xf32>
    %661 = arith.mulf %660, %638 : vector<2x32xf32>
    %662 = arith.addf %659, %661 : vector<2x32xf32>
    %cst_98 = arith.constant dense<0.000000e+00> : vector<2x96xf32>
    %663 = tpu.matmul %662, %7, %cst_98 {dimension_numbers = #tpu.dot_dimension_numbers<[1], [0], [0], [1], [0, 0, 1, 1], [], []>} : vector<2x32xf32>, vector<32x96xf32>, vector<2x96xf32> -> vector<2x96xf32>
    %664 = vector.extract_strided_slice %550 {offsets = [0, 0], sizes = [2, 64], strides = [1, 1]} : vector<2x96xf32> to vector<2x64xf32>
    %665 = vector.extract_strided_slice %663 {offsets = [0, 0], sizes = [2, 64], strides = [1, 1]} : vector<2x96xf32> to vector<2x64xf32>
    %666 = arith.addf %664, %665 : vector<2x64xf32>
    %667 = arith.negf %666 : vector<2x64xf32>
    %668 = math.exp %667 : vector<2x64xf32>
    %cst_99 = arith.constant 1.000000e+00 : f32
    %669 = vector.broadcast %cst_99 : f32 to vector<2x64xf32>
    %670 = arith.addf %669, %668 : vector<2x64xf32>
    %671 = arith.divf %669, %670 : vector<2x64xf32>
    %672 = vector.extract_strided_slice %550 {offsets = [0, 64], sizes = [2, 32], strides = [1, 1]} : vector<2x96xf32> to vector<2x32xf32>
    %673 = vector.extract_strided_slice %671 {offsets = [0, 0], sizes = [2, 32], strides = [1, 1]} : vector<2x64xf32> to vector<2x32xf32>
    %674 = vector.extract_strided_slice %663 {offsets = [0, 64], sizes = [2, 32], strides = [1, 1]} : vector<2x96xf32> to vector<2x32xf32>
    %675 = vector.broadcast %21 : vector<1x32xf32> to vector<2x32xf32>
    %676 = arith.addf %674, %675 : vector<2x32xf32>
    %677 = arith.mulf %673, %676 : vector<2x32xf32>
    %678 = arith.addf %672, %677 : vector<2x32xf32>
    %679 = math.tanh %678 : vector<2x32xf32>
    %680 = vector.extract_strided_slice %671 {offsets = [0, 32], sizes = [2, 32], strides = [1, 1]} : vector<2x64xf32> to vector<2x32xf32>
    %cst_100 = arith.constant 1.000000e+00 : f32
    %681 = vector.broadcast %cst_100 : f32 to vector<2x32xf32>
    %682 = arith.subf %681, %680 : vector<2x32xf32>
    %683 = arith.mulf %682, %679 : vector<2x32xf32>
    %684 = vector.extract_strided_slice %671 {offsets = [0, 32], sizes = [2, 32], strides = [1, 1]} : vector<2x64xf32> to vector<2x32xf32>
    %685 = arith.mulf %684, %662 : vector<2x32xf32>
    %686 = arith.addf %683, %685 : vector<2x32xf32>
    %cst_101 = arith.constant dense<0.000000e+00> : vector<2x96xf32>
    %687 = tpu.matmul %686, %7, %cst_101 {dimension_numbers = #tpu.dot_dimension_numbers<[1], [0], [0], [1], [0, 0, 1, 1], [], []>} : vector<2x32xf32>, vector<32x96xf32>, vector<2x96xf32> -> vector<2x96xf32>
    %688 = vector.extract_strided_slice %550 {offsets = [0, 0], sizes = [2, 64], strides = [1, 1]} : vector<2x96xf32> to vector<2x64xf32>
    %689 = vector.extract_strided_slice %687 {offsets = [0, 0], sizes = [2, 64], strides = [1, 1]} : vector<2x96xf32> to vector<2x64xf32>
    %690 = arith.addf %688, %689 : vector<2x64xf32>
    %691 = arith.negf %690 : vector<2x64xf32>
    %692 = math.exp %691 : vector<2x64xf32>
    %cst_102 = arith.constant 1.000000e+00 : f32
    %693 = vector.broadcast %cst_102 : f32 to vector<2x64xf32>
    %694 = arith.addf %693, %692 : vector<2x64xf32>
    %695 = arith.divf %693, %694 : vector<2x64xf32>
    %696 = vector.extract_strided_slice %550 {offsets = [0, 64], sizes = [2, 32], strides = [1, 1]} : vector<2x96xf32> to vector<2x32xf32>
    %697 = vector.extract_strided_slice %695 {offsets = [0, 0], sizes = [2, 32], strides = [1, 1]} : vector<2x64xf32> to vector<2x32xf32>
    %698 = vector.extract_strided_slice %687 {offsets = [0, 64], sizes = [2, 32], strides = [1, 1]} : vector<2x96xf32> to vector<2x32xf32>
    %699 = vector.broadcast %21 : vector<1x32xf32> to vector<2x32xf32>
    %700 = arith.addf %698, %699 : vector<2x32xf32>
    %701 = arith.mulf %697, %700 : vector<2x32xf32>
    %702 = arith.addf %696, %701 : vector<2x32xf32>
    %703 = math.tanh %702 : vector<2x32xf32>
    %704 = vector.extract_strided_slice %695 {offsets = [0, 32], sizes = [2, 32], strides = [1, 1]} : vector<2x64xf32> to vector<2x32xf32>
    %cst_103 = arith.constant 1.000000e+00 : f32
    %705 = vector.broadcast %cst_103 : f32 to vector<2x32xf32>
    %706 = arith.subf %705, %704 : vector<2x32xf32>
    %707 = arith.mulf %706, %703 : vector<2x32xf32>
    %708 = vector.extract_strided_slice %695 {offsets = [0, 32], sizes = [2, 32], strides = [1, 1]} : vector<2x64xf32> to vector<2x32xf32>
    %709 = arith.mulf %708, %686 : vector<2x32xf32>
    %710 = arith.addf %707, %709 : vector<2x32xf32>
    %cst_104 = arith.constant dense<0.000000e+00> : vector<2x96xf32>
    %711 = tpu.matmul %710, %7, %cst_104 {dimension_numbers = #tpu.dot_dimension_numbers<[1], [0], [0], [1], [0, 0, 1, 1], [], []>} : vector<2x32xf32>, vector<32x96xf32>, vector<2x96xf32> -> vector<2x96xf32>
    %712 = vector.extract_strided_slice %550 {offsets = [0, 0], sizes = [2, 64], strides = [1, 1]} : vector<2x96xf32> to vector<2x64xf32>
    %713 = vector.extract_strided_slice %711 {offsets = [0, 0], sizes = [2, 64], strides = [1, 1]} : vector<2x96xf32> to vector<2x64xf32>
    %714 = arith.addf %712, %713 : vector<2x64xf32>
    %715 = arith.negf %714 : vector<2x64xf32>
    %716 = math.exp %715 : vector<2x64xf32>
    %cst_105 = arith.constant 1.000000e+00 : f32
    %717 = vector.broadcast %cst_105 : f32 to vector<2x64xf32>
    %718 = arith.addf %717, %716 : vector<2x64xf32>
    %719 = arith.divf %717, %718 : vector<2x64xf32>
    %720 = vector.extract_strided_slice %550 {offsets = [0, 64], sizes = [2, 32], strides = [1, 1]} : vector<2x96xf32> to vector<2x32xf32>
    %721 = vector.extract_strided_slice %719 {offsets = [0, 0], sizes = [2, 32], strides = [1, 1]} : vector<2x64xf32> to vector<2x32xf32>
    %722 = vector.extract_strided_slice %711 {offsets = [0, 64], sizes = [2, 32], strides = [1, 1]} : vector<2x96xf32> to vector<2x32xf32>
    %723 = vector.broadcast %21 : vector<1x32xf32> to vector<2x32xf32>
    %724 = arith.addf %722, %723 : vector<2x32xf32>
    %725 = arith.mulf %721, %724 : vector<2x32xf32>
    %726 = arith.addf %720, %725 : vector<2x32xf32>
    %727 = math.tanh %726 : vector<2x32xf32>
    %728 = vector.extract_strided_slice %719 {offsets = [0, 32], sizes = [2, 32], strides = [1, 1]} : vector<2x64xf32> to vector<2x32xf32>
    %cst_106 = arith.constant 1.000000e+00 : f32
    %729 = vector.broadcast %cst_106 : f32 to vector<2x32xf32>
    %730 = arith.subf %729, %728 : vector<2x32xf32>
    %731 = arith.mulf %730, %727 : vector<2x32xf32>
    %732 = vector.extract_strided_slice %719 {offsets = [0, 32], sizes = [2, 32], strides = [1, 1]} : vector<2x64xf32> to vector<2x32xf32>
    %733 = arith.mulf %732, %710 : vector<2x32xf32>
    %734 = arith.addf %731, %733 : vector<2x32xf32>
    %cst_107 = arith.constant dense<0.000000e+00> : vector<2x12xf32>
    %735 = tpu.matmul %566, %14, %cst_107 {dimension_numbers = #tpu.dot_dimension_numbers<[1], [0], [0], [1], [0, 0, 1, 1], [], []>} : vector<2x32xf32>, vector<32x12xf32>, vector<2x12xf32> -> vector<2x12xf32>
    %736 = vector.broadcast %22 : vector<1x12xf32> to vector<2x12xf32>
    %737 = arith.addf %735, %736 : vector<2x12xf32>
    %c0_108 = arith.constant 0 : index
    %c0_109 = arith.constant 0 : index
    %738 = vector.load %arg6[%c0_108, %c0_109] : memref<16x12xf32, #tpu.memory_space<vmem>>, vector<2x12xf32>
    tpu.vector_store %arg6[%c0_108, %c0_109], %737 {strides = array<i32>} : memref<16x12xf32, #tpu.memory_space<vmem>>, vector<2x12xf32>,
    %cst_110 = arith.constant dense<0.000000e+00> : vector<2x12xf32>
    %739 = tpu.matmul %590, %14, %cst_110 {dimension_numbers = #tpu.dot_dimension_numbers<[1], [0], [0], [1], [0, 0, 1, 1], [], []>} : vector<2x32xf32>, vector<32x12xf32>, vector<2x12xf32> -> vector<2x12xf32>
    %740 = vector.broadcast %22 : vector<1x12xf32> to vector<2x12xf32>
    %741 = arith.addf %739, %740 : vector<2x12xf32>
    %c2 = arith.constant 2 : index
    %c0_111 = arith.constant 0 : index
    %742 = vector.load %arg6[%c2, %c0_111] : memref<16x12xf32, #tpu.memory_space<vmem>>, vector<2x12xf32>
    tpu.vector_store %arg6[%c2, %c0_111], %741 {strides = array<i32>} : memref<16x12xf32, #tpu.memory_space<vmem>>, vector<2x12xf32>,
    %cst_112 = arith.constant dense<0.000000e+00> : vector<2x12xf32>
    %743 = tpu.matmul %614, %14, %cst_112 {dimension_numbers = #tpu.dot_dimension_numbers<[1], [0], [0], [1], [0, 0, 1, 1], [], []>} : vector<2x32xf32>, vector<32x12xf32>, vector<2x12xf32> -> vector<2x12xf32>
    %744 = vector.broadcast %22 : vector<1x12xf32> to vector<2x12xf32>
    %745 = arith.addf %743, %744 : vector<2x12xf32>
    %c4 = arith.constant 4 : index
    %c0_113 = arith.constant 0 : index
    %746 = vector.load %arg6[%c4, %c0_113] : memref<16x12xf32, #tpu.memory_space<vmem>>, vector<2x12xf32>
    tpu.vector_store %arg6[%c4, %c0_113], %745 {strides = array<i32>} : memref<16x12xf32, #tpu.memory_space<vmem>>, vector<2x12xf32>,
    %cst_114 = arith.constant dense<0.000000e+00> : vector<2x12xf32>
    %747 = tpu.matmul %638, %14, %cst_114 {dimension_numbers = #tpu.dot_dimension_numbers<[1], [0], [0], [1], [0, 0, 1, 1], [], []>} : vector<2x32xf32>, vector<32x12xf32>, vector<2x12xf32> -> vector<2x12xf32>
    %748 = vector.broadcast %22 : vector<1x12xf32> to vector<2x12xf32>
    %749 = arith.addf %747, %748 : vector<2x12xf32>
    %c6 = arith.constant 6 : index
    %c0_115 = arith.constant 0 : index
    %750 = vector.load %arg6[%c6, %c0_115] : memref<16x12xf32, #tpu.memory_space<vmem>>, vector<2x12xf32>
    tpu.vector_store %arg6[%c6, %c0_115], %749 {strides = array<i32>} : memref<16x12xf32, #tpu.memory_space<vmem>>, vector<2x12xf32>,
    %cst_116 = arith.constant dense<0.000000e+00> : vector<2x12xf32>
    %751 = tpu.matmul %662, %14, %cst_116 {dimension_numbers = #tpu.dot_dimension_numbers<[1], [0], [0], [1], [0, 0, 1, 1], [], []>} : vector<2x32xf32>, vector<32x12xf32>, vector<2x12xf32> -> vector<2x12xf32>
    %752 = vector.broadcast %22 : vector<1x12xf32> to vector<2x12xf32>
    %753 = arith.addf %751, %752 : vector<2x12xf32>
    %c8 = arith.constant 8 : index
    %c0_117 = arith.constant 0 : index
    %754 = vector.load %arg6[%c8, %c0_117] : memref<16x12xf32, #tpu.memory_space<vmem>>, vector<2x12xf32>
    tpu.vector_store %arg6[%c8, %c0_117], %753 {strides = array<i32>} : memref<16x12xf32, #tpu.memory_space<vmem>>, vector<2x12xf32>,
    %cst_118 = arith.constant dense<0.000000e+00> : vector<2x12xf32>
    %755 = tpu.matmul %686, %14, %cst_118 {dimension_numbers = #tpu.dot_dimension_numbers<[1], [0], [0], [1], [0, 0, 1, 1], [], []>} : vector<2x32xf32>, vector<32x12xf32>, vector<2x12xf32> -> vector<2x12xf32>
    %756 = vector.broadcast %22 : vector<1x12xf32> to vector<2x12xf32>
    %757 = arith.addf %755, %756 : vector<2x12xf32>
    %c10 = arith.constant 10 : index
    %c0_119 = arith.constant 0 : index
    %758 = vector.load %arg6[%c10, %c0_119] : memref<16x12xf32, #tpu.memory_space<vmem>>, vector<2x12xf32>
    tpu.vector_store %arg6[%c10, %c0_119], %757 {strides = array<i32>} : memref<16x12xf32, #tpu.memory_space<vmem>>, vector<2x12xf32>,
    %cst_120 = arith.constant dense<0.000000e+00> : vector<2x12xf32>
    %759 = tpu.matmul %710, %14, %cst_120 {dimension_numbers = #tpu.dot_dimension_numbers<[1], [0], [0], [1], [0, 0, 1, 1], [], []>} : vector<2x32xf32>, vector<32x12xf32>, vector<2x12xf32> -> vector<2x12xf32>
    %760 = vector.broadcast %22 : vector<1x12xf32> to vector<2x12xf32>
    %761 = arith.addf %759, %760 : vector<2x12xf32>
    %c12 = arith.constant 12 : index
    %c0_121 = arith.constant 0 : index
    %762 = vector.load %arg6[%c12, %c0_121] : memref<16x12xf32, #tpu.memory_space<vmem>>, vector<2x12xf32>
    tpu.vector_store %arg6[%c12, %c0_121], %761 {strides = array<i32>} : memref<16x12xf32, #tpu.memory_space<vmem>>, vector<2x12xf32>,
    %cst_122 = arith.constant dense<0.000000e+00> : vector<2x12xf32>
    %763 = tpu.matmul %734, %14, %cst_122 {dimension_numbers = #tpu.dot_dimension_numbers<[1], [0], [0], [1], [0, 0, 1, 1], [], []>} : vector<2x32xf32>, vector<32x12xf32>, vector<2x12xf32> -> vector<2x12xf32>
    %764 = vector.broadcast %22 : vector<1x12xf32> to vector<2x12xf32>
    %765 = arith.addf %763, %764 : vector<2x12xf32>
    %c14 = arith.constant 14 : index
    %c0_123 = arith.constant 0 : index
    %766 = vector.load %arg6[%c14, %c0_123] : memref<16x12xf32, #tpu.memory_space<vmem>>, vector<2x12xf32>
    tpu.vector_store %arg6[%c14, %c0_123], %765 {strides = array<i32>} : memref<16x12xf32, #tpu.memory_space<vmem>>, vector<2x12xf32>,
    %767 = vector.extract_strided_slice %549 {offsets = [0, 96], sizes = [2, 192], strides = [1, 1]} : vector<2x288xf32> to vector<2x192xf32>
    %768 = vector.extract_strided_slice %767 {offsets = [0, 0], sizes = [2, 128], strides = [1, 1]} : vector<2x192xf32> to vector<2x128xf32>
    %769 = arith.negf %768 : vector<2x128xf32>
    %770 = math.exp %769 : vector<2x128xf32>
    %cst_124 = arith.constant 1.000000e+00 : f32
    %771 = vector.broadcast %cst_124 : f32 to vector<2x128xf32>
    %772 = arith.addf %771, %770 : vector<2x128xf32>
    %773 = arith.divf %771, %772 : vector<2x128xf32>
    %774 = vector.extract_strided_slice %767 {offsets = [0, 128], sizes = [2, 64], strides = [1, 1]} : vector<2x192xf32> to vector<2x64xf32>
    %775 = vector.extract_strided_slice %773 {offsets = [0, 0], sizes = [2, 64], strides = [1, 1]} : vector<2x128xf32> to vector<2x64xf32>
    %776 = vector.broadcast %27 : vector<1x64xf32> to vector<2x64xf32>
    %777 = arith.mulf %775, %776 : vector<2x64xf32>
    %778 = arith.addf %774, %777 : vector<2x64xf32>
    %779 = math.tanh %778 : vector<2x64xf32>
    %780 = vector.extract_strided_slice %773 {offsets = [0, 64], sizes = [2, 64], strides = [1, 1]} : vector<2x128xf32> to vector<2x64xf32>
    %cst_125 = arith.constant 1.000000e+00 : f32
    %781 = vector.broadcast %cst_125 : f32 to vector<2x64xf32>
    %782 = arith.subf %781, %780 : vector<2x64xf32>
    %783 = arith.mulf %782, %779 : vector<2x64xf32>
    %cst_126 = arith.constant dense<0.000000e+00> : vector<2x192xf32>
    %784 = tpu.matmul %783, %23, %cst_126 {dimension_numbers = #tpu.dot_dimension_numbers<[1], [0], [0], [1], [0, 0, 1, 1], [], []>} : vector<2x64xf32>, vector<64x192xf32>, vector<2x192xf32> -> vector<2x192xf32>
    %785 = vector.extract_strided_slice %767 {offsets = [0, 0], sizes = [2, 128], strides = [1, 1]} : vector<2x192xf32> to vector<2x128xf32>
    %786 = vector.extract_strided_slice %784 {offsets = [0, 0], sizes = [2, 128], strides = [1, 1]} : vector<2x192xf32> to vector<2x128xf32>
    %787 = arith.addf %785, %786 : vector<2x128xf32>
    %788 = arith.negf %787 : vector<2x128xf32>
    %789 = math.exp %788 : vector<2x128xf32>
    %cst_127 = arith.constant 1.000000e+00 : f32
    %790 = vector.broadcast %cst_127 : f32 to vector<2x128xf32>
    %791 = arith.addf %790, %789 : vector<2x128xf32>
    %792 = arith.divf %790, %791 : vector<2x128xf32>
    %793 = vector.extract_strided_slice %767 {offsets = [0, 128], sizes = [2, 64], strides = [1, 1]} : vector<2x192xf32> to vector<2x64xf32>
    %794 = vector.extract_strided_slice %792 {offsets = [0, 0], sizes = [2, 64], strides = [1, 1]} : vector<2x128xf32> to vector<2x64xf32>
    %795 = vector.extract_strided_slice %784 {offsets = [0, 128], sizes = [2, 64], strides = [1, 1]} : vector<2x192xf32> to vector<2x64xf32>
    %796 = vector.broadcast %27 : vector<1x64xf32> to vector<2x64xf32>
    %797 = arith.addf %795, %796 : vector<2x64xf32>
    %798 = arith.mulf %794, %797 : vector<2x64xf32>
    %799 = arith.addf %793, %798 : vector<2x64xf32>
    %800 = math.tanh %799 : vector<2x64xf32>
    %801 = vector.extract_strided_slice %792 {offsets = [0, 64], sizes = [2, 64], strides = [1, 1]} : vector<2x128xf32> to vector<2x64xf32>
    %cst_128 = arith.constant 1.000000e+00 : f32
    %802 = vector.broadcast %cst_128 : f32 to vector<2x64xf32>
    %803 = arith.subf %802, %801 : vector<2x64xf32>
    %804 = arith.mulf %803, %800 : vector<2x64xf32>
    %805 = vector.extract_strided_slice %792 {offsets = [0, 64], sizes = [2, 64], strides = [1, 1]} : vector<2x128xf32> to vector<2x64xf32>
    %806 = arith.mulf %805, %783 : vector<2x64xf32>
    %807 = arith.addf %804, %806 : vector<2x64xf32>
    %cst_129 = arith.constant dense<0.000000e+00> : vector<2x192xf32>
    %808 = tpu.matmul %807, %23, %cst_129 {dimension_numbers = #tpu.dot_dimension_numbers<[1], [0], [0], [1], [0, 0, 1, 1], [], []>} : vector<2x64xf32>, vector<64x192xf32>, vector<2x192xf32> -> vector<2x192xf32>
    %809 = vector.extract_strided_slice %767 {offsets = [0, 0], sizes = [2, 128], strides = [1, 1]} : vector<2x192xf32> to vector<2x128xf32>
    %810 = vector.extract_strided_slice %808 {offsets = [0, 0], sizes = [2, 128], strides = [1, 1]} : vector<2x192xf32> to vector<2x128xf32>
    %811 = arith.addf %809, %810 : vector<2x128xf32>
    %812 = arith.negf %811 : vector<2x128xf32>
    %813 = math.exp %812 : vector<2x128xf32>
    %cst_130 = arith.constant 1.000000e+00 : f32
    %814 = vector.broadcast %cst_130 : f32 to vector<2x128xf32>
    %815 = arith.addf %814, %813 : vector<2x128xf32>
    %816 = arith.divf %814, %815 : vector<2x128xf32>
    %817 = vector.extract_strided_slice %767 {offsets = [0, 128], sizes = [2, 64], strides = [1, 1]} : vector<2x192xf32> to vector<2x64xf32>
    %818 = vector.extract_strided_slice %816 {offsets = [0, 0], sizes = [2, 64], strides = [1, 1]} : vector<2x128xf32> to vector<2x64xf32>
    %819 = vector.extract_strided_slice %808 {offsets = [0, 128], sizes = [2, 64], strides = [1, 1]} : vector<2x192xf32> to vector<2x64xf32>
    %820 = vector.broadcast %27 : vector<1x64xf32> to vector<2x64xf32>
    %821 = arith.addf %819, %820 : vector<2x64xf32>
    %822 = arith.mulf %818, %821 : vector<2x64xf32>
    %823 = arith.addf %817, %822 : vector<2x64xf32>
    %824 = math.tanh %823 : vector<2x64xf32>
    %825 = vector.extract_strided_slice %816 {offsets = [0, 64], sizes = [2, 64], strides = [1, 1]} : vector<2x128xf32> to vector<2x64xf32>
    %cst_131 = arith.constant 1.000000e+00 : f32
    %826 = vector.broadcast %cst_131 : f32 to vector<2x64xf32>
    %827 = arith.subf %826, %825 : vector<2x64xf32>
    %828 = arith.mulf %827, %824 : vector<2x64xf32>
    %829 = vector.extract_strided_slice %816 {offsets = [0, 64], sizes = [2, 64], strides = [1, 1]} : vector<2x128xf32> to vector<2x64xf32>
    %830 = arith.mulf %829, %807 : vector<2x64xf32>
    %831 = arith.addf %828, %830 : vector<2x64xf32>
    %cst_132 = arith.constant dense<0.000000e+00> : vector<2x192xf32>
    %832 = tpu.matmul %831, %23, %cst_132 {dimension_numbers = #tpu.dot_dimension_numbers<[1], [0], [0], [1], [0, 0, 1, 1], [], []>} : vector<2x64xf32>, vector<64x192xf32>, vector<2x192xf32> -> vector<2x192xf32>
    %833 = vector.extract_strided_slice %767 {offsets = [0, 0], sizes = [2, 128], strides = [1, 1]} : vector<2x192xf32> to vector<2x128xf32>
    %834 = vector.extract_strided_slice %832 {offsets = [0, 0], sizes = [2, 128], strides = [1, 1]} : vector<2x192xf32> to vector<2x128xf32>
    %835 = arith.addf %833, %834 : vector<2x128xf32>
    %836 = arith.negf %835 : vector<2x128xf32>
    %837 = math.exp %836 : vector<2x128xf32>
    %cst_133 = arith.constant 1.000000e+00 : f32
    %838 = vector.broadcast %cst_133 : f32 to vector<2x128xf32>
    %839 = arith.addf %838, %837 : vector<2x128xf32>
    %840 = arith.divf %838, %839 : vector<2x128xf32>
    %841 = vector.extract_strided_slice %767 {offsets = [0, 128], sizes = [2, 64], strides = [1, 1]} : vector<2x192xf32> to vector<2x64xf32>
    %842 = vector.extract_strided_slice %840 {offsets = [0, 0], sizes = [2, 64], strides = [1, 1]} : vector<2x128xf32> to vector<2x64xf32>
    %843 = vector.extract_strided_slice %832 {offsets = [0, 128], sizes = [2, 64], strides = [1, 1]} : vector<2x192xf32> to vector<2x64xf32>
    %844 = vector.broadcast %27 : vector<1x64xf32> to vector<2x64xf32>
    %845 = arith.addf %843, %844 : vector<2x64xf32>
    %846 = arith.mulf %842, %845 : vector<2x64xf32>
    %847 = arith.addf %841, %846 : vector<2x64xf32>
    %848 = math.tanh %847 : vector<2x64xf32>
    %849 = vector.extract_strided_slice %840 {offsets = [0, 64], sizes = [2, 64], strides = [1, 1]} : vector<2x128xf32> to vector<2x64xf32>
    %cst_134 = arith.constant 1.000000e+00 : f32
    %850 = vector.broadcast %cst_134 : f32 to vector<2x64xf32>
    %851 = arith.subf %850, %849 : vector<2x64xf32>
    %852 = arith.mulf %851, %848 : vector<2x64xf32>
    %853 = vector.extract_strided_slice %840 {offsets = [0, 64], sizes = [2, 64], strides = [1, 1]} : vector<2x128xf32> to vector<2x64xf32>
    %854 = arith.mulf %853, %831 : vector<2x64xf32>
    %855 = arith.addf %852, %854 : vector<2x64xf32>
    %856 = vector.extract_strided_slice %783 {offsets = [0, 0], sizes = [2, 32], strides = [1, 1]} : vector<2x64xf32> to vector<2x32xf32>
    %cst_135 = arith.constant dense<0.000000e+00> : vector<2x12xf32>
    %857 = tpu.matmul %856, %25, %cst_135 {dimension_numbers = #tpu.dot_dimension_numbers<[1], [0], [0], [1], [0, 0, 1, 1], [], []>} : vector<2x32xf32>, vector<32x12xf32>, vector<2x12xf32> -> vector<2x12xf32>
    %858 = vector.extract_strided_slice %855 {offsets = [0, 32], sizes = [2, 32], strides = [1, 1]} : vector<2x64xf32> to vector<2x32xf32>
    %cst_136 = arith.constant dense<0.000000e+00> : vector<2x12xf32>
    %859 = tpu.matmul %858, %26, %cst_136 {dimension_numbers = #tpu.dot_dimension_numbers<[1], [0], [0], [1], [0, 0, 1, 1], [], []>} : vector<2x32xf32>, vector<32x12xf32>, vector<2x12xf32> -> vector<2x12xf32>
    %860 = arith.addf %857, %859 : vector<2x12xf32>
    %861 = vector.broadcast %28 : vector<1x12xf32> to vector<2x12xf32>
    %862 = arith.addf %860, %861 : vector<2x12xf32>
    %c0_137 = arith.constant 0 : index
    %c0_138 = arith.constant 0 : index
    %863 = vector.load %arg7[%c0_137, %c0_138] : memref<8x12xf32, #tpu.memory_space<vmem>>, vector<2x12xf32>
    tpu.vector_store %arg7[%c0_137, %c0_138], %862 {strides = array<i32>} : memref<8x12xf32, #tpu.memory_space<vmem>>, vector<2x12xf32>,
    %864 = vector.extract_strided_slice %807 {offsets = [0, 0], sizes = [2, 32], strides = [1, 1]} : vector<2x64xf32> to vector<2x32xf32>
    %cst_139 = arith.constant dense<0.000000e+00> : vector<2x12xf32>
    %865 = tpu.matmul %864, %25, %cst_139 {dimension_numbers = #tpu.dot_dimension_numbers<[1], [0], [0], [1], [0, 0, 1, 1], [], []>} : vector<2x32xf32>, vector<32x12xf32>, vector<2x12xf32> -> vector<2x12xf32>
    %866 = vector.extract_strided_slice %831 {offsets = [0, 32], sizes = [2, 32], strides = [1, 1]} : vector<2x64xf32> to vector<2x32xf32>
    %cst_140 = arith.constant dense<0.000000e+00> : vector<2x12xf32>
    %867 = tpu.matmul %866, %26, %cst_140 {dimension_numbers = #tpu.dot_dimension_numbers<[1], [0], [0], [1], [0, 0, 1, 1], [], []>} : vector<2x32xf32>, vector<32x12xf32>, vector<2x12xf32> -> vector<2x12xf32>
    %868 = arith.addf %865, %867 : vector<2x12xf32>
    %869 = vector.broadcast %28 : vector<1x12xf32> to vector<2x12xf32>
    %870 = arith.addf %868, %869 : vector<2x12xf32>
    %c2_141 = arith.constant 2 : index
    %c0_142 = arith.constant 0 : index
    %871 = vector.load %arg7[%c2_141, %c0_142] : memref<8x12xf32, #tpu.memory_space<vmem>>, vector<2x12xf32>
    tpu.vector_store %arg7[%c2_141, %c0_142], %870 {strides = array<i32>} : memref<8x12xf32, #tpu.memory_space<vmem>>, vector<2x12xf32>,
    %872 = vector.extract_strided_slice %831 {offsets = [0, 0], sizes = [2, 32], strides = [1, 1]} : vector<2x64xf32> to vector<2x32xf32>
    %cst_143 = arith.constant dense<0.000000e+00> : vector<2x12xf32>
    %873 = tpu.matmul %872, %25, %cst_143 {dimension_numbers = #tpu.dot_dimension_numbers<[1], [0], [0], [1], [0, 0, 1, 1], [], []>} : vector<2x32xf32>, vector<32x12xf32>, vector<2x12xf32> -> vector<2x12xf32>
    %874 = vector.extract_strided_slice %807 {offsets = [0, 32], sizes = [2, 32], strides = [1, 1]} : vector<2x64xf32> to vector<2x32xf32>
    %cst_144 = arith.constant dense<0.000000e+00> : vector<2x12xf32>
    %875 = tpu.matmul %874, %26, %cst_144 {dimension_numbers = #tpu.dot_dimension_numbers<[1], [0], [0], [1], [0, 0, 1, 1], [], []>} : vector<2x32xf32>, vector<32x12xf32>, vector<2x12xf32> -> vector<2x12xf32>
    %876 = arith.addf %873, %875 : vector<2x12xf32>
    %877 = vector.broadcast %28 : vector<1x12xf32> to vector<2x12xf32>
    %878 = arith.addf %876, %877 : vector<2x12xf32>
    %c4_145 = arith.constant 4 : index
    %c0_146 = arith.constant 0 : index
    %879 = vector.load %arg7[%c4_145, %c0_146] : memref<8x12xf32, #tpu.memory_space<vmem>>, vector<2x12xf32>
    tpu.vector_store %arg7[%c4_145, %c0_146], %878 {strides = array<i32>} : memref<8x12xf32, #tpu.memory_space<vmem>>, vector<2x12xf32>,
    %880 = vector.extract_strided_slice %855 {offsets = [0, 0], sizes = [2, 32], strides = [1, 1]} : vector<2x64xf32> to vector<2x32xf32>
    %cst_147 = arith.constant dense<0.000000e+00> : vector<2x12xf32>
    %881 = tpu.matmul %880, %25, %cst_147 {dimension_numbers = #tpu.dot_dimension_numbers<[1], [0], [0], [1], [0, 0, 1, 1], [], []>} : vector<2x32xf32>, vector<32x12xf32>, vector<2x12xf32> -> vector<2x12xf32>
    %882 = vector.extract_strided_slice %783 {offsets = [0, 32], sizes = [2, 32], strides = [1, 1]} : vector<2x64xf32> to vector<2x32xf32>
    %cst_148 = arith.constant dense<0.000000e+00> : vector<2x12xf32>
    %883 = tpu.matmul %882, %26, %cst_148 {dimension_numbers = #tpu.dot_dimension_numbers<[1], [0], [0], [1], [0, 0, 1, 1], [], []>} : vector<2x32xf32>, vector<32x12xf32>, vector<2x12xf32> -> vector<2x12xf32>
    %884 = arith.addf %881, %883 : vector<2x12xf32>
    %885 = vector.broadcast %28 : vector<1x12xf32> to vector<2x12xf32>
    %886 = arith.addf %884, %885 : vector<2x12xf32>
    %c6_149 = arith.constant 6 : index
    %c0_150 = arith.constant 0 : index
    %887 = vector.load %arg7[%c6_149, %c0_150] : memref<8x12xf32, #tpu.memory_space<vmem>>, vector<2x12xf32>
    tpu.vector_store %arg7[%c6_149, %c0_150], %886 {strides = array<i32>} : memref<8x12xf32, #tpu.memory_space<vmem>>, vector<2x12xf32>,
    return
  }
}

</mosaic_0001>

<llo_original>
// kernel: rnn_vae_legacy_forward.1
$region0: #{rnn_vae_legacy_forward.1}
  #allocation0 [shape = 'u32[]', space=smem, size = 0x4, offset = 0x4, fixed_abs, tag = 'smem constant byte address 0x4 - core index']
  #allocation1 [shape = 'u32[144,128]{1,0:T(1,128)}', space=vmem, size = 0x12000, scoped, tag = 'internal scratch']
  %s0 = inlined_call_operand.vmem [shape: f32[16,12], index: 0, kind: input, shape index: {}]
  %s1 = inlined_call_operand.vmem [shape: f32[224,192], index: 1, kind: input, shape index: {}]
  %s2 = inlined_call_operand.vmem [shape: f32[80,384], index: 2, kind: input, shape index: {}]
  %s3 = inlined_call_operand.vmem [shape: f32[144,288], index: 3, kind: input, shape index: {}]
  %s4 = inlined_call_operand.vmem [shape: f32[96,12], index: 4, kind: input, shape index: {}]
  %s5 = inlined_call_operand.vmem [shape: f32[10,288], index: 5, kind: input, shape index: {}]
  %s6 = inlined_call_operand.vmem [shape: f32[16,12], index: 6, kind: output, shape index: {0}]
  %s7 = inlined_call_operand.vmem [shape: f32[8,12], index: 7, kind: output, shape index: {1}]
  %s8 = inlined_call_operand.hbm [shape: f32[2,16], index: 8, kind: output, shape index: {2}]
  %s9 = inlined_call_operand.hbm [shape: f32[2,16], index: 9, kind: output, shape index: {3}]
  %s10 = inlined_call_operand.hbm [shape: f32[2,16], index: 10, kind: output, shape index: {4}]
  %11 = xla_tuple %s6, %s7, %s8, %s9, %s10
  %s12 = sld [smem:[#allocation0]]
  $region66: #{rnn_vae_legacy_forward.1} parent=0
    _
  %s14 = ssub.s32 1, %s12
  %s15 = scalar_select 0, %s14, %s12
  $region1: #{rnn_vae_legacy_forward.1} parent=0
    #allocation2 [shape = 'u8[1024]{0}', space=vmem, size = 0x400, scoped, tag = 'output window, operand 2, single buffered']
    #allocation3 [shape = 's32[1]{0}', space=sflag, size = 0x4, scoped, tag = 'scoped memory for rnn_vae_legacy_forward.1']
    #allocation4 [shape = 'u8[1024]{0}', space=vmem, size = 0x400, scoped, tag = 'output window, operand 3, single buffered']
    #allocation5 [shape = 's32[1]{0}', space=sflag, size = 0x4, scoped, tag = 'scoped memory for rnn_vae_legacy_forward.1']
    #allocation6 [shape = 'u8[1024]{0}', space=vmem, size = 0x400, scoped, tag = 'output window, operand 4, single buffered']
    %16 = vsyncpa [#allocation3], 0
    %17 = vsyncpa [#allocation5], 0
    // Predicated region
    $region2: #{rnn_vae_legacy_forward.1} parent=1 // pred_check
      _
    $region3: #{rnn_vae_legacy_forward.1} parent=1 // pred_check_branch
      %19 = sbr.rel (0) target = $region5
    $region4: #{rnn_vae_legacy_forward.1} parent=1 // pred_region
      _
    $region5: #{rnn_vae_legacy_forward.1} parent=1 // pred_fallthru
      _
    // Predicated region
    $region6: #{rnn_vae_legacy_forward.1} parent=1 // pred_check
      _
    $region7: #{rnn_vae_legacy_forward.1} parent=1 // pred_check_branch
      %21 = sbr.rel (0) target = $region9
    $region8: #{rnn_vae_legacy_forward.1} parent=1 // pred_region
      _
    $region9: #{rnn_vae_legacy_forward.1} parent=1 // pred_fallthru
      _
    // Predicated region
    $region10: #{rnn_vae_legacy_forward.1} parent=1 // pred_check
      _
    $region11: #{rnn_vae_legacy_forward.1} parent=1 // pred_check_branch
      %23 = sbr.rel (0) target = $region13
    $region12: #{rnn_vae_legacy_forward.1} parent=1 // pred_region
      _
    $region13: #{rnn_vae_legacy_forward.1} parent=1 // pred_fallthru
      _
    // Predicated region
    $region14: #{rnn_vae_legacy_forward.1} parent=1 // pred_check
      _
    $region15: #{rnn_vae_legacy_forward.1} parent=1 // pred_check_branch
      %25 = sbr.rel (0) target = $region17
    $region16: #{rnn_vae_legacy_forward.1} parent=1 // pred_region
      _
    $region17: #{rnn_vae_legacy_forward.1} parent=1 // pred_fallthru
      _
    // Predicated region
    $region18: #{rnn_vae_legacy_forward.1} parent=1 // pred_check
      _
    $region19: #{rnn_vae_legacy_forward.1} parent=1 // pred_check_branch
      %27 = sbr.rel (0) target = $region21
    $region20: #{rnn_vae_legacy_forward.1} parent=1 // pred_region
      _
    $region21: #{rnn_vae_legacy_forward.1} parent=1 // pred_fallthru
      _
    // Predicated region
    $region22: #{rnn_vae_legacy_forward.1} parent=1 // pred_check
      _
    $region23: #{rnn_vae_legacy_forward.1} parent=1 // pred_check_branch
      %29 = sbr.rel (0) target = $region25
    $region24: #{rnn_vae_legacy_forward.1} parent=1 // pred_region
      _
    $region25: #{rnn_vae_legacy_forward.1} parent=1 // pred_fallthru
      _
    %v30 = vld [vmem:[%s1] sm:$0xff]
    %v31 = vld [vmem:[%s1 + $0x8] sm:$0xff]
    %v32 = vld [vmem:[%s1 + $0x10] sm:$0xff]
    %v33 = vld [vmem:[%s1 + $0x18] sm:$0xff]
    %v34 = vld [vmem:[%s1 + $0x20] sm:$0xff]
    %v35 = vld [vmem:[%s1 + $0x28] sm:$0xff]
    %v36 = vld [vmem:[%s1 + $0x30] sm:$0xff]
    %v37 = vld [vmem:[%s1 + $0x38] sm:$0xff]
    %v38 = vld [vmem:[%s1 + $0x40] sm:$0xff]
    %v39 = vld [vmem:[%s1 + $0x48] sm:$0xff]
    %v40 = vld [vmem:[%s1 + $0x50] sm:$0xff]
    %v41 = vld [vmem:[%s1 + $0x58] sm:$0xff]
    %v42 = vld [vmem:[%s1 + $0x60] sm:$0xff]
    %v43 = vld [vmem:[%s1 + $0x68] sm:$0xff]
    %v44 = vld [vmem:[%s1 + $0x70] sm:$0xff]
    %v45 = vld [vmem:[%s1 + $0x78] sm:$0xff]
    %v46 = vld [vmem:[%s1 + $0x80] sm:$0xff]
    %v47 = vld [vmem:[%s1 + $0x88] sm:$0xff]
    %v48 = vld [vmem:[%s1 + $0x90] sm:$0xff]
    %v49 = vld [vmem:[%s1 + $0x98] sm:$0xff]
    %v50 = vld [vmem:[%s1 + $0xa0] sm:$0xff]
    %v51 = vld [vmem:[%s1 + $0xa8] sm:$0xff]
    %v52 = vld [vmem:[%s1 + $0xb0] sm:$0xff]
    %v53 = vld [vmem:[%s1 + $0xb8] sm:$0xff]
    %v54 = vld [vmem:[%s1 + $0xc0] sm:$0xff]
    %v55 = vld [vmem:[%s1 + $0xc8] sm:$0xff]
    %v56 = vld [vmem:[%s1 + $0xd0] sm:$0xff]
    %v57 = vld [vmem:[%s1 + $0xd8] sm:$0xff]
    %v58 = vld [vmem:[%s1 + $0xe0] sm:$0xff]
    %v59 = vld [vmem:[%s1 + $0xe8] sm:$0xff]
    %v60 = vld [vmem:[%s1 + $0xf0] sm:$0xff]
    %v61 = vld [vmem:[%s1 + $0xf8] sm:$0xff]
    %v62 = vld [vmem:[%s1 + $0x100] sm:$0xff]
    %v63 = vld [vmem:[%s1 + $0x110] sm:$0xff]
    %v64 = vld [vmem:[%s1 + $0x120] sm:$0xff]
    %v65 = vld [vmem:[%s1 + $0x130] sm:$0xff]
    %v66 = vld [vmem:[%s1 + $0x140] sm:$0xff]
    %v67 = vld [vmem:[%s1 + $0x148] sm:$0xff]
    %v68 = vld [vmem:[%s1 + $0x150] sm:$0xff]
    %v69 = vld [vmem:[%s1 + $0x158] sm:$0xff]
    %v70 = vld [vmem:[%s1 + $0x160] sm:$0xff]
    %v71 = vld [vmem:[%s1 + $0x168] sm:$0xff]
    %v72 = vld [vmem:[%s1 + $0x170] sm:$0xff]
    %v73 = vld [vmem:[%s1 + $0x178] sm:$0xff]
    %v74 = vld [vmem:[%s1 + $0x180] sm:$0xff]
    %v75 = vld [vmem:[%s1 + $0x188] sm:$0xff]
    %v76 = vld [vmem:[%s1 + $0x190] sm:$0xff]
    %v77 = vld [vmem:[%s1 + $0x198] sm:$0xff]
    %v78 = vld [vmem:[%s1 + $0x1a0] sm:$0xff]
    %v79 = vld [vmem:[%s1 + $0x1a8] sm:$0xff]
    %v80 = vld [vmem:[%s1 + $0x1b0] sm:$0xff]
    %v81 = vld [vmem:[%s1 + $0x1b8] sm:$0xff]
    %v82 = vld [vmem:[%s2] sm:$0xff]
    %v83 = vld [vmem:[%s2 + $0x8] sm:$0xff]
    %v84 = vld [vmem:[%s2 + $0x10] sm:$0xff]
    %v85 = vld [vmem:[%s2 + $0x18] sm:$0xff]
    %v86 = vld [vmem:[%s2 + $0x20] sm:$0xff]
    %v87 = vld [vmem:[%s2 + $0x28] sm:$0xff]
    %v88 = vld [vmem:[%s2 + $0x30] sm:$0xff]
    %v89 = vld [vmem:[%s2 + $0x38] sm:$0xff]
    %v90 = vld [vmem:[%s2 + $0x40] sm:$0xff]
    %v91 = vld [vmem:[%s2 + $0x48] sm:$0xff]
    %v92 = vld [vmem:[%s2 + $0x50] sm:$0xff]
    %v93 = vld [vmem:[%s2 + $0x58] sm:$0xff]
    %v94 = vld [vmem:[%s2 + $0x60] sm:$0xff]
    %v95 = vld [vmem:[%s2 + $0x68] sm:$0xff]
    %v96 = vld [vmem:[%s2 + $0x70] sm:$0xff]
    %v97 = vld [vmem:[%s2 + $0x78] sm:$0xff]
    %v98 = vld [vmem:[%s2 + $0x80] sm:$0xff]
    %v99 = vld [vmem:[%s2 + $0x88] sm:$0xff]
    %v100 = vld [vmem:[%s2 + $0x90] sm:$0xff]
    %v101 = vld [vmem:[%s2 + $0x98] sm:$0xff]
    %v102 = vld [vmem:[%s2 + $0xa0] sm:$0xff]
    %v103 = vld [vmem:[%s2 + $0xa8] sm:$0xff]
    %v104 = vld [vmem:[%s2 + $0xb0] sm:$0xff]
    %v105 = vld [vmem:[%s2 + $0xb8] sm:$0xff]
    %v106 = vld [vmem:[%s2 + $0xc0] sm:$0xff]
    %v107 = vld [vmem:[%s2 + $0xc8] sm:$0xff]
    %v108 = vld [vmem:[%s2 + $0xd0] sm:$0xff]
    %v109 = vld [vmem:[%s2 + $0xd8] sm:$0xff]
    %v110 = vld [vmem:[%s2 + $0xe0] sm:$0xff]
    %v111 = vld [vmem:[%s2 + $0xe8] sm:$0xff]
    %v112 = vld [vmem:[%s3] sm:$0xff]
    %v113 = vld [vmem:[%s3 + $0x18] sm:$0xff]
    %v114 = vld [vmem:[%s3 + $0x30] sm:$0xff]
    %v115 = vld [vmem:[%s3 + $0x48] sm:$0xff]
    %v116 = vld [vmem:[%s3 + $0x60] sm:$0xff]
    %v117 = vld [vmem:[%s3 + $0x78] sm:$0xff]
    %v118 = vld [vmem:[%s3 + $0x90] sm:$0xff]
    %v119 = vld [vmem:[%s3 + $0xa8] sm:$0xff]
    %v120 = vld [vmem:[%s3 + $0xc0] sm:$0xff]
    %v121 = vld [vmem:[%s3 + $0xd8] sm:$0xff]
    %v122 = vld [vmem:[%s3 + $0xf0] sm:$0xff]
    %v123 = vld [vmem:[%s3 + $0x108] sm:$0xff]
    %v124 = vld [vmem:[%s3 + $0x120] sm:$0xff]
    %v125 = vld [vmem:[%s3 + $0x138] sm:$0xff]
    %v126 = vld [vmem:[%s3 + $0x150] sm:$0xff]
    %v127 = vld [vmem:[%s3 + $0x168] sm:$0xff]
    %v128 = vld [vmem:[%s3 + $0x180] sm:$0xff]
    %v129 = vld [vmem:[%s3 + $0x188] sm:$0xff]
    %v130 = vld [vmem:[%s3 + $0x190] sm:$0xff]
    %v131 = vld [vmem:[%s3 + $0x198] sm:$0xff]
    %v132 = vld [vmem:[%s3 + $0x1a0] sm:$0xff]
    %v133 = vld [vmem:[%s3 + $0x1a8] sm:$0xff]
    %v134 = vld [vmem:[%s4] sm:$0xff]
    %v135 = vld [vmem:[%s4 + $0x8] sm:$0xff]
    %v136 = vld [vmem:[%s4 + $0x10] sm:$0xff]
    %v137 = vld [vmem:[%s4 + $0x18] sm:$0xff]
    %v138 = vld [vmem:[%s4 + $0x20] sm:$0xff]
    %v139 = vld [vmem:[%s4 + $0x28] sm:$0xff]
    %v140 = vld [vmem:[%s4 + $0x30] sm:$0xff]
    %v141 = vld [vmem:[%s4 + $0x38] sm:$0xff]
    %v142 = vld [vmem:[%s4 + $0x40] sm:$0xff]
    %v143 = vld [vmem:[%s4 + $0x48] sm:$0xff]
    %v144 = vld [vmem:[%s4 + $0x50] sm:$0xff]
    %v145 = vld [vmem:[%s4 + $0x58] sm:$0xff]
    %v146 = vld [vmem:[%s5] sm:$0xff]
    %v147 = vld [vmem:[%s5 + $0x8] sm:$0xff]
    %v148 = vld [vmem:[%s5 + $0x10] sm:$0xff]
    %v149 = vld [vmem:[%s5 + $0x18] sm:$0x3]
    %v150 = vld [vmem:[%s0] sm:$0xff]
    %v151 = vld [vmem:[%s0 + $0x8] sm:$0xff]
    %vm152 = vcmask 97280
    %v154 = vsel %vm152, %v150, 0
    %v157 = vsel %vm152, %v151, 0
    %vm159 = vcmask 1043456
    %v161 = vsel %vm159, %v85, 0
    %v164 = vsel %vm159, %v86, 0
    %v167 = vsel %vm159, %v87, 0
    %169 = vmatprep.subr.mxu0 0.0
    %170 = vmatpush1.msra.mxu0 0.0
    %171 = vmatprep.subr.mxu0 0.0
    %172 = vmatpush1.msra.mxu0 0.0
    %173 = vmatprep.subr.mxu0 0.0
    %174 = vmatpush1.msra.mxu0 0.0
    %175 = vmatprep.subr.mxu0 0.0
    %176 = vmatpush1.msra.mxu0 0.0
    %177 = vmatprep.subr.mxu0 0.0
    %178 = vmatpush1.msra.mxu0 0.0
    %179 = vmatprep.subr.mxu0 0.0
    %180 = vmatpush1.msra.mxu0 0.0
    %181 = vmatprep.subr.mxu0 0.0
    %182 = vmatpush1.msra.mxu0 0.0
    %183 = vmatprep.subr.mxu0 0.0
    %184 = vmatpush1.msra.mxu0 0.0
    %185 = vmatprep.subr.mxu0 0.0
    %186 = vmatpush1.msra.mxu0 0.0
    %187 = vmatprep.subr.mxu0 0.0
    %188 = vmatpush1.msra.mxu0 0.0
    %189 = vmatprep.subr.mxu0 0.0
    %190 = vmatpush1.msra.mxu0 0.0
    %191 = vmatprep.subr.mxu0 0.0
    %192 = vmatpush1.msra.mxu0 0.0
    %193 = vmatprep.subr.mxu0 0.0
    %194 = vmatpush1.msra.mxu0 0.0
    %195 = vmatprep.subr.mxu0 0.0
    %196 = vmatpush1.msra.mxu0 0.0
    %197 = vmatprep.subr.mxu0 %v164
    %198 = vmatpush1.msra.mxu0 %v161
    %199 = vmatprep.subr.mxu0 %v83
    %200 = vmatpush1.msra.mxu0 %v82
    %201 = vmatprep.subr.mxu0 0.0
    %202 = vmatpush2.msra.mxu0 0.0
    %203 = vmatprep.subr.mxu0 0.0
    %204 = vmatpush2.msra.mxu0 0.0
    %205 = vmatprep.subr.mxu0 0.0
    %206 = vmatpush2.msra.mxu0 0.0
    %207 = vmatprep.subr.mxu0 0.0
    %208 = vmatpush2.msra.mxu0 0.0
    %209 = vmatprep.subr.mxu0 0.0
    %210 = vmatpush2.msra.mxu0 0.0
    %211 = vmatprep.subr.mxu0 0.0
    %212 = vmatpush2.msra.mxu0 0.0
    %213 = vmatprep.subr.mxu0 0.0
    %214 = vmatpush2.msra.mxu0 0.0
    %215 = vmatprep.subr.mxu0 0.0
    %216 = vmatpush2.msra.mxu0 0.0
    %217 = vmatprep.subr.mxu0 0.0
    %218 = vmatpush2.msra.mxu0 0.0
    %219 = vmatprep.subr.mxu0 0.0
    %220 = vmatpush2.msra.mxu0 0.0
    %221 = vmatprep.subr.mxu0 0.0
    %222 = vmatpush2.msra.mxu0 0.0
    %223 = vmatprep.subr.mxu0 0.0
    %224 = vmatpush2.msra.mxu0 0.0
    %225 = vmatprep.subr.mxu0 0.0
    %226 = vmatpush2.msra.mxu0 0.0
    %227 = vmatprep.subr.mxu0 0.0
    %228 = vmatpush2.msra.mxu0 0.0
    %229 = vmatprep.subr.mxu0 0.0
    %230 = vmatpush2.msra.mxu0 0.0
    %231 = vmatprep.subr.mxu0 0.0
    %232 = vmatpush2.msra.mxu0 0.0
    %233 = vmatprep.mubr.f32.mxu0 0.0
    %234 = vmatmul.mubr.f32.gmra.mxu0 %v154
    %v235 = vpop.f32.mrf.mxu0
    %v236 = vadd.f32 0.0, %v235
    %v237 = vpop.f32.mrf.mxu0
    %v238 = vadd.f32 0.0, %v237
    %239 = vmatprep.mubr.f32.mxu0 0.0
    %240 = vmatmul.mubr.f32.gmra.mxu0 %v157
    %v241 = vpop.f32.mrf.mxu0
    %v242 = vadd.f32 0.0, %v241
    %v243 = vpop.f32.mrf.mxu0
    %v244 = vadd.f32 0.0, %v243
    %245 = vdwg.mxu0
    %246 = vmatprep.subr.mxu0 0.0
    %247 = vmatpush1.msra.mxu0 0.0
    %248 = vmatprep.subr.mxu0 0.0
    %249 = vmatpush1.msra.mxu0 0.0
    %250 = vmatprep.subr.mxu0 0.0
    %251 = vmatpush1.msra.mxu0 0.0
    %252 = vmatprep.subr.mxu0 0.0
    %253 = vmatpush1.msra.mxu0 0.0
    %254 = vmatprep.subr.mxu0 0.0
    %255 = vmatpush1.msra.mxu0 0.0
    %256 = vmatprep.subr.mxu0 0.0
    %257 = vmatpush1.msra.mxu0 0.0
    %258 = vmatprep.subr.mxu0 0.0
    %259 = vmatpush1.msra.mxu0 0.0
    %260 = vmatprep.subr.mxu0 0.0
    %261 = vmatpush1.msra.mxu0 0.0
    %262 = vmatprep.subr.mxu0 0.0
    %263 = vmatpush1.msra.mxu0 0.0
    %264 = vmatprep.subr.mxu0 0.0
    %265 = vmatpush1.msra.mxu0 0.0
    %266 = vmatprep.subr.mxu0 0.0
    %267 = vmatpush1.msra.mxu0 0.0
    %268 = vmatprep.subr.mxu0 0.0
    %269 = vmatpush1.msra.mxu0 0.0
    %270 = vmatprep.subr.mxu0 0.0
    %271 = vmatpush1.msra.mxu0 0.0
    %272 = vmatprep.subr.mxu0 0.0
    %273 = vmatpush1.msra.mxu0 0.0
    %274 = vmatprep.subr.mxu0 0.0
    %275 = vmatpush1.msra.mxu0 %v167
    %276 = vmatprep.subr.mxu0 0.0
    %277 = vmatpush1.msra.mxu0 %v84
    %278 = vmatprep.subr.mxu0 0.0
    %279 = vmatpush2.msra.mxu0 0.0
    %280 = vmatprep.subr.mxu0 0.0
    %281 = vmatpush2.msra.mxu0 0.0
    %282 = vmatprep.subr.mxu0 0.0
    %283 = vmatpush2.msra.mxu0 0.0
    %284 = vmatprep.subr.mxu0 0.0
    %285 = vmatpush2.msra.mxu0 0.0
    %286 = vmatprep.subr.mxu0 0.0
    %287 = vmatpush2.msra.mxu0 0.0
    %288 = vmatprep.subr.mxu0 0.0
    %289 = vmatpush2.msra.mxu0 0.0
    %290 = vmatprep.subr.mxu0 0.0
    %291 = vmatpush2.msra.mxu0 0.0
    %292 = vmatprep.subr.mxu0 0.0
    %293 = vmatpush2.msra.mxu0 0.0
    %294 = vmatprep.subr.mxu0 0.0
    %295 = vmatpush2.msra.mxu0 0.0
    %296 = vmatprep.subr.mxu0 0.0
    %297 = vmatpush2.msra.mxu0 0.0
    %298 = vmatprep.subr.mxu0 0.0
    %299 = vmatpush2.msra.mxu0 0.0
    %300 = vmatprep.subr.mxu0 0.0
    %301 = vmatpush2.msra.mxu0 0.0
    %302 = vmatprep.subr.mxu0 0.0
    %303 = vmatpush2.msra.mxu0 0.0
    %304 = vmatprep.subr.mxu0 0.0
    %305 = vmatpush2.msra.mxu0 0.0
    %306 = vmatprep.subr.mxu0 0.0
    %307 = vmatpush2.msra.mxu0 0.0
    %308 = vmatprep.subr.mxu0 0.0
    %309 = vmatpush2.msra.mxu0 0.0
    %310 = vmatprep.mubr.f32.mxu0 0.0
    %311 = vmatmul.mubr.f32.gmra.mxu0 %v154
    %v312 = vpop.f32.mrf.mxu0
    %v313 = vadd.f32 0.0, %v312
    %v314 = vpop.f32.mrf.mxu0
    %315 = vmatprep.mubr.f32.mxu0 0.0
    %316 = vmatmul.mubr.f32.gmra.mxu0 %v157
    %v317 = vpop.f32.mrf.mxu0
    %v318 = vadd.f32 0.0, %v317
    %v319 = vpop.f32.mrf.mxu0
    %320 = vdwg.mxu0
    %v323 = vrot.slane %v244, 6
    %v324 = vrot.slane %v318, 6
    %325 = vrot.lane.b32.xlu0 %v323, 64
    %v326 = vpop.permute.xlu0 %325
    %327 = vrot.lane.b32.xlu0 %v324, 64
    %v328 = vpop.permute.xlu0 %327
    %vm329 = vcmask 523264
    %v330 = vsel %vm329, %v326, %v328
    %v333 = vadd.f32 %v236, %v330
    %v334 = vadd.f32 %v238, %v328
    %v335 = vlaneseq
    %v336 = vshrl.u32 %v335, 7
    %v337 = vsub.s32 0, %v336
    %v338 = vrot.slane %v146, %v337
    %v339 = vlaneseq
    %v340 = vshrl.u32 %v339, 7
    %v341 = vsub.s32 0, %v340
    %v342 = vrot.slane %v147, %v341
    %v343 = vadd.f32 %v333, %v338
    %v344 = vadd.f32 %v334, %v342
    %v345 = vrot.slane %v244, 2
    %v346 = vrot.slane %v318, 2
    %347 = vrot.lane.b32.xlu0 %v345, 64
    %v348 = vpop.permute.xlu0 %347
    %349 = vrot.lane.b32.xlu0 %v346, 64
    %v350 = vpop.permute.xlu0 %349
    %v351 = vsel %vm329, %v348, %v350
    %v354 = vadd.f32 %v236, %v351
    %v355 = vadd.f32 %v238, %v350
    %v356 = vadd.f32 %v354, %v338
    %v357 = vadd.f32 %v355, %v342
    %v360 = vrot.slane %v238, 6
    %v361 = vrot.slane %v313, 6
    %362 = vrot.lane.b32.xlu0 %v360, 64
    %v363 = vpop.permute.xlu0 %362
    %364 = vrot.lane.b32.xlu0 %v361, 64
    %v365 = vpop.permute.xlu0 %364
    %v366 = vsel %vm329, %v363, %v365
    %v369 = vadd.f32 %v242, %v366
    %v370 = vadd.f32 %v244, %v365
    %v371 = vadd.f32 %v369, %v338
    %v372 = vadd.f32 %v370, %v342
    %v373 = vrot.slane %v238, 2
    %v374 = vrot.slane %v313, 2
    %375 = vrot.lane.b32.xlu0 %v373, 64
    %v376 = vpop.permute.xlu0 %375
    %377 = vrot.lane.b32.xlu0 %v374, 64
    %v378 = vpop.permute.xlu0 %377
    %v379 = vsel %vm329, %v376, %v378
    %v382 = vadd.f32 %v242, %v379
    %v383 = vadd.f32 %v244, %v378
    %v384 = vadd.f32 %v382, %v338
    %v385 = vadd.f32 %v383, %v342
    %v386 = vxor.u32 %v343, 2147483648
    %v387 = vmul.f32 %v386, 1.442695
    %v388 = vpow.pop %v387
    %v389 = vadd.f32 %v388, 1.0
    %v390 = vrcp.pop %v389
    %v391 = vmul.f32 1.0, %v390
    %v392 = vlaneseq
    %v393 = vshrl.u32 %v392, 7
    %v394 = vsub.s32 1, %v393
    %v395 = vrot.slane %v146, %v394
    %v396 = vmul.f32 %v391, %v395
    %v397 = vadd.f32 %v344, %v396
    %v398 = vtanh.pop %v397
    %v399 = vsub.f32 1.0, %v391
    %401 = vrot.lane.b32.xlu0 %v398, 64
    %v402 = vpop.permute.xlu0 %401
    %v404 = vmul.f32 %v399, %v402
    %406 = vrot.lane.b32.xlu0 %v404, 64
    %v407 = vpop.permute.xlu0 %406
    %v408 = vsel %vm329, %v407, 0
    %410 = vmatprep.subr.mxu0 0.0
    %411 = vmatpush1.msra.mxu0 0.0
    %412 = vmatprep.subr.mxu0 0.0
    %413 = vmatpush1.msra.mxu0 0.0
    %414 = vmatprep.subr.mxu0 0.0
    %415 = vmatpush1.msra.mxu0 0.0
    %416 = vmatprep.subr.mxu0 0.0
    %417 = vmatpush1.msra.mxu0 0.0
    %418 = vmatprep.subr.mxu0 0.0
    %419 = vmatpush1.msra.mxu0 0.0
    %420 = vmatprep.subr.mxu0 0.0
    %421 = vmatpush1.msra.mxu0 0.0
    %422 = vmatprep.subr.mxu0 0.0
    %423 = vmatpush1.msra.mxu0 0.0
    %424 = vmatprep.subr.mxu0 0.0
    %425 = vmatpush1.msra.mxu0 0.0
    %426 = vmatprep.subr.mxu0 %v45
    %427 = vmatpush1.msra.mxu0 %v44
    %428 = vmatprep.subr.mxu0 %v43
    %429 = vmatpush1.msra.mxu0 %v42
    %430 = vmatprep.subr.mxu0 %v41
    %431 = vmatpush1.msra.mxu0 %v40
    %432 = vmatprep.subr.mxu0 %v39
    %433 = vmatpush1.msra.mxu0 %v38
    %434 = vmatprep.subr.mxu0 %v37
    %435 = vmatpush1.msra.mxu0 %v36
    %436 = vmatprep.subr.mxu0 %v35
    %437 = vmatpush1.msra.mxu0 %v34
    %438 = vmatprep.subr.mxu0 %v33
    %439 = vmatpush1.msra.mxu0 %v32
    %440 = vmatprep.subr.mxu0 %v31
    %441 = vmatpush1.msra.mxu0 %v30
    %442 = vmatprep.subr.mxu0 0.0
    %443 = vmatpush2.msra.mxu0 0.0
    %444 = vmatprep.subr.mxu0 0.0
    %445 = vmatpush2.msra.mxu0 0.0
    %446 = vmatprep.subr.mxu0 0.0
    %447 = vmatpush2.msra.mxu0 0.0
    %448 = vmatprep.subr.mxu0 0.0
    %449 = vmatpush2.msra.mxu0 0.0
    %450 = vmatprep.subr.mxu0 0.0
    %451 = vmatpush2.msra.mxu0 0.0
    %452 = vmatprep.subr.mxu0 0.0
    %453 = vmatpush2.msra.mxu0 0.0
    %454 = vmatprep.subr.mxu0 0.0
    %455 = vmatpush2.msra.mxu0 0.0
    %456 = vmatprep.subr.mxu0 0.0
    %457 = vmatpush2.msra.mxu0 0.0
    %458 = vmatprep.subr.mxu0 0.0
    %459 = vmatpush2.msra.mxu0 0.0
    %460 = vmatprep.subr.mxu0 0.0
    %461 = vmatpush2.msra.mxu0 0.0
    %462 = vmatprep.subr.mxu0 0.0
    %463 = vmatpush2.msra.mxu0 0.0
    %464 = vmatprep.subr.mxu0 0.0
    %465 = vmatpush2.msra.mxu0 0.0
    %466 = vmatprep.subr.mxu0 0.0
    %467 = vmatpush2.msra.mxu0 0.0
    %468 = vmatprep.subr.mxu0 0.0
    %469 = vmatpush2.msra.mxu0 0.0
    %470 = vmatprep.subr.mxu0 0.0
    %471 = vmatpush2.msra.mxu0 0.0
    %472 = vmatprep.subr.mxu0 0.0
    %473 = vmatpush2.msra.mxu0 0.0
    %474 = vmatprep.mubr.f32.mxu0 0.0
    %475 = vmatmul.mubr.f32.gmra.mxu0 %v408
    %v476 = vpop.f32.mrf.mxu0
    %v477 = vadd.f32 0.0, %v476
    %v478 = vpop.f32.mrf.mxu0
    %v479 = vadd.f32 0.0, %v478
    %480 = vdwg.mxu0
    %v482 = vrot.slane %v477, 6
    %v484 = vadd.f32 %v356, %v482
    %v485 = vxor.u32 %v484, 2147483648
    %v486 = vmul.f32 %v485, 1.442695
    %v487 = vpow.pop %v486
    %v488 = vadd.f32 %v487, 1.0
    %v489 = vrcp.pop %v488
    %v490 = vmul.f32 1.0, %v489
    %v491 = vadd.f32 %v479, %v395
    %v493 = vrot.slane %v491, 6
    %v495 = vmul.f32 %v490, %v493
    %v496 = vadd.f32 %v357, %v495
    %v497 = vtanh.pop %v496
    %v498 = vsub.f32 1.0, %v490
    %500 = vrot.lane.b32.xlu0 %v497, 64
    %v501 = vpop.permute.xlu0 %500
    %v503 = vmul.f32 %v498, %v501
    %v504 = vrot.slane %v404, 6
    %v506 = vmul.f32 %v490, %v504
    %v507 = vadd.f32 %v503, %v506
    %v509 = vrot.slane %v507, 2
    %510 = vrot.lane.b32.xlu0 %v509, 64
    %v511 = vpop.permute.xlu0 %510
    %v512 = vsel %vm329, %v511, 0
    %514 = vmatprep.subr.mxu0 0.0
    %515 = vmatpush1.msra.mxu0 0.0
    %516 = vmatprep.subr.mxu0 0.0
    %517 = vmatpush1.msra.mxu0 0.0
    %518 = vmatprep.subr.mxu0 0.0
    %519 = vmatpush1.msra.mxu0 0.0
    %520 = vmatprep.subr.mxu0 0.0
    %521 = vmatpush1.msra.mxu0 0.0
    %522 = vmatprep.subr.mxu0 0.0
    %523 = vmatpush1.msra.mxu0 0.0
    %524 = vmatprep.subr.mxu0 0.0
    %525 = vmatpush1.msra.mxu0 0.0
    %526 = vmatprep.subr.mxu0 0.0
    %527 = vmatpush1.msra.mxu0 0.0
    %528 = vmatprep.subr.mxu0 0.0
    %529 = vmatpush1.msra.mxu0 0.0
    %530 = vmatprep.subr.mxu0 %v45
    %531 = vmatpush1.msra.mxu0 %v44
    %532 = vmatprep.subr.mxu0 %v43
    %533 = vmatpush1.msra.mxu0 %v42
    %534 = vmatprep.subr.mxu0 %v41
    %535 = vmatpush1.msra.mxu0 %v40
    %536 = vmatprep.subr.mxu0 %v39
    %537 = vmatpush1.msra.mxu0 %v38
    %538 = vmatprep.subr.mxu0 %v37
    %539 = vmatpush1.msra.mxu0 %v36
    %540 = vmatprep.subr.mxu0 %v35
    %541 = vmatpush1.msra.mxu0 %v34
    %542 = vmatprep.subr.mxu0 %v33
    %543 = vmatpush1.msra.mxu0 %v32
    %544 = vmatprep.subr.mxu0 %v31
    %545 = vmatpush1.msra.mxu0 %v30
    %546 = vmatprep.subr.mxu0 0.0
    %547 = vmatpush2.msra.mxu0 0.0
    %548 = vmatprep.subr.mxu0 0.0
    %549 = vmatpush2.msra.mxu0 0.0
    %550 = vmatprep.subr.mxu0 0.0
    %551 = vmatpush2.msra.mxu0 0.0
    %552 = vmatprep.subr.mxu0 0.0
    %553 = vmatpush2.msra.mxu0 0.0
    %554 = vmatprep.subr.mxu0 0.0
    %555 = vmatpush2.msra.mxu0 0.0
    %556 = vmatprep.subr.mxu0 0.0
    %557 = vmatpush2.msra.mxu0 0.0
    %558 = vmatprep.subr.mxu0 0.0
    %559 = vmatpush2.msra.mxu0 0.0
    %560 = vmatprep.subr.mxu0 0.0
    %561 = vmatpush2.msra.mxu0 0.0
    %562 = vmatprep.subr.mxu0 0.0
    %563 = vmatpush2.msra.mxu0 0.0
    %564 = vmatprep.subr.mxu0 0.0
    %565 = vmatpush2.msra.mxu0 0.0
    %566 = vmatprep.subr.mxu0 0.0
    %567 = vmatpush2.msra.mxu0 0.0
    %568 = vmatprep.subr.mxu0 0.0
    %569 = vmatpush2.msra.mxu0 0.0
    %570 = vmatprep.subr.mxu0 0.0
    %571 = vmatpush2.msra.mxu0 0.0
    %572 = vmatprep.subr.mxu0 0.0
    %573 = vmatpush2.msra.mxu0 0.0
    %574 = vmatprep.subr.mxu0 0.0
    %575 = vmatpush2.msra.mxu0 0.0
    %576 = vmatprep.subr.mxu0 0.0
    %577 = vmatpush2.msra.mxu0 0.0
    %578 = vmatprep.mubr.f32.mxu0 0.0
    %579 = vmatmul.mubr.f32.gmra.mxu0 %v512
    %v580 = vpop.f32.mrf.mxu0
    %v581 = vadd.f32 0.0, %v580
    %v582 = vpop.f32.mrf.mxu0
    %v583 = vadd.f32 0.0, %v582
    %584 = vdwg.mxu0
    %v586 = vrot.slane %v581, 4
    %v588 = vadd.f32 %v343, %v586
    %v589 = vxor.u32 %v588, 2147483648
    %v590 = vmul.f32 %v589, 1.442695
    %v591 = vpow.pop %v590
    %v592 = vadd.f32 %v591, 1.0
    %v593 = vrcp.pop %v592
    %v594 = vmul.f32 1.0, %v593
    %v595 = vadd.f32 %v583, %v395
    %v597 = vrot.slane %v595, 4
    %v599 = vmul.f32 %v594, %v597
    %v600 = vadd.f32 %v344, %v599
    %v601 = vtanh.pop %v600
    %v602 = vsub.f32 1.0, %v594
    %604 = vrot.lane.b32.xlu0 %v601, 64
    %v605 = vpop.permute.xlu0 %604
    %v607 = vmul.f32 %v602, %v605
    %v608 = vrot.slane %v507, 6
    %v610 = vmul.f32 %v594, %v608
    %v611 = vadd.f32 %v607, %v610
    %v613 = vrot.slane %v611, 4
    %614 = vrot.lane.b32.xlu0 %v613, 64
    %v615 = vpop.permute.xlu0 %614
    %v616 = vsel %vm329, %v615, 0
    %618 = vmatprep.subr.mxu0 0.0
    %619 = vmatpush1.msra.mxu0 0.0
    %620 = vmatprep.subr.mxu0 0.0
    %621 = vmatpush1.msra.mxu0 0.0
    %622 = vmatprep.subr.mxu0 0.0
    %623 = vmatpush1.msra.mxu0 0.0
    %624 = vmatprep.subr.mxu0 0.0
    %625 = vmatpush1.msra.mxu0 0.0
    %626 = vmatprep.subr.mxu0 0.0
    %627 = vmatpush1.msra.mxu0 0.0
    %628 = vmatprep.subr.mxu0 0.0
    %629 = vmatpush1.msra.mxu0 0.0
    %630 = vmatprep.subr.mxu0 0.0
    %631 = vmatpush1.msra.mxu0 0.0
    %632 = vmatprep.subr.mxu0 0.0
    %633 = vmatpush1.msra.mxu0 0.0
    %634 = vmatprep.subr.mxu0 %v45
    %635 = vmatpush1.msra.mxu0 %v44
    %636 = vmatprep.subr.mxu0 %v43
    %637 = vmatpush1.msra.mxu0 %v42
    %638 = vmatprep.subr.mxu0 %v41
    %639 = vmatpush1.msra.mxu0 %v40
    %640 = vmatprep.subr.mxu0 %v39
    %641 = vmatpush1.msra.mxu0 %v38
    %642 = vmatprep.subr.mxu0 %v37
    %643 = vmatpush1.msra.mxu0 %v36
    %644 = vmatprep.subr.mxu0 %v35
    %645 = vmatpush1.msra.mxu0 %v34
    %646 = vmatprep.subr.mxu0 %v33
    %647 = vmatpush1.msra.mxu0 %v32
    %648 = vmatprep.subr.mxu0 %v31
    %649 = vmatpush1.msra.mxu0 %v30
    %650 = vmatprep.subr.mxu0 0.0
    %651 = vmatpush2.msra.mxu0 0.0
    %652 = vmatprep.subr.mxu0 0.0
    %653 = vmatpush2.msra.mxu0 0.0
    %654 = vmatprep.subr.mxu0 0.0
    %655 = vmatpush2.msra.mxu0 0.0
    %656 = vmatprep.subr.mxu0 0.0
    %657 = vmatpush2.msra.mxu0 0.0
    %658 = vmatprep.subr.mxu0 0.0
    %659 = vmatpush2.msra.mxu0 0.0
    %660 = vmatprep.subr.mxu0 0.0
    %661 = vmatpush2.msra.mxu0 0.0
    %662 = vmatprep.subr.mxu0 0.0
    %663 = vmatpush2.msra.mxu0 0.0
    %664 = vmatprep.subr.mxu0 0.0
    %665 = vmatpush2.msra.mxu0 0.0
    %666 = vmatprep.subr.mxu0 0.0
    %667 = vmatpush2.msra.mxu0 0.0
    %668 = vmatprep.subr.mxu0 0.0
    %669 = vmatpush2.msra.mxu0 0.0
    %670 = vmatprep.subr.mxu0 0.0
    %671 = vmatpush2.msra.mxu0 0.0
    %672 = vmatprep.subr.mxu0 0.0
    %673 = vmatpush2.msra.mxu0 0.0
    %674 = vmatprep.subr.mxu0 0.0
    %675 = vmatpush2.msra.mxu0 0.0
    %676 = vmatprep.subr.mxu0 0.0
    %677 = vmatpush2.msra.mxu0 0.0
    %678 = vmatprep.subr.mxu0 0.0
    %679 = vmatpush2.msra.mxu0 0.0
    %680 = vmatprep.subr.mxu0 0.0
    %681 = vmatpush2.msra.mxu0 0.0
    %682 = vmatprep.mubr.f32.mxu0 0.0
    %683 = vmatmul.mubr.f32.gmra.mxu0 %v616
    %v684 = vpop.f32.mrf.mxu0
    %v685 = vadd.f32 0.0, %v684
    %v686 = vpop.f32.mrf.mxu0
    %v687 = vadd.f32 0.0, %v686
    %688 = vdwg.mxu0
    %v690 = vrot.slane %v685, 2
    %v692 = vadd.f32 %v356, %v690
    %v693 = vxor.u32 %v692, 2147483648
    %v694 = vmul.f32 %v693, 1.442695
    %v695 = vpow.pop %v694
    %v696 = vadd.f32 %v695, 1.0
    %v697 = vrcp.pop %v696
    %v698 = vmul.f32 1.0, %v697
    %v699 = vadd.f32 %v687, %v395
    %v701 = vrot.slane %v699, 2
    %v703 = vmul.f32 %v698, %v701
    %v704 = vadd.f32 %v357, %v703
    %v705 = vtanh.pop %v704
    %v706 = vsub.f32 1.0, %v698
    %708 = vrot.lane.b32.xlu0 %v705, 64
    %v709 = vpop.permute.xlu0 %708
    %v711 = vmul.f32 %v706, %v709
    %v712 = vrot.slane %v611, 6
    %v714 = vmul.f32 %v698, %v712
    %v715 = vadd.f32 %v711, %v714
    %v717 = vrot.slane %v715, 6
    %718 = vrot.lane.b32.xlu0 %v717, 64
    %v719 = vpop.permute.xlu0 %718
    %v720 = vsel %vm329, %v719, 0
    %722 = vmatprep.subr.mxu0 0.0
    %723 = vmatpush1.msra.mxu0 0.0
    %724 = vmatprep.subr.mxu0 0.0
    %725 = vmatpush1.msra.mxu0 0.0
    %726 = vmatprep.subr.mxu0 0.0
    %727 = vmatpush1.msra.mxu0 0.0
    %728 = vmatprep.subr.mxu0 0.0
    %729 = vmatpush1.msra.mxu0 0.0
    %730 = vmatprep.subr.mxu0 0.0
    %731 = vmatpush1.msra.mxu0 0.0
    %732 = vmatprep.subr.mxu0 0.0
    %733 = vmatpush1.msra.mxu0 0.0
    %734 = vmatprep.subr.mxu0 0.0
    %735 = vmatpush1.msra.mxu0 0.0
    %736 = vmatprep.subr.mxu0 0.0
    %737 = vmatpush1.msra.mxu0 0.0
    %738 = vmatprep.subr.mxu0 %v45
    %739 = vmatpush1.msra.mxu0 %v44
    %740 = vmatprep.subr.mxu0 %v43
    %741 = vmatpush1.msra.mxu0 %v42
    %742 = vmatprep.subr.mxu0 %v41
    %743 = vmatpush1.msra.mxu0 %v40
    %744 = vmatprep.subr.mxu0 %v39
    %745 = vmatpush1.msra.mxu0 %v38
    %746 = vmatprep.subr.mxu0 %v37
    %747 = vmatpush1.msra.mxu0 %v36
    %748 = vmatprep.subr.mxu0 %v35
    %749 = vmatpush1.msra.mxu0 %v34
    %750 = vmatprep.subr.mxu0 %v33
    %751 = vmatpush1.msra.mxu0 %v32
    %752 = vmatprep.subr.mxu0 %v31
    %753 = vmatpush1.msra.mxu0 %v30
    %754 = vmatprep.subr.mxu0 0.0
    %755 = vmatpush2.msra.mxu0 0.0
    %756 = vmatprep.subr.mxu0 0.0
    %757 = vmatpush2.msra.mxu0 0.0
    %758 = vmatprep.subr.mxu0 0.0
    %759 = vmatpush2.msra.mxu0 0.0
    %760 = vmatprep.subr.mxu0 0.0
    %761 = vmatpush2.msra.mxu0 0.0
    %762 = vmatprep.subr.mxu0 0.0
    %763 = vmatpush2.msra.mxu0 0.0
    %764 = vmatprep.subr.mxu0 0.0
    %765 = vmatpush2.msra.mxu0 0.0
    %766 = vmatprep.subr.mxu0 0.0
    %767 = vmatpush2.msra.mxu0 0.0
    %768 = vmatprep.subr.mxu0 0.0
    %769 = vmatpush2.msra.mxu0 0.0
    %770 = vmatprep.subr.mxu0 0.0
    %771 = vmatpush2.msra.mxu0 0.0
    %772 = vmatprep.subr.mxu0 0.0
    %773 = vmatpush2.msra.mxu0 0.0
    %774 = vmatprep.subr.mxu0 0.0
    %775 = vmatpush2.msra.mxu0 0.0
    %776 = vmatprep.subr.mxu0 0.0
    %777 = vmatpush2.msra.mxu0 0.0
    %778 = vmatprep.subr.mxu0 0.0
    %779 = vmatpush2.msra.mxu0 0.0
    %780 = vmatprep.subr.mxu0 0.0
    %781 = vmatpush2.msra.mxu0 0.0
    %782 = vmatprep.subr.mxu0 0.0
    %783 = vmatpush2.msra.mxu0 0.0
    %784 = vmatprep.subr.mxu0 0.0
    %785 = vmatpush2.msra.mxu0 0.0
    %786 = vmatprep.mubr.f32.mxu0 0.0
    %787 = vmatmul.mubr.f32.gmra.mxu0 %v720
    %v788 = vpop.f32.mrf.mxu0
    %v789 = vadd.f32 0.0, %v788
    %v790 = vpop.f32.mrf.mxu0
    %v791 = vadd.f32 0.0, %v790
    %792 = vdwg.mxu0
    %v793 = vadd.f32 %v371, %v789
    %v794 = vxor.u32 %v793, 2147483648
    %v795 = vmul.f32 %v794, 1.442695
    %v796 = vpow.pop %v795
    %v797 = vadd.f32 %v796, 1.0
    %v798 = vrcp.pop %v797
    %v799 = vmul.f32 1.0, %v798
    %v800 = vadd.f32 %v791, %v395
    %v801 = vmul.f32 %v799, %v800
    %v802 = vadd.f32 %v372, %v801
    %v803 = vtanh.pop %v802
    %v804 = vsub.f32 1.0, %v799
    %806 = vrot.lane.b32.xlu0 %v803, 64
    %v807 = vpop.permute.xlu0 %806
    %v809 = vmul.f32 %v804, %v807
    %v811 = vmul.f32 %v799, %v717
    %v812 = vadd.f32 %v809, %v811
    %814 = vrot.lane.b32.xlu0 %v812, 64
    %v815 = vpop.permute.xlu0 %814
    %v816 = vsel %vm329, %v815, 0
    %818 = vmatprep.subr.mxu0 0.0
    %819 = vmatpush1.msra.mxu0 0.0
    %820 = vmatprep.subr.mxu0 0.0
    %821 = vmatpush1.msra.mxu0 0.0
    %822 = vmatprep.subr.mxu0 0.0
    %823 = vmatpush1.msra.mxu0 0.0
    %824 = vmatprep.subr.mxu0 0.0
    %825 = vmatpush1.msra.mxu0 0.0
    %826 = vmatprep.subr.mxu0 0.0
    %827 = vmatpush1.msra.mxu0 0.0
    %828 = vmatprep.subr.mxu0 0.0
    %829 = vmatpush1.msra.mxu0 0.0
    %830 = vmatprep.subr.mxu0 0.0
    %831 = vmatpush1.msra.mxu0 0.0
    %832 = vmatprep.subr.mxu0 0.0
    %833 = vmatpush1.msra.mxu0 0.0
    %834 = vmatprep.subr.mxu0 %v45
    %835 = vmatpush1.msra.mxu0 %v44
    %836 = vmatprep.subr.mxu0 %v43
    %837 = vmatpush1.msra.mxu0 %v42
    %838 = vmatprep.subr.mxu0 %v41
    %839 = vmatpush1.msra.mxu0 %v40
    %840 = vmatprep.subr.mxu0 %v39
    %841 = vmatpush1.msra.mxu0 %v38
    %842 = vmatprep.subr.mxu0 %v37
    %843 = vmatpush1.msra.mxu0 %v36
    %844 = vmatprep.subr.mxu0 %v35
    %845 = vmatpush1.msra.mxu0 %v34
    %846 = vmatprep.subr.mxu0 %v33
    %847 = vmatpush1.msra.mxu0 %v32
    %848 = vmatprep.subr.mxu0 %v31
    %849 = vmatpush1.msra.mxu0 %v30
    %850 = vmatprep.subr.mxu0 0.0
    %851 = vmatpush2.msra.mxu0 0.0
    %852 = vmatprep.subr.mxu0 0.0
    %853 = vmatpush2.msra.mxu0 0.0
    %854 = vmatprep.subr.mxu0 0.0
    %855 = vmatpush2.msra.mxu0 0.0
    %856 = vmatprep.subr.mxu0 0.0
    %857 = vmatpush2.msra.mxu0 0.0
    %858 = vmatprep.subr.mxu0 0.0
    %859 = vmatpush2.msra.mxu0 0.0
    %860 = vmatprep.subr.mxu0 0.0
    %861 = vmatpush2.msra.mxu0 0.0
    %862 = vmatprep.subr.mxu0 0.0
    %863 = vmatpush2.msra.mxu0 0.0
    %864 = vmatprep.subr.mxu0 0.0
    %865 = vmatpush2.msra.mxu0 0.0
    %866 = vmatprep.subr.mxu0 0.0
    %867 = vmatpush2.msra.mxu0 0.0
    %868 = vmatprep.subr.mxu0 0.0
    %869 = vmatpush2.msra.mxu0 0.0
    %870 = vmatprep.subr.mxu0 0.0
    %871 = vmatpush2.msra.mxu0 0.0
    %872 = vmatprep.subr.mxu0 0.0
    %873 = vmatpush2.msra.mxu0 0.0
    %874 = vmatprep.subr.mxu0 0.0
    %875 = vmatpush2.msra.mxu0 0.0
    %876 = vmatprep.subr.mxu0 0.0
    %877 = vmatpush2.msra.mxu0 0.0
    %878 = vmatprep.subr.mxu0 0.0
    %879 = vmatpush2.msra.mxu0 0.0
    %880 = vmatprep.subr.mxu0 0.0
    %881 = vmatpush2.msra.mxu0 0.0
    %882 = vmatprep.mubr.f32.mxu0 0.0
    %883 = vmatmul.mubr.f32.gmra.mxu0 %v816
    %v884 = vpop.f32.mrf.mxu0
    %v885 = vadd.f32 0.0, %v884
    %v886 = vpop.f32.mrf.mxu0
    %v887 = vadd.f32 0.0, %v886
    %888 = vdwg.mxu0
    %v890 = vrot.slane %v885, 6
    %v892 = vadd.f32 %v384, %v890
    %v893 = vxor.u32 %v892, 2147483648
    %v894 = vmul.f32 %v893, 1.442695
    %v895 = vpow.pop %v894
    %v896 = vadd.f32 %v895, 1.0
    %v897 = vrcp.pop %v896
    %v898 = vmul.f32 1.0, %v897
    %v899 = vadd.f32 %v887, %v395
    %v901 = vrot.slane %v899, 6
    %v903 = vmul.f32 %v898, %v901
    %v904 = vadd.f32 %v385, %v903
    %v905 = vtanh.pop %v904
    %v906 = vsub.f32 1.0, %v898
    %908 = vrot.lane.b32.xlu0 %v905, 64
    %v909 = vpop.permute.xlu0 %908
    %v911 = vmul.f32 %v906, %v909
    %v912 = vrot.slane %v812, 6
    %v914 = vmul.f32 %v898, %v912
    %v915 = vadd.f32 %v911, %v914
    %v917 = vrot.slane %v915, 2
    %918 = vrot.lane.b32.xlu0 %v917, 64
    %v919 = vpop.permute.xlu0 %918
    %v920 = vsel %vm329, %v919, 0
    %922 = vmatprep.subr.mxu0 0.0
    %923 = vmatpush1.msra.mxu0 0.0
    %924 = vmatprep.subr.mxu0 0.0
    %925 = vmatpush1.msra.mxu0 0.0
    %926 = vmatprep.subr.mxu0 0.0
    %927 = vmatpush1.msra.mxu0 0.0
    %928 = vmatprep.subr.mxu0 0.0
    %929 = vmatpush1.msra.mxu0 0.0
    %930 = vmatprep.subr.mxu0 0.0
    %931 = vmatpush1.msra.mxu0 0.0
    %932 = vmatprep.subr.mxu0 0.0
    %933 = vmatpush1.msra.mxu0 0.0
    %934 = vmatprep.subr.mxu0 0.0
    %935 = vmatpush1.msra.mxu0 0.0
    %936 = vmatprep.subr.mxu0 0.0
    %937 = vmatpush1.msra.mxu0 0.0
    %938 = vmatprep.subr.mxu0 %v45
    %939 = vmatpush1.msra.mxu0 %v44
    %940 = vmatprep.subr.mxu0 %v43
    %941 = vmatpush1.msra.mxu0 %v42
    %942 = vmatprep.subr.mxu0 %v41
    %943 = vmatpush1.msra.mxu0 %v40
    %944 = vmatprep.subr.mxu0 %v39
    %945 = vmatpush1.msra.mxu0 %v38
    %946 = vmatprep.subr.mxu0 %v37
    %947 = vmatpush1.msra.mxu0 %v36
    %948 = vmatprep.subr.mxu0 %v35
    %949 = vmatpush1.msra.mxu0 %v34
    %950 = vmatprep.subr.mxu0 %v33
    %951 = vmatpush1.msra.mxu0 %v32
    %952 = vmatprep.subr.mxu0 %v31
    %953 = vmatpush1.msra.mxu0 %v30
    %954 = vmatprep.subr.mxu0 0.0
    %955 = vmatpush2.msra.mxu0 0.0
    %956 = vmatprep.subr.mxu0 0.0
    %957 = vmatpush2.msra.mxu0 0.0
    %958 = vmatprep.subr.mxu0 0.0
    %959 = vmatpush2.msra.mxu0 0.0
    %960 = vmatprep.subr.mxu0 0.0
    %961 = vmatpush2.msra.mxu0 0.0
    %962 = vmatprep.subr.mxu0 0.0
    %963 = vmatpush2.msra.mxu0 0.0
    %964 = vmatprep.subr.mxu0 0.0
    %965 = vmatpush2.msra.mxu0 0.0
    %966 = vmatprep.subr.mxu0 0.0
    %967 = vmatpush2.msra.mxu0 0.0
    %968 = vmatprep.subr.mxu0 0.0
    %969 = vmatpush2.msra.mxu0 0.0
    %970 = vmatprep.subr.mxu0 0.0
    %971 = vmatpush2.msra.mxu0 0.0
    %972 = vmatprep.subr.mxu0 0.0
    %973 = vmatpush2.msra.mxu0 0.0
    %974 = vmatprep.subr.mxu0 0.0
    %975 = vmatpush2.msra.mxu0 0.0
    %976 = vmatprep.subr.mxu0 0.0
    %977 = vmatpush2.msra.mxu0 0.0
    %978 = vmatprep.subr.mxu0 0.0
    %979 = vmatpush2.msra.mxu0 0.0
    %980 = vmatprep.subr.mxu0 0.0
    %981 = vmatpush2.msra.mxu0 0.0
    %982 = vmatprep.subr.mxu0 0.0
    %983 = vmatpush2.msra.mxu0 0.0
    %984 = vmatprep.subr.mxu0 0.0
    %985 = vmatpush2.msra.mxu0 0.0
    %986 = vmatprep.mubr.f32.mxu0 0.0
    %987 = vmatmul.mubr.f32.gmra.mxu0 %v920
    %v988 = vpop.f32.mrf.mxu0
    %v989 = vadd.f32 0.0, %v988
    %v990 = vpop.f32.mrf.mxu0
    %v991 = vadd.f32 0.0, %v990
    %992 = vdwg.mxu0
    %v994 = vrot.slane %v989, 4
    %v996 = vadd.f32 %v371, %v994
    %v997 = vxor.u32 %v996, 2147483648
    %v998 = vmul.f32 %v997, 1.442695
    %v999 = vpow.pop %v998
    %v1000 = vadd.f32 %v999, 1.0
    %v1001 = vrcp.pop %v1000
    %v1002 = vmul.f32 1.0, %v1001
    %v1003 = vadd.f32 %v991, %v395
    %v1005 = vrot.slane %v1003, 4
    %v1007 = vmul.f32 %v1002, %v1005
    %v1008 = vadd.f32 %v372, %v1007
    %v1009 = vtanh.pop %v1008
    %v1010 = vsub.f32 1.0, %v1002
    %1012 = vrot.lane.b32.xlu0 %v1009, 64
    %v1013 = vpop.permute.xlu0 %1012
    %v1015 = vmul.f32 %v1010, %v1013
    %v1016 = vrot.slane %v915, 6
    %v1018 = vmul.f32 %v1002, %v1016
    %v1019 = vadd.f32 %v1015, %v1018
    %v1021 = vrot.slane %v1019, 4
    %1022 = vrot.lane.b32.xlu0 %v1021, 64
    %v1023 = vpop.permute.xlu0 %1022
    %v1024 = vsel %vm329, %v1023, 0
    %1026 = vmatprep.subr.mxu0 0.0
    %1027 = vmatpush1.msra.mxu0 0.0
    %1028 = vmatprep.subr.mxu0 0.0
    %1029 = vmatpush1.msra.mxu0 0.0
    %1030 = vmatprep.subr.mxu0 0.0
    %1031 = vmatpush1.msra.mxu0 0.0
    %1032 = vmatprep.subr.mxu0 0.0
    %1033 = vmatpush1.msra.mxu0 0.0
    %1034 = vmatprep.subr.mxu0 0.0
    %1035 = vmatpush1.msra.mxu0 0.0
    %1036 = vmatprep.subr.mxu0 0.0
    %1037 = vmatpush1.msra.mxu0 0.0
    %1038 = vmatprep.subr.mxu0 0.0
    %1039 = vmatpush1.msra.mxu0 0.0
    %1040 = vmatprep.subr.mxu0 0.0
    %1041 = vmatpush1.msra.mxu0 0.0
    %1042 = vmatprep.subr.mxu0 %v45
    %1043 = vmatpush1.msra.mxu0 %v44
    %1044 = vmatprep.subr.mxu0 %v43
    %1045 = vmatpush1.msra.mxu0 %v42
    %1046 = vmatprep.subr.mxu0 %v41
    %1047 = vmatpush1.msra.mxu0 %v40
    %1048 = vmatprep.subr.mxu0 %v39
    %1049 = vmatpush1.msra.mxu0 %v38
    %1050 = vmatprep.subr.mxu0 %v37
    %1051 = vmatpush1.msra.mxu0 %v36
    %1052 = vmatprep.subr.mxu0 %v35
    %1053 = vmatpush1.msra.mxu0 %v34
    %1054 = vmatprep.subr.mxu0 %v33
    %1055 = vmatpush1.msra.mxu0 %v32
    %1056 = vmatprep.subr.mxu0 %v31
    %1057 = vmatpush1.msra.mxu0 %v30
    %1058 = vmatprep.subr.mxu0 0.0
    %1059 = vmatpush2.msra.mxu0 0.0
    %1060 = vmatprep.subr.mxu0 0.0
    %1061 = vmatpush2.msra.mxu0 0.0
    %1062 = vmatprep.subr.mxu0 0.0
    %1063 = vmatpush2.msra.mxu0 0.0
    %1064 = vmatprep.subr.mxu0 0.0
    %1065 = vmatpush2.msra.mxu0 0.0
    %1066 = vmatprep.subr.mxu0 0.0
    %1067 = vmatpush2.msra.mxu0 0.0
    %1068 = vmatprep.subr.mxu0 0.0
    %1069 = vmatpush2.msra.mxu0 0.0
    %1070 = vmatprep.subr.mxu0 0.0
    %1071 = vmatpush2.msra.mxu0 0.0
    %1072 = vmatprep.subr.mxu0 0.0
    %1073 = vmatpush2.msra.mxu0 0.0
    %1074 = vmatprep.subr.mxu0 0.0
    %1075 = vmatpush2.msra.mxu0 0.0
    %1076 = vmatprep.subr.mxu0 0.0
    %1077 = vmatpush2.msra.mxu0 0.0
    %1078 = vmatprep.subr.mxu0 0.0
    %1079 = vmatpush2.msra.mxu0 0.0
    %1080 = vmatprep.subr.mxu0 0.0
    %1081 = vmatpush2.msra.mxu0 0.0
    %1082 = vmatprep.subr.mxu0 0.0
    %1083 = vmatpush2.msra.mxu0 0.0
    %1084 = vmatprep.subr.mxu0 0.0
    %1085 = vmatpush2.msra.mxu0 0.0
    %1086 = vmatprep.subr.mxu0 0.0
    %1087 = vmatpush2.msra.mxu0 0.0
    %1088 = vmatprep.subr.mxu0 0.0
    %1089 = vmatpush2.msra.mxu0 0.0
    %1090 = vmatprep.mubr.f32.mxu0 0.0
    %1091 = vmatmul.mubr.f32.gmra.mxu0 %v1024
    %v1092 = vpop.f32.mrf.mxu0
    %v1093 = vadd.f32 0.0, %v1092
    %v1094 = vpop.f32.mrf.mxu0
    %v1095 = vadd.f32 0.0, %v1094
    %1096 = vdwg.mxu0
    %v1098 = vrot.slane %v1093, 2
    %v1100 = vadd.f32 %v384, %v1098
    %v1101 = vxor.u32 %v1100, 2147483648
    %v1102 = vmul.f32 %v1101, 1.442695
    %v1103 = vpow.pop %v1102
    %v1104 = vadd.f32 %v1103, 1.0
    %v1105 = vrcp.pop %v1104
    %v1106 = vmul.f32 1.0, %v1105
    %v1107 = vadd.f32 %v1095, %v395
    %v1109 = vrot.slane %v1107, 2
    %v1111 = vmul.f32 %v1106, %v1109
    %v1112 = vadd.f32 %v385, %v1111
    %v1113 = vtanh.pop %v1112
    %v1114 = vsub.f32 1.0, %v1106
    %1116 = vrot.lane.b32.xlu0 %v1113, 64
    %v1117 = vpop.permute.xlu0 %1116
    %v1119 = vmul.f32 %v1114, %v1117
    %v1120 = vrot.slane %v1019, 6
    %v1122 = vmul.f32 %v1106, %v1120
    %v1123 = vadd.f32 %v1119, %v1122
    %v1125 = vrot.slane %v1123, 6
    %1126 = vrot.lane.b32.xlu0 %v1125, 32
    %v1127 = vpop.permute.xlu0 %1126
    %vm1128 = vcmask 261120
    %v1129 = vsel %vm1128, %v1127, 0
    %1131 = vmatprep.subr.mxu0 0.0
    %1132 = vmatpush1.msra.mxu0 0.0
    %1133 = vmatprep.subr.mxu0 0.0
    %1134 = vmatpush1.msra.mxu0 0.0
    %1135 = vmatprep.subr.mxu0 0.0
    %1136 = vmatpush1.msra.mxu0 0.0
    %1137 = vmatprep.subr.mxu0 0.0
    %1138 = vmatpush1.msra.mxu0 0.0
    %1139 = vmatprep.subr.mxu0 0.0
    %1140 = vmatpush1.msra.mxu0 0.0
    %1141 = vmatprep.subr.mxu0 0.0
    %1142 = vmatpush1.msra.mxu0 0.0
    %1143 = vmatprep.subr.mxu0 0.0
    %1144 = vmatpush1.msra.mxu0 0.0
    %1145 = vmatprep.subr.mxu0 0.0
    %1146 = vmatpush1.msra.mxu0 0.0
    %1147 = vmatprep.subr.mxu0 0.0
    %1148 = vmatpush1.msra.mxu0 0.0
    %1149 = vmatprep.subr.mxu0 0.0
    %1150 = vmatpush1.msra.mxu0 0.0
    %1151 = vmatprep.subr.mxu0 0.0
    %1152 = vmatpush1.msra.mxu0 0.0
    %1153 = vmatprep.subr.mxu0 0.0
    %1154 = vmatpush1.msra.mxu0 0.0
    %1155 = vmatprep.subr.mxu0 %v110
    %1156 = vmatpush1.msra.mxu0 %v109
    %1157 = vmatprep.subr.mxu0 %v107
    %1158 = vmatpush1.msra.mxu0 %v106
    %1159 = vmatprep.subr.mxu0 %v104
    %1160 = vmatpush1.msra.mxu0 %v103
    %1161 = vmatprep.subr.mxu0 %v101
    %1162 = vmatpush1.msra.mxu0 %v100
    %1163 = vmatprep.subr.mxu0 0.0
    %1164 = vmatpush2.msra.mxu0 0.0
    %1165 = vmatprep.subr.mxu0 0.0
    %1166 = vmatpush2.msra.mxu0 0.0
    %1167 = vmatprep.subr.mxu0 0.0
    %1168 = vmatpush2.msra.mxu0 0.0
    %1169 = vmatprep.subr.mxu0 0.0
    %1170 = vmatpush2.msra.mxu0 0.0
    %1171 = vmatprep.subr.mxu0 0.0
    %1172 = vmatpush2.msra.mxu0 0.0
    %1173 = vmatprep.subr.mxu0 0.0
    %1174 = vmatpush2.msra.mxu0 0.0
    %1175 = vmatprep.subr.mxu0 0.0
    %1176 = vmatpush2.msra.mxu0 0.0
    %1177 = vmatprep.subr.mxu0 0.0
    %1178 = vmatpush2.msra.mxu0 0.0
    %1179 = vmatprep.subr.mxu0 0.0
    %1180 = vmatpush2.msra.mxu0 0.0
    %1181 = vmatprep.subr.mxu0 0.0
    %1182 = vmatpush2.msra.mxu0 0.0
    %1183 = vmatprep.subr.mxu0 0.0
    %1184 = vmatpush2.msra.mxu0 0.0
    %1185 = vmatprep.subr.mxu0 0.0
    %1186 = vmatpush2.msra.mxu0 0.0
    %1187 = vmatprep.subr.mxu0 0.0
    %1188 = vmatpush2.msra.mxu0 0.0
    %1189 = vmatprep.subr.mxu0 0.0
    %1190 = vmatpush2.msra.mxu0 0.0
    %1191 = vmatprep.subr.mxu0 0.0
    %1192 = vmatpush2.msra.mxu0 0.0
    %1193 = vmatprep.subr.mxu0 0.0
    %1194 = vmatpush2.msra.mxu0 0.0
    %1195 = vmatprep.mubr.f32.mxu0 0.0
    %1196 = vmatmul.mubr.f32.gmra.mxu0 %v1129
    %v1197 = vpop.f32.mrf.mxu0
    %v1198 = vadd.f32 0.0, %v1197
    %v1199 = vpop.f32.mrf.mxu0
    %v1200 = vadd.f32 0.0, %v1199
    %1201 = vdwg.mxu0
    %1202 = vmatprep.subr.mxu0 0.0
    %1203 = vmatpush1.msra.mxu0 0.0
    %1204 = vmatprep.subr.mxu0 0.0
    %1205 = vmatpush1.msra.mxu0 0.0
    %1206 = vmatprep.subr.mxu0 0.0
    %1207 = vmatpush1.msra.mxu0 0.0
    %1208 = vmatprep.subr.mxu0 0.0
    %1209 = vmatpush1.msra.mxu0 0.0
    %1210 = vmatprep.subr.mxu0 0.0
    %1211 = vmatpush1.msra.mxu0 0.0
    %1212 = vmatprep.subr.mxu0 0.0
    %1213 = vmatpush1.msra.mxu0 0.0
    %1214 = vmatprep.subr.mxu0 0.0
    %1215 = vmatpush1.msra.mxu0 0.0
    %1216 = vmatprep.subr.mxu0 0.0
    %1217 = vmatpush1.msra.mxu0 0.0
    %1218 = vmatprep.subr.mxu0 0.0
    %1219 = vmatpush1.msra.mxu0 0.0
    %1220 = vmatprep.subr.mxu0 0.0
    %1221 = vmatpush1.msra.mxu0 0.0
    %1222 = vmatprep.subr.mxu0 0.0
    %1223 = vmatpush1.msra.mxu0 0.0
    %1224 = vmatprep.subr.mxu0 0.0
    %1225 = vmatpush1.msra.mxu0 0.0
    %1226 = vmatprep.subr.mxu0 0.0
    %1227 = vmatpush1.msra.mxu0 %v111
    %1228 = vmatprep.subr.mxu0 0.0
    %1229 = vmatpush1.msra.mxu0 %v108
    %1230 = vmatprep.subr.mxu0 0.0
    %1231 = vmatpush1.msra.mxu0 %v105
    %1232 = vmatprep.subr.mxu0 0.0
    %1233 = vmatpush1.msra.mxu0 %v102
    %1234 = vmatprep.subr.mxu0 0.0
    %1235 = vmatpush2.msra.mxu0 0.0
    %1236 = vmatprep.subr.mxu0 0.0
    %1237 = vmatpush2.msra.mxu0 0.0
    %1238 = vmatprep.subr.mxu0 0.0
    %1239 = vmatpush2.msra.mxu0 0.0
    %1240 = vmatprep.subr.mxu0 0.0
    %1241 = vmatpush2.msra.mxu0 0.0
    %1242 = vmatprep.subr.mxu0 0.0
    %1243 = vmatpush2.msra.mxu0 0.0
    %1244 = vmatprep.subr.mxu0 0.0
    %1245 = vmatpush2.msra.mxu0 0.0
    %1246 = vmatprep.subr.mxu0 0.0
    %1247 = vmatpush2.msra.mxu0 0.0
    %1248 = vmatprep.subr.mxu0 0.0
    %1249 = vmatpush2.msra.mxu0 0.0
    %1250 = vmatprep.subr.mxu0 0.0
    %1251 = vmatpush2.msra.mxu0 0.0
    %1252 = vmatprep.subr.mxu0 0.0
    %1253 = vmatpush2.msra.mxu0 0.0
    %1254 = vmatprep.subr.mxu0 0.0
    %1255 = vmatpush2.msra.mxu0 0.0
    %1256 = vmatprep.subr.mxu0 0.0
    %1257 = vmatpush2.msra.mxu0 0.0
    %1258 = vmatprep.subr.mxu0 0.0
    %1259 = vmatpush2.msra.mxu0 0.0
    %1260 = vmatprep.subr.mxu0 0.0
    %1261 = vmatpush2.msra.mxu0 0.0
    %1262 = vmatprep.subr.mxu0 0.0
    %1263 = vmatpush2.msra.mxu0 0.0
    %1264 = vmatprep.subr.mxu0 0.0
    %1265 = vmatpush2.msra.mxu0 0.0
    %1266 = vmatprep.mubr.f32.mxu0 0.0
    %1267 = vmatmul.mubr.f32.gmra.mxu0 %v1129
    %v1268 = vpop.f32.mrf.mxu0
    %v1269 = vadd.f32 0.0, %v1268
    %v1270 = vpop.f32.mrf.mxu0
    %1271 = vdwg.mxu0
    %v1272 = vsel %vm1128, %v407, 0
    %1274 = vmatprep.subr.mxu0 0.0
    %1275 = vmatpush1.msra.mxu0 0.0
    %1276 = vmatprep.subr.mxu0 0.0
    %1277 = vmatpush1.msra.mxu0 0.0
    %1278 = vmatprep.subr.mxu0 0.0
    %1279 = vmatpush1.msra.mxu0 0.0
    %1280 = vmatprep.subr.mxu0 0.0
    %1281 = vmatpush1.msra.mxu0 0.0
    %1282 = vmatprep.subr.mxu0 0.0
    %1283 = vmatpush1.msra.mxu0 0.0
    %1284 = vmatprep.subr.mxu0 0.0
    %1285 = vmatpush1.msra.mxu0 0.0
    %1286 = vmatprep.subr.mxu0 0.0
    %1287 = vmatpush1.msra.mxu0 0.0
    %1288 = vmatprep.subr.mxu0 0.0
    %1289 = vmatpush1.msra.mxu0 0.0
    %1290 = vmatprep.subr.mxu0 0.0
    %1291 = vmatpush1.msra.mxu0 0.0
    %1292 = vmatprep.subr.mxu0 0.0
    %1293 = vmatpush1.msra.mxu0 0.0
    %1294 = vmatprep.subr.mxu0 0.0
    %1295 = vmatpush1.msra.mxu0 0.0
    %1296 = vmatprep.subr.mxu0 0.0
    %1297 = vmatpush1.msra.mxu0 0.0
    %1298 = vmatprep.subr.mxu0 %v98
    %1299 = vmatpush1.msra.mxu0 %v97
    %1300 = vmatprep.subr.mxu0 %v95
    %1301 = vmatpush1.msra.mxu0 %v94
    %1302 = vmatprep.subr.mxu0 %v92
    %1303 = vmatpush1.msra.mxu0 %v91
    %1304 = vmatprep.subr.mxu0 %v89
    %1305 = vmatpush1.msra.mxu0 %v88
    %1306 = vmatprep.subr.mxu0 0.0
    %1307 = vmatpush2.msra.mxu0 0.0
    %1308 = vmatprep.subr.mxu0 0.0
    %1309 = vmatpush2.msra.mxu0 0.0
    %1310 = vmatprep.subr.mxu0 0.0
    %1311 = vmatpush2.msra.mxu0 0.0
    %1312 = vmatprep.subr.mxu0 0.0
    %1313 = vmatpush2.msra.mxu0 0.0
    %1314 = vmatprep.subr.mxu0 0.0
    %1315 = vmatpush2.msra.mxu0 0.0
    %1316 = vmatprep.subr.mxu0 0.0
    %1317 = vmatpush2.msra.mxu0 0.0
    %1318 = vmatprep.subr.mxu0 0.0
    %1319 = vmatpush2.msra.mxu0 0.0
    %1320 = vmatprep.subr.mxu0 0.0
    %1321 = vmatpush2.msra.mxu0 0.0
    %1322 = vmatprep.subr.mxu0 0.0
    %1323 = vmatpush2.msra.mxu0 0.0
    %1324 = vmatprep.subr.mxu0 0.0
    %1325 = vmatpush2.msra.mxu0 0.0
    %1326 = vmatprep.subr.mxu0 0.0
    %1327 = vmatpush2.msra.mxu0 0.0
    %1328 = vmatprep.subr.mxu0 0.0
    %1329 = vmatpush2.msra.mxu0 0.0
    %1330 = vmatprep.subr.mxu0 0.0
    %1331 = vmatpush2.msra.mxu0 0.0
    %1332 = vmatprep.subr.mxu0 0.0
    %1333 = vmatpush2.msra.mxu0 0.0
    %1334 = vmatprep.subr.mxu0 0.0
    %1335 = vmatpush2.msra.mxu0 0.0
    %1336 = vmatprep.subr.mxu0 0.0
    %1337 = vmatpush2.msra.mxu0 0.0
    %1338 = vmatprep.mubr.f32.mxu0 0.0
    %1339 = vmatmul.mubr.f32.gmra.mxu0 %v1272
    %v1340 = vpop.f32.mrf.mxu0
    %v1341 = vadd.f32 %v1198, %v1340
    %v1342 = vpop.f32.mrf.mxu0
    %v1343 = vadd.f32 %v1200, %v1342
    %1344 = vdwg.mxu0
    %1345 = vmatprep.subr.mxu0 0.0
    %1346 = vmatpush1.msra.mxu0 0.0
    %1347 = vmatprep.subr.mxu0 0.0
    %1348 = vmatpush1.msra.mxu0 0.0
    %1349 = vmatprep.subr.mxu0 0.0
    %1350 = vmatpush1.msra.mxu0 0.0
    %1351 = vmatprep.subr.mxu0 0.0
    %1352 = vmatpush1.msra.mxu0 0.0
    %1353 = vmatprep.subr.mxu0 0.0
    %1354 = vmatpush1.msra.mxu0 0.0
    %1355 = vmatprep.subr.mxu0 0.0
    %1356 = vmatpush1.msra.mxu0 0.0
    %1357 = vmatprep.subr.mxu0 0.0
    %1358 = vmatpush1.msra.mxu0 0.0
    %1359 = vmatprep.subr.mxu0 0.0
    %1360 = vmatpush1.msra.mxu0 0.0
    %1361 = vmatprep.subr.mxu0 0.0
    %1362 = vmatpush1.msra.mxu0 0.0
    %1363 = vmatprep.subr.mxu0 0.0
    %1364 = vmatpush1.msra.mxu0 0.0
    %1365 = vmatprep.subr.mxu0 0.0
    %1366 = vmatpush1.msra.mxu0 0.0
    %1367 = vmatprep.subr.mxu0 0.0
    %1368 = vmatpush1.msra.mxu0 0.0
    %1369 = vmatprep.subr.mxu0 0.0
    %1370 = vmatpush1.msra.mxu0 %v99
    %1371 = vmatprep.subr.mxu0 0.0
    %1372 = vmatpush1.msra.mxu0 %v96
    %1373 = vmatprep.subr.mxu0 0.0
    %1374 = vmatpush1.msra.mxu0 %v93
    %1375 = vmatprep.subr.mxu0 0.0
    %1376 = vmatpush1.msra.mxu0 %v90
    %1377 = vmatprep.subr.mxu0 0.0
    %1378 = vmatpush2.msra.mxu0 0.0
    %1379 = vmatprep.subr.mxu0 0.0
    %1380 = vmatpush2.msra.mxu0 0.0
    %1381 = vmatprep.subr.mxu0 0.0
    %1382 = vmatpush2.msra.mxu0 0.0
    %1383 = vmatprep.subr.mxu0 0.0
    %1384 = vmatpush2.msra.mxu0 0.0
    %1385 = vmatprep.subr.mxu0 0.0
    %1386 = vmatpush2.msra.mxu0 0.0
    %1387 = vmatprep.subr.mxu0 0.0
    %1388 = vmatpush2.msra.mxu0 0.0
    %1389 = vmatprep.subr.mxu0 0.0
    %1390 = vmatpush2.msra.mxu0 0.0
    %1391 = vmatprep.subr.mxu0 0.0
    %1392 = vmatpush2.msra.mxu0 0.0
    %1393 = vmatprep.subr.mxu0 0.0
    %1394 = vmatpush2.msra.mxu0 0.0
    %1395 = vmatprep.subr.mxu0 0.0
    %1396 = vmatpush2.msra.mxu0 0.0
    %1397 = vmatprep.subr.mxu0 0.0
    %1398 = vmatpush2.msra.mxu0 0.0
    %1399 = vmatprep.subr.mxu0 0.0
    %1400 = vmatpush2.msra.mxu0 0.0
    %1401 = vmatprep.subr.mxu0 0.0
    %1402 = vmatpush2.msra.mxu0 0.0
    %1403 = vmatprep.subr.mxu0 0.0
    %1404 = vmatpush2.msra.mxu0 0.0
    %1405 = vmatprep.subr.mxu0 0.0
    %1406 = vmatpush2.msra.mxu0 0.0
    %1407 = vmatprep.subr.mxu0 0.0
    %1408 = vmatpush2.msra.mxu0 0.0
    %1409 = vmatprep.mubr.f32.mxu0 0.0
    %1410 = vmatmul.mubr.f32.gmra.mxu0 %v1272
    %v1411 = vpop.f32.mrf.mxu0
    %v1412 = vadd.f32 %v1269, %v1411
    %v1413 = vpop.f32.mrf.mxu0
    %1414 = vdwg.mxu0
    %1415 = vrot.lane.b32.xlu0 %v1021, 32
    %v1416 = vpop.permute.xlu0 %1415
    %v1417 = vsel %vm1128, %v1416, 0
    %1419 = vmatprep.subr.mxu0 0.0
    %1420 = vmatpush1.msra.mxu0 0.0
    %1421 = vmatprep.subr.mxu0 0.0
    %1422 = vmatpush1.msra.mxu0 0.0
    %1423 = vmatprep.subr.mxu0 0.0
    %1424 = vmatpush1.msra.mxu0 0.0
    %1425 = vmatprep.subr.mxu0 0.0
    %1426 = vmatpush1.msra.mxu0 0.0
    %1427 = vmatprep.subr.mxu0 0.0
    %1428 = vmatpush1.msra.mxu0 0.0
    %1429 = vmatprep.subr.mxu0 0.0
    %1430 = vmatpush1.msra.mxu0 0.0
    %1431 = vmatprep.subr.mxu0 0.0
    %1432 = vmatpush1.msra.mxu0 0.0
    %1433 = vmatprep.subr.mxu0 0.0
    %1434 = vmatpush1.msra.mxu0 0.0
    %1435 = vmatprep.subr.mxu0 0.0
    %1436 = vmatpush1.msra.mxu0 0.0
    %1437 = vmatprep.subr.mxu0 0.0
    %1438 = vmatpush1.msra.mxu0 0.0
    %1439 = vmatprep.subr.mxu0 0.0
    %1440 = vmatpush1.msra.mxu0 0.0
    %1441 = vmatprep.subr.mxu0 0.0
    %1442 = vmatpush1.msra.mxu0 0.0
    %1443 = vmatprep.subr.mxu0 %v110
    %1444 = vmatpush1.msra.mxu0 %v109
    %1445 = vmatprep.subr.mxu0 %v107
    %1446 = vmatpush1.msra.mxu0 %v106
    %1447 = vmatprep.subr.mxu0 %v104
    %1448 = vmatpush1.msra.mxu0 %v103
    %1449 = vmatprep.subr.mxu0 %v101
    %1450 = vmatpush1.msra.mxu0 %v100
    %1451 = vmatprep.subr.mxu0 0.0
    %1452 = vmatpush2.msra.mxu0 0.0
    %1453 = vmatprep.subr.mxu0 0.0
    %1454 = vmatpush2.msra.mxu0 0.0
    %1455 = vmatprep.subr.mxu0 0.0
    %1456 = vmatpush2.msra.mxu0 0.0
    %1457 = vmatprep.subr.mxu0 0.0
    %1458 = vmatpush2.msra.mxu0 0.0
    %1459 = vmatprep.subr.mxu0 0.0
    %1460 = vmatpush2.msra.mxu0 0.0
    %1461 = vmatprep.subr.mxu0 0.0
    %1462 = vmatpush2.msra.mxu0 0.0
    %1463 = vmatprep.subr.mxu0 0.0
    %1464 = vmatpush2.msra.mxu0 0.0
    %1465 = vmatprep.subr.mxu0 0.0
    %1466 = vmatpush2.msra.mxu0 0.0
    %1467 = vmatprep.subr.mxu0 0.0
    %1468 = vmatpush2.msra.mxu0 0.0
    %1469 = vmatprep.subr.mxu0 0.0
    %1470 = vmatpush2.msra.mxu0 0.0
    %1471 = vmatprep.subr.mxu0 0.0
    %1472 = vmatpush2.msra.mxu0 0.0
    %1473 = vmatprep.subr.mxu0 0.0
    %1474 = vmatpush2.msra.mxu0 0.0
    %1475 = vmatprep.subr.mxu0 0.0
    %1476 = vmatpush2.msra.mxu0 0.0
    %1477 = vmatprep.subr.mxu0 0.0
    %1478 = vmatpush2.msra.mxu0 0.0
    %1479 = vmatprep.subr.mxu0 0.0
    %1480 = vmatpush2.msra.mxu0 0.0
    %1481 = vmatprep.subr.mxu0 0.0
    %1482 = vmatpush2.msra.mxu0 0.0
    %1483 = vmatprep.mubr.f32.mxu0 0.0
    %1484 = vmatmul.mubr.f32.gmra.mxu0 %v1417
    %v1485 = vpop.f32.mrf.mxu0
    %v1486 = vadd.f32 0.0, %v1485
    %v1487 = vpop.f32.mrf.mxu0
    %v1488 = vadd.f32 0.0, %v1487
    %1489 = vdwg.mxu0
    %1490 = vmatprep.subr.mxu0 0.0
    %1491 = vmatpush1.msra.mxu0 0.0
    %1492 = vmatprep.subr.mxu0 0.0
    %1493 = vmatpush1.msra.mxu0 0.0
    %1494 = vmatprep.subr.mxu0 0.0
    %1495 = vmatpush1.msra.mxu0 0.0
    %1496 = vmatprep.subr.mxu0 0.0
    %1497 = vmatpush1.msra.mxu0 0.0
    %1498 = vmatprep.subr.mxu0 0.0
    %1499 = vmatpush1.msra.mxu0 0.0
    %1500 = vmatprep.subr.mxu0 0.0
    %1501 = vmatpush1.msra.mxu0 0.0
    %1502 = vmatprep.subr.mxu0 0.0
    %1503 = vmatpush1.msra.mxu0 0.0
    %1504 = vmatprep.subr.mxu0 0.0
    %1505 = vmatpush1.msra.mxu0 0.0
    %1506 = vmatprep.subr.mxu0 0.0
    %1507 = vmatpush1.msra.mxu0 0.0
    %1508 = vmatprep.subr.mxu0 0.0
    %1509 = vmatpush1.msra.mxu0 0.0
    %1510 = vmatprep.subr.mxu0 0.0
    %1511 = vmatpush1.msra.mxu0 0.0
    %1512 = vmatprep.subr.mxu0 0.0
    %1513 = vmatpush1.msra.mxu0 0.0
    %1514 = vmatprep.subr.mxu0 0.0
    %1515 = vmatpush1.msra.mxu0 %v111
    %1516 = vmatprep.subr.mxu0 0.0
    %1517 = vmatpush1.msra.mxu0 %v108
    %1518 = vmatprep.subr.mxu0 0.0
    %1519 = vmatpush1.msra.mxu0 %v105
    %1520 = vmatprep.subr.mxu0 0.0
    %1521 = vmatpush1.msra.mxu0 %v102
    %1522 = vmatprep.subr.mxu0 0.0
    %1523 = vmatpush2.msra.mxu0 0.0
    %1524 = vmatprep.subr.mxu0 0.0
    %1525 = vmatpush2.msra.mxu0 0.0
    %1526 = vmatprep.subr.mxu0 0.0
    %1527 = vmatpush2.msra.mxu0 0.0
    %1528 = vmatprep.subr.mxu0 0.0
    %1529 = vmatpush2.msra.mxu0 0.0
    %1530 = vmatprep.subr.mxu0 0.0
    %1531 = vmatpush2.msra.mxu0 0.0
    %1532 = vmatprep.subr.mxu0 0.0
    %1533 = vmatpush2.msra.mxu0 0.0
    %1534 = vmatprep.subr.mxu0 0.0
    %1535 = vmatpush2.msra.mxu0 0.0
    %1536 = vmatprep.subr.mxu0 0.0
    %1537 = vmatpush2.msra.mxu0 0.0
    %1538 = vmatprep.subr.mxu0 0.0
    %1539 = vmatpush2.msra.mxu0 0.0
    %1540 = vmatprep.subr.mxu0 0.0
    %1541 = vmatpush2.msra.mxu0 0.0
    %1542 = vmatprep.subr.mxu0 0.0
    %1543 = vmatpush2.msra.mxu0 0.0
    %1544 = vmatprep.subr.mxu0 0.0
    %1545 = vmatpush2.msra.mxu0 0.0
    %1546 = vmatprep.subr.mxu0 0.0
    %1547 = vmatpush2.msra.mxu0 0.0
    %1548 = vmatprep.subr.mxu0 0.0
    %1549 = vmatpush2.msra.mxu0 0.0
    %1550 = vmatprep.subr.mxu0 0.0
    %1551 = vmatpush2.msra.mxu0 0.0
    %1552 = vmatprep.subr.mxu0 0.0
    %1553 = vmatpush2.msra.mxu0 0.0
    %1554 = vmatprep.mubr.f32.mxu0 0.0
    %1555 = vmatmul.mubr.f32.gmra.mxu0 %v1417
    %v1556 = vpop.f32.mrf.mxu0
    %v1557 = vadd.f32 0.0, %v1556
    %v1558 = vpop.f32.mrf.mxu0
    %1559 = vdwg.mxu0
    %v1560 = vsel %vm1128, %v511, 0
    %1562 = vmatprep.subr.mxu0 0.0
    %1563 = vmatpush1.msra.mxu0 0.0
    %1564 = vmatprep.subr.mxu0 0.0
    %1565 = vmatpush1.msra.mxu0 0.0
    %1566 = vmatprep.subr.mxu0 0.0
    %1567 = vmatpush1.msra.mxu0 0.0
    %1568 = vmatprep.subr.mxu0 0.0
    %1569 = vmatpush1.msra.mxu0 0.0
    %1570 = vmatprep.subr.mxu0 0.0
    %1571 = vmatpush1.msra.mxu0 0.0
    %1572 = vmatprep.subr.mxu0 0.0
    %1573 = vmatpush1.msra.mxu0 0.0
    %1574 = vmatprep.subr.mxu0 0.0
    %1575 = vmatpush1.msra.mxu0 0.0
    %1576 = vmatprep.subr.mxu0 0.0
    %1577 = vmatpush1.msra.mxu0 0.0
    %1578 = vmatprep.subr.mxu0 0.0
    %1579 = vmatpush1.msra.mxu0 0.0
    %1580 = vmatprep.subr.mxu0 0.0
    %1581 = vmatpush1.msra.mxu0 0.0
    %1582 = vmatprep.subr.mxu0 0.0
    %1583 = vmatpush1.msra.mxu0 0.0
    %1584 = vmatprep.subr.mxu0 0.0
    %1585 = vmatpush1.msra.mxu0 0.0
    %1586 = vmatprep.subr.mxu0 %v98
    %1587 = vmatpush1.msra.mxu0 %v97
    %1588 = vmatprep.subr.mxu0 %v95
    %1589 = vmatpush1.msra.mxu0 %v94
    %1590 = vmatprep.subr.mxu0 %v92
    %1591 = vmatpush1.msra.mxu0 %v91
    %1592 = vmatprep.subr.mxu0 %v89
    %1593 = vmatpush1.msra.mxu0 %v88
    %1594 = vmatprep.subr.mxu0 0.0
    %1595 = vmatpush2.msra.mxu0 0.0
    %1596 = vmatprep.subr.mxu0 0.0
    %1597 = vmatpush2.msra.mxu0 0.0
    %1598 = vmatprep.subr.mxu0 0.0
    %1599 = vmatpush2.msra.mxu0 0.0
    %1600 = vmatprep.subr.mxu0 0.0
    %1601 = vmatpush2.msra.mxu0 0.0
    %1602 = vmatprep.subr.mxu0 0.0
    %1603 = vmatpush2.msra.mxu0 0.0
    %1604 = vmatprep.subr.mxu0 0.0
    %1605 = vmatpush2.msra.mxu0 0.0
    %1606 = vmatprep.subr.mxu0 0.0
    %1607 = vmatpush2.msra.mxu0 0.0
    %1608 = vmatprep.subr.mxu0 0.0
    %1609 = vmatpush2.msra.mxu0 0.0
    %1610 = vmatprep.subr.mxu0 0.0
    %1611 = vmatpush2.msra.mxu0 0.0
    %1612 = vmatprep.subr.mxu0 0.0
    %1613 = vmatpush2.msra.mxu0 0.0
    %1614 = vmatprep.subr.mxu0 0.0
    %1615 = vmatpush2.msra.mxu0 0.0
    %1616 = vmatprep.subr.mxu0 0.0
    %1617 = vmatpush2.msra.mxu0 0.0
    %1618 = vmatprep.subr.mxu0 0.0
    %1619 = vmatpush2.msra.mxu0 0.0
    %1620 = vmatprep.subr.mxu0 0.0
    %1621 = vmatpush2.msra.mxu0 0.0
    %1622 = vmatprep.subr.mxu0 0.0
    %1623 = vmatpush2.msra.mxu0 0.0
    %1624 = vmatprep.subr.mxu0 0.0
    %1625 = vmatpush2.msra.mxu0 0.0
    %1626 = vmatprep.mubr.f32.mxu0 0.0
    %1627 = vmatmul.mubr.f32.gmra.mxu0 %v1560
    %v1628 = vpop.f32.mrf.mxu0
    %v1629 = vadd.f32 %v1486, %v1628
    %v1630 = vpop.f32.mrf.mxu0
    %v1631 = vadd.f32 %v1488, %v1630
    %1632 = vdwg.mxu0
    %1633 = vmatprep.subr.mxu0 0.0
    %1634 = vmatpush1.msra.mxu0 0.0
    %1635 = vmatprep.subr.mxu0 0.0
    %1636 = vmatpush1.msra.mxu0 0.0
    %1637 = vmatprep.subr.mxu0 0.0
    %1638 = vmatpush1.msra.mxu0 0.0
    %1639 = vmatprep.subr.mxu0 0.0
    %1640 = vmatpush1.msra.mxu0 0.0
    %1641 = vmatprep.subr.mxu0 0.0
    %1642 = vmatpush1.msra.mxu0 0.0
    %1643 = vmatprep.subr.mxu0 0.0
    %1644 = vmatpush1.msra.mxu0 0.0
    %1645 = vmatprep.subr.mxu0 0.0
    %1646 = vmatpush1.msra.mxu0 0.0
    %1647 = vmatprep.subr.mxu0 0.0
    %1648 = vmatpush1.msra.mxu0 0.0
    %1649 = vmatprep.subr.mxu0 0.0
    %1650 = vmatpush1.msra.mxu0 0.0
    %1651 = vmatprep.subr.mxu0 0.0
    %1652 = vmatpush1.msra.mxu0 0.0
    %1653 = vmatprep.subr.mxu0 0.0
    %1654 = vmatpush1.msra.mxu0 0.0
    %1655 = vmatprep.subr.mxu0 0.0
    %1656 = vmatpush1.msra.mxu0 0.0
    %1657 = vmatprep.subr.mxu0 0.0
    %1658 = vmatpush1.msra.mxu0 %v99
    %1659 = vmatprep.subr.mxu0 0.0
    %1660 = vmatpush1.msra.mxu0 %v96
    %1661 = vmatprep.subr.mxu0 0.0
    %1662 = vmatpush1.msra.mxu0 %v93
    %1663 = vmatprep.subr.mxu0 0.0
    %1664 = vmatpush1.msra.mxu0 %v90
    %1665 = vmatprep.subr.mxu0 0.0
    %1666 = vmatpush2.msra.mxu0 0.0
    %1667 = vmatprep.subr.mxu0 0.0
    %1668 = vmatpush2.msra.mxu0 0.0
    %1669 = vmatprep.subr.mxu0 0.0
    %1670 = vmatpush2.msra.mxu0 0.0
    %1671 = vmatprep.subr.mxu0 0.0
    %1672 = vmatpush2.msra.mxu0 0.0
    %1673 = vmatprep.subr.mxu0 0.0
    %1674 = vmatpush2.msra.mxu0 0.0
    %1675 = vmatprep.subr.mxu0 0.0
    %1676 = vmatpush2.msra.mxu0 0.0
    %1677 = vmatprep.subr.mxu0 0.0
    %1678 = vmatpush2.msra.mxu0 0.0
    %1679 = vmatprep.subr.mxu0 0.0
    %1680 = vmatpush2.msra.mxu0 0.0
    %1681 = vmatprep.subr.mxu0 0.0
    %1682 = vmatpush2.msra.mxu0 0.0
    %1683 = vmatprep.subr.mxu0 0.0
    %1684 = vmatpush2.msra.mxu0 0.0
    %1685 = vmatprep.subr.mxu0 0.0
    %1686 = vmatpush2.msra.mxu0 0.0
    %1687 = vmatprep.subr.mxu0 0.0
    %1688 = vmatpush2.msra.mxu0 0.0
    %1689 = vmatprep.subr.mxu0 0.0
    %1690 = vmatpush2.msra.mxu0 0.0
    %1691 = vmatprep.subr.mxu0 0.0
    %1692 = vmatpush2.msra.mxu0 0.0
    %1693 = vmatprep.subr.mxu0 0.0
    %1694 = vmatpush2.msra.mxu0 0.0
    %1695 = vmatprep.subr.mxu0 0.0
    %1696 = vmatpush2.msra.mxu0 0.0
    %1697 = vmatprep.mubr.f32.mxu0 0.0
    %1698 = vmatmul.mubr.f32.gmra.mxu0 %v1560
    %v1699 = vpop.f32.mrf.mxu0
    %v1700 = vadd.f32 %v1557, %v1699
    %v1701 = vpop.f32.mrf.mxu0
    %1702 = vdwg.mxu0
    %1703 = vrot.lane.b32.xlu0 %v917, 32
    %v1704 = vpop.permute.xlu0 %1703
    %v1705 = vsel %vm1128, %v1704, 0
    %1707 = vmatprep.subr.mxu0 0.0
    %1708 = vmatpush1.msra.mxu0 0.0
    %1709 = vmatprep.subr.mxu0 0.0
    %1710 = vmatpush1.msra.mxu0 0.0
    %1711 = vmatprep.subr.mxu0 0.0
    %1712 = vmatpush1.msra.mxu0 0.0
    %1713 = vmatprep.subr.mxu0 0.0
    %1714 = vmatpush1.msra.mxu0 0.0
    %1715 = vmatprep.subr.mxu0 0.0
    %1716 = vmatpush1.msra.mxu0 0.0
    %1717 = vmatprep.subr.mxu0 0.0
    %1718 = vmatpush1.msra.mxu0 0.0
    %1719 = vmatprep.subr.mxu0 0.0
    %1720 = vmatpush1.msra.mxu0 0.0
    %1721 = vmatprep.subr.mxu0 0.0
    %1722 = vmatpush1.msra.mxu0 0.0
    %1723 = vmatprep.subr.mxu0 0.0
    %1724 = vmatpush1.msra.mxu0 0.0
    %1725 = vmatprep.subr.mxu0 0.0
    %1726 = vmatpush1.msra.mxu0 0.0
    %1727 = vmatprep.subr.mxu0 0.0
    %1728 = vmatpush1.msra.mxu0 0.0
    %1729 = vmatprep.subr.mxu0 0.0
    %1730 = vmatpush1.msra.mxu0 0.0
    %1731 = vmatprep.subr.mxu0 %v110
    %1732 = vmatpush1.msra.mxu0 %v109
    %1733 = vmatprep.subr.mxu0 %v107
    %1734 = vmatpush1.msra.mxu0 %v106
    %1735 = vmatprep.subr.mxu0 %v104
    %1736 = vmatpush1.msra.mxu0 %v103
    %1737 = vmatprep.subr.mxu0 %v101
    %1738 = vmatpush1.msra.mxu0 %v100
    %1739 = vmatprep.subr.mxu0 0.0
    %1740 = vmatpush2.msra.mxu0 0.0
    %1741 = vmatprep.subr.mxu0 0.0
    %1742 = vmatpush2.msra.mxu0 0.0
    %1743 = vmatprep.subr.mxu0 0.0
    %1744 = vmatpush2.msra.mxu0 0.0
    %1745 = vmatprep.subr.mxu0 0.0
    %1746 = vmatpush2.msra.mxu0 0.0
    %1747 = vmatprep.subr.mxu0 0.0
    %1748 = vmatpush2.msra.mxu0 0.0
    %1749 = vmatprep.subr.mxu0 0.0
    %1750 = vmatpush2.msra.mxu0 0.0
    %1751 = vmatprep.subr.mxu0 0.0
    %1752 = vmatpush2.msra.mxu0 0.0
    %1753 = vmatprep.subr.mxu0 0.0
    %1754 = vmatpush2.msra.mxu0 0.0
    %1755 = vmatprep.subr.mxu0 0.0
    %1756 = vmatpush2.msra.mxu0 0.0
    %1757 = vmatprep.subr.mxu0 0.0
    %1758 = vmatpush2.msra.mxu0 0.0
    %1759 = vmatprep.subr.mxu0 0.0
    %1760 = vmatpush2.msra.mxu0 0.0
    %1761 = vmatprep.subr.mxu0 0.0
    %1762 = vmatpush2.msra.mxu0 0.0
    %1763 = vmatprep.subr.mxu0 0.0
    %1764 = vmatpush2.msra.mxu0 0.0
    %1765 = vmatprep.subr.mxu0 0.0
    %1766 = vmatpush2.msra.mxu0 0.0
    %1767 = vmatprep.subr.mxu0 0.0
    %1768 = vmatpush2.msra.mxu0 0.0
    %1769 = vmatprep.subr.mxu0 0.0
    %1770 = vmatpush2.msra.mxu0 0.0
    %1771 = vmatprep.mubr.f32.mxu0 0.0
    %1772 = vmatmul.mubr.f32.gmra.mxu0 %v1705
    %v1773 = vpop.f32.mrf.mxu0
    %v1774 = vadd.f32 0.0, %v1773
    %v1775 = vpop.f32.mrf.mxu0
    %v1776 = vadd.f32 0.0, %v1775
    %1777 = vdwg.mxu0
    %1778 = vmatprep.subr.mxu0 0.0
    %1779 = vmatpush1.msra.mxu0 0.0
    %1780 = vmatprep.subr.mxu0 0.0
    %1781 = vmatpush1.msra.mxu0 0.0
    %1782 = vmatprep.subr.mxu0 0.0
    %1783 = vmatpush1.msra.mxu0 0.0
    %1784 = vmatprep.subr.mxu0 0.0
    %1785 = vmatpush1.msra.mxu0 0.0
    %1786 = vmatprep.subr.mxu0 0.0
    %1787 = vmatpush1.msra.mxu0 0.0
    %1788 = vmatprep.subr.mxu0 0.0
    %1789 = vmatpush1.msra.mxu0 0.0
    %1790 = vmatprep.subr.mxu0 0.0
    %1791 = vmatpush1.msra.mxu0 0.0
    %1792 = vmatprep.subr.mxu0 0.0
    %1793 = vmatpush1.msra.mxu0 0.0
    %1794 = vmatprep.subr.mxu0 0.0
    %1795 = vmatpush1.msra.mxu0 0.0
    %1796 = vmatprep.subr.mxu0 0.0
    %1797 = vmatpush1.msra.mxu0 0.0
    %1798 = vmatprep.subr.mxu0 0.0
    %1799 = vmatpush1.msra.mxu0 0.0
    %1800 = vmatprep.subr.mxu0 0.0
    %1801 = vmatpush1.msra.mxu0 0.0
    %1802 = vmatprep.subr.mxu0 0.0
    %1803 = vmatpush1.msra.mxu0 %v111
    %1804 = vmatprep.subr.mxu0 0.0
    %1805 = vmatpush1.msra.mxu0 %v108
    %1806 = vmatprep.subr.mxu0 0.0
    %1807 = vmatpush1.msra.mxu0 %v105
    %1808 = vmatprep.subr.mxu0 0.0
    %1809 = vmatpush1.msra.mxu0 %v102
    %1810 = vmatprep.subr.mxu0 0.0
    %1811 = vmatpush2.msra.mxu0 0.0
    %1812 = vmatprep.subr.mxu0 0.0
    %1813 = vmatpush2.msra.mxu0 0.0
    %1814 = vmatprep.subr.mxu0 0.0
    %1815 = vmatpush2.msra.mxu0 0.0
    %1816 = vmatprep.subr.mxu0 0.0
    %1817 = vmatpush2.msra.mxu0 0.0
    %1818 = vmatprep.subr.mxu0 0.0
    %1819 = vmatpush2.msra.mxu0 0.0
    %1820 = vmatprep.subr.mxu0 0.0
    %1821 = vmatpush2.msra.mxu0 0.0
    %1822 = vmatprep.subr.mxu0 0.0
    %1823 = vmatpush2.msra.mxu0 0.0
    %1824 = vmatprep.subr.mxu0 0.0
    %1825 = vmatpush2.msra.mxu0 0.0
    %1826 = vmatprep.subr.mxu0 0.0
    %1827 = vmatpush2.msra.mxu0 0.0
    %1828 = vmatprep.subr.mxu0 0.0
    %1829 = vmatpush2.msra.mxu0 0.0
    %1830 = vmatprep.subr.mxu0 0.0
    %1831 = vmatpush2.msra.mxu0 0.0
    %1832 = vmatprep.subr.mxu0 0.0
    %1833 = vmatpush2.msra.mxu0 0.0
    %1834 = vmatprep.subr.mxu0 0.0
    %1835 = vmatpush2.msra.mxu0 0.0
    %1836 = vmatprep.subr.mxu0 0.0
    %1837 = vmatpush2.msra.mxu0 0.0
    %1838 = vmatprep.subr.mxu0 0.0
    %1839 = vmatpush2.msra.mxu0 0.0
    %1840 = vmatprep.subr.mxu0 0.0
    %1841 = vmatpush2.msra.mxu0 0.0
    %1842 = vmatprep.mubr.f32.mxu0 0.0
    %1843 = vmatmul.mubr.f32.gmra.mxu0 %v1705
    %v1844 = vpop.f32.mrf.mxu0
    %v1845 = vadd.f32 0.0, %v1844
    %v1846 = vpop.f32.mrf.mxu0
    %1847 = vdwg.mxu0
    %v1848 = vsel %vm1128, %v615, 0
    %1850 = vmatprep.subr.mxu0 0.0
    %1851 = vmatpush1.msra.mxu0 0.0
    %1852 = vmatprep.subr.mxu0 0.0
    %1853 = vmatpush1.msra.mxu0 0.0
    %1854 = vmatprep.subr.mxu0 0.0
    %1855 = vmatpush1.msra.mxu0 0.0
    %1856 = vmatprep.subr.mxu0 0.0
    %1857 = vmatpush1.msra.mxu0 0.0
    %1858 = vmatprep.subr.mxu0 0.0
    %1859 = vmatpush1.msra.mxu0 0.0
    %1860 = vmatprep.subr.mxu0 0.0
    %1861 = vmatpush1.msra.mxu0 0.0
    %1862 = vmatprep.subr.mxu0 0.0
    %1863 = vmatpush1.msra.mxu0 0.0
    %1864 = vmatprep.subr.mxu0 0.0
    %1865 = vmatpush1.msra.mxu0 0.0
    %1866 = vmatprep.subr.mxu0 0.0
    %1867 = vmatpush1.msra.mxu0 0.0
    %1868 = vmatprep.subr.mxu0 0.0
    %1869 = vmatpush1.msra.mxu0 0.0
    %1870 = vmatprep.subr.mxu0 0.0
    %1871 = vmatpush1.msra.mxu0 0.0
    %1872 = vmatprep.subr.mxu0 0.0
    %1873 = vmatpush1.msra.mxu0 0.0
    %1874 = vmatprep.subr.mxu0 %v98
    %1875 = vmatpush1.msra.mxu0 %v97
    %1876 = vmatprep.subr.mxu0 %v95
    %1877 = vmatpush1.msra.mxu0 %v94
    %1878 = vmatprep.subr.mxu0 %v92
    %1879 = vmatpush1.msra.mxu0 %v91
    %1880 = vmatprep.subr.mxu0 %v89
    %1881 = vmatpush1.msra.mxu0 %v88
    %1882 = vmatprep.subr.mxu0 0.0
    %1883 = vmatpush2.msra.mxu0 0.0
    %1884 = vmatprep.subr.mxu0 0.0
    %1885 = vmatpush2.msra.mxu0 0.0
    %1886 = vmatprep.subr.mxu0 0.0
    %1887 = vmatpush2.msra.mxu0 0.0
    %1888 = vmatprep.subr.mxu0 0.0
    %1889 = vmatpush2.msra.mxu0 0.0
    %1890 = vmatprep.subr.mxu0 0.0
    %1891 = vmatpush2.msra.mxu0 0.0
    %1892 = vmatprep.subr.mxu0 0.0
    %1893 = vmatpush2.msra.mxu0 0.0
    %1894 = vmatprep.subr.mxu0 0.0
    %1895 = vmatpush2.msra.mxu0 0.0
    %1896 = vmatprep.subr.mxu0 0.0
    %1897 = vmatpush2.msra.mxu0 0.0
    %1898 = vmatprep.subr.mxu0 0.0
    %1899 = vmatpush2.msra.mxu0 0.0
    %1900 = vmatprep.subr.mxu0 0.0
    %1901 = vmatpush2.msra.mxu0 0.0
    %1902 = vmatprep.subr.mxu0 0.0
    %1903 = vmatpush2.msra.mxu0 0.0
    %1904 = vmatprep.subr.mxu0 0.0
    %1905 = vmatpush2.msra.mxu0 0.0
    %1906 = vmatprep.subr.mxu0 0.0
    %1907 = vmatpush2.msra.mxu0 0.0
    %1908 = vmatprep.subr.mxu0 0.0
    %1909 = vmatpush2.msra.mxu0 0.0
    %1910 = vmatprep.subr.mxu0 0.0
    %1911 = vmatpush2.msra.mxu0 0.0
    %1912 = vmatprep.subr.mxu0 0.0
    %1913 = vmatpush2.msra.mxu0 0.0
    %1914 = vmatprep.mubr.f32.mxu0 0.0
    %1915 = vmatmul.mubr.f32.gmra.mxu0 %v1848
    %v1916 = vpop.f32.mrf.mxu0
    %v1917 = vadd.f32 %v1774, %v1916
    %v1918 = vpop.f32.mrf.mxu0
    %v1919 = vadd.f32 %v1776, %v1918
    %1920 = vdwg.mxu0
    %1921 = vmatprep.subr.mxu0 0.0
    %1922 = vmatpush1.msra.mxu0 0.0
    %1923 = vmatprep.subr.mxu0 0.0
    %1924 = vmatpush1.msra.mxu0 0.0
    %1925 = vmatprep.subr.mxu0 0.0
    %1926 = vmatpush1.msra.mxu0 0.0
    %1927 = vmatprep.subr.mxu0 0.0
    %1928 = vmatpush1.msra.mxu0 0.0
    %1929 = vmatprep.subr.mxu0 0.0
    %1930 = vmatpush1.msra.mxu0 0.0
    %1931 = vmatprep.subr.mxu0 0.0
    %1932 = vmatpush1.msra.mxu0 0.0
    %1933 = vmatprep.subr.mxu0 0.0
    %1934 = vmatpush1.msra.mxu0 0.0
    %1935 = vmatprep.subr.mxu0 0.0
    %1936 = vmatpush1.msra.mxu0 0.0
    %1937 = vmatprep.subr.mxu0 0.0
    %1938 = vmatpush1.msra.mxu0 0.0
    %1939 = vmatprep.subr.mxu0 0.0
    %1940 = vmatpush1.msra.mxu0 0.0
    %1941 = vmatprep.subr.mxu0 0.0
    %1942 = vmatpush1.msra.mxu0 0.0
    %1943 = vmatprep.subr.mxu0 0.0
    %1944 = vmatpush1.msra.mxu0 0.0
    %1945 = vmatprep.subr.mxu0 0.0
    %1946 = vmatpush1.msra.mxu0 %v99
    %1947 = vmatprep.subr.mxu0 0.0
    %1948 = vmatpush1.msra.mxu0 %v96
    %1949 = vmatprep.subr.mxu0 0.0
    %1950 = vmatpush1.msra.mxu0 %v93
    %1951 = vmatprep.subr.mxu0 0.0
    %1952 = vmatpush1.msra.mxu0 %v90
    %1953 = vmatprep.subr.mxu0 0.0
    %1954 = vmatpush2.msra.mxu0 0.0
    %1955 = vmatprep.subr.mxu0 0.0
    %1956 = vmatpush2.msra.mxu0 0.0
    %1957 = vmatprep.subr.mxu0 0.0
    %1958 = vmatpush2.msra.mxu0 0.0
    %1959 = vmatprep.subr.mxu0 0.0
    %1960 = vmatpush2.msra.mxu0 0.0
    %1961 = vmatprep.subr.mxu0 0.0
    %1962 = vmatpush2.msra.mxu0 0.0
    %1963 = vmatprep.subr.mxu0 0.0
    %1964 = vmatpush2.msra.mxu0 0.0
    %1965 = vmatprep.subr.mxu0 0.0
    %1966 = vmatpush2.msra.mxu0 0.0
    %1967 = vmatprep.subr.mxu0 0.0
    %1968 = vmatpush2.msra.mxu0 0.0
    %1969 = vmatprep.subr.mxu0 0.0
    %1970 = vmatpush2.msra.mxu0 0.0
    %1971 = vmatprep.subr.mxu0 0.0
    %1972 = vmatpush2.msra.mxu0 0.0
    %1973 = vmatprep.subr.mxu0 0.0
    %1974 = vmatpush2.msra.mxu0 0.0
    %1975 = vmatprep.subr.mxu0 0.0
    %1976 = vmatpush2.msra.mxu0 0.0
    %1977 = vmatprep.subr.mxu0 0.0
    %1978 = vmatpush2.msra.mxu0 0.0
    %1979 = vmatprep.subr.mxu0 0.0
    %1980 = vmatpush2.msra.mxu0 0.0
    %1981 = vmatprep.subr.mxu0 0.0
    %1982 = vmatpush2.msra.mxu0 0.0
    %1983 = vmatprep.subr.mxu0 0.0
    %1984 = vmatpush2.msra.mxu0 0.0
    %1985 = vmatprep.mubr.f32.mxu0 0.0
    %1986 = vmatmul.mubr.f32.gmra.mxu0 %v1848
    %v1987 = vpop.f32.mrf.mxu0
    %v1988 = vadd.f32 %v1845, %v1987
    %v1989 = vpop.f32.mrf.mxu0
    %1990 = vdwg.mxu0
    %1991 = vrot.lane.b32.xlu0 %v812, 32
    %v1992 = vpop.permute.xlu0 %1991
    %v1993 = vsel %vm1128, %v1992, 0
    %1995 = vmatprep.subr.mxu0 0.0
    %1996 = vmatpush1.msra.mxu0 0.0
    %1997 = vmatprep.subr.mxu0 0.0
    %1998 = vmatpush1.msra.mxu0 0.0
    %1999 = vmatprep.subr.mxu0 0.0
    %2000 = vmatpush1.msra.mxu0 0.0
    %2001 = vmatprep.subr.mxu0 0.0
    %2002 = vmatpush1.msra.mxu0 0.0
    %2003 = vmatprep.subr.mxu0 0.0
    %2004 = vmatpush1.msra.mxu0 0.0
    %2005 = vmatprep.subr.mxu0 0.0
    %2006 = vmatpush1.msra.mxu0 0.0
    %2007 = vmatprep.subr.mxu0 0.0
    %2008 = vmatpush1.msra.mxu0 0.0
    %2009 = vmatprep.subr.mxu0 0.0
    %2010 = vmatpush1.msra.mxu0 0.0
    %2011 = vmatprep.subr.mxu0 0.0
    %2012 = vmatpush1.msra.mxu0 0.0
    %2013 = vmatprep.subr.mxu0 0.0
    %2014 = vmatpush1.msra.mxu0 0.0
    %2015 = vmatprep.subr.mxu0 0.0
    %2016 = vmatpush1.msra.mxu0 0.0
    %2017 = vmatprep.subr.mxu0 0.0
    %2018 = vmatpush1.msra.mxu0 0.0
    %2019 = vmatprep.subr.mxu0 %v110
    %2020 = vmatpush1.msra.mxu0 %v109
    %2021 = vmatprep.subr.mxu0 %v107
    %2022 = vmatpush1.msra.mxu0 %v106
    %2023 = vmatprep.subr.mxu0 %v104
    %2024 = vmatpush1.msra.mxu0 %v103
    %2025 = vmatprep.subr.mxu0 %v101
    %2026 = vmatpush1.msra.mxu0 %v100
    %2027 = vmatprep.subr.mxu0 0.0
    %2028 = vmatpush2.msra.mxu0 0.0
    %2029 = vmatprep.subr.mxu0 0.0
    %2030 = vmatpush2.msra.mxu0 0.0
    %2031 = vmatprep.subr.mxu0 0.0
    %2032 = vmatpush2.msra.mxu0 0.0
    %2033 = vmatprep.subr.mxu0 0.0
    %2034 = vmatpush2.msra.mxu0 0.0
    %2035 = vmatprep.subr.mxu0 0.0
    %2036 = vmatpush2.msra.mxu0 0.0
    %2037 = vmatprep.subr.mxu0 0.0
    %2038 = vmatpush2.msra.mxu0 0.0
    %2039 = vmatprep.subr.mxu0 0.0
    %2040 = vmatpush2.msra.mxu0 0.0
    %2041 = vmatprep.subr.mxu0 0.0
    %2042 = vmatpush2.msra.mxu0 0.0
    %2043 = vmatprep.subr.mxu0 0.0
    %2044 = vmatpush2.msra.mxu0 0.0
    %2045 = vmatprep.subr.mxu0 0.0
    %2046 = vmatpush2.msra.mxu0 0.0
    %2047 = vmatprep.subr.mxu0 0.0
    %2048 = vmatpush2.msra.mxu0 0.0
    %2049 = vmatprep.subr.mxu0 0.0
    %2050 = vmatpush2.msra.mxu0 0.0
    %2051 = vmatprep.subr.mxu0 0.0
    %2052 = vmatpush2.msra.mxu0 0.0
    %2053 = vmatprep.subr.mxu0 0.0
    %2054 = vmatpush2.msra.mxu0 0.0
    %2055 = vmatprep.subr.mxu0 0.0
    %2056 = vmatpush2.msra.mxu0 0.0
    %2057 = vmatprep.subr.mxu0 0.0
    %2058 = vmatpush2.msra.mxu0 0.0
    %2059 = vmatprep.mubr.f32.mxu0 0.0
    %2060 = vmatmul.mubr.f32.gmra.mxu0 %v1993
    %v2061 = vpop.f32.mrf.mxu0
    %v2062 = vadd.f32 0.0, %v2061
    %v2063 = vpop.f32.mrf.mxu0
    %v2064 = vadd.f32 0.0, %v2063
    %2065 = vdwg.mxu0
    %2066 = vmatprep.subr.mxu0 0.0
    %2067 = vmatpush1.msra.mxu0 0.0
    %2068 = vmatprep.subr.mxu0 0.0
    %2069 = vmatpush1.msra.mxu0 0.0
    %2070 = vmatprep.subr.mxu0 0.0
    %2071 = vmatpush1.msra.mxu0 0.0
    %2072 = vmatprep.subr.mxu0 0.0
    %2073 = vmatpush1.msra.mxu0 0.0
    %2074 = vmatprep.subr.mxu0 0.0
    %2075 = vmatpush1.msra.mxu0 0.0
    %2076 = vmatprep.subr.mxu0 0.0
    %2077 = vmatpush1.msra.mxu0 0.0
    %2078 = vmatprep.subr.mxu0 0.0
    %2079 = vmatpush1.msra.mxu0 0.0
    %2080 = vmatprep.subr.mxu0 0.0
    %2081 = vmatpush1.msra.mxu0 0.0
    %2082 = vmatprep.subr.mxu0 0.0
    %2083 = vmatpush1.msra.mxu0 0.0
    %2084 = vmatprep.subr.mxu0 0.0
    %2085 = vmatpush1.msra.mxu0 0.0
    %2086 = vmatprep.subr.mxu0 0.0
    %2087 = vmatpush1.msra.mxu0 0.0
    %2088 = vmatprep.subr.mxu0 0.0
    %2089 = vmatpush1.msra.mxu0 0.0
    %2090 = vmatprep.subr.mxu0 0.0
    %2091 = vmatpush1.msra.mxu0 %v111
    %2092 = vmatprep.subr.mxu0 0.0
    %2093 = vmatpush1.msra.mxu0 %v108
    %2094 = vmatprep.subr.mxu0 0.0
    %2095 = vmatpush1.msra.mxu0 %v105
    %2096 = vmatprep.subr.mxu0 0.0
    %2097 = vmatpush1.msra.mxu0 %v102
    %2098 = vmatprep.subr.mxu0 0.0
    %2099 = vmatpush2.msra.mxu0 0.0
    %2100 = vmatprep.subr.mxu0 0.0
    %2101 = vmatpush2.msra.mxu0 0.0
    %2102 = vmatprep.subr.mxu0 0.0
    %2103 = vmatpush2.msra.mxu0 0.0
    %2104 = vmatprep.subr.mxu0 0.0
    %2105 = vmatpush2.msra.mxu0 0.0
    %2106 = vmatprep.subr.mxu0 0.0
    %2107 = vmatpush2.msra.mxu0 0.0
    %2108 = vmatprep.subr.mxu0 0.0
    %2109 = vmatpush2.msra.mxu0 0.0
    %2110 = vmatprep.subr.mxu0 0.0
    %2111 = vmatpush2.msra.mxu0 0.0
    %2112 = vmatprep.subr.mxu0 0.0
    %2113 = vmatpush2.msra.mxu0 0.0
    %2114 = vmatprep.subr.mxu0 0.0
    %2115 = vmatpush2.msra.mxu0 0.0
    %2116 = vmatprep.subr.mxu0 0.0
    %2117 = vmatpush2.msra.mxu0 0.0
    %2118 = vmatprep.subr.mxu0 0.0
    %2119 = vmatpush2.msra.mxu0 0.0
    %2120 = vmatprep.subr.mxu0 0.0
    %2121 = vmatpush2.msra.mxu0 0.0
    %2122 = vmatprep.subr.mxu0 0.0
    %2123 = vmatpush2.msra.mxu0 0.0
    %2124 = vmatprep.subr.mxu0 0.0
    %2125 = vmatpush2.msra.mxu0 0.0
    %2126 = vmatprep.subr.mxu0 0.0
    %2127 = vmatpush2.msra.mxu0 0.0
    %2128 = vmatprep.subr.mxu0 0.0
    %2129 = vmatpush2.msra.mxu0 0.0
    %2130 = vmatprep.mubr.f32.mxu0 0.0
    %2131 = vmatmul.mubr.f32.gmra.mxu0 %v1993
    %v2132 = vpop.f32.mrf.mxu0
    %v2133 = vadd.f32 0.0, %v2132
    %v2134 = vpop.f32.mrf.mxu0
    %2135 = vdwg.mxu0
    %v2136 = vsel %vm1128, %v719, 0
    %2138 = vmatprep.subr.mxu0 0.0
    %2139 = vmatpush1.msra.mxu0 0.0
    %2140 = vmatprep.subr.mxu0 0.0
    %2141 = vmatpush1.msra.mxu0 0.0
    %2142 = vmatprep.subr.mxu0 0.0
    %2143 = vmatpush1.msra.mxu0 0.0
    %2144 = vmatprep.subr.mxu0 0.0
    %2145 = vmatpush1.msra.mxu0 0.0
    %2146 = vmatprep.subr.mxu0 0.0
    %2147 = vmatpush1.msra.mxu0 0.0
    %2148 = vmatprep.subr.mxu0 0.0
    %2149 = vmatpush1.msra.mxu0 0.0
    %2150 = vmatprep.subr.mxu0 0.0
    %2151 = vmatpush1.msra.mxu0 0.0
    %2152 = vmatprep.subr.mxu0 0.0
    %2153 = vmatpush1.msra.mxu0 0.0
    %2154 = vmatprep.subr.mxu0 0.0
    %2155 = vmatpush1.msra.mxu0 0.0
    %2156 = vmatprep.subr.mxu0 0.0
    %2157 = vmatpush1.msra.mxu0 0.0
    %2158 = vmatprep.subr.mxu0 0.0
    %2159 = vmatpush1.msra.mxu0 0.0
    %2160 = vmatprep.subr.mxu0 0.0
    %2161 = vmatpush1.msra.mxu0 0.0
    %2162 = vmatprep.subr.mxu0 %v98
    %2163 = vmatpush1.msra.mxu0 %v97
    %2164 = vmatprep.subr.mxu0 %v95
    %2165 = vmatpush1.msra.mxu0 %v94
    %2166 = vmatprep.subr.mxu0 %v92
    %2167 = vmatpush1.msra.mxu0 %v91
    %2168 = vmatprep.subr.mxu0 %v89
    %2169 = vmatpush1.msra.mxu0 %v88
    %2170 = vmatprep.subr.mxu0 0.0
    %2171 = vmatpush2.msra.mxu0 0.0
    %2172 = vmatprep.subr.mxu0 0.0
    %2173 = vmatpush2.msra.mxu0 0.0
    %2174 = vmatprep.subr.mxu0 0.0
    %2175 = vmatpush2.msra.mxu0 0.0
    %2176 = vmatprep.subr.mxu0 0.0
    %2177 = vmatpush2.msra.mxu0 0.0
    %2178 = vmatprep.subr.mxu0 0.0
    %2179 = vmatpush2.msra.mxu0 0.0
    %2180 = vmatprep.subr.mxu0 0.0
    %2181 = vmatpush2.msra.mxu0 0.0
    %2182 = vmatprep.subr.mxu0 0.0
    %2183 = vmatpush2.msra.mxu0 0.0
    %2184 = vmatprep.subr.mxu0 0.0
    %2185 = vmatpush2.msra.mxu0 0.0
    %2186 = vmatprep.subr.mxu0 0.0
    %2187 = vmatpush2.msra.mxu0 0.0
    %2188 = vmatprep.subr.mxu0 0.0
    %2189 = vmatpush2.msra.mxu0 0.0
    %2190 = vmatprep.subr.mxu0 0.0
    %2191 = vmatpush2.msra.mxu0 0.0
    %2192 = vmatprep.subr.mxu0 0.0
    %2193 = vmatpush2.msra.mxu0 0.0
    %2194 = vmatprep.subr.mxu0 0.0
    %2195 = vmatpush2.msra.mxu0 0.0
    %2196 = vmatprep.subr.mxu0 0.0
    %2197 = vmatpush2.msra.mxu0 0.0
    %2198 = vmatprep.subr.mxu0 0.0
    %2199 = vmatpush2.msra.mxu0 0.0
    %2200 = vmatprep.subr.mxu0 0.0
    %2201 = vmatpush2.msra.mxu0 0.0
    %2202 = vmatprep.mubr.f32.mxu0 0.0
    %2203 = vmatmul.mubr.f32.gmra.mxu0 %v2136
    %v2204 = vpop.f32.mrf.mxu0
    %v2205 = vadd.f32 %v2062, %v2204
    %v2206 = vpop.f32.mrf.mxu0
    %v2207 = vadd.f32 %v2064, %v2206
    %2208 = vdwg.mxu0
    %2209 = vmatprep.subr.mxu0 0.0
    %2210 = vmatpush1.msra.mxu0 0.0
    %2211 = vmatprep.subr.mxu0 0.0
    %2212 = vmatpush1.msra.mxu0 0.0
    %2213 = vmatprep.subr.mxu0 0.0
    %2214 = vmatpush1.msra.mxu0 0.0
    %2215 = vmatprep.subr.mxu0 0.0
    %2216 = vmatpush1.msra.mxu0 0.0
    %2217 = vmatprep.subr.mxu0 0.0
    %2218 = vmatpush1.msra.mxu0 0.0
    %2219 = vmatprep.subr.mxu0 0.0
    %2220 = vmatpush1.msra.mxu0 0.0
    %2221 = vmatprep.subr.mxu0 0.0
    %2222 = vmatpush1.msra.mxu0 0.0
    %2223 = vmatprep.subr.mxu0 0.0
    %2224 = vmatpush1.msra.mxu0 0.0
    %2225 = vmatprep.subr.mxu0 0.0
    %2226 = vmatpush1.msra.mxu0 0.0
    %2227 = vmatprep.subr.mxu0 0.0
    %2228 = vmatpush1.msra.mxu0 0.0
    %2229 = vmatprep.subr.mxu0 0.0
    %2230 = vmatpush1.msra.mxu0 0.0
    %2231 = vmatprep.subr.mxu0 0.0
    %2232 = vmatpush1.msra.mxu0 0.0
    %2233 = vmatprep.subr.mxu0 0.0
    %2234 = vmatpush1.msra.mxu0 %v99
    %2235 = vmatprep.subr.mxu0 0.0
    %2236 = vmatpush1.msra.mxu0 %v96
    %2237 = vmatprep.subr.mxu0 0.0
    %2238 = vmatpush1.msra.mxu0 %v93
    %2239 = vmatprep.subr.mxu0 0.0
    %2240 = vmatpush1.msra.mxu0 %v90
    %2241 = vmatprep.subr.mxu0 0.0
    %2242 = vmatpush2.msra.mxu0 0.0
    %2243 = vmatprep.subr.mxu0 0.0
    %2244 = vmatpush2.msra.mxu0 0.0
    %2245 = vmatprep.subr.mxu0 0.0
    %2246 = vmatpush2.msra.mxu0 0.0
    %2247 = vmatprep.subr.mxu0 0.0
    %2248 = vmatpush2.msra.mxu0 0.0
    %2249 = vmatprep.subr.mxu0 0.0
    %2250 = vmatpush2.msra.mxu0 0.0
    %2251 = vmatprep.subr.mxu0 0.0
    %2252 = vmatpush2.msra.mxu0 0.0
    %2253 = vmatprep.subr.mxu0 0.0
    %2254 = vmatpush2.msra.mxu0 0.0
    %2255 = vmatprep.subr.mxu0 0.0
    %2256 = vmatpush2.msra.mxu0 0.0
    %2257 = vmatprep.subr.mxu0 0.0
    %2258 = vmatpush2.msra.mxu0 0.0
    %2259 = vmatprep.subr.mxu0 0.0
    %2260 = vmatpush2.msra.mxu0 0.0
    %2261 = vmatprep.subr.mxu0 0.0
    %2262 = vmatpush2.msra.mxu0 0.0
    %2263 = vmatprep.subr.mxu0 0.0
    %2264 = vmatpush2.msra.mxu0 0.0
    %2265 = vmatprep.subr.mxu0 0.0
    %2266 = vmatpush2.msra.mxu0 0.0
    %2267 = vmatprep.subr.mxu0 0.0
    %2268 = vmatpush2.msra.mxu0 0.0
    %2269 = vmatprep.subr.mxu0 0.0
    %2270 = vmatpush2.msra.mxu0 0.0
    %2271 = vmatprep.subr.mxu0 0.0
    %2272 = vmatpush2.msra.mxu0 0.0
    %2273 = vmatprep.mubr.f32.mxu0 0.0
    %2274 = vmatmul.mubr.f32.gmra.mxu0 %v2136
    %v2275 = vpop.f32.mrf.mxu0
    %v2276 = vadd.f32 %v2133, %v2275
    %v2277 = vpop.f32.mrf.mxu0
    %2278 = vdwg.mxu0
    %2279 = vrot.lane.b32.xlu0 %v717, 32
    %v2280 = vpop.permute.xlu0 %2279
    %v2281 = vsel %vm1128, %v2280, 0
    %2283 = vmatprep.subr.mxu0 0.0
    %2284 = vmatpush1.msra.mxu0 0.0
    %2285 = vmatprep.subr.mxu0 0.0
    %2286 = vmatpush1.msra.mxu0 0.0
    %2287 = vmatprep.subr.mxu0 0.0
    %2288 = vmatpush1.msra.mxu0 0.0
    %2289 = vmatprep.subr.mxu0 0.0
    %2290 = vmatpush1.msra.mxu0 0.0
    %2291 = vmatprep.subr.mxu0 0.0
    %2292 = vmatpush1.msra.mxu0 0.0
    %2293 = vmatprep.subr.mxu0 0.0
    %2294 = vmatpush1.msra.mxu0 0.0
    %2295 = vmatprep.subr.mxu0 0.0
    %2296 = vmatpush1.msra.mxu0 0.0
    %2297 = vmatprep.subr.mxu0 0.0
    %2298 = vmatpush1.msra.mxu0 0.0
    %2299 = vmatprep.subr.mxu0 0.0
    %2300 = vmatpush1.msra.mxu0 0.0
    %2301 = vmatprep.subr.mxu0 0.0
    %2302 = vmatpush1.msra.mxu0 0.0
    %2303 = vmatprep.subr.mxu0 0.0
    %2304 = vmatpush1.msra.mxu0 0.0
    %2305 = vmatprep.subr.mxu0 0.0
    %2306 = vmatpush1.msra.mxu0 0.0
    %2307 = vmatprep.subr.mxu0 %v110
    %2308 = vmatpush1.msra.mxu0 %v109
    %2309 = vmatprep.subr.mxu0 %v107
    %2310 = vmatpush1.msra.mxu0 %v106
    %2311 = vmatprep.subr.mxu0 %v104
    %2312 = vmatpush1.msra.mxu0 %v103
    %2313 = vmatprep.subr.mxu0 %v101
    %2314 = vmatpush1.msra.mxu0 %v100
    %2315 = vmatprep.subr.mxu0 0.0
    %2316 = vmatpush2.msra.mxu0 0.0
    %2317 = vmatprep.subr.mxu0 0.0
    %2318 = vmatpush2.msra.mxu0 0.0
    %2319 = vmatprep.subr.mxu0 0.0
    %2320 = vmatpush2.msra.mxu0 0.0
    %2321 = vmatprep.subr.mxu0 0.0
    %2322 = vmatpush2.msra.mxu0 0.0
    %2323 = vmatprep.subr.mxu0 0.0
    %2324 = vmatpush2.msra.mxu0 0.0
    %2325 = vmatprep.subr.mxu0 0.0
    %2326 = vmatpush2.msra.mxu0 0.0
    %2327 = vmatprep.subr.mxu0 0.0
    %2328 = vmatpush2.msra.mxu0 0.0
    %2329 = vmatprep.subr.mxu0 0.0
    %2330 = vmatpush2.msra.mxu0 0.0
    %2331 = vmatprep.subr.mxu0 0.0
    %2332 = vmatpush2.msra.mxu0 0.0
    %2333 = vmatprep.subr.mxu0 0.0
    %2334 = vmatpush2.msra.mxu0 0.0
    %2335 = vmatprep.subr.mxu0 0.0
    %2336 = vmatpush2.msra.mxu0 0.0
    %2337 = vmatprep.subr.mxu0 0.0
    %2338 = vmatpush2.msra.mxu0 0.0
    %2339 = vmatprep.subr.mxu0 0.0
    %2340 = vmatpush2.msra.mxu0 0.0
    %2341 = vmatprep.subr.mxu0 0.0
    %2342 = vmatpush2.msra.mxu0 0.0
    %2343 = vmatprep.subr.mxu0 0.0
    %2344 = vmatpush2.msra.mxu0 0.0
    %2345 = vmatprep.subr.mxu0 0.0
    %2346 = vmatpush2.msra.mxu0 0.0
    %2347 = vmatprep.mubr.f32.mxu0 0.0
    %2348 = vmatmul.mubr.f32.gmra.mxu0 %v2281
    %v2349 = vpop.f32.mrf.mxu0
    %v2350 = vadd.f32 0.0, %v2349
    %v2351 = vpop.f32.mrf.mxu0
    %v2352 = vadd.f32 0.0, %v2351
    %2353 = vdwg.mxu0
    %2354 = vmatprep.subr.mxu0 0.0
    %2355 = vmatpush1.msra.mxu0 0.0
    %2356 = vmatprep.subr.mxu0 0.0
    %2357 = vmatpush1.msra.mxu0 0.0
    %2358 = vmatprep.subr.mxu0 0.0
    %2359 = vmatpush1.msra.mxu0 0.0
    %2360 = vmatprep.subr.mxu0 0.0
    %2361 = vmatpush1.msra.mxu0 0.0
    %2362 = vmatprep.subr.mxu0 0.0
    %2363 = vmatpush1.msra.mxu0 0.0
    %2364 = vmatprep.subr.mxu0 0.0
    %2365 = vmatpush1.msra.mxu0 0.0
    %2366 = vmatprep.subr.mxu0 0.0
    %2367 = vmatpush1.msra.mxu0 0.0
    %2368 = vmatprep.subr.mxu0 0.0
    %2369 = vmatpush1.msra.mxu0 0.0
    %2370 = vmatprep.subr.mxu0 0.0
    %2371 = vmatpush1.msra.mxu0 0.0
    %2372 = vmatprep.subr.mxu0 0.0
    %2373 = vmatpush1.msra.mxu0 0.0
    %2374 = vmatprep.subr.mxu0 0.0
    %2375 = vmatpush1.msra.mxu0 0.0
    %2376 = vmatprep.subr.mxu0 0.0
    %2377 = vmatpush1.msra.mxu0 0.0
    %2378 = vmatprep.subr.mxu0 0.0
    %2379 = vmatpush1.msra.mxu0 %v111
    %2380 = vmatprep.subr.mxu0 0.0
    %2381 = vmatpush1.msra.mxu0 %v108
    %2382 = vmatprep.subr.mxu0 0.0
    %2383 = vmatpush1.msra.mxu0 %v105
    %2384 = vmatprep.subr.mxu0 0.0
    %2385 = vmatpush1.msra.mxu0 %v102
    %2386 = vmatprep.subr.mxu0 0.0
    %2387 = vmatpush2.msra.mxu0 0.0
    %2388 = vmatprep.subr.mxu0 0.0
    %2389 = vmatpush2.msra.mxu0 0.0
    %2390 = vmatprep.subr.mxu0 0.0
    %2391 = vmatpush2.msra.mxu0 0.0
    %2392 = vmatprep.subr.mxu0 0.0
    %2393 = vmatpush2.msra.mxu0 0.0
    %2394 = vmatprep.subr.mxu0 0.0
    %2395 = vmatpush2.msra.mxu0 0.0
    %2396 = vmatprep.subr.mxu0 0.0
    %2397 = vmatpush2.msra.mxu0 0.0
    %2398 = vmatprep.subr.mxu0 0.0
    %2399 = vmatpush2.msra.mxu0 0.0
    %2400 = vmatprep.subr.mxu0 0.0
    %2401 = vmatpush2.msra.mxu0 0.0
    %2402 = vmatprep.subr.mxu0 0.0
    %2403 = vmatpush2.msra.mxu0 0.0
    %2404 = vmatprep.subr.mxu0 0.0
    %2405 = vmatpush2.msra.mxu0 0.0
    %2406 = vmatprep.subr.mxu0 0.0
    %2407 = vmatpush2.msra.mxu0 0.0
    %2408 = vmatprep.subr.mxu0 0.0
    %2409 = vmatpush2.msra.mxu0 0.0
    %2410 = vmatprep.subr.mxu0 0.0
    %2411 = vmatpush2.msra.mxu0 0.0
    %2412 = vmatprep.subr.mxu0 0.0
    %2413 = vmatpush2.msra.mxu0 0.0
    %2414 = vmatprep.subr.mxu0 0.0
    %2415 = vmatpush2.msra.mxu0 0.0
    %2416 = vmatprep.subr.mxu0 0.0
    %2417 = vmatpush2.msra.mxu0 0.0
    %2418 = vmatprep.mubr.f32.mxu0 0.0
    %2419 = vmatmul.mubr.f32.gmra.mxu0 %v2281
    %v2420 = vpop.f32.mrf.mxu0
    %v2421 = vadd.f32 0.0, %v2420
    %v2422 = vpop.f32.mrf.mxu0
    %2423 = vdwg.mxu0
    %v2424 = vsel %vm1128, %v815, 0
    %2426 = vmatprep.subr.mxu0 0.0
    %2427 = vmatpush1.msra.mxu0 0.0
    %2428 = vmatprep.subr.mxu0 0.0
    %2429 = vmatpush1.msra.mxu0 0.0
    %2430 = vmatprep.subr.mxu0 0.0
    %2431 = vmatpush1.msra.mxu0 0.0
    %2432 = vmatprep.subr.mxu0 0.0
    %2433 = vmatpush1.msra.mxu0 0.0
    %2434 = vmatprep.subr.mxu0 0.0
    %2435 = vmatpush1.msra.mxu0 0.0
    %2436 = vmatprep.subr.mxu0 0.0
    %2437 = vmatpush1.msra.mxu0 0.0
    %2438 = vmatprep.subr.mxu0 0.0
    %2439 = vmatpush1.msra.mxu0 0.0
    %2440 = vmatprep.subr.mxu0 0.0
    %2441 = vmatpush1.msra.mxu0 0.0
    %2442 = vmatprep.subr.mxu0 0.0
    %2443 = vmatpush1.msra.mxu0 0.0
    %2444 = vmatprep.subr.mxu0 0.0
    %2445 = vmatpush1.msra.mxu0 0.0
    %2446 = vmatprep.subr.mxu0 0.0
    %2447 = vmatpush1.msra.mxu0 0.0
    %2448 = vmatprep.subr.mxu0 0.0
    %2449 = vmatpush1.msra.mxu0 0.0
    %2450 = vmatprep.subr.mxu0 %v98
    %2451 = vmatpush1.msra.mxu0 %v97
    %2452 = vmatprep.subr.mxu0 %v95
    %2453 = vmatpush1.msra.mxu0 %v94
    %2454 = vmatprep.subr.mxu0 %v92
    %2455 = vmatpush1.msra.mxu0 %v91
    %2456 = vmatprep.subr.mxu0 %v89
    %2457 = vmatpush1.msra.mxu0 %v88
    %2458 = vmatprep.subr.mxu0 0.0
    %2459 = vmatpush2.msra.mxu0 0.0
    %2460 = vmatprep.subr.mxu0 0.0
    %2461 = vmatpush2.msra.mxu0 0.0
    %2462 = vmatprep.subr.mxu0 0.0
    %2463 = vmatpush2.msra.mxu0 0.0
    %2464 = vmatprep.subr.mxu0 0.0
    %2465 = vmatpush2.msra.mxu0 0.0
    %2466 = vmatprep.subr.mxu0 0.0
    %2467 = vmatpush2.msra.mxu0 0.0
    %2468 = vmatprep.subr.mxu0 0.0
    %2469 = vmatpush2.msra.mxu0 0.0
    %2470 = vmatprep.subr.mxu0 0.0
    %2471 = vmatpush2.msra.mxu0 0.0
    %2472 = vmatprep.subr.mxu0 0.0
    %2473 = vmatpush2.msra.mxu0 0.0
    %2474 = vmatprep.subr.mxu0 0.0
    %2475 = vmatpush2.msra.mxu0 0.0
    %2476 = vmatprep.subr.mxu0 0.0
    %2477 = vmatpush2.msra.mxu0 0.0
    %2478 = vmatprep.subr.mxu0 0.0
    %2479 = vmatpush2.msra.mxu0 0.0
    %2480 = vmatprep.subr.mxu0 0.0
    %2481 = vmatpush2.msra.mxu0 0.0
    %2482 = vmatprep.subr.mxu0 0.0
    %2483 = vmatpush2.msra.mxu0 0.0
    %2484 = vmatprep.subr.mxu0 0.0
    %2485 = vmatpush2.msra.mxu0 0.0
    %2486 = vmatprep.subr.mxu0 0.0
    %2487 = vmatpush2.msra.mxu0 0.0
    %2488 = vmatprep.subr.mxu0 0.0
    %2489 = vmatpush2.msra.mxu0 0.0
    %2490 = vmatprep.mubr.f32.mxu0 0.0
    %2491 = vmatmul.mubr.f32.gmra.mxu0 %v2424
    %v2492 = vpop.f32.mrf.mxu0
    %v2493 = vadd.f32 %v2350, %v2492
    %v2494 = vpop.f32.mrf.mxu0
    %v2495 = vadd.f32 %v2352, %v2494
    %2496 = vdwg.mxu0
    %2497 = vmatprep.subr.mxu0 0.0
    %2498 = vmatpush1.msra.mxu0 0.0
    %2499 = vmatprep.subr.mxu0 0.0
    %2500 = vmatpush1.msra.mxu0 0.0
    %2501 = vmatprep.subr.mxu0 0.0
    %2502 = vmatpush1.msra.mxu0 0.0
    %2503 = vmatprep.subr.mxu0 0.0
    %2504 = vmatpush1.msra.mxu0 0.0
    %2505 = vmatprep.subr.mxu0 0.0
    %2506 = vmatpush1.msra.mxu0 0.0
    %2507 = vmatprep.subr.mxu0 0.0
    %2508 = vmatpush1.msra.mxu0 0.0
    %2509 = vmatprep.subr.mxu0 0.0
    %2510 = vmatpush1.msra.mxu0 0.0
    %2511 = vmatprep.subr.mxu0 0.0
    %2512 = vmatpush1.msra.mxu0 0.0
    %2513 = vmatprep.subr.mxu0 0.0
    %2514 = vmatpush1.msra.mxu0 0.0
    %2515 = vmatprep.subr.mxu0 0.0
    %2516 = vmatpush1.msra.mxu0 0.0
    %2517 = vmatprep.subr.mxu0 0.0
    %2518 = vmatpush1.msra.mxu0 0.0
    %2519 = vmatprep.subr.mxu0 0.0
    %2520 = vmatpush1.msra.mxu0 0.0
    %2521 = vmatprep.subr.mxu0 0.0
    %2522 = vmatpush1.msra.mxu0 %v99
    %2523 = vmatprep.subr.mxu0 0.0
    %2524 = vmatpush1.msra.mxu0 %v96
    %2525 = vmatprep.subr.mxu0 0.0
    %2526 = vmatpush1.msra.mxu0 %v93
    %2527 = vmatprep.subr.mxu0 0.0
    %2528 = vmatpush1.msra.mxu0 %v90
    %2529 = vmatprep.subr.mxu0 0.0
    %2530 = vmatpush2.msra.mxu0 0.0
    %2531 = vmatprep.subr.mxu0 0.0
    %2532 = vmatpush2.msra.mxu0 0.0
    %2533 = vmatprep.subr.mxu0 0.0
    %2534 = vmatpush2.msra.mxu0 0.0
    %2535 = vmatprep.subr.mxu0 0.0
    %2536 = vmatpush2.msra.mxu0 0.0
    %2537 = vmatprep.subr.mxu0 0.0
    %2538 = vmatpush2.msra.mxu0 0.0
    %2539 = vmatprep.subr.mxu0 0.0
    %2540 = vmatpush2.msra.mxu0 0.0
    %2541 = vmatprep.subr.mxu0 0.0
    %2542 = vmatpush2.msra.mxu0 0.0
    %2543 = vmatprep.subr.mxu0 0.0
    %2544 = vmatpush2.msra.mxu0 0.0
    %2545 = vmatprep.subr.mxu0 0.0
    %2546 = vmatpush2.msra.mxu0 0.0
    %2547 = vmatprep.subr.mxu0 0.0
    %2548 = vmatpush2.msra.mxu0 0.0
    %2549 = vmatprep.subr.mxu0 0.0
    %2550 = vmatpush2.msra.mxu0 0.0
    %2551 = vmatprep.subr.mxu0 0.0
    %2552 = vmatpush2.msra.mxu0 0.0
    %2553 = vmatprep.subr.mxu0 0.0
    %2554 = vmatpush2.msra.mxu0 0.0
    %2555 = vmatprep.subr.mxu0 0.0
    %2556 = vmatpush2.msra.mxu0 0.0
    %2557 = vmatprep.subr.mxu0 0.0
    %2558 = vmatpush2.msra.mxu0 0.0
    %2559 = vmatprep.subr.mxu0 0.0
    %2560 = vmatpush2.msra.mxu0 0.0
    %2561 = vmatprep.mubr.f32.mxu0 0.0
    %2562 = vmatmul.mubr.f32.gmra.mxu0 %v2424
    %v2563 = vpop.f32.mrf.mxu0
    %v2564 = vadd.f32 %v2421, %v2563
    %v2565 = vpop.f32.mrf.mxu0
    %2566 = vdwg.mxu0
    %2567 = vrot.lane.b32.xlu0 %v613, 32
    %v2568 = vpop.permute.xlu0 %2567
    %v2569 = vsel %vm1128, %v2568, 0
    %2571 = vmatprep.subr.mxu0 0.0
    %2572 = vmatpush1.msra.mxu0 0.0
    %2573 = vmatprep.subr.mxu0 0.0
    %2574 = vmatpush1.msra.mxu0 0.0
    %2575 = vmatprep.subr.mxu0 0.0
    %2576 = vmatpush1.msra.mxu0 0.0
    %2577 = vmatprep.subr.mxu0 0.0
    %2578 = vmatpush1.msra.mxu0 0.0
    %2579 = vmatprep.subr.mxu0 0.0
    %2580 = vmatpush1.msra.mxu0 0.0
    %2581 = vmatprep.subr.mxu0 0.0
    %2582 = vmatpush1.msra.mxu0 0.0
    %2583 = vmatprep.subr.mxu0 0.0
    %2584 = vmatpush1.msra.mxu0 0.0
    %2585 = vmatprep.subr.mxu0 0.0
    %2586 = vmatpush1.msra.mxu0 0.0
    %2587 = vmatprep.subr.mxu0 0.0
    %2588 = vmatpush1.msra.mxu0 0.0
    %2589 = vmatprep.subr.mxu0 0.0
    %2590 = vmatpush1.msra.mxu0 0.0
    %2591 = vmatprep.subr.mxu0 0.0
    %2592 = vmatpush1.msra.mxu0 0.0
    %2593 = vmatprep.subr.mxu0 0.0
    %2594 = vmatpush1.msra.mxu0 0.0
    %2595 = vmatprep.subr.mxu0 %v110
    %2596 = vmatpush1.msra.mxu0 %v109
    %2597 = vmatprep.subr.mxu0 %v107
    %2598 = vmatpush1.msra.mxu0 %v106
    %2599 = vmatprep.subr.mxu0 %v104
    %2600 = vmatpush1.msra.mxu0 %v103
    %2601 = vmatprep.subr.mxu0 %v101
    %2602 = vmatpush1.msra.mxu0 %v100
    %2603 = vmatprep.subr.mxu0 0.0
    %2604 = vmatpush2.msra.mxu0 0.0
    %2605 = vmatprep.subr.mxu0 0.0
    %2606 = vmatpush2.msra.mxu0 0.0
    %2607 = vmatprep.subr.mxu0 0.0
    %2608 = vmatpush2.msra.mxu0 0.0
    %2609 = vmatprep.subr.mxu0 0.0
    %2610 = vmatpush2.msra.mxu0 0.0
    %2611 = vmatprep.subr.mxu0 0.0
    %2612 = vmatpush2.msra.mxu0 0.0
    %2613 = vmatprep.subr.mxu0 0.0
    %2614 = vmatpush2.msra.mxu0 0.0
    %2615 = vmatprep.subr.mxu0 0.0
    %2616 = vmatpush2.msra.mxu0 0.0
    %2617 = vmatprep.subr.mxu0 0.0
    %2618 = vmatpush2.msra.mxu0 0.0
    %2619 = vmatprep.subr.mxu0 0.0
    %2620 = vmatpush2.msra.mxu0 0.0
    %2621 = vmatprep.subr.mxu0 0.0
    %2622 = vmatpush2.msra.mxu0 0.0
    %2623 = vmatprep.subr.mxu0 0.0
    %2624 = vmatpush2.msra.mxu0 0.0
    %2625 = vmatprep.subr.mxu0 0.0
    %2626 = vmatpush2.msra.mxu0 0.0
    %2627 = vmatprep.subr.mxu0 0.0
    %2628 = vmatpush2.msra.mxu0 0.0
    %2629 = vmatprep.subr.mxu0 0.0
    %2630 = vmatpush2.msra.mxu0 0.0
    %2631 = vmatprep.subr.mxu0 0.0
    %2632 = vmatpush2.msra.mxu0 0.0
    %2633 = vmatprep.subr.mxu0 0.0
    %2634 = vmatpush2.msra.mxu0 0.0
    %2635 = vmatprep.mubr.f32.mxu0 0.0
    %2636 = vmatmul.mubr.f32.gmra.mxu0 %v2569
    %v2637 = vpop.f32.mrf.mxu0
    %v2638 = vadd.f32 0.0, %v2637
    %v2639 = vpop.f32.mrf.mxu0
    %v2640 = vadd.f32 0.0, %v2639
    %2641 = vdwg.mxu0
    %2642 = vmatprep.subr.mxu0 0.0
    %2643 = vmatpush1.msra.mxu0 0.0
    %2644 = vmatprep.subr.mxu0 0.0
    %2645 = vmatpush1.msra.mxu0 0.0
    %2646 = vmatprep.subr.mxu0 0.0
    %2647 = vmatpush1.msra.mxu0 0.0
    %2648 = vmatprep.subr.mxu0 0.0
    %2649 = vmatpush1.msra.mxu0 0.0
    %2650 = vmatprep.subr.mxu0 0.0
    %2651 = vmatpush1.msra.mxu0 0.0
    %2652 = vmatprep.subr.mxu0 0.0
    %2653 = vmatpush1.msra.mxu0 0.0
    %2654 = vmatprep.subr.mxu0 0.0
    %2655 = vmatpush1.msra.mxu0 0.0
    %2656 = vmatprep.subr.mxu0 0.0
    %2657 = vmatpush1.msra.mxu0 0.0
    %2658 = vmatprep.subr.mxu0 0.0
    %2659 = vmatpush1.msra.mxu0 0.0
    %2660 = vmatprep.subr.mxu0 0.0
    %2661 = vmatpush1.msra.mxu0 0.0
    %2662 = vmatprep.subr.mxu0 0.0
    %2663 = vmatpush1.msra.mxu0 0.0
    %2664 = vmatprep.subr.mxu0 0.0
    %2665 = vmatpush1.msra.mxu0 0.0
    %2666 = vmatprep.subr.mxu0 0.0
    %2667 = vmatpush1.msra.mxu0 %v111
    %2668 = vmatprep.subr.mxu0 0.0
    %2669 = vmatpush1.msra.mxu0 %v108
    %2670 = vmatprep.subr.mxu0 0.0
    %2671 = vmatpush1.msra.mxu0 %v105
    %2672 = vmatprep.subr.mxu0 0.0
    %2673 = vmatpush1.msra.mxu0 %v102
    %2674 = vmatprep.subr.mxu0 0.0
    %2675 = vmatpush2.msra.mxu0 0.0
    %2676 = vmatprep.subr.mxu0 0.0
    %2677 = vmatpush2.msra.mxu0 0.0
    %2678 = vmatprep.subr.mxu0 0.0
    %2679 = vmatpush2.msra.mxu0 0.0
    %2680 = vmatprep.subr.mxu0 0.0
    %2681 = vmatpush2.msra.mxu0 0.0
    %2682 = vmatprep.subr.mxu0 0.0
    %2683 = vmatpush2.msra.mxu0 0.0
    %2684 = vmatprep.subr.mxu0 0.0
    %2685 = vmatpush2.msra.mxu0 0.0
    %2686 = vmatprep.subr.mxu0 0.0
    %2687 = vmatpush2.msra.mxu0 0.0
    %2688 = vmatprep.subr.mxu0 0.0
    %2689 = vmatpush2.msra.mxu0 0.0
    %2690 = vmatprep.subr.mxu0 0.0
    %2691 = vmatpush2.msra.mxu0 0.0
    %2692 = vmatprep.subr.mxu0 0.0
    %2693 = vmatpush2.msra.mxu0 0.0
    %2694 = vmatprep.subr.mxu0 0.0
    %2695 = vmatpush2.msra.mxu0 0.0
    %2696 = vmatprep.subr.mxu0 0.0
    %2697 = vmatpush2.msra.mxu0 0.0
    %2698 = vmatprep.subr.mxu0 0.0
    %2699 = vmatpush2.msra.mxu0 0.0
    %2700 = vmatprep.subr.mxu0 0.0
    %2701 = vmatpush2.msra.mxu0 0.0
    %2702 = vmatprep.subr.mxu0 0.0
    %2703 = vmatpush2.msra.mxu0 0.0
    %2704 = vmatprep.subr.mxu0 0.0
    %2705 = vmatpush2.msra.mxu0 0.0
    %2706 = vmatprep.mubr.f32.mxu0 0.0
    %2707 = vmatmul.mubr.f32.gmra.mxu0 %v2569
    %v2708 = vpop.f32.mrf.mxu0
    %v2709 = vadd.f32 0.0, %v2708
    %v2710 = vpop.f32.mrf.mxu0
    %2711 = vdwg.mxu0
    %v2712 = vsel %vm1128, %v919, 0
    %2714 = vmatprep.subr.mxu0 0.0
    %2715 = vmatpush1.msra.mxu0 0.0
    %2716 = vmatprep.subr.mxu0 0.0
    %2717 = vmatpush1.msra.mxu0 0.0
    %2718 = vmatprep.subr.mxu0 0.0
    %2719 = vmatpush1.msra.mxu0 0.0
    %2720 = vmatprep.subr.mxu0 0.0
    %2721 = vmatpush1.msra.mxu0 0.0
    %2722 = vmatprep.subr.mxu0 0.0
    %2723 = vmatpush1.msra.mxu0 0.0
    %2724 = vmatprep.subr.mxu0 0.0
    %2725 = vmatpush1.msra.mxu0 0.0
    %2726 = vmatprep.subr.mxu0 0.0
    %2727 = vmatpush1.msra.mxu0 0.0
    %2728 = vmatprep.subr.mxu0 0.0
    %2729 = vmatpush1.msra.mxu0 0.0
    %2730 = vmatprep.subr.mxu0 0.0
    %2731 = vmatpush1.msra.mxu0 0.0
    %2732 = vmatprep.subr.mxu0 0.0
    %2733 = vmatpush1.msra.mxu0 0.0
    %2734 = vmatprep.subr.mxu0 0.0
    %2735 = vmatpush1.msra.mxu0 0.0
    %2736 = vmatprep.subr.mxu0 0.0
    %2737 = vmatpush1.msra.mxu0 0.0
    %2738 = vmatprep.subr.mxu0 %v98
    %2739 = vmatpush1.msra.mxu0 %v97
    %2740 = vmatprep.subr.mxu0 %v95
    %2741 = vmatpush1.msra.mxu0 %v94
    %2742 = vmatprep.subr.mxu0 %v92
    %2743 = vmatpush1.msra.mxu0 %v91
    %2744 = vmatprep.subr.mxu0 %v89
    %2745 = vmatpush1.msra.mxu0 %v88
    %2746 = vmatprep.subr.mxu0 0.0
    %2747 = vmatpush2.msra.mxu0 0.0
    %2748 = vmatprep.subr.mxu0 0.0
    %2749 = vmatpush2.msra.mxu0 0.0
    %2750 = vmatprep.subr.mxu0 0.0
    %2751 = vmatpush2.msra.mxu0 0.0
    %2752 = vmatprep.subr.mxu0 0.0
    %2753 = vmatpush2.msra.mxu0 0.0
    %2754 = vmatprep.subr.mxu0 0.0
    %2755 = vmatpush2.msra.mxu0 0.0
    %2756 = vmatprep.subr.mxu0 0.0
    %2757 = vmatpush2.msra.mxu0 0.0
    %2758 = vmatprep.subr.mxu0 0.0
    %2759 = vmatpush2.msra.mxu0 0.0
    %2760 = vmatprep.subr.mxu0 0.0
    %2761 = vmatpush2.msra.mxu0 0.0
    %2762 = vmatprep.subr.mxu0 0.0
    %2763 = vmatpush2.msra.mxu0 0.0
    %2764 = vmatprep.subr.mxu0 0.0
    %2765 = vmatpush2.msra.mxu0 0.0
    %2766 = vmatprep.subr.mxu0 0.0
    %2767 = vmatpush2.msra.mxu0 0.0
    %2768 = vmatprep.subr.mxu0 0.0
    %2769 = vmatpush2.msra.mxu0 0.0
    %2770 = vmatprep.subr.mxu0 0.0
    %2771 = vmatpush2.msra.mxu0 0.0
    %2772 = vmatprep.subr.mxu0 0.0
    %2773 = vmatpush2.msra.mxu0 0.0
    %2774 = vmatprep.subr.mxu0 0.0
    %2775 = vmatpush2.msra.mxu0 0.0
    %2776 = vmatprep.subr.mxu0 0.0
    %2777 = vmatpush2.msra.mxu0 0.0
    %2778 = vmatprep.mubr.f32.mxu0 0.0
    %2779 = vmatmul.mubr.f32.gmra.mxu0 %v2712
    %v2780 = vpop.f32.mrf.mxu0
    %v2781 = vadd.f32 %v2638, %v2780
    %v2782 = vpop.f32.mrf.mxu0
    %v2783 = vadd.f32 %v2640, %v2782
    %2784 = vdwg.mxu0
    %2785 = vmatprep.subr.mxu0 0.0
    %2786 = vmatpush1.msra.mxu0 0.0
    %2787 = vmatprep.subr.mxu0 0.0
    %2788 = vmatpush1.msra.mxu0 0.0
    %2789 = vmatprep.subr.mxu0 0.0
    %2790 = vmatpush1.msra.mxu0 0.0
    %2791 = vmatprep.subr.mxu0 0.0
    %2792 = vmatpush1.msra.mxu0 0.0
    %2793 = vmatprep.subr.mxu0 0.0
    %2794 = vmatpush1.msra.mxu0 0.0
    %2795 = vmatprep.subr.mxu0 0.0
    %2796 = vmatpush1.msra.mxu0 0.0
    %2797 = vmatprep.subr.mxu0 0.0
    %2798 = vmatpush1.msra.mxu0 0.0
    %2799 = vmatprep.subr.mxu0 0.0
    %2800 = vmatpush1.msra.mxu0 0.0
    %2801 = vmatprep.subr.mxu0 0.0
    %2802 = vmatpush1.msra.mxu0 0.0
    %2803 = vmatprep.subr.mxu0 0.0
    %2804 = vmatpush1.msra.mxu0 0.0
    %2805 = vmatprep.subr.mxu0 0.0
    %2806 = vmatpush1.msra.mxu0 0.0
    %2807 = vmatprep.subr.mxu0 0.0
    %2808 = vmatpush1.msra.mxu0 0.0
    %2809 = vmatprep.subr.mxu0 0.0
    %2810 = vmatpush1.msra.mxu0 %v99
    %2811 = vmatprep.subr.mxu0 0.0
    %2812 = vmatpush1.msra.mxu0 %v96
    %2813 = vmatprep.subr.mxu0 0.0
    %2814 = vmatpush1.msra.mxu0 %v93
    %2815 = vmatprep.subr.mxu0 0.0
    %2816 = vmatpush1.msra.mxu0 %v90
    %2817 = vmatprep.subr.mxu0 0.0
    %2818 = vmatpush2.msra.mxu0 0.0
    %2819 = vmatprep.subr.mxu0 0.0
    %2820 = vmatpush2.msra.mxu0 0.0
    %2821 = vmatprep.subr.mxu0 0.0
    %2822 = vmatpush2.msra.mxu0 0.0
    %2823 = vmatprep.subr.mxu0 0.0
    %2824 = vmatpush2.msra.mxu0 0.0
    %2825 = vmatprep.subr.mxu0 0.0
    %2826 = vmatpush2.msra.mxu0 0.0
    %2827 = vmatprep.subr.mxu0 0.0
    %2828 = vmatpush2.msra.mxu0 0.0
    %2829 = vmatprep.subr.mxu0 0.0
    %2830 = vmatpush2.msra.mxu0 0.0
    %2831 = vmatprep.subr.mxu0 0.0
    %2832 = vmatpush2.msra.mxu0 0.0
    %2833 = vmatprep.subr.mxu0 0.0
    %2834 = vmatpush2.msra.mxu0 0.0
    %2835 = vmatprep.subr.mxu0 0.0
    %2836 = vmatpush2.msra.mxu0 0.0
    %2837 = vmatprep.subr.mxu0 0.0
    %2838 = vmatpush2.msra.mxu0 0.0
    %2839 = vmatprep.subr.mxu0 0.0
    %2840 = vmatpush2.msra.mxu0 0.0
    %2841 = vmatprep.subr.mxu0 0.0
    %2842 = vmatpush2.msra.mxu0 0.0
    %2843 = vmatprep.subr.mxu0 0.0
    %2844 = vmatpush2.msra.mxu0 0.0
    %2845 = vmatprep.subr.mxu0 0.0
    %2846 = vmatpush2.msra.mxu0 0.0
    %2847 = vmatprep.subr.mxu0 0.0
    %2848 = vmatpush2.msra.mxu0 0.0
    %2849 = vmatprep.mubr.f32.mxu0 0.0
    %2850 = vmatmul.mubr.f32.gmra.mxu0 %v2712
    %v2851 = vpop.f32.mrf.mxu0
    %v2852 = vadd.f32 %v2709, %v2851
    %v2853 = vpop.f32.mrf.mxu0
    %2854 = vdwg.mxu0
    %2855 = vrot.lane.b32.xlu0 %v509, 32
    %v2856 = vpop.permute.xlu0 %2855
    %v2857 = vsel %vm1128, %v2856, 0
    %2859 = vmatprep.subr.mxu0 0.0
    %2860 = vmatpush1.msra.mxu0 0.0
    %2861 = vmatprep.subr.mxu0 0.0
    %2862 = vmatpush1.msra.mxu0 0.0
    %2863 = vmatprep.subr.mxu0 0.0
    %2864 = vmatpush1.msra.mxu0 0.0
    %2865 = vmatprep.subr.mxu0 0.0
    %2866 = vmatpush1.msra.mxu0 0.0
    %2867 = vmatprep.subr.mxu0 0.0
    %2868 = vmatpush1.msra.mxu0 0.0
    %2869 = vmatprep.subr.mxu0 0.0
    %2870 = vmatpush1.msra.mxu0 0.0
    %2871 = vmatprep.subr.mxu0 0.0
    %2872 = vmatpush1.msra.mxu0 0.0
    %2873 = vmatprep.subr.mxu0 0.0
    %2874 = vmatpush1.msra.mxu0 0.0
    %2875 = vmatprep.subr.mxu0 0.0
    %2876 = vmatpush1.msra.mxu0 0.0
    %2877 = vmatprep.subr.mxu0 0.0
    %2878 = vmatpush1.msra.mxu0 0.0
    %2879 = vmatprep.subr.mxu0 0.0
    %2880 = vmatpush1.msra.mxu0 0.0
    %2881 = vmatprep.subr.mxu0 0.0
    %2882 = vmatpush1.msra.mxu0 0.0
    %2883 = vmatprep.subr.mxu0 %v110
    %2884 = vmatpush1.msra.mxu0 %v109
    %2885 = vmatprep.subr.mxu0 %v107
    %2886 = vmatpush1.msra.mxu0 %v106
    %2887 = vmatprep.subr.mxu0 %v104
    %2888 = vmatpush1.msra.mxu0 %v103
    %2889 = vmatprep.subr.mxu0 %v101
    %2890 = vmatpush1.msra.mxu0 %v100
    %2891 = vmatprep.subr.mxu0 0.0
    %2892 = vmatpush2.msra.mxu0 0.0
    %2893 = vmatprep.subr.mxu0 0.0
    %2894 = vmatpush2.msra.mxu0 0.0
    %2895 = vmatprep.subr.mxu0 0.0
    %2896 = vmatpush2.msra.mxu0 0.0
    %2897 = vmatprep.subr.mxu0 0.0
    %2898 = vmatpush2.msra.mxu0 0.0
    %2899 = vmatprep.subr.mxu0 0.0
    %2900 = vmatpush2.msra.mxu0 0.0
    %2901 = vmatprep.subr.mxu0 0.0
    %2902 = vmatpush2.msra.mxu0 0.0
    %2903 = vmatprep.subr.mxu0 0.0
    %2904 = vmatpush2.msra.mxu0 0.0
    %2905 = vmatprep.subr.mxu0 0.0
    %2906 = vmatpush2.msra.mxu0 0.0
    %2907 = vmatprep.subr.mxu0 0.0
    %2908 = vmatpush2.msra.mxu0 0.0
    %2909 = vmatprep.subr.mxu0 0.0
    %2910 = vmatpush2.msra.mxu0 0.0
    %2911 = vmatprep.subr.mxu0 0.0
    %2912 = vmatpush2.msra.mxu0 0.0
    %2913 = vmatprep.subr.mxu0 0.0
    %2914 = vmatpush2.msra.mxu0 0.0
    %2915 = vmatprep.subr.mxu0 0.0
    %2916 = vmatpush2.msra.mxu0 0.0
    %2917 = vmatprep.subr.mxu0 0.0
    %2918 = vmatpush2.msra.mxu0 0.0
    %2919 = vmatprep.subr.mxu0 0.0
    %2920 = vmatpush2.msra.mxu0 0.0
    %2921 = vmatprep.subr.mxu0 0.0
    %2922 = vmatpush2.msra.mxu0 0.0
    %2923 = vmatprep.mubr.f32.mxu0 0.0
    %2924 = vmatmul.mubr.f32.gmra.mxu0 %v2857
    %v2925 = vpop.f32.mrf.mxu0
    %v2926 = vadd.f32 0.0, %v2925
    %v2927 = vpop.f32.mrf.mxu0
    %v2928 = vadd.f32 0.0, %v2927
    %2929 = vdwg.mxu0
    %2930 = vmatprep.subr.mxu0 0.0
    %2931 = vmatpush1.msra.mxu0 0.0
    %2932 = vmatprep.subr.mxu0 0.0
    %2933 = vmatpush1.msra.mxu0 0.0
    %2934 = vmatprep.subr.mxu0 0.0
    %2935 = vmatpush1.msra.mxu0 0.0
    %2936 = vmatprep.subr.mxu0 0.0
    %2937 = vmatpush1.msra.mxu0 0.0
    %2938 = vmatprep.subr.mxu0 0.0
    %2939 = vmatpush1.msra.mxu0 0.0
    %2940 = vmatprep.subr.mxu0 0.0
    %2941 = vmatpush1.msra.mxu0 0.0
    %2942 = vmatprep.subr.mxu0 0.0
    %2943 = vmatpush1.msra.mxu0 0.0
    %2944 = vmatprep.subr.mxu0 0.0
    %2945 = vmatpush1.msra.mxu0 0.0
    %2946 = vmatprep.subr.mxu0 0.0
    %2947 = vmatpush1.msra.mxu0 0.0
    %2948 = vmatprep.subr.mxu0 0.0
    %2949 = vmatpush1.msra.mxu0 0.0
    %2950 = vmatprep.subr.mxu0 0.0
    %2951 = vmatpush1.msra.mxu0 0.0
    %2952 = vmatprep.subr.mxu0 0.0
    %2953 = vmatpush1.msra.mxu0 0.0
    %2954 = vmatprep.subr.mxu0 0.0
    %2955 = vmatpush1.msra.mxu0 %v111
    %2956 = vmatprep.subr.mxu0 0.0
    %2957 = vmatpush1.msra.mxu0 %v108
    %2958 = vmatprep.subr.mxu0 0.0
    %2959 = vmatpush1.msra.mxu0 %v105
    %2960 = vmatprep.subr.mxu0 0.0
    %2961 = vmatpush1.msra.mxu0 %v102
    %2962 = vmatprep.subr.mxu0 0.0
    %2963 = vmatpush2.msra.mxu0 0.0
    %2964 = vmatprep.subr.mxu0 0.0
    %2965 = vmatpush2.msra.mxu0 0.0
    %2966 = vmatprep.subr.mxu0 0.0
    %2967 = vmatpush2.msra.mxu0 0.0
    %2968 = vmatprep.subr.mxu0 0.0
    %2969 = vmatpush2.msra.mxu0 0.0
    %2970 = vmatprep.subr.mxu0 0.0
    %2971 = vmatpush2.msra.mxu0 0.0
    %2972 = vmatprep.subr.mxu0 0.0
    %2973 = vmatpush2.msra.mxu0 0.0
    %2974 = vmatprep.subr.mxu0 0.0
    %2975 = vmatpush2.msra.mxu0 0.0
    %2976 = vmatprep.subr.mxu0 0.0
    %2977 = vmatpush2.msra.mxu0 0.0
    %2978 = vmatprep.subr.mxu0 0.0
    %2979 = vmatpush2.msra.mxu0 0.0
    %2980 = vmatprep.subr.mxu0 0.0
    %2981 = vmatpush2.msra.mxu0 0.0
    %2982 = vmatprep.subr.mxu0 0.0
    %2983 = vmatpush2.msra.mxu0 0.0
    %2984 = vmatprep.subr.mxu0 0.0
    %2985 = vmatpush2.msra.mxu0 0.0
    %2986 = vmatprep.subr.mxu0 0.0
    %2987 = vmatpush2.msra.mxu0 0.0
    %2988 = vmatprep.subr.mxu0 0.0
    %2989 = vmatpush2.msra.mxu0 0.0
    %2990 = vmatprep.subr.mxu0 0.0
    %2991 = vmatpush2.msra.mxu0 0.0
    %2992 = vmatprep.subr.mxu0 0.0
    %2993 = vmatpush2.msra.mxu0 0.0
    %2994 = vmatprep.mubr.f32.mxu0 0.0
    %2995 = vmatmul.mubr.f32.gmra.mxu0 %v2857
    %v2996 = vpop.f32.mrf.mxu0
    %v2997 = vadd.f32 0.0, %v2996
    %v2998 = vpop.f32.mrf.mxu0
    %2999 = vdwg.mxu0
    %v3000 = vsel %vm1128, %v1023, 0
    %3002 = vmatprep.subr.mxu0 0.0
    %3003 = vmatpush1.msra.mxu0 0.0
    %3004 = vmatprep.subr.mxu0 0.0
    %3005 = vmatpush1.msra.mxu0 0.0
    %3006 = vmatprep.subr.mxu0 0.0
    %3007 = vmatpush1.msra.mxu0 0.0
    %3008 = vmatprep.subr.mxu0 0.0
    %3009 = vmatpush1.msra.mxu0 0.0
    %3010 = vmatprep.subr.mxu0 0.0
    %3011 = vmatpush1.msra.mxu0 0.0
    %3012 = vmatprep.subr.mxu0 0.0
    %3013 = vmatpush1.msra.mxu0 0.0
    %3014 = vmatprep.subr.mxu0 0.0
    %3015 = vmatpush1.msra.mxu0 0.0
    %3016 = vmatprep.subr.mxu0 0.0
    %3017 = vmatpush1.msra.mxu0 0.0
    %3018 = vmatprep.subr.mxu0 0.0
    %3019 = vmatpush1.msra.mxu0 0.0
    %3020 = vmatprep.subr.mxu0 0.0
    %3021 = vmatpush1.msra.mxu0 0.0
    %3022 = vmatprep.subr.mxu0 0.0
    %3023 = vmatpush1.msra.mxu0 0.0
    %3024 = vmatprep.subr.mxu0 0.0
    %3025 = vmatpush1.msra.mxu0 0.0
    %3026 = vmatprep.subr.mxu0 %v98
    %3027 = vmatpush1.msra.mxu0 %v97
    %3028 = vmatprep.subr.mxu0 %v95
    %3029 = vmatpush1.msra.mxu0 %v94
    %3030 = vmatprep.subr.mxu0 %v92
    %3031 = vmatpush1.msra.mxu0 %v91
    %3032 = vmatprep.subr.mxu0 %v89
    %3033 = vmatpush1.msra.mxu0 %v88
    %3034 = vmatprep.subr.mxu0 0.0
    %3035 = vmatpush2.msra.mxu0 0.0
    %3036 = vmatprep.subr.mxu0 0.0
    %3037 = vmatpush2.msra.mxu0 0.0
    %3038 = vmatprep.subr.mxu0 0.0
    %3039 = vmatpush2.msra.mxu0 0.0
    %3040 = vmatprep.subr.mxu0 0.0
    %3041 = vmatpush2.msra.mxu0 0.0
    %3042 = vmatprep.subr.mxu0 0.0
    %3043 = vmatpush2.msra.mxu0 0.0
    %3044 = vmatprep.subr.mxu0 0.0
    %3045 = vmatpush2.msra.mxu0 0.0
    %3046 = vmatprep.subr.mxu0 0.0
    %3047 = vmatpush2.msra.mxu0 0.0
    %3048 = vmatprep.subr.mxu0 0.0
    %3049 = vmatpush2.msra.mxu0 0.0
    %3050 = vmatprep.subr.mxu0 0.0
    %3051 = vmatpush2.msra.mxu0 0.0
    %3052 = vmatprep.subr.mxu0 0.0
    %3053 = vmatpush2.msra.mxu0 0.0
    %3054 = vmatprep.subr.mxu0 0.0
    %3055 = vmatpush2.msra.mxu0 0.0
    %3056 = vmatprep.subr.mxu0 0.0
    %3057 = vmatpush2.msra.mxu0 0.0
    %3058 = vmatprep.subr.mxu0 0.0
    %3059 = vmatpush2.msra.mxu0 0.0
    %3060 = vmatprep.subr.mxu0 0.0
    %3061 = vmatpush2.msra.mxu0 0.0
    %3062 = vmatprep.subr.mxu0 0.0
    %3063 = vmatpush2.msra.mxu0 0.0
    %3064 = vmatprep.subr.mxu0 0.0
    %3065 = vmatpush2.msra.mxu0 0.0
    %3066 = vmatprep.mubr.f32.mxu0 0.0
    %3067 = vmatmul.mubr.f32.gmra.mxu0 %v3000
    %v3068 = vpop.f32.mrf.mxu0
    %v3069 = vadd.f32 %v2926, %v3068
    %v3070 = vpop.f32.mrf.mxu0
    %v3071 = vadd.f32 %v2928, %v3070
    %3072 = vdwg.mxu0
    %3073 = vmatprep.subr.mxu0 0.0
    %3074 = vmatpush1.msra.mxu0 0.0
    %3075 = vmatprep.subr.mxu0 0.0
    %3076 = vmatpush1.msra.mxu0 0.0
    %3077 = vmatprep.subr.mxu0 0.0
    %3078 = vmatpush1.msra.mxu0 0.0
    %3079 = vmatprep.subr.mxu0 0.0
    %3080 = vmatpush1.msra.mxu0 0.0
    %3081 = vmatprep.subr.mxu0 0.0
    %3082 = vmatpush1.msra.mxu0 0.0
    %3083 = vmatprep.subr.mxu0 0.0
    %3084 = vmatpush1.msra.mxu0 0.0
    %3085 = vmatprep.subr.mxu0 0.0
    %3086 = vmatpush1.msra.mxu0 0.0
    %3087 = vmatprep.subr.mxu0 0.0
    %3088 = vmatpush1.msra.mxu0 0.0
    %3089 = vmatprep.subr.mxu0 0.0
    %3090 = vmatpush1.msra.mxu0 0.0
    %3091 = vmatprep.subr.mxu0 0.0
    %3092 = vmatpush1.msra.mxu0 0.0
    %3093 = vmatprep.subr.mxu0 0.0
    %3094 = vmatpush1.msra.mxu0 0.0
    %3095 = vmatprep.subr.mxu0 0.0
    %3096 = vmatpush1.msra.mxu0 0.0
    %3097 = vmatprep.subr.mxu0 0.0
    %3098 = vmatpush1.msra.mxu0 %v99
    %3099 = vmatprep.subr.mxu0 0.0
    %3100 = vmatpush1.msra.mxu0 %v96
    %3101 = vmatprep.subr.mxu0 0.0
    %3102 = vmatpush1.msra.mxu0 %v93
    %3103 = vmatprep.subr.mxu0 0.0
    %3104 = vmatpush1.msra.mxu0 %v90
    %3105 = vmatprep.subr.mxu0 0.0
    %3106 = vmatpush2.msra.mxu0 0.0
    %3107 = vmatprep.subr.mxu0 0.0
    %3108 = vmatpush2.msra.mxu0 0.0
    %3109 = vmatprep.subr.mxu0 0.0
    %3110 = vmatpush2.msra.mxu0 0.0
    %3111 = vmatprep.subr.mxu0 0.0
    %3112 = vmatpush2.msra.mxu0 0.0
    %3113 = vmatprep.subr.mxu0 0.0
    %3114 = vmatpush2.msra.mxu0 0.0
    %3115 = vmatprep.subr.mxu0 0.0
    %3116 = vmatpush2.msra.mxu0 0.0
    %3117 = vmatprep.subr.mxu0 0.0
    %3118 = vmatpush2.msra.mxu0 0.0
    %3119 = vmatprep.subr.mxu0 0.0
    %3120 = vmatpush2.msra.mxu0 0.0
    %3121 = vmatprep.subr.mxu0 0.0
    %3122 = vmatpush2.msra.mxu0 0.0
    %3123 = vmatprep.subr.mxu0 0.0
    %3124 = vmatpush2.msra.mxu0 0.0
    %3125 = vmatprep.subr.mxu0 0.0
    %3126 = vmatpush2.msra.mxu0 0.0
    %3127 = vmatprep.subr.mxu0 0.0
    %3128 = vmatpush2.msra.mxu0 0.0
    %3129 = vmatprep.subr.mxu0 0.0
    %3130 = vmatpush2.msra.mxu0 0.0
    %3131 = vmatprep.subr.mxu0 0.0
    %3132 = vmatpush2.msra.mxu0 0.0
    %3133 = vmatprep.subr.mxu0 0.0
    %3134 = vmatpush2.msra.mxu0 0.0
    %3135 = vmatprep.subr.mxu0 0.0
    %3136 = vmatpush2.msra.mxu0 0.0
    %3137 = vmatprep.mubr.f32.mxu0 0.0
    %3138 = vmatmul.mubr.f32.gmra.mxu0 %v3000
    %v3139 = vpop.f32.mrf.mxu0
    %v3140 = vadd.f32 %v2997, %v3139
    %v3141 = vpop.f32.mrf.mxu0
    %3142 = vdwg.mxu0
    %3143 = vrot.lane.b32.xlu0 %v404, 32
    %v3144 = vpop.permute.xlu0 %3143
    %v3145 = vsel %vm1128, %v3144, 0
    %3147 = vmatprep.subr.mxu0 0.0
    %3148 = vmatpush1.msra.mxu0 0.0
    %3149 = vmatprep.subr.mxu0 0.0
    %3150 = vmatpush1.msra.mxu0 0.0
    %3151 = vmatprep.subr.mxu0 0.0
    %3152 = vmatpush1.msra.mxu0 0.0
    %3153 = vmatprep.subr.mxu0 0.0
    %3154 = vmatpush1.msra.mxu0 0.0
    %3155 = vmatprep.subr.mxu0 0.0
    %3156 = vmatpush1.msra.mxu0 0.0
    %3157 = vmatprep.subr.mxu0 0.0
    %3158 = vmatpush1.msra.mxu0 0.0
    %3159 = vmatprep.subr.mxu0 0.0
    %3160 = vmatpush1.msra.mxu0 0.0
    %3161 = vmatprep.subr.mxu0 0.0
    %3162 = vmatpush1.msra.mxu0 0.0
    %3163 = vmatprep.subr.mxu0 0.0
    %3164 = vmatpush1.msra.mxu0 0.0
    %3165 = vmatprep.subr.mxu0 0.0
    %3166 = vmatpush1.msra.mxu0 0.0
    %3167 = vmatprep.subr.mxu0 0.0
    %3168 = vmatpush1.msra.mxu0 0.0
    %3169 = vmatprep.subr.mxu0 0.0
    %3170 = vmatpush1.msra.mxu0 0.0
    %3171 = vmatprep.subr.mxu0 %v110
    %3172 = vmatpush1.msra.mxu0 %v109
    %3173 = vmatprep.subr.mxu0 %v107
    %3174 = vmatpush1.msra.mxu0 %v106
    %3175 = vmatprep.subr.mxu0 %v104
    %3176 = vmatpush1.msra.mxu0 %v103
    %3177 = vmatprep.subr.mxu0 %v101
    %3178 = vmatpush1.msra.mxu0 %v100
    %3179 = vmatprep.subr.mxu0 0.0
    %3180 = vmatpush2.msra.mxu0 0.0
    %3181 = vmatprep.subr.mxu0 0.0
    %3182 = vmatpush2.msra.mxu0 0.0
    %3183 = vmatprep.subr.mxu0 0.0
    %3184 = vmatpush2.msra.mxu0 0.0
    %3185 = vmatprep.subr.mxu0 0.0
    %3186 = vmatpush2.msra.mxu0 0.0
    %3187 = vmatprep.subr.mxu0 0.0
    %3188 = vmatpush2.msra.mxu0 0.0
    %3189 = vmatprep.subr.mxu0 0.0
    %3190 = vmatpush2.msra.mxu0 0.0
    %3191 = vmatprep.subr.mxu0 0.0
    %3192 = vmatpush2.msra.mxu0 0.0
    %3193 = vmatprep.subr.mxu0 0.0
    %3194 = vmatpush2.msra.mxu0 0.0
    %3195 = vmatprep.subr.mxu0 0.0
    %3196 = vmatpush2.msra.mxu0 0.0
    %3197 = vmatprep.subr.mxu0 0.0
    %3198 = vmatpush2.msra.mxu0 0.0
    %3199 = vmatprep.subr.mxu0 0.0
    %3200 = vmatpush2.msra.mxu0 0.0
    %3201 = vmatprep.subr.mxu0 0.0
    %3202 = vmatpush2.msra.mxu0 0.0
    %3203 = vmatprep.subr.mxu0 0.0
    %3204 = vmatpush2.msra.mxu0 0.0
    %3205 = vmatprep.subr.mxu0 0.0
    %3206 = vmatpush2.msra.mxu0 0.0
    %3207 = vmatprep.subr.mxu0 0.0
    %3208 = vmatpush2.msra.mxu0 0.0
    %3209 = vmatprep.subr.mxu0 0.0
    %3210 = vmatpush2.msra.mxu0 0.0
    %3211 = vmatprep.mubr.f32.mxu0 0.0
    %3212 = vmatmul.mubr.f32.gmra.mxu0 %v3145
    %v3213 = vpop.f32.mrf.mxu0
    %v3214 = vadd.f32 0.0, %v3213
    %v3215 = vpop.f32.mrf.mxu0
    %v3216 = vadd.f32 0.0, %v3215
    %3217 = vdwg.mxu0
    %3218 = vmatprep.subr.mxu0 0.0
    %3219 = vmatpush1.msra.mxu0 0.0
    %3220 = vmatprep.subr.mxu0 0.0
    %3221 = vmatpush1.msra.mxu0 0.0
    %3222 = vmatprep.subr.mxu0 0.0
    %3223 = vmatpush1.msra.mxu0 0.0
    %3224 = vmatprep.subr.mxu0 0.0
    %3225 = vmatpush1.msra.mxu0 0.0
    %3226 = vmatprep.subr.mxu0 0.0
    %3227 = vmatpush1.msra.mxu0 0.0
    %3228 = vmatprep.subr.mxu0 0.0
    %3229 = vmatpush1.msra.mxu0 0.0
    %3230 = vmatprep.subr.mxu0 0.0
    %3231 = vmatpush1.msra.mxu0 0.0
    %3232 = vmatprep.subr.mxu0 0.0
    %3233 = vmatpush1.msra.mxu0 0.0
    %3234 = vmatprep.subr.mxu0 0.0
    %3235 = vmatpush1.msra.mxu0 0.0
    %3236 = vmatprep.subr.mxu0 0.0
    %3237 = vmatpush1.msra.mxu0 0.0
    %3238 = vmatprep.subr.mxu0 0.0
    %3239 = vmatpush1.msra.mxu0 0.0
    %3240 = vmatprep.subr.mxu0 0.0
    %3241 = vmatpush1.msra.mxu0 0.0
    %3242 = vmatprep.subr.mxu0 0.0
    %3243 = vmatpush1.msra.mxu0 %v111
    %3244 = vmatprep.subr.mxu0 0.0
    %3245 = vmatpush1.msra.mxu0 %v108
    %3246 = vmatprep.subr.mxu0 0.0
    %3247 = vmatpush1.msra.mxu0 %v105
    %3248 = vmatprep.subr.mxu0 0.0
    %3249 = vmatpush1.msra.mxu0 %v102
    %3250 = vmatprep.subr.mxu0 0.0
    %3251 = vmatpush2.msra.mxu0 0.0
    %3252 = vmatprep.subr.mxu0 0.0
    %3253 = vmatpush2.msra.mxu0 0.0
    %3254 = vmatprep.subr.mxu0 0.0
    %3255 = vmatpush2.msra.mxu0 0.0
    %3256 = vmatprep.subr.mxu0 0.0
    %3257 = vmatpush2.msra.mxu0 0.0
    %3258 = vmatprep.subr.mxu0 0.0
    %3259 = vmatpush2.msra.mxu0 0.0
    %3260 = vmatprep.subr.mxu0 0.0
    %3261 = vmatpush2.msra.mxu0 0.0
    %3262 = vmatprep.subr.mxu0 0.0
    %3263 = vmatpush2.msra.mxu0 0.0
    %3264 = vmatprep.subr.mxu0 0.0
    %3265 = vmatpush2.msra.mxu0 0.0
    %3266 = vmatprep.subr.mxu0 0.0
    %3267 = vmatpush2.msra.mxu0 0.0
    %3268 = vmatprep.subr.mxu0 0.0
    %3269 = vmatpush2.msra.mxu0 0.0
    %3270 = vmatprep.subr.mxu0 0.0
    %3271 = vmatpush2.msra.mxu0 0.0
    %3272 = vmatprep.subr.mxu0 0.0
    %3273 = vmatpush2.msra.mxu0 0.0
    %3274 = vmatprep.subr.mxu0 0.0
    %3275 = vmatpush2.msra.mxu0 0.0
    %3276 = vmatprep.subr.mxu0 0.0
    %3277 = vmatpush2.msra.mxu0 0.0
    %3278 = vmatprep.subr.mxu0 0.0
    %3279 = vmatpush2.msra.mxu0 0.0
    %3280 = vmatprep.subr.mxu0 0.0
    %3281 = vmatpush2.msra.mxu0 0.0
    %3282 = vmatprep.mubr.f32.mxu0 0.0
    %3283 = vmatmul.mubr.f32.gmra.mxu0 %v3145
    %v3284 = vpop.f32.mrf.mxu0
    %v3285 = vadd.f32 0.0, %v3284
    %v3286 = vpop.f32.mrf.mxu0
    %3287 = vdwg.mxu0
    %3288 = vrot.lane.b32.xlu0 %v1125, 64
    %v3289 = vpop.permute.xlu0 %3288
    %v3290 = vsel %vm1128, %v3289, 0
    %3292 = vmatprep.subr.mxu0 0.0
    %3293 = vmatpush1.msra.mxu0 0.0
    %3294 = vmatprep.subr.mxu0 0.0
    %3295 = vmatpush1.msra.mxu0 0.0
    %3296 = vmatprep.subr.mxu0 0.0
    %3297 = vmatpush1.msra.mxu0 0.0
    %3298 = vmatprep.subr.mxu0 0.0
    %3299 = vmatpush1.msra.mxu0 0.0
    %3300 = vmatprep.subr.mxu0 0.0
    %3301 = vmatpush1.msra.mxu0 0.0
    %3302 = vmatprep.subr.mxu0 0.0
    %3303 = vmatpush1.msra.mxu0 0.0
    %3304 = vmatprep.subr.mxu0 0.0
    %3305 = vmatpush1.msra.mxu0 0.0
    %3306 = vmatprep.subr.mxu0 0.0
    %3307 = vmatpush1.msra.mxu0 0.0
    %3308 = vmatprep.subr.mxu0 0.0
    %3309 = vmatpush1.msra.mxu0 0.0
    %3310 = vmatprep.subr.mxu0 0.0
    %3311 = vmatpush1.msra.mxu0 0.0
    %3312 = vmatprep.subr.mxu0 0.0
    %3313 = vmatpush1.msra.mxu0 0.0
    %3314 = vmatprep.subr.mxu0 0.0
    %3315 = vmatpush1.msra.mxu0 0.0
    %3316 = vmatprep.subr.mxu0 %v98
    %3317 = vmatpush1.msra.mxu0 %v97
    %3318 = vmatprep.subr.mxu0 %v95
    %3319 = vmatpush1.msra.mxu0 %v94
    %3320 = vmatprep.subr.mxu0 %v92
    %3321 = vmatpush1.msra.mxu0 %v91
    %3322 = vmatprep.subr.mxu0 %v89
    %3323 = vmatpush1.msra.mxu0 %v88
    %3324 = vmatprep.subr.mxu0 0.0
    %3325 = vmatpush2.msra.mxu0 0.0
    %3326 = vmatprep.subr.mxu0 0.0
    %3327 = vmatpush2.msra.mxu0 0.0
    %3328 = vmatprep.subr.mxu0 0.0
    %3329 = vmatpush2.msra.mxu0 0.0
    %3330 = vmatprep.subr.mxu0 0.0
    %3331 = vmatpush2.msra.mxu0 0.0
    %3332 = vmatprep.subr.mxu0 0.0
    %3333 = vmatpush2.msra.mxu0 0.0
    %3334 = vmatprep.subr.mxu0 0.0
    %3335 = vmatpush2.msra.mxu0 0.0
    %3336 = vmatprep.subr.mxu0 0.0
    %3337 = vmatpush2.msra.mxu0 0.0
    %3338 = vmatprep.subr.mxu0 0.0
    %3339 = vmatpush2.msra.mxu0 0.0
    %3340 = vmatprep.subr.mxu0 0.0
    %3341 = vmatpush2.msra.mxu0 0.0
    %3342 = vmatprep.subr.mxu0 0.0
    %3343 = vmatpush2.msra.mxu0 0.0
    %3344 = vmatprep.subr.mxu0 0.0
    %3345 = vmatpush2.msra.mxu0 0.0
    %3346 = vmatprep.subr.mxu0 0.0
    %3347 = vmatpush2.msra.mxu0 0.0
    %3348 = vmatprep.subr.mxu0 0.0
    %3349 = vmatpush2.msra.mxu0 0.0
    %3350 = vmatprep.subr.mxu0 0.0
    %3351 = vmatpush2.msra.mxu0 0.0
    %3352 = vmatprep.subr.mxu0 0.0
    %3353 = vmatpush2.msra.mxu0 0.0
    %3354 = vmatprep.subr.mxu0 0.0
    %3355 = vmatpush2.msra.mxu0 0.0
    %3356 = vmatprep.mubr.f32.mxu0 0.0
    %3357 = vmatmul.mubr.f32.gmra.mxu0 %v3290
    %v3358 = vpop.f32.mrf.mxu0
    %v3359 = vadd.f32 %v3214, %v3358
    %v3360 = vpop.f32.mrf.mxu0
    %v3361 = vadd.f32 %v3216, %v3360
    %3362 = vdwg.mxu0
    %3363 = vmatprep.subr.mxu0 0.0
    %3364 = vmatpush1.msra.mxu0 0.0
    %3365 = vmatprep.subr.mxu0 0.0
    %3366 = vmatpush1.msra.mxu0 0.0
    %3367 = vmatprep.subr.mxu0 0.0
    %3368 = vmatpush1.msra.mxu0 0.0
    %3369 = vmatprep.subr.mxu0 0.0
    %3370 = vmatpush1.msra.mxu0 0.0
    %3371 = vmatprep.subr.mxu0 0.0
    %3372 = vmatpush1.msra.mxu0 0.0
    %3373 = vmatprep.subr.mxu0 0.0
    %3374 = vmatpush1.msra.mxu0 0.0
    %3375 = vmatprep.subr.mxu0 0.0
    %3376 = vmatpush1.msra.mxu0 0.0
    %3377 = vmatprep.subr.mxu0 0.0
    %3378 = vmatpush1.msra.mxu0 0.0
    %3379 = vmatprep.subr.mxu0 0.0
    %3380 = vmatpush1.msra.mxu0 0.0
    %3381 = vmatprep.subr.mxu0 0.0
    %3382 = vmatpush1.msra.mxu0 0.0
    %3383 = vmatprep.subr.mxu0 0.0
    %3384 = vmatpush1.msra.mxu0 0.0
    %3385 = vmatprep.subr.mxu0 0.0
    %3386 = vmatpush1.msra.mxu0 0.0
    %3387 = vmatprep.subr.mxu0 0.0
    %3388 = vmatpush1.msra.mxu0 %v99
    %3389 = vmatprep.subr.mxu0 0.0
    %3390 = vmatpush1.msra.mxu0 %v96
    %3391 = vmatprep.subr.mxu0 0.0
    %3392 = vmatpush1.msra.mxu0 %v93
    %3393 = vmatprep.subr.mxu0 0.0
    %3394 = vmatpush1.msra.mxu0 %v90
    %3395 = vmatprep.subr.mxu0 0.0
    %3396 = vmatpush2.msra.mxu0 0.0
    %3397 = vmatprep.subr.mxu0 0.0
    %3398 = vmatpush2.msra.mxu0 0.0
    %3399 = vmatprep.subr.mxu0 0.0
    %3400 = vmatpush2.msra.mxu0 0.0
    %3401 = vmatprep.subr.mxu0 0.0
    %3402 = vmatpush2.msra.mxu0 0.0
    %3403 = vmatprep.subr.mxu0 0.0
    %3404 = vmatpush2.msra.mxu0 0.0
    %3405 = vmatprep.subr.mxu0 0.0
    %3406 = vmatpush2.msra.mxu0 0.0
    %3407 = vmatprep.subr.mxu0 0.0
    %3408 = vmatpush2.msra.mxu0 0.0
    %3409 = vmatprep.subr.mxu0 0.0
    %3410 = vmatpush2.msra.mxu0 0.0
    %3411 = vmatprep.subr.mxu0 0.0
    %3412 = vmatpush2.msra.mxu0 0.0
    %3413 = vmatprep.subr.mxu0 0.0
    %3414 = vmatpush2.msra.mxu0 0.0
    %3415 = vmatprep.subr.mxu0 0.0
    %3416 = vmatpush2.msra.mxu0 0.0
    %3417 = vmatprep.subr.mxu0 0.0
    %3418 = vmatpush2.msra.mxu0 0.0
    %3419 = vmatprep.subr.mxu0 0.0
    %3420 = vmatpush2.msra.mxu0 0.0
    %3421 = vmatprep.subr.mxu0 0.0
    %3422 = vmatpush2.msra.mxu0 0.0
    %3423 = vmatprep.subr.mxu0 0.0
    %3424 = vmatpush2.msra.mxu0 0.0
    %3425 = vmatprep.subr.mxu0 0.0
    %3426 = vmatpush2.msra.mxu0 0.0
    %3427 = vmatprep.mubr.f32.mxu0 0.0
    %3428 = vmatmul.mubr.f32.gmra.mxu0 %v3290
    %v3429 = vpop.f32.mrf.mxu0
    %v3430 = vadd.f32 %v3285, %v3429
    %v3431 = vpop.f32.mrf.mxu0
    %3432 = vdwg.mxu0
    %3435 = vrot.lane.b32.xlu0 %v3361, 64
    %v3436 = vpop.permute.xlu0 %3435
    %3437 = vrot.lane.b32.xlu0 %v3430, 64
    %v3438 = vpop.permute.xlu0 %3437
    %v3439 = vsel %vm329, %v3436, %v3438
    %v3442 = vadd.f32 %v1341, %v3439
    %v3443 = vadd.f32 %v1343, %v3438
    %v3444 = vlaneseq
    %v3445 = vshrl.u32 %v3444, 7
    %v3446 = vsub.s32 2, %v3445
    %v3447 = vrot.slane %v146, %v3446
    %v3448 = vlaneseq
    %v3449 = vshrl.u32 %v3448, 7
    %v3450 = vsub.s32 2, %v3449
    %v3451 = vrot.slane %v147, %v3450
    %v3452 = vadd.f32 %v3442, %v3447
    %v3453 = vadd.f32 %v3443, %v3451
    %3456 = vrot.lane.b32.xlu0 %v3071, 64
    %v3457 = vpop.permute.xlu0 %3456
    %3458 = vrot.lane.b32.xlu0 %v3140, 64
    %v3459 = vpop.permute.xlu0 %3458
    %v3460 = vsel %vm329, %v3457, %v3459
    %v3463 = vadd.f32 %v1629, %v3460
    %v3464 = vadd.f32 %v1631, %v3459
    %v3465 = vadd.f32 %v3463, %v3447
    %v3466 = vadd.f32 %v3464, %v3451
    %3469 = vrot.lane.b32.xlu0 %v2783, 64
    %v3470 = vpop.permute.xlu0 %3469
    %3471 = vrot.lane.b32.xlu0 %v2852, 64
    %v3472 = vpop.permute.xlu0 %3471
    %v3473 = vsel %vm329, %v3470, %v3472
    %v3476 = vadd.f32 %v1917, %v3473
    %v3477 = vadd.f32 %v1919, %v3472
    %v3478 = vadd.f32 %v3476, %v3447
    %v3479 = vadd.f32 %v3477, %v3451
    %3482 = vrot.lane.b32.xlu0 %v2495, 64
    %v3483 = vpop.permute.xlu0 %3482
    %3484 = vrot.lane.b32.xlu0 %v2564, 64
    %v3485 = vpop.permute.xlu0 %3484
    %v3486 = vsel %vm329, %v3483, %v3485
    %v3489 = vadd.f32 %v2205, %v3486
    %v3490 = vadd.f32 %v2207, %v3485
    %v3491 = vadd.f32 %v3489, %v3447
    %v3492 = vadd.f32 %v3490, %v3451
    %3495 = vrot.lane.b32.xlu0 %v2207, 64
    %v3496 = vpop.permute.xlu0 %3495
    %3497 = vrot.lane.b32.xlu0 %v2276, 64
    %v3498 = vpop.permute.xlu0 %3497
    %v3499 = vsel %vm329, %v3496, %v3498
    %v3502 = vadd.f32 %v2493, %v3499
    %v3503 = vadd.f32 %v2495, %v3498
    %v3504 = vadd.f32 %v3502, %v3447
    %v3505 = vadd.f32 %v3503, %v3451
    %3508 = vrot.lane.b32.xlu0 %v1919, 64
    %v3509 = vpop.permute.xlu0 %3508
    %3510 = vrot.lane.b32.xlu0 %v1988, 64
    %v3511 = vpop.permute.xlu0 %3510
    %v3512 = vsel %vm329, %v3509, %v3511
    %v3515 = vadd.f32 %v2781, %v3512
    %v3516 = vadd.f32 %v2783, %v3511
    %v3517 = vadd.f32 %v3515, %v3447
    %v3518 = vadd.f32 %v3516, %v3451
    %3521 = vrot.lane.b32.xlu0 %v1631, 64
    %v3522 = vpop.permute.xlu0 %3521
    %3523 = vrot.lane.b32.xlu0 %v1700, 64
    %v3524 = vpop.permute.xlu0 %3523
    %v3525 = vsel %vm329, %v3522, %v3524
    %v3528 = vadd.f32 %v3069, %v3525
    %v3529 = vadd.f32 %v3071, %v3524
    %v3530 = vadd.f32 %v3528, %v3447
    %v3531 = vadd.f32 %v3529, %v3451
    %3534 = vrot.lane.b32.xlu0 %v1343, 64
    %v3535 = vpop.permute.xlu0 %3534
    %3536 = vrot.lane.b32.xlu0 %v1412, 64
    %v3537 = vpop.permute.xlu0 %3536
    %v3538 = vsel %vm329, %v3535, %v3537
    %v3541 = vadd.f32 %v3359, %v3538
    %v3542 = vadd.f32 %v3361, %v3537
    %v3543 = vadd.f32 %v3541, %v3447
    %v3544 = vadd.f32 %v3542, %v3451
    %v3545 = vxor.u32 %v3452, 2147483648
    %v3546 = vmul.f32 %v3545, 1.442695
    %v3547 = vpow.pop %v3546
    %v3548 = vadd.f32 %v3547, 1.0
    %v3549 = vrcp.pop %v3548
    %v3550 = vmul.f32 1.0, %v3549
    %v3551 = vlaneseq
    %v3552 = vshrl.u32 %v3551, 7
    %v3553 = vsub.s32 3, %v3552
    %v3554 = vrot.slane %v146, %v3553
    %v3555 = vmul.f32 %v3550, %v3554
    %v3556 = vadd.f32 %v3453, %v3555
    %v3557 = vtanh.pop %v3556
    %v3558 = vsub.f32 1.0, %v3550
    %3560 = vrot.lane.b32.xlu0 %v3557, 64
    %v3561 = vpop.permute.xlu0 %3560
    %v3563 = vmul.f32 %v3558, %v3561
    %3565 = vrot.lane.b32.xlu0 %v3563, 64
    %v3566 = vpop.permute.xlu0 %3565
    %v3567 = vsel %vm329, %v3566, 0
    %3569 = vmatprep.subr.mxu0 0.0
    %3570 = vmatpush1.msra.mxu0 0.0
    %3571 = vmatprep.subr.mxu0 0.0
    %3572 = vmatpush1.msra.mxu0 0.0
    %3573 = vmatprep.subr.mxu0 0.0
    %3574 = vmatpush1.msra.mxu0 0.0
    %3575 = vmatprep.subr.mxu0 0.0
    %3576 = vmatpush1.msra.mxu0 0.0
    %3577 = vmatprep.subr.mxu0 0.0
    %3578 = vmatpush1.msra.mxu0 0.0
    %3579 = vmatprep.subr.mxu0 0.0
    %3580 = vmatpush1.msra.mxu0 0.0
    %3581 = vmatprep.subr.mxu0 0.0
    %3582 = vmatpush1.msra.mxu0 0.0
    %3583 = vmatprep.subr.mxu0 0.0
    %3584 = vmatpush1.msra.mxu0 0.0
    %3585 = vmatprep.subr.mxu0 %v61
    %3586 = vmatpush1.msra.mxu0 %v60
    %3587 = vmatprep.subr.mxu0 %v59
    %3588 = vmatpush1.msra.mxu0 %v58
    %3589 = vmatprep.subr.mxu0 %v57
    %3590 = vmatpush1.msra.mxu0 %v56
    %3591 = vmatprep.subr.mxu0 %v55
    %3592 = vmatpush1.msra.mxu0 %v54
    %3593 = vmatprep.subr.mxu0 %v53
    %3594 = vmatpush1.msra.mxu0 %v52
    %3595 = vmatprep.subr.mxu0 %v51
    %3596 = vmatpush1.msra.mxu0 %v50
    %3597 = vmatprep.subr.mxu0 %v49
    %3598 = vmatpush1.msra.mxu0 %v48
    %3599 = vmatprep.subr.mxu0 %v47
    %3600 = vmatpush1.msra.mxu0 %v46
    %3601 = vmatprep.subr.mxu0 0.0
    %3602 = vmatpush2.msra.mxu0 0.0
    %3603 = vmatprep.subr.mxu0 0.0
    %3604 = vmatpush2.msra.mxu0 0.0
    %3605 = vmatprep.subr.mxu0 0.0
    %3606 = vmatpush2.msra.mxu0 0.0
    %3607 = vmatprep.subr.mxu0 0.0
    %3608 = vmatpush2.msra.mxu0 0.0
    %3609 = vmatprep.subr.mxu0 0.0
    %3610 = vmatpush2.msra.mxu0 0.0
    %3611 = vmatprep.subr.mxu0 0.0
    %3612 = vmatpush2.msra.mxu0 0.0
    %3613 = vmatprep.subr.mxu0 0.0
    %3614 = vmatpush2.msra.mxu0 0.0
    %3615 = vmatprep.subr.mxu0 0.0
    %3616 = vmatpush2.msra.mxu0 0.0
    %3617 = vmatprep.subr.mxu0 0.0
    %3618 = vmatpush2.msra.mxu0 0.0
    %3619 = vmatprep.subr.mxu0 0.0
    %3620 = vmatpush2.msra.mxu0 0.0
    %3621 = vmatprep.subr.mxu0 0.0
    %3622 = vmatpush2.msra.mxu0 0.0
    %3623 = vmatprep.subr.mxu0 0.0
    %3624 = vmatpush2.msra.mxu0 0.0
    %3625 = vmatprep.subr.mxu0 0.0
    %3626 = vmatpush2.msra.mxu0 0.0
    %3627 = vmatprep.subr.mxu0 0.0
    %3628 = vmatpush2.msra.mxu0 0.0
    %3629 = vmatprep.subr.mxu0 0.0
    %3630 = vmatpush2.msra.mxu0 0.0
    %3631 = vmatprep.subr.mxu0 0.0
    %3632 = vmatpush2.msra.mxu0 0.0
    %3633 = vmatprep.mubr.f32.mxu0 0.0
    %3634 = vmatmul.mubr.f32.gmra.mxu0 %v3567
    %v3635 = vpop.f32.mrf.mxu0
    %v3636 = vadd.f32 0.0, %v3635
    %v3637 = vpop.f32.mrf.mxu0
    %v3638 = vadd.f32 0.0, %v3637
    %3639 = vdwg.mxu0
    %v3640 = vadd.f32 %v3465, %v3636
    %v3641 = vxor.u32 %v3640, 2147483648
    %v3642 = vmul.f32 %v3641, 1.442695
    %v3643 = vpow.pop %v3642
    %v3644 = vadd.f32 %v3643, 1.0
    %v3645 = vrcp.pop %v3644
    %v3646 = vmul.f32 1.0, %v3645
    %v3647 = vadd.f32 %v3638, %v3554
    %v3648 = vmul.f32 %v3646, %v3647
    %v3649 = vadd.f32 %v3466, %v3648
    %v3650 = vtanh.pop %v3649
    %v3651 = vsub.f32 1.0, %v3646
    %3653 = vrot.lane.b32.xlu0 %v3650, 64
    %v3654 = vpop.permute.xlu0 %3653
    %v3656 = vmul.f32 %v3651, %v3654
    %v3657 = vmul.f32 %v3646, %v3563
    %v3658 = vadd.f32 %v3656, %v3657
    %3660 = vrot.lane.b32.xlu0 %v3658, 64
    %v3661 = vpop.permute.xlu0 %3660
    %v3662 = vsel %vm329, %v3661, 0
    %3664 = vmatprep.subr.mxu0 0.0
    %3665 = vmatpush1.msra.mxu0 0.0
    %3666 = vmatprep.subr.mxu0 0.0
    %3667 = vmatpush1.msra.mxu0 0.0
    %3668 = vmatprep.subr.mxu0 0.0
    %3669 = vmatpush1.msra.mxu0 0.0
    %3670 = vmatprep.subr.mxu0 0.0
    %3671 = vmatpush1.msra.mxu0 0.0
    %3672 = vmatprep.subr.mxu0 0.0
    %3673 = vmatpush1.msra.mxu0 0.0
    %3674 = vmatprep.subr.mxu0 0.0
    %3675 = vmatpush1.msra.mxu0 0.0
    %3676 = vmatprep.subr.mxu0 0.0
    %3677 = vmatpush1.msra.mxu0 0.0
    %3678 = vmatprep.subr.mxu0 0.0
    %3679 = vmatpush1.msra.mxu0 0.0
    %3680 = vmatprep.subr.mxu0 %v61
    %3681 = vmatpush1.msra.mxu0 %v60
    %3682 = vmatprep.subr.mxu0 %v59
    %3683 = vmatpush1.msra.mxu0 %v58
    %3684 = vmatprep.subr.mxu0 %v57
    %3685 = vmatpush1.msra.mxu0 %v56
    %3686 = vmatprep.subr.mxu0 %v55
    %3687 = vmatpush1.msra.mxu0 %v54
    %3688 = vmatprep.subr.mxu0 %v53
    %3689 = vmatpush1.msra.mxu0 %v52
    %3690 = vmatprep.subr.mxu0 %v51
    %3691 = vmatpush1.msra.mxu0 %v50
    %3692 = vmatprep.subr.mxu0 %v49
    %3693 = vmatpush1.msra.mxu0 %v48
    %3694 = vmatprep.subr.mxu0 %v47
    %3695 = vmatpush1.msra.mxu0 %v46
    %3696 = vmatprep.subr.mxu0 0.0
    %3697 = vmatpush2.msra.mxu0 0.0
    %3698 = vmatprep.subr.mxu0 0.0
    %3699 = vmatpush2.msra.mxu0 0.0
    %3700 = vmatprep.subr.mxu0 0.0
    %3701 = vmatpush2.msra.mxu0 0.0
    %3702 = vmatprep.subr.mxu0 0.0
    %3703 = vmatpush2.msra.mxu0 0.0
    %3704 = vmatprep.subr.mxu0 0.0
    %3705 = vmatpush2.msra.mxu0 0.0
    %3706 = vmatprep.subr.mxu0 0.0
    %3707 = vmatpush2.msra.mxu0 0.0
    %3708 = vmatprep.subr.mxu0 0.0
    %3709 = vmatpush2.msra.mxu0 0.0
    %3710 = vmatprep.subr.mxu0 0.0
    %3711 = vmatpush2.msra.mxu0 0.0
    %3712 = vmatprep.subr.mxu0 0.0
    %3713 = vmatpush2.msra.mxu0 0.0
    %3714 = vmatprep.subr.mxu0 0.0
    %3715 = vmatpush2.msra.mxu0 0.0
    %3716 = vmatprep.subr.mxu0 0.0
    %3717 = vmatpush2.msra.mxu0 0.0
    %3718 = vmatprep.subr.mxu0 0.0
    %3719 = vmatpush2.msra.mxu0 0.0
    %3720 = vmatprep.subr.mxu0 0.0
    %3721 = vmatpush2.msra.mxu0 0.0
    %3722 = vmatprep.subr.mxu0 0.0
    %3723 = vmatpush2.msra.mxu0 0.0
    %3724 = vmatprep.subr.mxu0 0.0
    %3725 = vmatpush2.msra.mxu0 0.0
    %3726 = vmatprep.subr.mxu0 0.0
    %3727 = vmatpush2.msra.mxu0 0.0
    %3728 = vmatprep.mubr.f32.mxu0 0.0
    %3729 = vmatmul.mubr.f32.gmra.mxu0 %v3662
    %v3730 = vpop.f32.mrf.mxu0
    %v3731 = vadd.f32 0.0, %v3730
    %v3732 = vpop.f32.mrf.mxu0
    %v3733 = vadd.f32 0.0, %v3732
    %3734 = vdwg.mxu0
    %v3735 = vadd.f32 %v3478, %v3731
    %v3736 = vxor.u32 %v3735, 2147483648
    %v3737 = vmul.f32 %v3736, 1.442695
    %v3738 = vpow.pop %v3737
    %v3739 = vadd.f32 %v3738, 1.0
    %v3740 = vrcp.pop %v3739
    %v3741 = vmul.f32 1.0, %v3740
    %v3742 = vadd.f32 %v3733, %v3554
    %v3743 = vmul.f32 %v3741, %v3742
    %v3744 = vadd.f32 %v3479, %v3743
    %v3745 = vtanh.pop %v3744
    %v3746 = vsub.f32 1.0, %v3741
    %3748 = vrot.lane.b32.xlu0 %v3745, 64
    %v3749 = vpop.permute.xlu0 %3748
    %v3751 = vmul.f32 %v3746, %v3749
    %v3752 = vmul.f32 %v3741, %v3658
    %v3753 = vadd.f32 %v3751, %v3752
    %3755 = vrot.lane.b32.xlu0 %v3753, 64
    %v3756 = vpop.permute.xlu0 %3755
    %v3757 = vsel %vm329, %v3756, 0
    %3759 = vmatprep.subr.mxu0 0.0
    %3760 = vmatpush1.msra.mxu0 0.0
    %3761 = vmatprep.subr.mxu0 0.0
    %3762 = vmatpush1.msra.mxu0 0.0
    %3763 = vmatprep.subr.mxu0 0.0
    %3764 = vmatpush1.msra.mxu0 0.0
    %3765 = vmatprep.subr.mxu0 0.0
    %3766 = vmatpush1.msra.mxu0 0.0
    %3767 = vmatprep.subr.mxu0 0.0
    %3768 = vmatpush1.msra.mxu0 0.0
    %3769 = vmatprep.subr.mxu0 0.0
    %3770 = vmatpush1.msra.mxu0 0.0
    %3771 = vmatprep.subr.mxu0 0.0
    %3772 = vmatpush1.msra.mxu0 0.0
    %3773 = vmatprep.subr.mxu0 0.0
    %3774 = vmatpush1.msra.mxu0 0.0
    %3775 = vmatprep.subr.mxu0 %v61
    %3776 = vmatpush1.msra.mxu0 %v60
    %3777 = vmatprep.subr.mxu0 %v59
    %3778 = vmatpush1.msra.mxu0 %v58
    %3779 = vmatprep.subr.mxu0 %v57
    %3780 = vmatpush1.msra.mxu0 %v56
    %3781 = vmatprep.subr.mxu0 %v55
    %3782 = vmatpush1.msra.mxu0 %v54
    %3783 = vmatprep.subr.mxu0 %v53
    %3784 = vmatpush1.msra.mxu0 %v52
    %3785 = vmatprep.subr.mxu0 %v51
    %3786 = vmatpush1.msra.mxu0 %v50
    %3787 = vmatprep.subr.mxu0 %v49
    %3788 = vmatpush1.msra.mxu0 %v48
    %3789 = vmatprep.subr.mxu0 %v47
    %3790 = vmatpush1.msra.mxu0 %v46
    %3791 = vmatprep.subr.mxu0 0.0
    %3792 = vmatpush2.msra.mxu0 0.0
    %3793 = vmatprep.subr.mxu0 0.0
    %3794 = vmatpush2.msra.mxu0 0.0
    %3795 = vmatprep.subr.mxu0 0.0
    %3796 = vmatpush2.msra.mxu0 0.0
    %3797 = vmatprep.subr.mxu0 0.0
    %3798 = vmatpush2.msra.mxu0 0.0
    %3799 = vmatprep.subr.mxu0 0.0
    %3800 = vmatpush2.msra.mxu0 0.0
    %3801 = vmatprep.subr.mxu0 0.0
    %3802 = vmatpush2.msra.mxu0 0.0
    %3803 = vmatprep.subr.mxu0 0.0
    %3804 = vmatpush2.msra.mxu0 0.0
    %3805 = vmatprep.subr.mxu0 0.0
    %3806 = vmatpush2.msra.mxu0 0.0
    %3807 = vmatprep.subr.mxu0 0.0
    %3808 = vmatpush2.msra.mxu0 0.0
    %3809 = vmatprep.subr.mxu0 0.0
    %3810 = vmatpush2.msra.mxu0 0.0
    %3811 = vmatprep.subr.mxu0 0.0
    %3812 = vmatpush2.msra.mxu0 0.0
    %3813 = vmatprep.subr.mxu0 0.0
    %3814 = vmatpush2.msra.mxu0 0.0
    %3815 = vmatprep.subr.mxu0 0.0
    %3816 = vmatpush2.msra.mxu0 0.0
    %3817 = vmatprep.subr.mxu0 0.0
    %3818 = vmatpush2.msra.mxu0 0.0
    %3819 = vmatprep.subr.mxu0 0.0
    %3820 = vmatpush2.msra.mxu0 0.0
    %3821 = vmatprep.subr.mxu0 0.0
    %3822 = vmatpush2.msra.mxu0 0.0
    %3823 = vmatprep.mubr.f32.mxu0 0.0
    %3824 = vmatmul.mubr.f32.gmra.mxu0 %v3757
    %v3825 = vpop.f32.mrf.mxu0
    %v3826 = vadd.f32 0.0, %v3825
    %v3827 = vpop.f32.mrf.mxu0
    %v3828 = vadd.f32 0.0, %v3827
    %3829 = vdwg.mxu0
    %v3830 = vadd.f32 %v3491, %v3826
    %v3831 = vxor.u32 %v3830, 2147483648
    %v3832 = vmul.f32 %v3831, 1.442695
    %v3833 = vpow.pop %v3832
    %v3834 = vadd.f32 %v3833, 1.0
    %v3835 = vrcp.pop %v3834
    %v3836 = vmul.f32 1.0, %v3835
    %v3837 = vadd.f32 %v3828, %v3554
    %v3838 = vmul.f32 %v3836, %v3837
    %v3839 = vadd.f32 %v3492, %v3838
    %v3840 = vtanh.pop %v3839
    %v3841 = vsub.f32 1.0, %v3836
    %3843 = vrot.lane.b32.xlu0 %v3840, 64
    %v3844 = vpop.permute.xlu0 %3843
    %v3846 = vmul.f32 %v3841, %v3844
    %v3847 = vmul.f32 %v3836, %v3753
    %v3848 = vadd.f32 %v3846, %v3847
    %3850 = vrot.lane.b32.xlu0 %v3848, 64
    %v3851 = vpop.permute.xlu0 %3850
    %v3852 = vsel %vm329, %v3851, 0
    %3854 = vmatprep.subr.mxu0 0.0
    %3855 = vmatpush1.msra.mxu0 0.0
    %3856 = vmatprep.subr.mxu0 0.0
    %3857 = vmatpush1.msra.mxu0 0.0
    %3858 = vmatprep.subr.mxu0 0.0
    %3859 = vmatpush1.msra.mxu0 0.0
    %3860 = vmatprep.subr.mxu0 0.0
    %3861 = vmatpush1.msra.mxu0 0.0
    %3862 = vmatprep.subr.mxu0 0.0
    %3863 = vmatpush1.msra.mxu0 0.0
    %3864 = vmatprep.subr.mxu0 0.0
    %3865 = vmatpush1.msra.mxu0 0.0
    %3866 = vmatprep.subr.mxu0 0.0
    %3867 = vmatpush1.msra.mxu0 0.0
    %3868 = vmatprep.subr.mxu0 0.0
    %3869 = vmatpush1.msra.mxu0 0.0
    %3870 = vmatprep.subr.mxu0 %v61
    %3871 = vmatpush1.msra.mxu0 %v60
    %3872 = vmatprep.subr.mxu0 %v59
    %3873 = vmatpush1.msra.mxu0 %v58
    %3874 = vmatprep.subr.mxu0 %v57
    %3875 = vmatpush1.msra.mxu0 %v56
    %3876 = vmatprep.subr.mxu0 %v55
    %3877 = vmatpush1.msra.mxu0 %v54
    %3878 = vmatprep.subr.mxu0 %v53
    %3879 = vmatpush1.msra.mxu0 %v52
    %3880 = vmatprep.subr.mxu0 %v51
    %3881 = vmatpush1.msra.mxu0 %v50
    %3882 = vmatprep.subr.mxu0 %v49
    %3883 = vmatpush1.msra.mxu0 %v48
    %3884 = vmatprep.subr.mxu0 %v47
    %3885 = vmatpush1.msra.mxu0 %v46
    %3886 = vmatprep.subr.mxu0 0.0
    %3887 = vmatpush2.msra.mxu0 0.0
    %3888 = vmatprep.subr.mxu0 0.0
    %3889 = vmatpush2.msra.mxu0 0.0
    %3890 = vmatprep.subr.mxu0 0.0
    %3891 = vmatpush2.msra.mxu0 0.0
    %3892 = vmatprep.subr.mxu0 0.0
    %3893 = vmatpush2.msra.mxu0 0.0
    %3894 = vmatprep.subr.mxu0 0.0
    %3895 = vmatpush2.msra.mxu0 0.0
    %3896 = vmatprep.subr.mxu0 0.0
    %3897 = vmatpush2.msra.mxu0 0.0
    %3898 = vmatprep.subr.mxu0 0.0
    %3899 = vmatpush2.msra.mxu0 0.0
    %3900 = vmatprep.subr.mxu0 0.0
    %3901 = vmatpush2.msra.mxu0 0.0
    %3902 = vmatprep.subr.mxu0 0.0
    %3903 = vmatpush2.msra.mxu0 0.0
    %3904 = vmatprep.subr.mxu0 0.0
    %3905 = vmatpush2.msra.mxu0 0.0
    %3906 = vmatprep.subr.mxu0 0.0
    %3907 = vmatpush2.msra.mxu0 0.0
    %3908 = vmatprep.subr.mxu0 0.0
    %3909 = vmatpush2.msra.mxu0 0.0
    %3910 = vmatprep.subr.mxu0 0.0
    %3911 = vmatpush2.msra.mxu0 0.0
    %3912 = vmatprep.subr.mxu0 0.0
    %3913 = vmatpush2.msra.mxu0 0.0
    %3914 = vmatprep.subr.mxu0 0.0
    %3915 = vmatpush2.msra.mxu0 0.0
    %3916 = vmatprep.subr.mxu0 0.0
    %3917 = vmatpush2.msra.mxu0 0.0
    %3918 = vmatprep.mubr.f32.mxu0 0.0
    %3919 = vmatmul.mubr.f32.gmra.mxu0 %v3852
    %v3920 = vpop.f32.mrf.mxu0
    %v3921 = vadd.f32 0.0, %v3920
    %v3922 = vpop.f32.mrf.mxu0
    %v3923 = vadd.f32 0.0, %v3922
    %3924 = vdwg.mxu0
    %v3925 = vadd.f32 %v3504, %v3921
    %v3926 = vxor.u32 %v3925, 2147483648
    %v3927 = vmul.f32 %v3926, 1.442695
    %v3928 = vpow.pop %v3927
    %v3929 = vadd.f32 %v3928, 1.0
    %v3930 = vrcp.pop %v3929
    %v3931 = vmul.f32 1.0, %v3930
    %v3932 = vadd.f32 %v3923, %v3554
    %v3933 = vmul.f32 %v3931, %v3932
    %v3934 = vadd.f32 %v3505, %v3933
    %v3935 = vtanh.pop %v3934
    %v3936 = vsub.f32 1.0, %v3931
    %3938 = vrot.lane.b32.xlu0 %v3935, 64
    %v3939 = vpop.permute.xlu0 %3938
    %v3941 = vmul.f32 %v3936, %v3939
    %v3942 = vmul.f32 %v3931, %v3848
    %v3943 = vadd.f32 %v3941, %v3942
    %3945 = vrot.lane.b32.xlu0 %v3943, 64
    %v3946 = vpop.permute.xlu0 %3945
    %v3947 = vsel %vm329, %v3946, 0
    %3949 = vmatprep.subr.mxu0 0.0
    %3950 = vmatpush1.msra.mxu0 0.0
    %3951 = vmatprep.subr.mxu0 0.0
    %3952 = vmatpush1.msra.mxu0 0.0
    %3953 = vmatprep.subr.mxu0 0.0
    %3954 = vmatpush1.msra.mxu0 0.0
    %3955 = vmatprep.subr.mxu0 0.0
    %3956 = vmatpush1.msra.mxu0 0.0
    %3957 = vmatprep.subr.mxu0 0.0
    %3958 = vmatpush1.msra.mxu0 0.0
    %3959 = vmatprep.subr.mxu0 0.0
    %3960 = vmatpush1.msra.mxu0 0.0
    %3961 = vmatprep.subr.mxu0 0.0
    %3962 = vmatpush1.msra.mxu0 0.0
    %3963 = vmatprep.subr.mxu0 0.0
    %3964 = vmatpush1.msra.mxu0 0.0
    %3965 = vmatprep.subr.mxu0 %v61
    %3966 = vmatpush1.msra.mxu0 %v60
    %3967 = vmatprep.subr.mxu0 %v59
    %3968 = vmatpush1.msra.mxu0 %v58
    %3969 = vmatprep.subr.mxu0 %v57
    %3970 = vmatpush1.msra.mxu0 %v56
    %3971 = vmatprep.subr.mxu0 %v55
    %3972 = vmatpush1.msra.mxu0 %v54
    %3973 = vmatprep.subr.mxu0 %v53
    %3974 = vmatpush1.msra.mxu0 %v52
    %3975 = vmatprep.subr.mxu0 %v51
    %3976 = vmatpush1.msra.mxu0 %v50
    %3977 = vmatprep.subr.mxu0 %v49
    %3978 = vmatpush1.msra.mxu0 %v48
    %3979 = vmatprep.subr.mxu0 %v47
    %3980 = vmatpush1.msra.mxu0 %v46
    %3981 = vmatprep.subr.mxu0 0.0
    %3982 = vmatpush2.msra.mxu0 0.0
    %3983 = vmatprep.subr.mxu0 0.0
    %3984 = vmatpush2.msra.mxu0 0.0
    %3985 = vmatprep.subr.mxu0 0.0
    %3986 = vmatpush2.msra.mxu0 0.0
    %3987 = vmatprep.subr.mxu0 0.0
    %3988 = vmatpush2.msra.mxu0 0.0
    %3989 = vmatprep.subr.mxu0 0.0
    %3990 = vmatpush2.msra.mxu0 0.0
    %3991 = vmatprep.subr.mxu0 0.0
    %3992 = vmatpush2.msra.mxu0 0.0
    %3993 = vmatprep.subr.mxu0 0.0
    %3994 = vmatpush2.msra.mxu0 0.0
    %3995 = vmatprep.subr.mxu0 0.0
    %3996 = vmatpush2.msra.mxu0 0.0
    %3997 = vmatprep.subr.mxu0 0.0
    %3998 = vmatpush2.msra.mxu0 0.0
    %3999 = vmatprep.subr.mxu0 0.0
    %4000 = vmatpush2.msra.mxu0 0.0
    %4001 = vmatprep.subr.mxu0 0.0
    %4002 = vmatpush2.msra.mxu0 0.0
    %4003 = vmatprep.subr.mxu0 0.0
    %4004 = vmatpush2.msra.mxu0 0.0
    %4005 = vmatprep.subr.mxu0 0.0
    %4006 = vmatpush2.msra.mxu0 0.0
    %4007 = vmatprep.subr.mxu0 0.0
    %4008 = vmatpush2.msra.mxu0 0.0
    %4009 = vmatprep.subr.mxu0 0.0
    %4010 = vmatpush2.msra.mxu0 0.0
    %4011 = vmatprep.subr.mxu0 0.0
    %4012 = vmatpush2.msra.mxu0 0.0
    %4013 = vmatprep.mubr.f32.mxu0 0.0
    %4014 = vmatmul.mubr.f32.gmra.mxu0 %v3947
    %v4015 = vpop.f32.mrf.mxu0
    %v4016 = vadd.f32 0.0, %v4015
    %v4017 = vpop.f32.mrf.mxu0
    %v4018 = vadd.f32 0.0, %v4017
    %4019 = vdwg.mxu0
    %v4020 = vadd.f32 %v3517, %v4016
    %v4021 = vxor.u32 %v4020, 2147483648
    %v4022 = vmul.f32 %v4021, 1.442695
    %v4023 = vpow.pop %v4022
    %v4024 = vadd.f32 %v4023, 1.0
    %v4025 = vrcp.pop %v4024
    %v4026 = vmul.f32 1.0, %v4025
    %v4027 = vadd.f32 %v4018, %v3554
    %v4028 = vmul.f32 %v4026, %v4027
    %v4029 = vadd.f32 %v3518, %v4028
    %v4030 = vtanh.pop %v4029
    %v4031 = vsub.f32 1.0, %v4026
    %4033 = vrot.lane.b32.xlu0 %v4030, 64
    %v4034 = vpop.permute.xlu0 %4033
    %v4036 = vmul.f32 %v4031, %v4034
    %v4037 = vmul.f32 %v4026, %v3943
    %v4038 = vadd.f32 %v4036, %v4037
    %4040 = vrot.lane.b32.xlu0 %v4038, 64
    %v4041 = vpop.permute.xlu0 %4040
    %v4042 = vsel %vm329, %v4041, 0
    %4044 = vmatprep.subr.mxu0 0.0
    %4045 = vmatpush1.msra.mxu0 0.0
    %4046 = vmatprep.subr.mxu0 0.0
    %4047 = vmatpush1.msra.mxu0 0.0
    %4048 = vmatprep.subr.mxu0 0.0
    %4049 = vmatpush1.msra.mxu0 0.0
    %4050 = vmatprep.subr.mxu0 0.0
    %4051 = vmatpush1.msra.mxu0 0.0
    %4052 = vmatprep.subr.mxu0 0.0
    %4053 = vmatpush1.msra.mxu0 0.0
    %4054 = vmatprep.subr.mxu0 0.0
    %4055 = vmatpush1.msra.mxu0 0.0
    %4056 = vmatprep.subr.mxu0 0.0
    %4057 = vmatpush1.msra.mxu0 0.0
    %4058 = vmatprep.subr.mxu0 0.0
    %4059 = vmatpush1.msra.mxu0 0.0
    %4060 = vmatprep.subr.mxu0 %v61
    %4061 = vmatpush1.msra.mxu0 %v60
    %4062 = vmatprep.subr.mxu0 %v59
    %4063 = vmatpush1.msra.mxu0 %v58
    %4064 = vmatprep.subr.mxu0 %v57
    %4065 = vmatpush1.msra.mxu0 %v56
    %4066 = vmatprep.subr.mxu0 %v55
    %4067 = vmatpush1.msra.mxu0 %v54
    %4068 = vmatprep.subr.mxu0 %v53
    %4069 = vmatpush1.msra.mxu0 %v52
    %4070 = vmatprep.subr.mxu0 %v51
    %4071 = vmatpush1.msra.mxu0 %v50
    %4072 = vmatprep.subr.mxu0 %v49
    %4073 = vmatpush1.msra.mxu0 %v48
    %4074 = vmatprep.subr.mxu0 %v47
    %4075 = vmatpush1.msra.mxu0 %v46
    %4076 = vmatprep.subr.mxu0 0.0
    %4077 = vmatpush2.msra.mxu0 0.0
    %4078 = vmatprep.subr.mxu0 0.0
    %4079 = vmatpush2.msra.mxu0 0.0
    %4080 = vmatprep.subr.mxu0 0.0
    %4081 = vmatpush2.msra.mxu0 0.0
    %4082 = vmatprep.subr.mxu0 0.0
    %4083 = vmatpush2.msra.mxu0 0.0
    %4084 = vmatprep.subr.mxu0 0.0
    %4085 = vmatpush2.msra.mxu0 0.0
    %4086 = vmatprep.subr.mxu0 0.0
    %4087 = vmatpush2.msra.mxu0 0.0
    %4088 = vmatprep.subr.mxu0 0.0
    %4089 = vmatpush2.msra.mxu0 0.0
    %4090 = vmatprep.subr.mxu0 0.0
    %4091 = vmatpush2.msra.mxu0 0.0
    %4092 = vmatprep.subr.mxu0 0.0
    %4093 = vmatpush2.msra.mxu0 0.0
    %4094 = vmatprep.subr.mxu0 0.0
    %4095 = vmatpush2.msra.mxu0 0.0
    %4096 = vmatprep.subr.mxu0 0.0
    %4097 = vmatpush2.msra.mxu0 0.0
    %4098 = vmatprep.subr.mxu0 0.0
    %4099 = vmatpush2.msra.mxu0 0.0
    %4100 = vmatprep.subr.mxu0 0.0
    %4101 = vmatpush2.msra.mxu0 0.0
    %4102 = vmatprep.subr.mxu0 0.0
    %4103 = vmatpush2.msra.mxu0 0.0
    %4104 = vmatprep.subr.mxu0 0.0
    %4105 = vmatpush2.msra.mxu0 0.0
    %4106 = vmatprep.subr.mxu0 0.0
    %4107 = vmatpush2.msra.mxu0 0.0
    %4108 = vmatprep.mubr.f32.mxu0 0.0
    %4109 = vmatmul.mubr.f32.gmra.mxu0 %v4042
    %v4110 = vpop.f32.mrf.mxu0
    %v4111 = vadd.f32 0.0, %v4110
    %v4112 = vpop.f32.mrf.mxu0
    %v4113 = vadd.f32 0.0, %v4112
    %4114 = vdwg.mxu0
    %v4115 = vadd.f32 %v3530, %v4111
    %v4116 = vxor.u32 %v4115, 2147483648
    %v4117 = vmul.f32 %v4116, 1.442695
    %v4118 = vpow.pop %v4117
    %v4119 = vadd.f32 %v4118, 1.0
    %v4120 = vrcp.pop %v4119
    %v4121 = vmul.f32 1.0, %v4120
    %v4122 = vadd.f32 %v4113, %v3554
    %v4123 = vmul.f32 %v4121, %v4122
    %v4124 = vadd.f32 %v3531, %v4123
    %v4125 = vtanh.pop %v4124
    %v4126 = vsub.f32 1.0, %v4121
    %4128 = vrot.lane.b32.xlu0 %v4125, 64
    %v4129 = vpop.permute.xlu0 %4128
    %v4131 = vmul.f32 %v4126, %v4129
    %v4132 = vmul.f32 %v4121, %v4038
    %v4133 = vadd.f32 %v4131, %v4132
    %4135 = vrot.lane.b32.xlu0 %v4133, 64
    %v4136 = vpop.permute.xlu0 %4135
    %v4137 = vsel %vm329, %v4136, 0
    %4139 = vmatprep.subr.mxu0 0.0
    %4140 = vmatpush1.msra.mxu0 0.0
    %4141 = vmatprep.subr.mxu0 0.0
    %4142 = vmatpush1.msra.mxu0 0.0
    %4143 = vmatprep.subr.mxu0 0.0
    %4144 = vmatpush1.msra.mxu0 0.0
    %4145 = vmatprep.subr.mxu0 0.0
    %4146 = vmatpush1.msra.mxu0 0.0
    %4147 = vmatprep.subr.mxu0 0.0
    %4148 = vmatpush1.msra.mxu0 0.0
    %4149 = vmatprep.subr.mxu0 0.0
    %4150 = vmatpush1.msra.mxu0 0.0
    %4151 = vmatprep.subr.mxu0 0.0
    %4152 = vmatpush1.msra.mxu0 0.0
    %4153 = vmatprep.subr.mxu0 0.0
    %4154 = vmatpush1.msra.mxu0 0.0
    %4155 = vmatprep.subr.mxu0 %v61
    %4156 = vmatpush1.msra.mxu0 %v60
    %4157 = vmatprep.subr.mxu0 %v59
    %4158 = vmatpush1.msra.mxu0 %v58
    %4159 = vmatprep.subr.mxu0 %v57
    %4160 = vmatpush1.msra.mxu0 %v56
    %4161 = vmatprep.subr.mxu0 %v55
    %4162 = vmatpush1.msra.mxu0 %v54
    %4163 = vmatprep.subr.mxu0 %v53
    %4164 = vmatpush1.msra.mxu0 %v52
    %4165 = vmatprep.subr.mxu0 %v51
    %4166 = vmatpush1.msra.mxu0 %v50
    %4167 = vmatprep.subr.mxu0 %v49
    %4168 = vmatpush1.msra.mxu0 %v48
    %4169 = vmatprep.subr.mxu0 %v47
    %4170 = vmatpush1.msra.mxu0 %v46
    %4171 = vmatprep.subr.mxu0 0.0
    %4172 = vmatpush2.msra.mxu0 0.0
    %4173 = vmatprep.subr.mxu0 0.0
    %4174 = vmatpush2.msra.mxu0 0.0
    %4175 = vmatprep.subr.mxu0 0.0
    %4176 = vmatpush2.msra.mxu0 0.0
    %4177 = vmatprep.subr.mxu0 0.0
    %4178 = vmatpush2.msra.mxu0 0.0
    %4179 = vmatprep.subr.mxu0 0.0
    %4180 = vmatpush2.msra.mxu0 0.0
    %4181 = vmatprep.subr.mxu0 0.0
    %4182 = vmatpush2.msra.mxu0 0.0
    %4183 = vmatprep.subr.mxu0 0.0
    %4184 = vmatpush2.msra.mxu0 0.0
    %4185 = vmatprep.subr.mxu0 0.0
    %4186 = vmatpush2.msra.mxu0 0.0
    %4187 = vmatprep.subr.mxu0 0.0
    %4188 = vmatpush2.msra.mxu0 0.0
    %4189 = vmatprep.subr.mxu0 0.0
    %4190 = vmatpush2.msra.mxu0 0.0
    %4191 = vmatprep.subr.mxu0 0.0
    %4192 = vmatpush2.msra.mxu0 0.0
    %4193 = vmatprep.subr.mxu0 0.0
    %4194 = vmatpush2.msra.mxu0 0.0
    %4195 = vmatprep.subr.mxu0 0.0
    %4196 = vmatpush2.msra.mxu0 0.0
    %4197 = vmatprep.subr.mxu0 0.0
    %4198 = vmatpush2.msra.mxu0 0.0
    %4199 = vmatprep.subr.mxu0 0.0
    %4200 = vmatpush2.msra.mxu0 0.0
    %4201 = vmatprep.subr.mxu0 0.0
    %4202 = vmatpush2.msra.mxu0 0.0
    %4203 = vmatprep.mubr.f32.mxu0 0.0
    %4204 = vmatmul.mubr.f32.gmra.mxu0 %v4137
    %v4205 = vpop.f32.mrf.mxu0
    %v4206 = vadd.f32 0.0, %v4205
    %v4207 = vpop.f32.mrf.mxu0
    %v4208 = vadd.f32 0.0, %v4207
    %4209 = vdwg.mxu0
    %v4210 = vadd.f32 %v3543, %v4206
    %v4211 = vxor.u32 %v4210, 2147483648
    %v4212 = vmul.f32 %v4211, 1.442695
    %v4213 = vpow.pop %v4212
    %v4214 = vadd.f32 %v4213, 1.0
    %v4215 = vrcp.pop %v4214
    %v4216 = vmul.f32 1.0, %v4215
    %v4217 = vadd.f32 %v4208, %v3554
    %v4218 = vmul.f32 %v4216, %v4217
    %v4219 = vadd.f32 %v3544, %v4218
    %v4220 = vtanh.pop %v4219
    %v4221 = vsub.f32 1.0, %v4216
    %4223 = vrot.lane.b32.xlu0 %v4220, 64
    %v4224 = vpop.permute.xlu0 %4223
    %v4226 = vmul.f32 %v4221, %v4224
    %v4227 = vmul.f32 %v4216, %v4133
    %v4228 = vadd.f32 %v4226, %v4227
    %4230 = vrot.lane.b32.xlu0 %v4228, 64
    %v4231 = vpop.permute.xlu0 %4230
    %v4232 = vsel %vm329, %v4231, 0
    %4234 = vmatprep.subr.mxu0 0.0
    %4235 = vmatpush1.msra.mxu0 0.0
    %4236 = vmatprep.subr.mxu0 0.0
    %4237 = vmatpush1.msra.mxu0 0.0
    %4238 = vmatprep.subr.mxu0 0.0
    %4239 = vmatpush1.msra.mxu0 0.0
    %4240 = vmatprep.subr.mxu0 0.0
    %4241 = vmatpush1.msra.mxu0 0.0
    %4242 = vmatprep.subr.mxu0 0.0
    %4243 = vmatpush1.msra.mxu0 0.0
    %4244 = vmatprep.subr.mxu0 0.0
    %4245 = vmatpush1.msra.mxu0 0.0
    %4246 = vmatprep.subr.mxu0 0.0
    %4247 = vmatpush1.msra.mxu0 0.0
    %4248 = vmatprep.subr.mxu0 0.0
    %4249 = vmatpush1.msra.mxu0 0.0
    %4250 = vmatprep.subr.mxu0 0.0
    %4251 = vmatpush1.msra.mxu0 %v127
    %4252 = vmatprep.subr.mxu0 0.0
    %4253 = vmatpush1.msra.mxu0 %v126
    %4254 = vmatprep.subr.mxu0 0.0
    %4255 = vmatpush1.msra.mxu0 %v125
    %4256 = vmatprep.subr.mxu0 0.0
    %4257 = vmatpush1.msra.mxu0 %v124
    %4258 = vmatprep.subr.mxu0 0.0
    %4259 = vmatpush1.msra.mxu0 %v123
    %4260 = vmatprep.subr.mxu0 0.0
    %4261 = vmatpush1.msra.mxu0 %v122
    %4262 = vmatprep.subr.mxu0 0.0
    %4263 = vmatpush1.msra.mxu0 %v121
    %4264 = vmatprep.subr.mxu0 0.0
    %4265 = vmatpush1.msra.mxu0 %v120
    %4266 = vmatprep.subr.mxu0 0.0
    %4267 = vmatpush2.msra.mxu0 0.0
    %4268 = vmatprep.subr.mxu0 0.0
    %4269 = vmatpush2.msra.mxu0 0.0
    %4270 = vmatprep.subr.mxu0 0.0
    %4271 = vmatpush2.msra.mxu0 0.0
    %4272 = vmatprep.subr.mxu0 0.0
    %4273 = vmatpush2.msra.mxu0 0.0
    %4274 = vmatprep.subr.mxu0 0.0
    %4275 = vmatpush2.msra.mxu0 0.0
    %4276 = vmatprep.subr.mxu0 0.0
    %4277 = vmatpush2.msra.mxu0 0.0
    %4278 = vmatprep.subr.mxu0 0.0
    %4279 = vmatpush2.msra.mxu0 0.0
    %4280 = vmatprep.subr.mxu0 0.0
    %4281 = vmatpush2.msra.mxu0 0.0
    %4282 = vmatprep.subr.mxu0 0.0
    %4283 = vmatpush2.msra.mxu0 0.0
    %4284 = vmatprep.subr.mxu0 0.0
    %4285 = vmatpush2.msra.mxu0 0.0
    %4286 = vmatprep.subr.mxu0 0.0
    %4287 = vmatpush2.msra.mxu0 0.0
    %4288 = vmatprep.subr.mxu0 0.0
    %4289 = vmatpush2.msra.mxu0 0.0
    %4290 = vmatprep.subr.mxu0 0.0
    %4291 = vmatpush2.msra.mxu0 0.0
    %4292 = vmatprep.subr.mxu0 0.0
    %4293 = vmatpush2.msra.mxu0 0.0
    %4294 = vmatprep.subr.mxu0 0.0
    %4295 = vmatpush2.msra.mxu0 0.0
    %4296 = vmatprep.subr.mxu0 0.0
    %4297 = vmatpush2.msra.mxu0 0.0
    %4298 = vmatprep.mubr.f32.mxu0 0.0
    %4299 = vmatmul.mubr.f32.gmra.mxu0 %v4232
    %v4300 = vpop.f32.mrf.mxu0
    %v4301 = vadd.f32 0.0, %v4300
    %v4302 = vpop.f32.mrf.mxu0
    %4303 = vdwg.mxu0
    %v4304 = vsel %vm329, %v3289, 0
    %4306 = vmatprep.subr.mxu0 0.0
    %4307 = vmatpush1.msra.mxu0 0.0
    %4308 = vmatprep.subr.mxu0 0.0
    %4309 = vmatpush1.msra.mxu0 0.0
    %4310 = vmatprep.subr.mxu0 0.0
    %4311 = vmatpush1.msra.mxu0 0.0
    %4312 = vmatprep.subr.mxu0 0.0
    %4313 = vmatpush1.msra.mxu0 0.0
    %4314 = vmatprep.subr.mxu0 0.0
    %4315 = vmatpush1.msra.mxu0 0.0
    %4316 = vmatprep.subr.mxu0 0.0
    %4317 = vmatpush1.msra.mxu0 0.0
    %4318 = vmatprep.subr.mxu0 0.0
    %4319 = vmatpush1.msra.mxu0 0.0
    %4320 = vmatprep.subr.mxu0 0.0
    %4321 = vmatpush1.msra.mxu0 0.0
    %4322 = vmatprep.subr.mxu0 0.0
    %4323 = vmatpush1.msra.mxu0 %v119
    %4324 = vmatprep.subr.mxu0 0.0
    %4325 = vmatpush1.msra.mxu0 %v118
    %4326 = vmatprep.subr.mxu0 0.0
    %4327 = vmatpush1.msra.mxu0 %v117
    %4328 = vmatprep.subr.mxu0 0.0
    %4329 = vmatpush1.msra.mxu0 %v116
    %4330 = vmatprep.subr.mxu0 0.0
    %4331 = vmatpush1.msra.mxu0 %v115
    %4332 = vmatprep.subr.mxu0 0.0
    %4333 = vmatpush1.msra.mxu0 %v114
    %4334 = vmatprep.subr.mxu0 0.0
    %4335 = vmatpush1.msra.mxu0 %v113
    %4336 = vmatprep.subr.mxu0 0.0
    %4337 = vmatpush1.msra.mxu0 %v112
    %4338 = vmatprep.subr.mxu0 0.0
    %4339 = vmatpush2.msra.mxu0 0.0
    %4340 = vmatprep.subr.mxu0 0.0
    %4341 = vmatpush2.msra.mxu0 0.0
    %4342 = vmatprep.subr.mxu0 0.0
    %4343 = vmatpush2.msra.mxu0 0.0
    %4344 = vmatprep.subr.mxu0 0.0
    %4345 = vmatpush2.msra.mxu0 0.0
    %4346 = vmatprep.subr.mxu0 0.0
    %4347 = vmatpush2.msra.mxu0 0.0
    %4348 = vmatprep.subr.mxu0 0.0
    %4349 = vmatpush2.msra.mxu0 0.0
    %4350 = vmatprep.subr.mxu0 0.0
    %4351 = vmatpush2.msra.mxu0 0.0
    %4352 = vmatprep.subr.mxu0 0.0
    %4353 = vmatpush2.msra.mxu0 0.0
    %4354 = vmatprep.subr.mxu0 0.0
    %4355 = vmatpush2.msra.mxu0 0.0
    %4356 = vmatprep.subr.mxu0 0.0
    %4357 = vmatpush2.msra.mxu0 0.0
    %4358 = vmatprep.subr.mxu0 0.0
    %4359 = vmatpush2.msra.mxu0 0.0
    %4360 = vmatprep.subr.mxu0 0.0
    %4361 = vmatpush2.msra.mxu0 0.0
    %4362 = vmatprep.subr.mxu0 0.0
    %4363 = vmatpush2.msra.mxu0 0.0
    %4364 = vmatprep.subr.mxu0 0.0
    %4365 = vmatpush2.msra.mxu0 0.0
    %4366 = vmatprep.subr.mxu0 0.0
    %4367 = vmatpush2.msra.mxu0 0.0
    %4368 = vmatprep.subr.mxu0 0.0
    %4369 = vmatpush2.msra.mxu0 0.0
    %4370 = vmatprep.mubr.f32.mxu0 0.0
    %4371 = vmatmul.mubr.f32.gmra.mxu0 %v4304
    %v4372 = vpop.f32.mrf.mxu0
    %v4373 = vadd.f32 %v4301, %v4372
    %v4374 = vpop.f32.mrf.mxu0
    %4375 = vdwg.mxu0
    %v4376 = vlaneseq
    %v4377 = vshrl.u32 %v4376, 7
    %v4378 = vsub.s32 4, %v4377
    %v4379 = vrot.slane %v146, %v4378
    %v4380 = vadd.f32 %v4373, %v4379
    %v4381 = vmax.f32 %v4380, 0.0
    %vm4382 = vcmp.ne.f32.partialorder %v4380, %v4380
    %v4383 = vadd.f32 %v4380, 0.0
    %v4384 = vand.u32 2147483647, %v4380
    %v4385 = vsub.f32 0.0, %v4384
    %v4386 = vmul.f32 %v4385, 1.442695
    %v4387 = vpow.pop %v4386
    %v4388 = vadd.f32 %v4387, 1.0
    %v4389 = vlog2.pop %v4388
    %v4390 = vmul.f32 %v4389, 0.6931472
    %v4391 = vmul.f32 -0.5, %v4387
    %v4392 = vadd.f32 %v4391, 1.0
    %v4393 = vmul.f32 %v4392, %v4387
    %v4394 = vand.u32 2147483647, %v4387
    %vm4395 = vcmp.lt.f32.partialorder %v4394, 0.0004427343
    %v4396 = vsel %vm4395, %v4393, %v4390
    %v4397 = vadd.f32 %v4381, %v4396
    %v4398 = vsel %vm4382, %v4383, %v4397
    %vm4399 = vcmask 123904
    %4400 = vst.msk [vmem:[#allocation2] sm:$0x3] %vm4399, %v4380
    %4401 = vst.msk [vmem:[#allocation4] sm:$0x3] %vm4399, %v4380
    %4403 = vrot.lane.b32.xlu0 %v4398, 112
    %v4404 = vpop.permute.xlu0 %4403
    %4406 = vst.msk [vmem:[#allocation6] sm:$0x3] %vm4399, %v4404
    %v4407 = vlaneseq
    %v4408 = vshrl.u32 %v4407, 7
    %v4409 = vsub.s32 5, %v4408
    %v4410 = vrot.slane %v146, %v4409
    %v4411 = vlaneseq
    %v4412 = vshrl.u32 %v4411, 7
    %v4413 = vsub.s32 5, %v4412
    %v4414 = vrot.slane %v147, %v4413
    %v4415 = vlaneseq
    %v4416 = vshrl.u32 %v4415, 7
    %v4417 = vsub.s32 5, %v4416
    %v4418 = vrot.slane %v148, %v4417
    %vm4419 = vcmask 130048
    %v4421 = vsel %vm4419, %v4380, 0
    %4423 = vmatprep.subr.mxu0 0.0
    %4424 = vmatpush1.msra.mxu0 0.0
    %4425 = vmatprep.subr.mxu0 0.0
    %4426 = vmatpush1.msra.mxu0 0.0
    %4427 = vmatprep.subr.mxu0 0.0
    %4428 = vmatpush1.msra.mxu0 0.0
    %4429 = vmatprep.subr.mxu0 0.0
    %4430 = vmatpush1.msra.mxu0 0.0
    %4431 = vmatprep.subr.mxu0 0.0
    %4432 = vmatpush1.msra.mxu0 0.0
    %4433 = vmatprep.subr.mxu0 0.0
    %4434 = vmatpush1.msra.mxu0 0.0
    %4435 = vmatprep.subr.mxu0 0.0
    %4436 = vmatpush1.msra.mxu0 0.0
    %4437 = vmatprep.subr.mxu0 0.0
    %4438 = vmatpush1.msra.mxu0 0.0
    %4439 = vmatprep.subr.mxu0 0.0
    %4440 = vmatpush1.msra.mxu0 0.0
    %4441 = vmatprep.subr.mxu0 0.0
    %4442 = vmatpush1.msra.mxu0 0.0
    %4443 = vmatprep.subr.mxu0 0.0
    %4444 = vmatpush1.msra.mxu0 0.0
    %4445 = vmatprep.subr.mxu0 0.0
    %4446 = vmatpush1.msra.mxu0 0.0
    %4447 = vmatprep.subr.mxu0 0.0
    %4448 = vmatpush1.msra.mxu0 0.0
    %4449 = vmatprep.subr.mxu0 0.0
    %4450 = vmatpush1.msra.mxu0 0.0
    %4451 = vmatprep.subr.mxu0 %v132
    %4452 = vmatpush1.msra.mxu0 %v131
    %4453 = vmatprep.subr.mxu0 %v129
    %4454 = vmatpush1.msra.mxu0 %v128
    %4455 = vmatprep.subr.mxu0 0.0
    %4456 = vmatpush2.msra.mxu0 0.0
    %4457 = vmatprep.subr.mxu0 0.0
    %4458 = vmatpush2.msra.mxu0 0.0
    %4459 = vmatprep.subr.mxu0 0.0
    %4460 = vmatpush2.msra.mxu0 0.0
    %4461 = vmatprep.subr.mxu0 0.0
    %4462 = vmatpush2.msra.mxu0 0.0
    %4463 = vmatprep.subr.mxu0 0.0
    %4464 = vmatpush2.msra.mxu0 0.0
    %4465 = vmatprep.subr.mxu0 0.0
    %4466 = vmatpush2.msra.mxu0 0.0
    %4467 = vmatprep.subr.mxu0 0.0
    %4468 = vmatpush2.msra.mxu0 0.0
    %4469 = vmatprep.subr.mxu0 0.0
    %4470 = vmatpush2.msra.mxu0 0.0
    %4471 = vmatprep.subr.mxu0 0.0
    %4472 = vmatpush2.msra.mxu0 0.0
    %4473 = vmatprep.subr.mxu0 0.0
    %4474 = vmatpush2.msra.mxu0 0.0
    %4475 = vmatprep.subr.mxu0 0.0
    %4476 = vmatpush2.msra.mxu0 0.0
    %4477 = vmatprep.subr.mxu0 0.0
    %4478 = vmatpush2.msra.mxu0 0.0
    %4479 = vmatprep.subr.mxu0 0.0
    %4480 = vmatpush2.msra.mxu0 0.0
    %4481 = vmatprep.subr.mxu0 0.0
    %4482 = vmatpush2.msra.mxu0 0.0
    %4483 = vmatprep.subr.mxu0 0.0
    %4484 = vmatpush2.msra.mxu0 0.0
    %4485 = vmatprep.subr.mxu0 0.0
    %4486 = vmatpush2.msra.mxu0 0.0
    %4487 = vmatprep.mubr.f32.mxu0 0.0
    %4488 = vmatmul.mubr.f32.gmra.mxu0 %v4421
    %v4489 = vpop.f32.mrf.mxu0
    %v4490 = vadd.f32 %v4410, %v4489
    %v4491 = vpop.f32.mrf.mxu0
    %v4492 = vadd.f32 %v4414, %v4491
    %4493 = vdwg.mxu0
    %4494 = vmatprep.subr.mxu0 0.0
    %4495 = vmatpush1.msra.mxu0 0.0
    %4496 = vmatprep.subr.mxu0 0.0
    %4497 = vmatpush1.msra.mxu0 0.0
    %4498 = vmatprep.subr.mxu0 0.0
    %4499 = vmatpush1.msra.mxu0 0.0
    %4500 = vmatprep.subr.mxu0 0.0
    %4501 = vmatpush1.msra.mxu0 0.0
    %4502 = vmatprep.subr.mxu0 0.0
    %4503 = vmatpush1.msra.mxu0 0.0
    %4504 = vmatprep.subr.mxu0 0.0
    %4505 = vmatpush1.msra.mxu0 0.0
    %4506 = vmatprep.subr.mxu0 0.0
    %4507 = vmatpush1.msra.mxu0 0.0
    %4508 = vmatprep.subr.mxu0 0.0
    %4509 = vmatpush1.msra.mxu0 0.0
    %4510 = vmatprep.subr.mxu0 0.0
    %4511 = vmatpush1.msra.mxu0 0.0
    %4512 = vmatprep.subr.mxu0 0.0
    %4513 = vmatpush1.msra.mxu0 0.0
    %4514 = vmatprep.subr.mxu0 0.0
    %4515 = vmatpush1.msra.mxu0 0.0
    %4516 = vmatprep.subr.mxu0 0.0
    %4517 = vmatpush1.msra.mxu0 0.0
    %4518 = vmatprep.subr.mxu0 0.0
    %4519 = vmatpush1.msra.mxu0 0.0
    %4520 = vmatprep.subr.mxu0 0.0
    %4521 = vmatpush1.msra.mxu0 0.0
    %4522 = vmatprep.subr.mxu0 0.0
    %4523 = vmatpush1.msra.mxu0 %v133
    %4524 = vmatprep.subr.mxu0 0.0
    %4525 = vmatpush1.msra.mxu0 %v130
    %4526 = vmatprep.subr.mxu0 0.0
    %4527 = vmatpush2.msra.mxu0 0.0
    %4528 = vmatprep.subr.mxu0 0.0
    %4529 = vmatpush2.msra.mxu0 0.0
    %4530 = vmatprep.subr.mxu0 0.0
    %4531 = vmatpush2.msra.mxu0 0.0
    %4532 = vmatprep.subr.mxu0 0.0
    %4533 = vmatpush2.msra.mxu0 0.0
    %4534 = vmatprep.subr.mxu0 0.0
    %4535 = vmatpush2.msra.mxu0 0.0
    %4536 = vmatprep.subr.mxu0 0.0
    %4537 = vmatpush2.msra.mxu0 0.0
    %4538 = vmatprep.subr.mxu0 0.0
    %4539 = vmatpush2.msra.mxu0 0.0
    %4540 = vmatprep.subr.mxu0 0.0
    %4541 = vmatpush2.msra.mxu0 0.0
    %4542 = vmatprep.subr.mxu0 0.0
    %4543 = vmatpush2.msra.mxu0 0.0
    %4544 = vmatprep.subr.mxu0 0.0
    %4545 = vmatpush2.msra.mxu0 0.0
    %4546 = vmatprep.subr.mxu0 0.0
    %4547 = vmatpush2.msra.mxu0 0.0
    %4548 = vmatprep.subr.mxu0 0.0
    %4549 = vmatpush2.msra.mxu0 0.0
    %4550 = vmatprep.subr.mxu0 0.0
    %4551 = vmatpush2.msra.mxu0 0.0
    %4552 = vmatprep.subr.mxu0 0.0
    %4553 = vmatpush2.msra.mxu0 0.0
    %4554 = vmatprep.subr.mxu0 0.0
    %4555 = vmatpush2.msra.mxu0 0.0
    %4556 = vmatprep.subr.mxu0 0.0
    %4557 = vmatpush2.msra.mxu0 0.0
    %4558 = vmatprep.mubr.f32.mxu0 0.0
    %4559 = vmatmul.mubr.f32.gmra.mxu0 %v4421
    %v4560 = vpop.f32.mrf.mxu0
    %v4561 = vadd.f32 %v4418, %v4560
    %v4562 = vpop.f32.mrf.mxu0
    %4563 = vdwg.mxu0
    %v4564 = vxor.u32 %v4490, 2147483648
    %v4565 = vmul.f32 %v4564, 1.442695
    %v4566 = vpow.pop %v4565
    %v4567 = vadd.f32 %v4566, 1.0
    %v4568 = vrcp.pop %v4567
    %v4569 = vmul.f32 1.0, %v4568
    %v4570 = vlaneseq
    %v4571 = vshrl.u32 %v4570, 7
    %v4572 = vsub.s32 6, %v4571
    %v4573 = vrot.slane %v146, %v4572
    %v4574 = vmul.f32 %v4569, %v4573
    %4576 = vrot.lane.b32.xlu0 %v4574, 64
    %v4577 = vpop.permute.xlu0 %4576
    %v4579 = vadd.f32 %v4490, %v4577
    %v4580 = vtanh.pop %v4579
    %v4581 = vsub.f32 1.0, %v4569
    %4583 = vrot.lane.b32.xlu0 %v4580, 96
    %v4584 = vpop.permute.xlu0 %4583
    %v4586 = vmul.f32 %v4581, %v4584
    %4588 = vrot.lane.b32.xlu0 %v4586, 96
    %v4589 = vpop.permute.xlu0 %4588
    %v4590 = vsel %vm1128, %v4589, 0
    %4592 = vmatprep.subr.mxu0 0.0
    %4593 = vmatpush1.msra.mxu0 0.0
    %4594 = vmatprep.subr.mxu0 0.0
    %4595 = vmatpush1.msra.mxu0 0.0
    %4596 = vmatprep.subr.mxu0 0.0
    %4597 = vmatpush1.msra.mxu0 0.0
    %4598 = vmatprep.subr.mxu0 0.0
    %4599 = vmatpush1.msra.mxu0 0.0
    %4600 = vmatprep.subr.mxu0 0.0
    %4601 = vmatpush1.msra.mxu0 0.0
    %4602 = vmatprep.subr.mxu0 0.0
    %4603 = vmatpush1.msra.mxu0 0.0
    %4604 = vmatprep.subr.mxu0 0.0
    %4605 = vmatpush1.msra.mxu0 0.0
    %4606 = vmatprep.subr.mxu0 0.0
    %4607 = vmatpush1.msra.mxu0 0.0
    %4608 = vmatprep.subr.mxu0 0.0
    %4609 = vmatpush1.msra.mxu0 0.0
    %4610 = vmatprep.subr.mxu0 0.0
    %4611 = vmatpush1.msra.mxu0 0.0
    %4612 = vmatprep.subr.mxu0 0.0
    %4613 = vmatpush1.msra.mxu0 0.0
    %4614 = vmatprep.subr.mxu0 0.0
    %4615 = vmatpush1.msra.mxu0 0.0
    %4616 = vmatprep.subr.mxu0 0.0
    %4617 = vmatpush1.msra.mxu0 %v65
    %4618 = vmatprep.subr.mxu0 0.0
    %4619 = vmatpush1.msra.mxu0 %v64
    %4620 = vmatprep.subr.mxu0 0.0
    %4621 = vmatpush1.msra.mxu0 %v63
    %4622 = vmatprep.subr.mxu0 0.0
    %4623 = vmatpush1.msra.mxu0 %v62
    %4624 = vmatprep.subr.mxu0 0.0
    %4625 = vmatpush2.msra.mxu0 0.0
    %4626 = vmatprep.subr.mxu0 0.0
    %4627 = vmatpush2.msra.mxu0 0.0
    %4628 = vmatprep.subr.mxu0 0.0
    %4629 = vmatpush2.msra.mxu0 0.0
    %4630 = vmatprep.subr.mxu0 0.0
    %4631 = vmatpush2.msra.mxu0 0.0
    %4632 = vmatprep.subr.mxu0 0.0
    %4633 = vmatpush2.msra.mxu0 0.0
    %4634 = vmatprep.subr.mxu0 0.0
    %4635 = vmatpush2.msra.mxu0 0.0
    %4636 = vmatprep.subr.mxu0 0.0
    %4637 = vmatpush2.msra.mxu0 0.0
    %4638 = vmatprep.subr.mxu0 0.0
    %4639 = vmatpush2.msra.mxu0 0.0
    %4640 = vmatprep.subr.mxu0 0.0
    %4641 = vmatpush2.msra.mxu0 0.0
    %4642 = vmatprep.subr.mxu0 0.0
    %4643 = vmatpush2.msra.mxu0 0.0
    %4644 = vmatprep.subr.mxu0 0.0
    %4645 = vmatpush2.msra.mxu0 0.0
    %4646 = vmatprep.subr.mxu0 0.0
    %4647 = vmatpush2.msra.mxu0 0.0
    %4648 = vmatprep.subr.mxu0 0.0
    %4649 = vmatpush2.msra.mxu0 0.0
    %4650 = vmatprep.subr.mxu0 0.0
    %4651 = vmatpush2.msra.mxu0 0.0
    %4652 = vmatprep.subr.mxu0 0.0
    %4653 = vmatpush2.msra.mxu0 0.0
    %4654 = vmatprep.subr.mxu0 0.0
    %4655 = vmatpush2.msra.mxu0 0.0
    %4656 = vmatprep.mubr.f32.mxu0 0.0
    %4657 = vmatmul.mubr.f32.gmra.mxu0 %v4590
    %v4658 = vpop.f32.mrf.mxu0
    %v4659 = vadd.f32 0.0, %v4658
    %v4660 = vpop.f32.mrf.mxu0
    %4661 = vdwg.mxu0
    %v4662 = vadd.f32 %v4490, %v4659
    %v4663 = vxor.u32 %v4662, 2147483648
    %v4664 = vmul.f32 %v4663, 1.442695
    %v4665 = vpow.pop %v4664
    %v4666 = vadd.f32 %v4665, 1.0
    %v4667 = vrcp.pop %v4666
    %v4668 = vmul.f32 1.0, %v4667
    %4670 = vrot.lane.b32.xlu0 %v4573, 64
    %v4671 = vpop.permute.xlu0 %4670
    %v4673 = vadd.f32 %v4659, %v4671
    %4675 = vrot.lane.b32.xlu0 %v4673, 64
    %v4676 = vpop.permute.xlu0 %4675
    %v4678 = vmul.f32 %v4668, %v4676
    %4680 = vrot.lane.b32.xlu0 %v4678, 64
    %v4681 = vpop.permute.xlu0 %4680
    %v4683 = vadd.f32 %v4490, %v4681
    %v4684 = vtanh.pop %v4683
    %v4685 = vsub.f32 1.0, %v4668
    %4687 = vrot.lane.b32.xlu0 %v4684, 96
    %v4688 = vpop.permute.xlu0 %4687
    %v4690 = vmul.f32 %v4685, %v4688
    %v4691 = vmul.f32 %v4668, %v4586
    %v4692 = vadd.f32 %v4690, %v4691
    %4694 = vrot.lane.b32.xlu0 %v4692, 96
    %v4695 = vpop.permute.xlu0 %4694
    %v4696 = vsel %vm1128, %v4695, 0
    %4698 = vmatprep.subr.mxu0 0.0
    %4699 = vmatpush1.msra.mxu0 0.0
    %4700 = vmatprep.subr.mxu0 0.0
    %4701 = vmatpush1.msra.mxu0 0.0
    %4702 = vmatprep.subr.mxu0 0.0
    %4703 = vmatpush1.msra.mxu0 0.0
    %4704 = vmatprep.subr.mxu0 0.0
    %4705 = vmatpush1.msra.mxu0 0.0
    %4706 = vmatprep.subr.mxu0 0.0
    %4707 = vmatpush1.msra.mxu0 0.0
    %4708 = vmatprep.subr.mxu0 0.0
    %4709 = vmatpush1.msra.mxu0 0.0
    %4710 = vmatprep.subr.mxu0 0.0
    %4711 = vmatpush1.msra.mxu0 0.0
    %4712 = vmatprep.subr.mxu0 0.0
    %4713 = vmatpush1.msra.mxu0 0.0
    %4714 = vmatprep.subr.mxu0 0.0
    %4715 = vmatpush1.msra.mxu0 0.0
    %4716 = vmatprep.subr.mxu0 0.0
    %4717 = vmatpush1.msra.mxu0 0.0
    %4718 = vmatprep.subr.mxu0 0.0
    %4719 = vmatpush1.msra.mxu0 0.0
    %4720 = vmatprep.subr.mxu0 0.0
    %4721 = vmatpush1.msra.mxu0 0.0
    %4722 = vmatprep.subr.mxu0 0.0
    %4723 = vmatpush1.msra.mxu0 %v65
    %4724 = vmatprep.subr.mxu0 0.0
    %4725 = vmatpush1.msra.mxu0 %v64
    %4726 = vmatprep.subr.mxu0 0.0
    %4727 = vmatpush1.msra.mxu0 %v63
    %4728 = vmatprep.subr.mxu0 0.0
    %4729 = vmatpush1.msra.mxu0 %v62
    %4730 = vmatprep.subr.mxu0 0.0
    %4731 = vmatpush2.msra.mxu0 0.0
    %4732 = vmatprep.subr.mxu0 0.0
    %4733 = vmatpush2.msra.mxu0 0.0
    %4734 = vmatprep.subr.mxu0 0.0
    %4735 = vmatpush2.msra.mxu0 0.0
    %4736 = vmatprep.subr.mxu0 0.0
    %4737 = vmatpush2.msra.mxu0 0.0
    %4738 = vmatprep.subr.mxu0 0.0
    %4739 = vmatpush2.msra.mxu0 0.0
    %4740 = vmatprep.subr.mxu0 0.0
    %4741 = vmatpush2.msra.mxu0 0.0
    %4742 = vmatprep.subr.mxu0 0.0
    %4743 = vmatpush2.msra.mxu0 0.0
    %4744 = vmatprep.subr.mxu0 0.0
    %4745 = vmatpush2.msra.mxu0 0.0
    %4746 = vmatprep.subr.mxu0 0.0
    %4747 = vmatpush2.msra.mxu0 0.0
    %4748 = vmatprep.subr.mxu0 0.0
    %4749 = vmatpush2.msra.mxu0 0.0
    %4750 = vmatprep.subr.mxu0 0.0
    %4751 = vmatpush2.msra.mxu0 0.0
    %4752 = vmatprep.subr.mxu0 0.0
    %4753 = vmatpush2.msra.mxu0 0.0
    %4754 = vmatprep.subr.mxu0 0.0
    %4755 = vmatpush2.msra.mxu0 0.0
    %4756 = vmatprep.subr.mxu0 0.0
    %4757 = vmatpush2.msra.mxu0 0.0
    %4758 = vmatprep.subr.mxu0 0.0
    %4759 = vmatpush2.msra.mxu0 0.0
    %4760 = vmatprep.subr.mxu0 0.0
    %4761 = vmatpush2.msra.mxu0 0.0
    %4762 = vmatprep.mubr.f32.mxu0 0.0
    %4763 = vmatmul.mubr.f32.gmra.mxu0 %v4696
    %v4764 = vpop.f32.mrf.mxu0
    %v4765 = vadd.f32 0.0, %v4764
    %v4766 = vpop.f32.mrf.mxu0
    %4767 = vdwg.mxu0
    %v4768 = vadd.f32 %v4490, %v4765
    %v4769 = vxor.u32 %v4768, 2147483648
    %v4770 = vmul.f32 %v4769, 1.442695
    %v4771 = vpow.pop %v4770
    %v4772 = vadd.f32 %v4771, 1.0
    %v4773 = vrcp.pop %v4772
    %v4774 = vmul.f32 1.0, %v4773
    %v4775 = vadd.f32 %v4765, %v4671
    %4777 = vrot.lane.b32.xlu0 %v4775, 64
    %v4778 = vpop.permute.xlu0 %4777
    %v4780 = vmul.f32 %v4774, %v4778
    %4782 = vrot.lane.b32.xlu0 %v4780, 64
    %v4783 = vpop.permute.xlu0 %4782
    %v4785 = vadd.f32 %v4490, %v4783
    %v4786 = vtanh.pop %v4785
    %v4787 = vsub.f32 1.0, %v4774
    %4789 = vrot.lane.b32.xlu0 %v4786, 96
    %v4790 = vpop.permute.xlu0 %4789
    %v4792 = vmul.f32 %v4787, %v4790
    %v4793 = vmul.f32 %v4774, %v4692
    %v4794 = vadd.f32 %v4792, %v4793
    %4796 = vrot.lane.b32.xlu0 %v4794, 96
    %v4797 = vpop.permute.xlu0 %4796
    %v4798 = vsel %vm1128, %v4797, 0
    %4800 = vmatprep.subr.mxu0 0.0
    %4801 = vmatpush1.msra.mxu0 0.0
    %4802 = vmatprep.subr.mxu0 0.0
    %4803 = vmatpush1.msra.mxu0 0.0
    %4804 = vmatprep.subr.mxu0 0.0
    %4805 = vmatpush1.msra.mxu0 0.0
    %4806 = vmatprep.subr.mxu0 0.0
    %4807 = vmatpush1.msra.mxu0 0.0
    %4808 = vmatprep.subr.mxu0 0.0
    %4809 = vmatpush1.msra.mxu0 0.0
    %4810 = vmatprep.subr.mxu0 0.0
    %4811 = vmatpush1.msra.mxu0 0.0
    %4812 = vmatprep.subr.mxu0 0.0
    %4813 = vmatpush1.msra.mxu0 0.0
    %4814 = vmatprep.subr.mxu0 0.0
    %4815 = vmatpush1.msra.mxu0 0.0
    %4816 = vmatprep.subr.mxu0 0.0
    %4817 = vmatpush1.msra.mxu0 0.0
    %4818 = vmatprep.subr.mxu0 0.0
    %4819 = vmatpush1.msra.mxu0 0.0
    %4820 = vmatprep.subr.mxu0 0.0
    %4821 = vmatpush1.msra.mxu0 0.0
    %4822 = vmatprep.subr.mxu0 0.0
    %4823 = vmatpush1.msra.mxu0 0.0
    %4824 = vmatprep.subr.mxu0 0.0
    %4825 = vmatpush1.msra.mxu0 %v65
    %4826 = vmatprep.subr.mxu0 0.0
    %4827 = vmatpush1.msra.mxu0 %v64
    %4828 = vmatprep.subr.mxu0 0.0
    %4829 = vmatpush1.msra.mxu0 %v63
    %4830 = vmatprep.subr.mxu0 0.0
    %4831 = vmatpush1.msra.mxu0 %v62
    %4832 = vmatprep.subr.mxu0 0.0
    %4833 = vmatpush2.msra.mxu0 0.0
    %4834 = vmatprep.subr.mxu0 0.0
    %4835 = vmatpush2.msra.mxu0 0.0
    %4836 = vmatprep.subr.mxu0 0.0
    %4837 = vmatpush2.msra.mxu0 0.0
    %4838 = vmatprep.subr.mxu0 0.0
    %4839 = vmatpush2.msra.mxu0 0.0
    %4840 = vmatprep.subr.mxu0 0.0
    %4841 = vmatpush2.msra.mxu0 0.0
    %4842 = vmatprep.subr.mxu0 0.0
    %4843 = vmatpush2.msra.mxu0 0.0
    %4844 = vmatprep.subr.mxu0 0.0
    %4845 = vmatpush2.msra.mxu0 0.0
    %4846 = vmatprep.subr.mxu0 0.0
    %4847 = vmatpush2.msra.mxu0 0.0
    %4848 = vmatprep.subr.mxu0 0.0
    %4849 = vmatpush2.msra.mxu0 0.0
    %4850 = vmatprep.subr.mxu0 0.0
    %4851 = vmatpush2.msra.mxu0 0.0
    %4852 = vmatprep.subr.mxu0 0.0
    %4853 = vmatpush2.msra.mxu0 0.0
    %4854 = vmatprep.subr.mxu0 0.0
    %4855 = vmatpush2.msra.mxu0 0.0
    %4856 = vmatprep.subr.mxu0 0.0
    %4857 = vmatpush2.msra.mxu0 0.0
    %4858 = vmatprep.subr.mxu0 0.0
    %4859 = vmatpush2.msra.mxu0 0.0
    %4860 = vmatprep.subr.mxu0 0.0
    %4861 = vmatpush2.msra.mxu0 0.0
    %4862 = vmatprep.subr.mxu0 0.0
    %4863 = vmatpush2.msra.mxu0 0.0
    %4864 = vmatprep.mubr.f32.mxu0 0.0
    %4865 = vmatmul.mubr.f32.gmra.mxu0 %v4798
    %v4866 = vpop.f32.mrf.mxu0
    %v4867 = vadd.f32 0.0, %v4866
    %v4868 = vpop.f32.mrf.mxu0
    %4869 = vdwg.mxu0
    %v4870 = vadd.f32 %v4490, %v4867
    %v4871 = vxor.u32 %v4870, 2147483648
    %v4872 = vmul.f32 %v4871, 1.442695
    %v4873 = vpow.pop %v4872
    %v4874 = vadd.f32 %v4873, 1.0
    %v4875 = vrcp.pop %v4874
    %v4876 = vmul.f32 1.0, %v4875
    %v4877 = vadd.f32 %v4867, %v4671
    %4879 = vrot.lane.b32.xlu0 %v4877, 64
    %v4880 = vpop.permute.xlu0 %4879
    %v4882 = vmul.f32 %v4876, %v4880
    %4884 = vrot.lane.b32.xlu0 %v4882, 64
    %v4885 = vpop.permute.xlu0 %4884
    %v4887 = vadd.f32 %v4490, %v4885
    %v4888 = vtanh.pop %v4887
    %v4889 = vsub.f32 1.0, %v4876
    %4891 = vrot.lane.b32.xlu0 %v4888, 96
    %v4892 = vpop.permute.xlu0 %4891
    %v4894 = vmul.f32 %v4889, %v4892
    %v4895 = vmul.f32 %v4876, %v4794
    %v4896 = vadd.f32 %v4894, %v4895
    %4898 = vrot.lane.b32.xlu0 %v4896, 96
    %v4899 = vpop.permute.xlu0 %4898
    %v4900 = vsel %vm1128, %v4899, 0
    %4902 = vmatprep.subr.mxu0 0.0
    %4903 = vmatpush1.msra.mxu0 0.0
    %4904 = vmatprep.subr.mxu0 0.0
    %4905 = vmatpush1.msra.mxu0 0.0
    %4906 = vmatprep.subr.mxu0 0.0
    %4907 = vmatpush1.msra.mxu0 0.0
    %4908 = vmatprep.subr.mxu0 0.0
    %4909 = vmatpush1.msra.mxu0 0.0
    %4910 = vmatprep.subr.mxu0 0.0
    %4911 = vmatpush1.msra.mxu0 0.0
    %4912 = vmatprep.subr.mxu0 0.0
    %4913 = vmatpush1.msra.mxu0 0.0
    %4914 = vmatprep.subr.mxu0 0.0
    %4915 = vmatpush1.msra.mxu0 0.0
    %4916 = vmatprep.subr.mxu0 0.0
    %4917 = vmatpush1.msra.mxu0 0.0
    %4918 = vmatprep.subr.mxu0 0.0
    %4919 = vmatpush1.msra.mxu0 0.0
    %4920 = vmatprep.subr.mxu0 0.0
    %4921 = vmatpush1.msra.mxu0 0.0
    %4922 = vmatprep.subr.mxu0 0.0
    %4923 = vmatpush1.msra.mxu0 0.0
    %4924 = vmatprep.subr.mxu0 0.0
    %4925 = vmatpush1.msra.mxu0 0.0
    %4926 = vmatprep.subr.mxu0 0.0
    %4927 = vmatpush1.msra.mxu0 %v65
    %4928 = vmatprep.subr.mxu0 0.0
    %4929 = vmatpush1.msra.mxu0 %v64
    %4930 = vmatprep.subr.mxu0 0.0
    %4931 = vmatpush1.msra.mxu0 %v63
    %4932 = vmatprep.subr.mxu0 0.0
    %4933 = vmatpush1.msra.mxu0 %v62
    %4934 = vmatprep.subr.mxu0 0.0
    %4935 = vmatpush2.msra.mxu0 0.0
    %4936 = vmatprep.subr.mxu0 0.0
    %4937 = vmatpush2.msra.mxu0 0.0
    %4938 = vmatprep.subr.mxu0 0.0
    %4939 = vmatpush2.msra.mxu0 0.0
    %4940 = vmatprep.subr.mxu0 0.0
    %4941 = vmatpush2.msra.mxu0 0.0
    %4942 = vmatprep.subr.mxu0 0.0
    %4943 = vmatpush2.msra.mxu0 0.0
    %4944 = vmatprep.subr.mxu0 0.0
    %4945 = vmatpush2.msra.mxu0 0.0
    %4946 = vmatprep.subr.mxu0 0.0
    %4947 = vmatpush2.msra.mxu0 0.0
    %4948 = vmatprep.subr.mxu0 0.0
    %4949 = vmatpush2.msra.mxu0 0.0
    %4950 = vmatprep.subr.mxu0 0.0
    %4951 = vmatpush2.msra.mxu0 0.0
    %4952 = vmatprep.subr.mxu0 0.0
    %4953 = vmatpush2.msra.mxu0 0.0
    %4954 = vmatprep.subr.mxu0 0.0
    %4955 = vmatpush2.msra.mxu0 0.0
    %4956 = vmatprep.subr.mxu0 0.0
    %4957 = vmatpush2.msra.mxu0 0.0
    %4958 = vmatprep.subr.mxu0 0.0
    %4959 = vmatpush2.msra.mxu0 0.0
    %4960 = vmatprep.subr.mxu0 0.0
    %4961 = vmatpush2.msra.mxu0 0.0
    %4962 = vmatprep.subr.mxu0 0.0
    %4963 = vmatpush2.msra.mxu0 0.0
    %4964 = vmatprep.subr.mxu0 0.0
    %4965 = vmatpush2.msra.mxu0 0.0
    %4966 = vmatprep.mubr.f32.mxu0 0.0
    %4967 = vmatmul.mubr.f32.gmra.mxu0 %v4900
    %v4968 = vpop.f32.mrf.mxu0
    %v4969 = vadd.f32 0.0, %v4968
    %v4970 = vpop.f32.mrf.mxu0
    %4971 = vdwg.mxu0
    %v4972 = vadd.f32 %v4490, %v4969
    %v4973 = vxor.u32 %v4972, 2147483648
    %v4974 = vmul.f32 %v4973, 1.442695
    %v4975 = vpow.pop %v4974
    %v4976 = vadd.f32 %v4975, 1.0
    %v4977 = vrcp.pop %v4976
    %v4978 = vmul.f32 1.0, %v4977
    %v4979 = vadd.f32 %v4969, %v4671
    %4981 = vrot.lane.b32.xlu0 %v4979, 64
    %v4982 = vpop.permute.xlu0 %4981
    %v4984 = vmul.f32 %v4978, %v4982
    %4986 = vrot.lane.b32.xlu0 %v4984, 64
    %v4987 = vpop.permute.xlu0 %4986
    %v4989 = vadd.f32 %v4490, %v4987
    %v4990 = vtanh.pop %v4989
    %v4991 = vsub.f32 1.0, %v4978
    %4993 = vrot.lane.b32.xlu0 %v4990, 96
    %v4994 = vpop.permute.xlu0 %4993
    %v4996 = vmul.f32 %v4991, %v4994
    %v4997 = vmul.f32 %v4978, %v4896
    %v4998 = vadd.f32 %v4996, %v4997
    %5000 = vrot.lane.b32.xlu0 %v4998, 96
    %v5001 = vpop.permute.xlu0 %5000
    %v5002 = vsel %vm1128, %v5001, 0
    %5004 = vmatprep.subr.mxu0 0.0
    %5005 = vmatpush1.msra.mxu0 0.0
    %5006 = vmatprep.subr.mxu0 0.0
    %5007 = vmatpush1.msra.mxu0 0.0
    %5008 = vmatprep.subr.mxu0 0.0
    %5009 = vmatpush1.msra.mxu0 0.0
    %5010 = vmatprep.subr.mxu0 0.0
    %5011 = vmatpush1.msra.mxu0 0.0
    %5012 = vmatprep.subr.mxu0 0.0
    %5013 = vmatpush1.msra.mxu0 0.0
    %5014 = vmatprep.subr.mxu0 0.0
    %5015 = vmatpush1.msra.mxu0 0.0
    %5016 = vmatprep.subr.mxu0 0.0
    %5017 = vmatpush1.msra.mxu0 0.0
    %5018 = vmatprep.subr.mxu0 0.0
    %5019 = vmatpush1.msra.mxu0 0.0
    %5020 = vmatprep.subr.mxu0 0.0
    %5021 = vmatpush1.msra.mxu0 0.0
    %5022 = vmatprep.subr.mxu0 0.0
    %5023 = vmatpush1.msra.mxu0 0.0
    %5024 = vmatprep.subr.mxu0 0.0
    %5025 = vmatpush1.msra.mxu0 0.0
    %5026 = vmatprep.subr.mxu0 0.0
    %5027 = vmatpush1.msra.mxu0 0.0
    %5028 = vmatprep.subr.mxu0 0.0
    %5029 = vmatpush1.msra.mxu0 %v65
    %5030 = vmatprep.subr.mxu0 0.0
    %5031 = vmatpush1.msra.mxu0 %v64
    %5032 = vmatprep.subr.mxu0 0.0
    %5033 = vmatpush1.msra.mxu0 %v63
    %5034 = vmatprep.subr.mxu0 0.0
    %5035 = vmatpush1.msra.mxu0 %v62
    %5036 = vmatprep.subr.mxu0 0.0
    %5037 = vmatpush2.msra.mxu0 0.0
    %5038 = vmatprep.subr.mxu0 0.0
    %5039 = vmatpush2.msra.mxu0 0.0
    %5040 = vmatprep.subr.mxu0 0.0
    %5041 = vmatpush2.msra.mxu0 0.0
    %5042 = vmatprep.subr.mxu0 0.0
    %5043 = vmatpush2.msra.mxu0 0.0
    %5044 = vmatprep.subr.mxu0 0.0
    %5045 = vmatpush2.msra.mxu0 0.0
    %5046 = vmatprep.subr.mxu0 0.0
    %5047 = vmatpush2.msra.mxu0 0.0
    %5048 = vmatprep.subr.mxu0 0.0
    %5049 = vmatpush2.msra.mxu0 0.0
    %5050 = vmatprep.subr.mxu0 0.0
    %5051 = vmatpush2.msra.mxu0 0.0
    %5052 = vmatprep.subr.mxu0 0.0
    %5053 = vmatpush2.msra.mxu0 0.0
    %5054 = vmatprep.subr.mxu0 0.0
    %5055 = vmatpush2.msra.mxu0 0.0
    %5056 = vmatprep.subr.mxu0 0.0
    %5057 = vmatpush2.msra.mxu0 0.0
    %5058 = vmatprep.subr.mxu0 0.0
    %5059 = vmatpush2.msra.mxu0 0.0
    %5060 = vmatprep.subr.mxu0 0.0
    %5061 = vmatpush2.msra.mxu0 0.0
    %5062 = vmatprep.subr.mxu0 0.0
    %5063 = vmatpush2.msra.mxu0 0.0
    %5064 = vmatprep.subr.mxu0 0.0
    %5065 = vmatpush2.msra.mxu0 0.0
    %5066 = vmatprep.subr.mxu0 0.0
    %5067 = vmatpush2.msra.mxu0 0.0
    %5068 = vmatprep.mubr.f32.mxu0 0.0
    %5069 = vmatmul.mubr.f32.gmra.mxu0 %v5002
    %v5070 = vpop.f32.mrf.mxu0
    %v5071 = vadd.f32 0.0, %v5070
    %v5072 = vpop.f32.mrf.mxu0
    %5073 = vdwg.mxu0
    %v5074 = vadd.f32 %v4490, %v5071
    %v5075 = vxor.u32 %v5074, 2147483648
    %v5076 = vmul.f32 %v5075, 1.442695
    %v5077 = vpow.pop %v5076
    %v5078 = vadd.f32 %v5077, 1.0
    %v5079 = vrcp.pop %v5078
    %v5080 = vmul.f32 1.0, %v5079
    %v5081 = vadd.f32 %v5071, %v4671
    %5083 = vrot.lane.b32.xlu0 %v5081, 64
    %v5084 = vpop.permute.xlu0 %5083
    %v5086 = vmul.f32 %v5080, %v5084
    %5088 = vrot.lane.b32.xlu0 %v5086, 64
    %v5089 = vpop.permute.xlu0 %5088
    %v5091 = vadd.f32 %v4490, %v5089
    %v5092 = vtanh.pop %v5091
    %v5093 = vsub.f32 1.0, %v5080
    %5095 = vrot.lane.b32.xlu0 %v5092, 96
    %v5096 = vpop.permute.xlu0 %5095
    %v5098 = vmul.f32 %v5093, %v5096
    %v5099 = vmul.f32 %v5080, %v4998
    %v5100 = vadd.f32 %v5098, %v5099
    %5102 = vrot.lane.b32.xlu0 %v5100, 96
    %v5103 = vpop.permute.xlu0 %5102
    %v5104 = vsel %vm1128, %v5103, 0
    %5106 = vmatprep.subr.mxu0 0.0
    %5107 = vmatpush1.msra.mxu0 0.0
    %5108 = vmatprep.subr.mxu0 0.0
    %5109 = vmatpush1.msra.mxu0 0.0
    %5110 = vmatprep.subr.mxu0 0.0
    %5111 = vmatpush1.msra.mxu0 0.0
    %5112 = vmatprep.subr.mxu0 0.0
    %5113 = vmatpush1.msra.mxu0 0.0
    %5114 = vmatprep.subr.mxu0 0.0
    %5115 = vmatpush1.msra.mxu0 0.0
    %5116 = vmatprep.subr.mxu0 0.0
    %5117 = vmatpush1.msra.mxu0 0.0
    %5118 = vmatprep.subr.mxu0 0.0
    %5119 = vmatpush1.msra.mxu0 0.0
    %5120 = vmatprep.subr.mxu0 0.0
    %5121 = vmatpush1.msra.mxu0 0.0
    %5122 = vmatprep.subr.mxu0 0.0
    %5123 = vmatpush1.msra.mxu0 0.0
    %5124 = vmatprep.subr.mxu0 0.0
    %5125 = vmatpush1.msra.mxu0 0.0
    %5126 = vmatprep.subr.mxu0 0.0
    %5127 = vmatpush1.msra.mxu0 0.0
    %5128 = vmatprep.subr.mxu0 0.0
    %5129 = vmatpush1.msra.mxu0 0.0
    %5130 = vmatprep.subr.mxu0 0.0
    %5131 = vmatpush1.msra.mxu0 %v65
    %5132 = vmatprep.subr.mxu0 0.0
    %5133 = vmatpush1.msra.mxu0 %v64
    %5134 = vmatprep.subr.mxu0 0.0
    %5135 = vmatpush1.msra.mxu0 %v63
    %5136 = vmatprep.subr.mxu0 0.0
    %5137 = vmatpush1.msra.mxu0 %v62
    %5138 = vmatprep.subr.mxu0 0.0
    %5139 = vmatpush2.msra.mxu0 0.0
    %5140 = vmatprep.subr.mxu0 0.0
    %5141 = vmatpush2.msra.mxu0 0.0
    %5142 = vmatprep.subr.mxu0 0.0
    %5143 = vmatpush2.msra.mxu0 0.0
    %5144 = vmatprep.subr.mxu0 0.0
    %5145 = vmatpush2.msra.mxu0 0.0
    %5146 = vmatprep.subr.mxu0 0.0
    %5147 = vmatpush2.msra.mxu0 0.0
    %5148 = vmatprep.subr.mxu0 0.0
    %5149 = vmatpush2.msra.mxu0 0.0
    %5150 = vmatprep.subr.mxu0 0.0
    %5151 = vmatpush2.msra.mxu0 0.0
    %5152 = vmatprep.subr.mxu0 0.0
    %5153 = vmatpush2.msra.mxu0 0.0
    %5154 = vmatprep.subr.mxu0 0.0
    %5155 = vmatpush2.msra.mxu0 0.0
    %5156 = vmatprep.subr.mxu0 0.0
    %5157 = vmatpush2.msra.mxu0 0.0
    %5158 = vmatprep.subr.mxu0 0.0
    %5159 = vmatpush2.msra.mxu0 0.0
    %5160 = vmatprep.subr.mxu0 0.0
    %5161 = vmatpush2.msra.mxu0 0.0
    %5162 = vmatprep.subr.mxu0 0.0
    %5163 = vmatpush2.msra.mxu0 0.0
    %5164 = vmatprep.subr.mxu0 0.0
    %5165 = vmatpush2.msra.mxu0 0.0
    %5166 = vmatprep.subr.mxu0 0.0
    %5167 = vmatpush2.msra.mxu0 0.0
    %5168 = vmatprep.subr.mxu0 0.0
    %5169 = vmatpush2.msra.mxu0 0.0
    %5170 = vmatprep.mubr.f32.mxu0 0.0
    %5171 = vmatmul.mubr.f32.gmra.mxu0 %v5104
    %v5172 = vpop.f32.mrf.mxu0
    %v5173 = vadd.f32 0.0, %v5172
    %v5174 = vpop.f32.mrf.mxu0
    %5175 = vdwg.mxu0
    %v5176 = vadd.f32 %v4490, %v5173
    %v5177 = vxor.u32 %v5176, 2147483648
    %v5178 = vmul.f32 %v5177, 1.442695
    %v5179 = vpow.pop %v5178
    %v5180 = vadd.f32 %v5179, 1.0
    %v5181 = vrcp.pop %v5180
    %v5182 = vmul.f32 1.0, %v5181
    %v5183 = vadd.f32 %v5173, %v4671
    %5185 = vrot.lane.b32.xlu0 %v5183, 64
    %v5186 = vpop.permute.xlu0 %5185
    %v5188 = vmul.f32 %v5182, %v5186
    %5190 = vrot.lane.b32.xlu0 %v5188, 64
    %v5191 = vpop.permute.xlu0 %5190
    %v5193 = vadd.f32 %v4490, %v5191
    %v5194 = vtanh.pop %v5193
    %v5195 = vsub.f32 1.0, %v5182
    %5197 = vrot.lane.b32.xlu0 %v5194, 96
    %v5198 = vpop.permute.xlu0 %5197
    %v5200 = vmul.f32 %v5195, %v5198
    %v5201 = vmul.f32 %v5182, %v5100
    %v5202 = vadd.f32 %v5200, %v5201
    %5204 = vrot.lane.b32.xlu0 %v5202, 96
    %v5205 = vpop.permute.xlu0 %5204
    %v5206 = vsel %vm1128, %v5205, 0
    %5208 = vmatprep.subr.mxu0 0.0
    %5209 = vmatpush1.msra.mxu0 0.0
    %5210 = vmatprep.subr.mxu0 0.0
    %5211 = vmatpush1.msra.mxu0 0.0
    %5212 = vmatprep.subr.mxu0 0.0
    %5213 = vmatpush1.msra.mxu0 0.0
    %5214 = vmatprep.subr.mxu0 0.0
    %5215 = vmatpush1.msra.mxu0 0.0
    %5216 = vmatprep.subr.mxu0 0.0
    %5217 = vmatpush1.msra.mxu0 0.0
    %5218 = vmatprep.subr.mxu0 0.0
    %5219 = vmatpush1.msra.mxu0 0.0
    %5220 = vmatprep.subr.mxu0 0.0
    %5221 = vmatpush1.msra.mxu0 0.0
    %5222 = vmatprep.subr.mxu0 0.0
    %5223 = vmatpush1.msra.mxu0 0.0
    %5224 = vmatprep.subr.mxu0 0.0
    %5225 = vmatpush1.msra.mxu0 0.0
    %5226 = vmatprep.subr.mxu0 0.0
    %5227 = vmatpush1.msra.mxu0 0.0
    %5228 = vmatprep.subr.mxu0 0.0
    %5229 = vmatpush1.msra.mxu0 0.0
    %5230 = vmatprep.subr.mxu0 0.0
    %5231 = vmatpush1.msra.mxu0 0.0
    %5232 = vmatprep.subr.mxu0 0.0
    %5233 = vmatpush1.msra.mxu0 %v65
    %5234 = vmatprep.subr.mxu0 0.0
    %5235 = vmatpush1.msra.mxu0 %v64
    %5236 = vmatprep.subr.mxu0 0.0
    %5237 = vmatpush1.msra.mxu0 %v63
    %5238 = vmatprep.subr.mxu0 0.0
    %5239 = vmatpush1.msra.mxu0 %v62
    %5240 = vmatprep.subr.mxu0 0.0
    %5241 = vmatpush2.msra.mxu0 0.0
    %5242 = vmatprep.subr.mxu0 0.0
    %5243 = vmatpush2.msra.mxu0 0.0
    %5244 = vmatprep.subr.mxu0 0.0
    %5245 = vmatpush2.msra.mxu0 0.0
    %5246 = vmatprep.subr.mxu0 0.0
    %5247 = vmatpush2.msra.mxu0 0.0
    %5248 = vmatprep.subr.mxu0 0.0
    %5249 = vmatpush2.msra.mxu0 0.0
    %5250 = vmatprep.subr.mxu0 0.0
    %5251 = vmatpush2.msra.mxu0 0.0
    %5252 = vmatprep.subr.mxu0 0.0
    %5253 = vmatpush2.msra.mxu0 0.0
    %5254 = vmatprep.subr.mxu0 0.0
    %5255 = vmatpush2.msra.mxu0 0.0
    %5256 = vmatprep.subr.mxu0 0.0
    %5257 = vmatpush2.msra.mxu0 0.0
    %5258 = vmatprep.subr.mxu0 0.0
    %5259 = vmatpush2.msra.mxu0 0.0
    %5260 = vmatprep.subr.mxu0 0.0
    %5261 = vmatpush2.msra.mxu0 0.0
    %5262 = vmatprep.subr.mxu0 0.0
    %5263 = vmatpush2.msra.mxu0 0.0
    %5264 = vmatprep.subr.mxu0 0.0
    %5265 = vmatpush2.msra.mxu0 0.0
    %5266 = vmatprep.subr.mxu0 0.0
    %5267 = vmatpush2.msra.mxu0 0.0
    %5268 = vmatprep.subr.mxu0 0.0
    %5269 = vmatpush2.msra.mxu0 0.0
    %5270 = vmatprep.subr.mxu0 0.0
    %5271 = vmatpush2.msra.mxu0 0.0
    %5272 = vmatprep.mubr.f32.mxu0 0.0
    %5273 = vmatmul.mubr.f32.gmra.mxu0 %v5206
    %v5274 = vpop.f32.mrf.mxu0
    %v5275 = vadd.f32 0.0, %v5274
    %v5276 = vpop.f32.mrf.mxu0
    %5277 = vdwg.mxu0
    %v5278 = vadd.f32 %v4490, %v5275
    %v5279 = vxor.u32 %v5278, 2147483648
    %v5280 = vmul.f32 %v5279, 1.442695
    %v5281 = vpow.pop %v5280
    %v5282 = vadd.f32 %v5281, 1.0
    %v5283 = vrcp.pop %v5282
    %v5284 = vmul.f32 1.0, %v5283
    %v5285 = vadd.f32 %v5275, %v4671
    %5287 = vrot.lane.b32.xlu0 %v5285, 64
    %v5288 = vpop.permute.xlu0 %5287
    %v5290 = vmul.f32 %v5284, %v5288
    %5292 = vrot.lane.b32.xlu0 %v5290, 64
    %v5293 = vpop.permute.xlu0 %5292
    %v5295 = vadd.f32 %v4490, %v5293
    %v5296 = vtanh.pop %v5295
    %v5297 = vsub.f32 1.0, %v5284
    %5299 = vrot.lane.b32.xlu0 %v5296, 96
    %v5300 = vpop.permute.xlu0 %5299
    %v5302 = vmul.f32 %v5297, %v5300
    %v5303 = vmul.f32 %v5284, %v5202
    %v5304 = vadd.f32 %v5302, %v5303
    %v5305 = vlaneseq
    %v5306 = vshrl.u32 %v5305, 7
    %v5307 = vsub.s32 0, %v5306
    %v5308 = vrot.slane %v149, %v5307
    %5309 = vmatprep.subr.mxu0 0.0
    %5310 = vmatpush1.msra.mxu0 0.0
    %5311 = vmatprep.subr.mxu0 0.0
    %5312 = vmatpush1.msra.mxu0 0.0
    %5313 = vmatprep.subr.mxu0 0.0
    %5314 = vmatpush1.msra.mxu0 0.0
    %5315 = vmatprep.subr.mxu0 0.0
    %5316 = vmatpush1.msra.mxu0 0.0
    %5317 = vmatprep.subr.mxu0 0.0
    %5318 = vmatpush1.msra.mxu0 0.0
    %5319 = vmatprep.subr.mxu0 0.0
    %5320 = vmatpush1.msra.mxu0 0.0
    %5321 = vmatprep.subr.mxu0 0.0
    %5322 = vmatpush1.msra.mxu0 0.0
    %5323 = vmatprep.subr.mxu0 0.0
    %5324 = vmatpush1.msra.mxu0 0.0
    %5325 = vmatprep.subr.mxu0 0.0
    %5326 = vmatpush1.msra.mxu0 0.0
    %5327 = vmatprep.subr.mxu0 0.0
    %5328 = vmatpush1.msra.mxu0 0.0
    %5329 = vmatprep.subr.mxu0 0.0
    %5330 = vmatpush1.msra.mxu0 0.0
    %5331 = vmatprep.subr.mxu0 0.0
    %5332 = vmatpush1.msra.mxu0 0.0
    %5333 = vmatprep.subr.mxu0 0.0
    %5334 = vmatpush1.msra.mxu0 %v137
    %5335 = vmatprep.subr.mxu0 0.0
    %5336 = vmatpush1.msra.mxu0 %v136
    %5337 = vmatprep.subr.mxu0 0.0
    %5338 = vmatpush1.msra.mxu0 %v135
    %5339 = vmatprep.subr.mxu0 0.0
    %5340 = vmatpush1.msra.mxu0 %v134
    %5341 = vmatprep.subr.mxu0 0.0
    %5342 = vmatpush2.msra.mxu0 0.0
    %5343 = vmatprep.subr.mxu0 0.0
    %5344 = vmatpush2.msra.mxu0 0.0
    %5345 = vmatprep.subr.mxu0 0.0
    %5346 = vmatpush2.msra.mxu0 0.0
    %5347 = vmatprep.subr.mxu0 0.0
    %5348 = vmatpush2.msra.mxu0 0.0
    %5349 = vmatprep.subr.mxu0 0.0
    %5350 = vmatpush2.msra.mxu0 0.0
    %5351 = vmatprep.subr.mxu0 0.0
    %5352 = vmatpush2.msra.mxu0 0.0
    %5353 = vmatprep.subr.mxu0 0.0
    %5354 = vmatpush2.msra.mxu0 0.0
    %5355 = vmatprep.subr.mxu0 0.0
    %5356 = vmatpush2.msra.mxu0 0.0
    %5357 = vmatprep.subr.mxu0 0.0
    %5358 = vmatpush2.msra.mxu0 0.0
    %5359 = vmatprep.subr.mxu0 0.0
    %5360 = vmatpush2.msra.mxu0 0.0
    %5361 = vmatprep.subr.mxu0 0.0
    %5362 = vmatpush2.msra.mxu0 0.0
    %5363 = vmatprep.subr.mxu0 0.0
    %5364 = vmatpush2.msra.mxu0 0.0
    %5365 = vmatprep.subr.mxu0 0.0
    %5366 = vmatpush2.msra.mxu0 0.0
    %5367 = vmatprep.subr.mxu0 0.0
    %5368 = vmatpush2.msra.mxu0 0.0
    %5369 = vmatprep.subr.mxu0 0.0
    %5370 = vmatpush2.msra.mxu0 0.0
    %5371 = vmatprep.subr.mxu0 0.0
    %5372 = vmatpush2.msra.mxu0 0.0
    %5373 = vmatprep.mubr.f32.mxu0 0.0
    %5374 = vmatmul.mubr.f32.gmra.mxu0 %v4590
    %v5375 = vpop.f32.mrf.mxu0
    %v5376 = vadd.f32 %v5308, %v5375
    %v5377 = vpop.f32.mrf.mxu0
    %5378 = vdwg.mxu0
    %vm5379 = vcmask 91136
    %5380 = vst.msk [vmem:[%s6] sm:$0x3] %vm5379, %v5376
    %5381 = vmatprep.subr.mxu0 0.0
    %5382 = vmatpush1.msra.mxu0 0.0
    %5383 = vmatprep.subr.mxu0 0.0
    %5384 = vmatpush1.msra.mxu0 0.0
    %5385 = vmatprep.subr.mxu0 0.0
    %5386 = vmatpush1.msra.mxu0 0.0
    %5387 = vmatprep.subr.mxu0 0.0
    %5388 = vmatpush1.msra.mxu0 0.0
    %5389 = vmatprep.subr.mxu0 0.0
    %5390 = vmatpush1.msra.mxu0 0.0
    %5391 = vmatprep.subr.mxu0 0.0
    %5392 = vmatpush1.msra.mxu0 0.0
    %5393 = vmatprep.subr.mxu0 0.0
    %5394 = vmatpush1.msra.mxu0 0.0
    %5395 = vmatprep.subr.mxu0 0.0
    %5396 = vmatpush1.msra.mxu0 0.0
    %5397 = vmatprep.subr.mxu0 0.0
    %5398 = vmatpush1.msra.mxu0 0.0
    %5399 = vmatprep.subr.mxu0 0.0
    %5400 = vmatpush1.msra.mxu0 0.0
    %5401 = vmatprep.subr.mxu0 0.0
    %5402 = vmatpush1.msra.mxu0 0.0
    %5403 = vmatprep.subr.mxu0 0.0
    %5404 = vmatpush1.msra.mxu0 0.0
    %5405 = vmatprep.subr.mxu0 0.0
    %5406 = vmatpush1.msra.mxu0 %v137
    %5407 = vmatprep.subr.mxu0 0.0
    %5408 = vmatpush1.msra.mxu0 %v136
    %5409 = vmatprep.subr.mxu0 0.0
    %5410 = vmatpush1.msra.mxu0 %v135
    %5411 = vmatprep.subr.mxu0 0.0
    %5412 = vmatpush1.msra.mxu0 %v134
    %5413 = vmatprep.subr.mxu0 0.0
    %5414 = vmatpush2.msra.mxu0 0.0
    %5415 = vmatprep.subr.mxu0 0.0
    %5416 = vmatpush2.msra.mxu0 0.0
    %5417 = vmatprep.subr.mxu0 0.0
    %5418 = vmatpush2.msra.mxu0 0.0
    %5419 = vmatprep.subr.mxu0 0.0
    %5420 = vmatpush2.msra.mxu0 0.0
    %5421 = vmatprep.subr.mxu0 0.0
    %5422 = vmatpush2.msra.mxu0 0.0
    %5423 = vmatprep.subr.mxu0 0.0
    %5424 = vmatpush2.msra.mxu0 0.0
    %5425 = vmatprep.subr.mxu0 0.0
    %5426 = vmatpush2.msra.mxu0 0.0
    %5427 = vmatprep.subr.mxu0 0.0
    %5428 = vmatpush2.msra.mxu0 0.0
    %5429 = vmatprep.subr.mxu0 0.0
    %5430 = vmatpush2.msra.mxu0 0.0
    %5431 = vmatprep.subr.mxu0 0.0
    %5432 = vmatpush2.msra.mxu0 0.0
    %5433 = vmatprep.subr.mxu0 0.0
    %5434 = vmatpush2.msra.mxu0 0.0
    %5435 = vmatprep.subr.mxu0 0.0
    %5436 = vmatpush2.msra.mxu0 0.0
    %5437 = vmatprep.subr.mxu0 0.0
    %5438 = vmatpush2.msra.mxu0 0.0
    %5439 = vmatprep.subr.mxu0 0.0
    %5440 = vmatpush2.msra.mxu0 0.0
    %5441 = vmatprep.subr.mxu0 0.0
    %5442 = vmatpush2.msra.mxu0 0.0
    %5443 = vmatprep.subr.mxu0 0.0
    %5444 = vmatpush2.msra.mxu0 0.0
    %5445 = vmatprep.mubr.f32.mxu0 0.0
    %5446 = vmatmul.mubr.f32.gmra.mxu0 %v4696
    %v5447 = vpop.f32.mrf.mxu0
    %v5448 = vadd.f32 %v5308, %v5447
    %v5449 = vpop.f32.mrf.mxu0
    %5450 = vdwg.mxu0
    %5451 = vst.msk [vmem:[%s6 + $0x2] sm:$0x3] %vm5379, %v5448
    %5452 = vmatprep.subr.mxu0 0.0
    %5453 = vmatpush1.msra.mxu0 0.0
    %5454 = vmatprep.subr.mxu0 0.0
    %5455 = vmatpush1.msra.mxu0 0.0
    %5456 = vmatprep.subr.mxu0 0.0
    %5457 = vmatpush1.msra.mxu0 0.0
    %5458 = vmatprep.subr.mxu0 0.0
    %5459 = vmatpush1.msra.mxu0 0.0
    %5460 = vmatprep.subr.mxu0 0.0
    %5461 = vmatpush1.msra.mxu0 0.0
    %5462 = vmatprep.subr.mxu0 0.0
    %5463 = vmatpush1.msra.mxu0 0.0
    %5464 = vmatprep.subr.mxu0 0.0
    %5465 = vmatpush1.msra.mxu0 0.0
    %5466 = vmatprep.subr.mxu0 0.0
    %5467 = vmatpush1.msra.mxu0 0.0
    %5468 = vmatprep.subr.mxu0 0.0
    %5469 = vmatpush1.msra.mxu0 0.0
    %5470 = vmatprep.subr.mxu0 0.0
    %5471 = vmatpush1.msra.mxu0 0.0
    %5472 = vmatprep.subr.mxu0 0.0
    %5473 = vmatpush1.msra.mxu0 0.0
    %5474 = vmatprep.subr.mxu0 0.0
    %5475 = vmatpush1.msra.mxu0 0.0
    %5476 = vmatprep.subr.mxu0 0.0
    %5477 = vmatpush1.msra.mxu0 %v137
    %5478 = vmatprep.subr.mxu0 0.0
    %5479 = vmatpush1.msra.mxu0 %v136
    %5480 = vmatprep.subr.mxu0 0.0
    %5481 = vmatpush1.msra.mxu0 %v135
    %5482 = vmatprep.subr.mxu0 0.0
    %5483 = vmatpush1.msra.mxu0 %v134
    %5484 = vmatprep.subr.mxu0 0.0
    %5485 = vmatpush2.msra.mxu0 0.0
    %5486 = vmatprep.subr.mxu0 0.0
    %5487 = vmatpush2.msra.mxu0 0.0
    %5488 = vmatprep.subr.mxu0 0.0
    %5489 = vmatpush2.msra.mxu0 0.0
    %5490 = vmatprep.subr.mxu0 0.0
    %5491 = vmatpush2.msra.mxu0 0.0
    %5492 = vmatprep.subr.mxu0 0.0
    %5493 = vmatpush2.msra.mxu0 0.0
    %5494 = vmatprep.subr.mxu0 0.0
    %5495 = vmatpush2.msra.mxu0 0.0
    %5496 = vmatprep.subr.mxu0 0.0
    %5497 = vmatpush2.msra.mxu0 0.0
    %5498 = vmatprep.subr.mxu0 0.0
    %5499 = vmatpush2.msra.mxu0 0.0
    %5500 = vmatprep.subr.mxu0 0.0
    %5501 = vmatpush2.msra.mxu0 0.0
    %5502 = vmatprep.subr.mxu0 0.0
    %5503 = vmatpush2.msra.mxu0 0.0
    %5504 = vmatprep.subr.mxu0 0.0
    %5505 = vmatpush2.msra.mxu0 0.0
    %5506 = vmatprep.subr.mxu0 0.0
    %5507 = vmatpush2.msra.mxu0 0.0
    %5508 = vmatprep.subr.mxu0 0.0
    %5509 = vmatpush2.msra.mxu0 0.0
    %5510 = vmatprep.subr.mxu0 0.0
    %5511 = vmatpush2.msra.mxu0 0.0
    %5512 = vmatprep.subr.mxu0 0.0
    %5513 = vmatpush2.msra.mxu0 0.0
    %5514 = vmatprep.subr.mxu0 0.0
    %5515 = vmatpush2.msra.mxu0 0.0
    %5516 = vmatprep.mubr.f32.mxu0 0.0
    %5517 = vmatmul.mubr.f32.gmra.mxu0 %v4798
    %v5518 = vpop.f32.mrf.mxu0
    %v5519 = vadd.f32 %v5308, %v5518
    %v5520 = vpop.f32.mrf.mxu0
    %5521 = vdwg.mxu0
    %5522 = vst.msk [vmem:[%s6 + $0x4] sm:$0x3] %vm5379, %v5519
    %5523 = vmatprep.subr.mxu0 0.0
    %5524 = vmatpush1.msra.mxu0 0.0
    %5525 = vmatprep.subr.mxu0 0.0
    %5526 = vmatpush1.msra.mxu0 0.0
    %5527 = vmatprep.subr.mxu0 0.0
    %5528 = vmatpush1.msra.mxu0 0.0
    %5529 = vmatprep.subr.mxu0 0.0
    %5530 = vmatpush1.msra.mxu0 0.0
    %5531 = vmatprep.subr.mxu0 0.0
    %5532 = vmatpush1.msra.mxu0 0.0
    %5533 = vmatprep.subr.mxu0 0.0
    %5534 = vmatpush1.msra.mxu0 0.0
    %5535 = vmatprep.subr.mxu0 0.0
    %5536 = vmatpush1.msra.mxu0 0.0
    %5537 = vmatprep.subr.mxu0 0.0
    %5538 = vmatpush1.msra.mxu0 0.0
    %5539 = vmatprep.subr.mxu0 0.0
    %5540 = vmatpush1.msra.mxu0 0.0
    %5541 = vmatprep.subr.mxu0 0.0
    %5542 = vmatpush1.msra.mxu0 0.0
    %5543 = vmatprep.subr.mxu0 0.0
    %5544 = vmatpush1.msra.mxu0 0.0
    %5545 = vmatprep.subr.mxu0 0.0
    %5546 = vmatpush1.msra.mxu0 0.0
    %5547 = vmatprep.subr.mxu0 0.0
    %5548 = vmatpush1.msra.mxu0 %v137
    %5549 = vmatprep.subr.mxu0 0.0
    %5550 = vmatpush1.msra.mxu0 %v136
    %5551 = vmatprep.subr.mxu0 0.0
    %5552 = vmatpush1.msra.mxu0 %v135
    %5553 = vmatprep.subr.mxu0 0.0
    %5554 = vmatpush1.msra.mxu0 %v134
    %5555 = vmatprep.subr.mxu0 0.0
    %5556 = vmatpush2.msra.mxu0 0.0
    %5557 = vmatprep.subr.mxu0 0.0
    %5558 = vmatpush2.msra.mxu0 0.0
    %5559 = vmatprep.subr.mxu0 0.0
    %5560 = vmatpush2.msra.mxu0 0.0
    %5561 = vmatprep.subr.mxu0 0.0
    %5562 = vmatpush2.msra.mxu0 0.0
    %5563 = vmatprep.subr.mxu0 0.0
    %5564 = vmatpush2.msra.mxu0 0.0
    %5565 = vmatprep.subr.mxu0 0.0
    %5566 = vmatpush2.msra.mxu0 0.0
    %5567 = vmatprep.subr.mxu0 0.0
    %5568 = vmatpush2.msra.mxu0 0.0
    %5569 = vmatprep.subr.mxu0 0.0
    %5570 = vmatpush2.msra.mxu0 0.0
    %5571 = vmatprep.subr.mxu0 0.0
    %5572 = vmatpush2.msra.mxu0 0.0
    %5573 = vmatprep.subr.mxu0 0.0
    %5574 = vmatpush2.msra.mxu0 0.0
    %5575 = vmatprep.subr.mxu0 0.0
    %5576 = vmatpush2.msra.mxu0 0.0
    %5577 = vmatprep.subr.mxu0 0.0
    %5578 = vmatpush2.msra.mxu0 0.0
    %5579 = vmatprep.subr.mxu0 0.0
    %5580 = vmatpush2.msra.mxu0 0.0
    %5581 = vmatprep.subr.mxu0 0.0
    %5582 = vmatpush2.msra.mxu0 0.0
    %5583 = vmatprep.subr.mxu0 0.0
    %5584 = vmatpush2.msra.mxu0 0.0
    %5585 = vmatprep.subr.mxu0 0.0
    %5586 = vmatpush2.msra.mxu0 0.0
    %5587 = vmatprep.mubr.f32.mxu0 0.0
    %5588 = vmatmul.mubr.f32.gmra.mxu0 %v4900
    %v5589 = vpop.f32.mrf.mxu0
    %v5590 = vadd.f32 %v5308, %v5589
    %v5591 = vpop.f32.mrf.mxu0
    %5592 = vdwg.mxu0
    %5593 = vst.msk [vmem:[%s6 + $0x6] sm:$0x3] %vm5379, %v5590
    %5594 = vmatprep.subr.mxu0 0.0
    %5595 = vmatpush1.msra.mxu0 0.0
    %5596 = vmatprep.subr.mxu0 0.0
    %5597 = vmatpush1.msra.mxu0 0.0
    %5598 = vmatprep.subr.mxu0 0.0
    %5599 = vmatpush1.msra.mxu0 0.0
    %5600 = vmatprep.subr.mxu0 0.0
    %5601 = vmatpush1.msra.mxu0 0.0
    %5602 = vmatprep.subr.mxu0 0.0
    %5603 = vmatpush1.msra.mxu0 0.0
    %5604 = vmatprep.subr.mxu0 0.0
    %5605 = vmatpush1.msra.mxu0 0.0
    %5606 = vmatprep.subr.mxu0 0.0
    %5607 = vmatpush1.msra.mxu0 0.0
    %5608 = vmatprep.subr.mxu0 0.0
    %5609 = vmatpush1.msra.mxu0 0.0
    %5610 = vmatprep.subr.mxu0 0.0
    %5611 = vmatpush1.msra.mxu0 0.0
    %5612 = vmatprep.subr.mxu0 0.0
    %5613 = vmatpush1.msra.mxu0 0.0
    %5614 = vmatprep.subr.mxu0 0.0
    %5615 = vmatpush1.msra.mxu0 0.0
    %5616 = vmatprep.subr.mxu0 0.0
    %5617 = vmatpush1.msra.mxu0 0.0
    %5618 = vmatprep.subr.mxu0 0.0
    %5619 = vmatpush1.msra.mxu0 %v137
    %5620 = vmatprep.subr.mxu0 0.0
    %5621 = vmatpush1.msra.mxu0 %v136
    %5622 = vmatprep.subr.mxu0 0.0
    %5623 = vmatpush1.msra.mxu0 %v135
    %5624 = vmatprep.subr.mxu0 0.0
    %5625 = vmatpush1.msra.mxu0 %v134
    %5626 = vmatprep.subr.mxu0 0.0
    %5627 = vmatpush2.msra.mxu0 0.0
    %5628 = vmatprep.subr.mxu0 0.0
    %5629 = vmatpush2.msra.mxu0 0.0
    %5630 = vmatprep.subr.mxu0 0.0
    %5631 = vmatpush2.msra.mxu0 0.0
    %5632 = vmatprep.subr.mxu0 0.0
    %5633 = vmatpush2.msra.mxu0 0.0
    %5634 = vmatprep.subr.mxu0 0.0
    %5635 = vmatpush2.msra.mxu0 0.0
    %5636 = vmatprep.subr.mxu0 0.0
    %5637 = vmatpush2.msra.mxu0 0.0
    %5638 = vmatprep.subr.mxu0 0.0
    %5639 = vmatpush2.msra.mxu0 0.0
    %5640 = vmatprep.subr.mxu0 0.0
    %5641 = vmatpush2.msra.mxu0 0.0
    %5642 = vmatprep.subr.mxu0 0.0
    %5643 = vmatpush2.msra.mxu0 0.0
    %5644 = vmatprep.subr.mxu0 0.0
    %5645 = vmatpush2.msra.mxu0 0.0
    %5646 = vmatprep.subr.mxu0 0.0
    %5647 = vmatpush2.msra.mxu0 0.0
    %5648 = vmatprep.subr.mxu0 0.0
    %5649 = vmatpush2.msra.mxu0 0.0
    %5650 = vmatprep.subr.mxu0 0.0
    %5651 = vmatpush2.msra.mxu0 0.0
    %5652 = vmatprep.subr.mxu0 0.0
    %5653 = vmatpush2.msra.mxu0 0.0
    %5654 = vmatprep.subr.mxu0 0.0
    %5655 = vmatpush2.msra.mxu0 0.0
    %5656 = vmatprep.subr.mxu0 0.0
    %5657 = vmatpush2.msra.mxu0 0.0
    %5658 = vmatprep.mubr.f32.mxu0 0.0
    %5659 = vmatmul.mubr.f32.gmra.mxu0 %v5002
    %v5660 = vpop.f32.mrf.mxu0
    %v5661 = vadd.f32 %v5308, %v5660
    %v5662 = vpop.f32.mrf.mxu0
    %5663 = vdwg.mxu0
    %5664 = vst.msk [vmem:[%s6 + $0x8] sm:$0x3] %vm5379, %v5661
    %5665 = vmatprep.subr.mxu0 0.0
    %5666 = vmatpush1.msra.mxu0 0.0
    %5667 = vmatprep.subr.mxu0 0.0
    %5668 = vmatpush1.msra.mxu0 0.0
    %5669 = vmatprep.subr.mxu0 0.0
    %5670 = vmatpush1.msra.mxu0 0.0
    %5671 = vmatprep.subr.mxu0 0.0
    %5672 = vmatpush1.msra.mxu0 0.0
    %5673 = vmatprep.subr.mxu0 0.0
    %5674 = vmatpush1.msra.mxu0 0.0
    %5675 = vmatprep.subr.mxu0 0.0
    %5676 = vmatpush1.msra.mxu0 0.0
    %5677 = vmatprep.subr.mxu0 0.0
    %5678 = vmatpush1.msra.mxu0 0.0
    %5679 = vmatprep.subr.mxu0 0.0
    %5680 = vmatpush1.msra.mxu0 0.0
    %5681 = vmatprep.subr.mxu0 0.0
    %5682 = vmatpush1.msra.mxu0 0.0
    %5683 = vmatprep.subr.mxu0 0.0
    %5684 = vmatpush1.msra.mxu0 0.0
    %5685 = vmatprep.subr.mxu0 0.0
    %5686 = vmatpush1.msra.mxu0 0.0
    %5687 = vmatprep.subr.mxu0 0.0
    %5688 = vmatpush1.msra.mxu0 0.0
    %5689 = vmatprep.subr.mxu0 0.0
    %5690 = vmatpush1.msra.mxu0 %v137
    %5691 = vmatprep.subr.mxu0 0.0
    %5692 = vmatpush1.msra.mxu0 %v136
    %5693 = vmatprep.subr.mxu0 0.0
    %5694 = vmatpush1.msra.mxu0 %v135
    %5695 = vmatprep.subr.mxu0 0.0
    %5696 = vmatpush1.msra.mxu0 %v134
    %5697 = vmatprep.subr.mxu0 0.0
    %5698 = vmatpush2.msra.mxu0 0.0
    %5699 = vmatprep.subr.mxu0 0.0
    %5700 = vmatpush2.msra.mxu0 0.0
    %5701 = vmatprep.subr.mxu0 0.0
    %5702 = vmatpush2.msra.mxu0 0.0
    %5703 = vmatprep.subr.mxu0 0.0
    %5704 = vmatpush2.msra.mxu0 0.0
    %5705 = vmatprep.subr.mxu0 0.0
    %5706 = vmatpush2.msra.mxu0 0.0
    %5707 = vmatprep.subr.mxu0 0.0
    %5708 = vmatpush2.msra.mxu0 0.0
    %5709 = vmatprep.subr.mxu0 0.0
    %5710 = vmatpush2.msra.mxu0 0.0
    %5711 = vmatprep.subr.mxu0 0.0
    %5712 = vmatpush2.msra.mxu0 0.0
    %5713 = vmatprep.subr.mxu0 0.0
    %5714 = vmatpush2.msra.mxu0 0.0
    %5715 = vmatprep.subr.mxu0 0.0
    %5716 = vmatpush2.msra.mxu0 0.0
    %5717 = vmatprep.subr.mxu0 0.0
    %5718 = vmatpush2.msra.mxu0 0.0
    %5719 = vmatprep.subr.mxu0 0.0
    %5720 = vmatpush2.msra.mxu0 0.0
    %5721 = vmatprep.subr.mxu0 0.0
    %5722 = vmatpush2.msra.mxu0 0.0
    %5723 = vmatprep.subr.mxu0 0.0
    %5724 = vmatpush2.msra.mxu0 0.0
    %5725 = vmatprep.subr.mxu0 0.0
    %5726 = vmatpush2.msra.mxu0 0.0
    %5727 = vmatprep.subr.mxu0 0.0
    %5728 = vmatpush2.msra.mxu0 0.0
    %5729 = vmatprep.mubr.f32.mxu0 0.0
    %5730 = vmatmul.mubr.f32.gmra.mxu0 %v5104
    %v5731 = vpop.f32.mrf.mxu0
    %v5732 = vadd.f32 %v5308, %v5731
    %v5733 = vpop.f32.mrf.mxu0
    %5734 = vdwg.mxu0
    %5735 = vst.msk [vmem:[%s6 + $0xa] sm:$0x3] %vm5379, %v5732
    %5736 = vmatprep.subr.mxu0 0.0
    %5737 = vmatpush1.msra.mxu0 0.0
    %5738 = vmatprep.subr.mxu0 0.0
    %5739 = vmatpush1.msra.mxu0 0.0
    %5740 = vmatprep.subr.mxu0 0.0
    %5741 = vmatpush1.msra.mxu0 0.0
    %5742 = vmatprep.subr.mxu0 0.0
    %5743 = vmatpush1.msra.mxu0 0.0
    %5744 = vmatprep.subr.mxu0 0.0
    %5745 = vmatpush1.msra.mxu0 0.0
    %5746 = vmatprep.subr.mxu0 0.0
    %5747 = vmatpush1.msra.mxu0 0.0
    %5748 = vmatprep.subr.mxu0 0.0
    %5749 = vmatpush1.msra.mxu0 0.0
    %5750 = vmatprep.subr.mxu0 0.0
    %5751 = vmatpush1.msra.mxu0 0.0
    %5752 = vmatprep.subr.mxu0 0.0
    %5753 = vmatpush1.msra.mxu0 0.0
    %5754 = vmatprep.subr.mxu0 0.0
    %5755 = vmatpush1.msra.mxu0 0.0
    %5756 = vmatprep.subr.mxu0 0.0
    %5757 = vmatpush1.msra.mxu0 0.0
    %5758 = vmatprep.subr.mxu0 0.0
    %5759 = vmatpush1.msra.mxu0 0.0
    %5760 = vmatprep.subr.mxu0 0.0
    %5761 = vmatpush1.msra.mxu0 %v137
    %5762 = vmatprep.subr.mxu0 0.0
    %5763 = vmatpush1.msra.mxu0 %v136
    %5764 = vmatprep.subr.mxu0 0.0
    %5765 = vmatpush1.msra.mxu0 %v135
    %5766 = vmatprep.subr.mxu0 0.0
    %5767 = vmatpush1.msra.mxu0 %v134
    %5768 = vmatprep.subr.mxu0 0.0
    %5769 = vmatpush2.msra.mxu0 0.0
    %5770 = vmatprep.subr.mxu0 0.0
    %5771 = vmatpush2.msra.mxu0 0.0
    %5772 = vmatprep.subr.mxu0 0.0
    %5773 = vmatpush2.msra.mxu0 0.0
    %5774 = vmatprep.subr.mxu0 0.0
    %5775 = vmatpush2.msra.mxu0 0.0
    %5776 = vmatprep.subr.mxu0 0.0
    %5777 = vmatpush2.msra.mxu0 0.0
    %5778 = vmatprep.subr.mxu0 0.0
    %5779 = vmatpush2.msra.mxu0 0.0
    %5780 = vmatprep.subr.mxu0 0.0
    %5781 = vmatpush2.msra.mxu0 0.0
    %5782 = vmatprep.subr.mxu0 0.0
    %5783 = vmatpush2.msra.mxu0 0.0
    %5784 = vmatprep.subr.mxu0 0.0
    %5785 = vmatpush2.msra.mxu0 0.0
    %5786 = vmatprep.subr.mxu0 0.0
    %5787 = vmatpush2.msra.mxu0 0.0
    %5788 = vmatprep.subr.mxu0 0.0
    %5789 = vmatpush2.msra.mxu0 0.0
    %5790 = vmatprep.subr.mxu0 0.0
    %5791 = vmatpush2.msra.mxu0 0.0
    %5792 = vmatprep.subr.mxu0 0.0
    %5793 = vmatpush2.msra.mxu0 0.0
    %5794 = vmatprep.subr.mxu0 0.0
    %5795 = vmatpush2.msra.mxu0 0.0
    %5796 = vmatprep.subr.mxu0 0.0
    %5797 = vmatpush2.msra.mxu0 0.0
    %5798 = vmatprep.subr.mxu0 0.0
    %5799 = vmatpush2.msra.mxu0 0.0
    %5800 = vmatprep.mubr.f32.mxu0 0.0
    %5801 = vmatmul.mubr.f32.gmra.mxu0 %v5206
    %v5802 = vpop.f32.mrf.mxu0
    %v5803 = vadd.f32 %v5308, %v5802
    %v5804 = vpop.f32.mrf.mxu0
    %5805 = vdwg.mxu0
    %5806 = vst.msk [vmem:[%s6 + $0xc] sm:$0x3] %vm5379, %v5803
    %5808 = vrot.lane.b32.xlu0 %v5304, 96
    %v5809 = vpop.permute.xlu0 %5808
    %v5810 = vsel %vm1128, %v5809, 0
    %5812 = vmatprep.subr.mxu0 0.0
    %5813 = vmatpush1.msra.mxu0 0.0
    %5814 = vmatprep.subr.mxu0 0.0
    %5815 = vmatpush1.msra.mxu0 0.0
    %5816 = vmatprep.subr.mxu0 0.0
    %5817 = vmatpush1.msra.mxu0 0.0
    %5818 = vmatprep.subr.mxu0 0.0
    %5819 = vmatpush1.msra.mxu0 0.0
    %5820 = vmatprep.subr.mxu0 0.0
    %5821 = vmatpush1.msra.mxu0 0.0
    %5822 = vmatprep.subr.mxu0 0.0
    %5823 = vmatpush1.msra.mxu0 0.0
    %5824 = vmatprep.subr.mxu0 0.0
    %5825 = vmatpush1.msra.mxu0 0.0
    %5826 = vmatprep.subr.mxu0 0.0
    %5827 = vmatpush1.msra.mxu0 0.0
    %5828 = vmatprep.subr.mxu0 0.0
    %5829 = vmatpush1.msra.mxu0 0.0
    %5830 = vmatprep.subr.mxu0 0.0
    %5831 = vmatpush1.msra.mxu0 0.0
    %5832 = vmatprep.subr.mxu0 0.0
    %5833 = vmatpush1.msra.mxu0 0.0
    %5834 = vmatprep.subr.mxu0 0.0
    %5835 = vmatpush1.msra.mxu0 0.0
    %5836 = vmatprep.subr.mxu0 0.0
    %5837 = vmatpush1.msra.mxu0 %v137
    %5838 = vmatprep.subr.mxu0 0.0
    %5839 = vmatpush1.msra.mxu0 %v136
    %5840 = vmatprep.subr.mxu0 0.0
    %5841 = vmatpush1.msra.mxu0 %v135
    %5842 = vmatprep.subr.mxu0 0.0
    %5843 = vmatpush1.msra.mxu0 %v134
    %5844 = vmatprep.subr.mxu0 0.0
    %5845 = vmatpush2.msra.mxu0 0.0
    %5846 = vmatprep.subr.mxu0 0.0
    %5847 = vmatpush2.msra.mxu0 0.0
    %5848 = vmatprep.subr.mxu0 0.0
    %5849 = vmatpush2.msra.mxu0 0.0
    %5850 = vmatprep.subr.mxu0 0.0
    %5851 = vmatpush2.msra.mxu0 0.0
    %5852 = vmatprep.subr.mxu0 0.0
    %5853 = vmatpush2.msra.mxu0 0.0
    %5854 = vmatprep.subr.mxu0 0.0
    %5855 = vmatpush2.msra.mxu0 0.0
    %5856 = vmatprep.subr.mxu0 0.0
    %5857 = vmatpush2.msra.mxu0 0.0
    %5858 = vmatprep.subr.mxu0 0.0
    %5859 = vmatpush2.msra.mxu0 0.0
    %5860 = vmatprep.subr.mxu0 0.0
    %5861 = vmatpush2.msra.mxu0 0.0
    %5862 = vmatprep.subr.mxu0 0.0
    %5863 = vmatpush2.msra.mxu0 0.0
    %5864 = vmatprep.subr.mxu0 0.0
    %5865 = vmatpush2.msra.mxu0 0.0
    %5866 = vmatprep.subr.mxu0 0.0
    %5867 = vmatpush2.msra.mxu0 0.0
    %5868 = vmatprep.subr.mxu0 0.0
    %5869 = vmatpush2.msra.mxu0 0.0
    %5870 = vmatprep.subr.mxu0 0.0
    %5871 = vmatpush2.msra.mxu0 0.0
    %5872 = vmatprep.subr.mxu0 0.0
    %5873 = vmatpush2.msra.mxu0 0.0
    %5874 = vmatprep.subr.mxu0 0.0
    %5875 = vmatpush2.msra.mxu0 0.0
    %5876 = vmatprep.mubr.f32.mxu0 0.0
    %5877 = vmatmul.mubr.f32.gmra.mxu0 %v5810
    %v5878 = vpop.f32.mrf.mxu0
    %v5879 = vadd.f32 %v5308, %v5878
    %v5880 = vpop.f32.mrf.mxu0
    %5881 = vdwg.mxu0
    %5882 = vst.msk [vmem:[%s6 + $0xe] sm:$0x3] %vm5379, %v5879
    %v5883 = vxor.u32 %v4492, 2147483648
    %v5884 = vmul.f32 %v5883, 1.442695
    %v5885 = vpow.pop %v5884
    %v5886 = vadd.f32 %v5885, 1.0
    %v5887 = vrcp.pop %v5886
    %v5888 = vmul.f32 1.0, %v5887
    %v5889 = vlaneseq
    %v5890 = vshrl.u32 %v5889, 7
    %v5891 = vsub.s32 7, %v5890
    %v5892 = vrot.slane %v146, %v5891
    %5894 = vrot.lane.b32.xlu0 %v5892, 96
    %v5895 = vpop.permute.xlu0 %5894
    %v5897 = vmul.f32 %v4569, %v5895
    %v5898 = vmul.f32 %v5888, %v5895
    %v5899 = vadd.f32 %v4492, %v5897
    %v5900 = vadd.f32 %v4561, %v5898
    %v5901 = vtanh.pop %v5899
    %v5902 = vtanh.pop %v5900
    %v5903 = vsub.f32 1.0, %v5888
    %5906 = vrot.lane.b32.xlu0 %v5901, 64
    %v5907 = vpop.permute.xlu0 %5906
    %5908 = vrot.lane.b32.xlu0 %v5902, 64
    %v5909 = vpop.permute.xlu0 %5908
    %v5910 = vsel %vm329, %v5907, %v5909
    %v5912 = vmul.f32 %v5903, %v5910
    %5914 = vrot.lane.b32.xlu0 %v5912, 96
    %v5915 = vpop.permute.xlu0 %5914
    %v5916 = vsel %vm329, %v5915, 0
    %5918 = vmatprep.subr.mxu0 0.0
    %5919 = vmatpush1.msra.mxu0 0.0
    %5920 = vmatprep.subr.mxu0 0.0
    %5921 = vmatpush1.msra.mxu0 0.0
    %5922 = vmatprep.subr.mxu0 0.0
    %5923 = vmatpush1.msra.mxu0 0.0
    %5924 = vmatprep.subr.mxu0 0.0
    %5925 = vmatpush1.msra.mxu0 0.0
    %5926 = vmatprep.subr.mxu0 0.0
    %5927 = vmatpush1.msra.mxu0 0.0
    %5928 = vmatprep.subr.mxu0 0.0
    %5929 = vmatpush1.msra.mxu0 0.0
    %5930 = vmatprep.subr.mxu0 0.0
    %5931 = vmatpush1.msra.mxu0 0.0
    %5932 = vmatprep.subr.mxu0 0.0
    %5933 = vmatpush1.msra.mxu0 0.0
    %5934 = vmatprep.subr.mxu0 %v81
    %5935 = vmatpush1.msra.mxu0 %v80
    %5936 = vmatprep.subr.mxu0 %v79
    %5937 = vmatpush1.msra.mxu0 %v78
    %5938 = vmatprep.subr.mxu0 %v77
    %5939 = vmatpush1.msra.mxu0 %v76
    %5940 = vmatprep.subr.mxu0 %v75
    %5941 = vmatpush1.msra.mxu0 %v74
    %5942 = vmatprep.subr.mxu0 %v73
    %5943 = vmatpush1.msra.mxu0 %v72
    %5944 = vmatprep.subr.mxu0 %v71
    %5945 = vmatpush1.msra.mxu0 %v70
    %5946 = vmatprep.subr.mxu0 %v69
    %5947 = vmatpush1.msra.mxu0 %v68
    %5948 = vmatprep.subr.mxu0 %v67
    %5949 = vmatpush1.msra.mxu0 %v66
    %5950 = vmatprep.subr.mxu0 0.0
    %5951 = vmatpush2.msra.mxu0 0.0
    %5952 = vmatprep.subr.mxu0 0.0
    %5953 = vmatpush2.msra.mxu0 0.0
    %5954 = vmatprep.subr.mxu0 0.0
    %5955 = vmatpush2.msra.mxu0 0.0
    %5956 = vmatprep.subr.mxu0 0.0
    %5957 = vmatpush2.msra.mxu0 0.0
    %5958 = vmatprep.subr.mxu0 0.0
    %5959 = vmatpush2.msra.mxu0 0.0
    %5960 = vmatprep.subr.mxu0 0.0
    %5961 = vmatpush2.msra.mxu0 0.0
    %5962 = vmatprep.subr.mxu0 0.0
    %5963 = vmatpush2.msra.mxu0 0.0
    %5964 = vmatprep.subr.mxu0 0.0
    %5965 = vmatpush2.msra.mxu0 0.0
    %5966 = vmatprep.subr.mxu0 0.0
    %5967 = vmatpush2.msra.mxu0 0.0
    %5968 = vmatprep.subr.mxu0 0.0
    %5969 = vmatpush2.msra.mxu0 0.0
    %5970 = vmatprep.subr.mxu0 0.0
    %5971 = vmatpush2.msra.mxu0 0.0
    %5972 = vmatprep.subr.mxu0 0.0
    %5973 = vmatpush2.msra.mxu0 0.0
    %5974 = vmatprep.subr.mxu0 0.0
    %5975 = vmatpush2.msra.mxu0 0.0
    %5976 = vmatprep.subr.mxu0 0.0
    %5977 = vmatpush2.msra.mxu0 0.0
    %5978 = vmatprep.subr.mxu0 0.0
    %5979 = vmatpush2.msra.mxu0 0.0
    %5980 = vmatprep.subr.mxu0 0.0
    %5981 = vmatpush2.msra.mxu0 0.0
    %5982 = vmatprep.mubr.f32.mxu0 0.0
    %5983 = vmatmul.mubr.f32.gmra.mxu0 %v5916
    %v5984 = vpop.f32.mrf.mxu0
    %v5985 = vadd.f32 0.0, %v5984
    %v5986 = vpop.f32.mrf.mxu0
    %v5987 = vadd.f32 0.0, %v5986
    %5988 = vdwg.mxu0
    %5990 = vrot.lane.b32.xlu0 %v5985, 96
    %v5991 = vpop.permute.xlu0 %5990
    %v5993 = vadd.f32 %v4490, %v5991
    %v5994 = vadd.f32 %v4492, %v5991
    %v5995 = vxor.u32 %v5993, 2147483648
    %v5996 = vxor.u32 %v5994, 2147483648
    %v5997 = vmul.f32 %v5995, 1.442695
    %v5998 = vpow.pop %v5997
    %v5999 = vmul.f32 %v5996, 1.442695
    %v6000 = vpow.pop %v5999
    %v6001 = vadd.f32 %v5998, 1.0
    %v6002 = vadd.f32 %v6000, 1.0
    %v6003 = vrcp.pop %v6001
    %v6004 = vmul.f32 1.0, %v6003
    %v6005 = vrcp.pop %v6002
    %v6006 = vmul.f32 1.0, %v6005
    %v6007 = vadd.f32 %v5987, %v5892
    %6009 = vrot.lane.b32.xlu0 %v6007, 96
    %v6010 = vpop.permute.xlu0 %6009
    %v6012 = vmul.f32 %v6004, %v6010
    %v6013 = vmul.f32 %v6006, %v6010
    %v6014 = vadd.f32 %v4492, %v6012
    %v6015 = vadd.f32 %v4561, %v6013
    %v6016 = vtanh.pop %v6014
    %v6017 = vtanh.pop %v6015
    %v6018 = vsub.f32 1.0, %v6006
    %6021 = vrot.lane.b32.xlu0 %v6016, 64
    %v6022 = vpop.permute.xlu0 %6021
    %6023 = vrot.lane.b32.xlu0 %v6017, 64
    %v6024 = vpop.permute.xlu0 %6023
    %v6025 = vsel %vm329, %v6022, %v6024
    %v6027 = vmul.f32 %v6018, %v6025
    %v6028 = vmul.f32 %v6006, %v5912
    %v6029 = vadd.f32 %v6027, %v6028
    %6031 = vrot.lane.b32.xlu0 %v6029, 96
    %v6032 = vpop.permute.xlu0 %6031
    %v6033 = vsel %vm329, %v6032, 0
    %6035 = vmatprep.subr.mxu0 0.0
    %6036 = vmatpush1.msra.mxu0 0.0
    %6037 = vmatprep.subr.mxu0 0.0
    %6038 = vmatpush1.msra.mxu0 0.0
    %6039 = vmatprep.subr.mxu0 0.0
    %6040 = vmatpush1.msra.mxu0 0.0
    %6041 = vmatprep.subr.mxu0 0.0
    %6042 = vmatpush1.msra.mxu0 0.0
    %6043 = vmatprep.subr.mxu0 0.0
    %6044 = vmatpush1.msra.mxu0 0.0
    %6045 = vmatprep.subr.mxu0 0.0
    %6046 = vmatpush1.msra.mxu0 0.0
    %6047 = vmatprep.subr.mxu0 0.0
    %6048 = vmatpush1.msra.mxu0 0.0
    %6049 = vmatprep.subr.mxu0 0.0
    %6050 = vmatpush1.msra.mxu0 0.0
    %6051 = vmatprep.subr.mxu0 %v81
    %6052 = vmatpush1.msra.mxu0 %v80
    %6053 = vmatprep.subr.mxu0 %v79
    %6054 = vmatpush1.msra.mxu0 %v78
    %6055 = vmatprep.subr.mxu0 %v77
    %6056 = vmatpush1.msra.mxu0 %v76
    %6057 = vmatprep.subr.mxu0 %v75
    %6058 = vmatpush1.msra.mxu0 %v74
    %6059 = vmatprep.subr.mxu0 %v73
    %6060 = vmatpush1.msra.mxu0 %v72
    %6061 = vmatprep.subr.mxu0 %v71
    %6062 = vmatpush1.msra.mxu0 %v70
    %6063 = vmatprep.subr.mxu0 %v69
    %6064 = vmatpush1.msra.mxu0 %v68
    %6065 = vmatprep.subr.mxu0 %v67
    %6066 = vmatpush1.msra.mxu0 %v66
    %6067 = vmatprep.subr.mxu0 0.0
    %6068 = vmatpush2.msra.mxu0 0.0
    %6069 = vmatprep.subr.mxu0 0.0
    %6070 = vmatpush2.msra.mxu0 0.0
    %6071 = vmatprep.subr.mxu0 0.0
    %6072 = vmatpush2.msra.mxu0 0.0
    %6073 = vmatprep.subr.mxu0 0.0
    %6074 = vmatpush2.msra.mxu0 0.0
    %6075 = vmatprep.subr.mxu0 0.0
    %6076 = vmatpush2.msra.mxu0 0.0
    %6077 = vmatprep.subr.mxu0 0.0
    %6078 = vmatpush2.msra.mxu0 0.0
    %6079 = vmatprep.subr.mxu0 0.0
    %6080 = vmatpush2.msra.mxu0 0.0
    %6081 = vmatprep.subr.mxu0 0.0
    %6082 = vmatpush2.msra.mxu0 0.0
    %6083 = vmatprep.subr.mxu0 0.0
    %6084 = vmatpush2.msra.mxu0 0.0
    %6085 = vmatprep.subr.mxu0 0.0
    %6086 = vmatpush2.msra.mxu0 0.0
    %6087 = vmatprep.subr.mxu0 0.0
    %6088 = vmatpush2.msra.mxu0 0.0
    %6089 = vmatprep.subr.mxu0 0.0
    %6090 = vmatpush2.msra.mxu0 0.0
    %6091 = vmatprep.subr.mxu0 0.0
    %6092 = vmatpush2.msra.mxu0 0.0
    %6093 = vmatprep.subr.mxu0 0.0
    %6094 = vmatpush2.msra.mxu0 0.0
    %6095 = vmatprep.subr.mxu0 0.0
    %6096 = vmatpush2.msra.mxu0 0.0
    %6097 = vmatprep.subr.mxu0 0.0
    %6098 = vmatpush2.msra.mxu0 0.0
    %6099 = vmatprep.mubr.f32.mxu0 0.0
    %6100 = vmatmul.mubr.f32.gmra.mxu0 %v6033
    %v6101 = vpop.f32.mrf.mxu0
    %v6102 = vadd.f32 0.0, %v6101
    %v6103 = vpop.f32.mrf.mxu0
    %v6104 = vadd.f32 0.0, %v6103
    %6105 = vdwg.mxu0
    %6107 = vrot.lane.b32.xlu0 %v6102, 96
    %v6108 = vpop.permute.xlu0 %6107
    %v6110 = vadd.f32 %v4490, %v6108
    %v6111 = vadd.f32 %v4492, %v6108
    %v6112 = vxor.u32 %v6110, 2147483648
    %v6113 = vxor.u32 %v6111, 2147483648
    %v6114 = vmul.f32 %v6112, 1.442695
    %v6115 = vpow.pop %v6114
    %v6116 = vmul.f32 %v6113, 1.442695
    %v6117 = vpow.pop %v6116
    %v6118 = vadd.f32 %v6115, 1.0
    %v6119 = vadd.f32 %v6117, 1.0
    %v6120 = vrcp.pop %v6118
    %v6121 = vmul.f32 1.0, %v6120
    %v6122 = vrcp.pop %v6119
    %v6123 = vmul.f32 1.0, %v6122
    %v6124 = vadd.f32 %v6104, %v5892
    %6126 = vrot.lane.b32.xlu0 %v6124, 96
    %v6127 = vpop.permute.xlu0 %6126
    %v6129 = vmul.f32 %v6121, %v6127
    %v6130 = vmul.f32 %v6123, %v6127
    %v6131 = vadd.f32 %v4492, %v6129
    %v6132 = vadd.f32 %v4561, %v6130
    %v6133 = vtanh.pop %v6131
    %v6134 = vtanh.pop %v6132
    %v6135 = vsub.f32 1.0, %v6123
    %6138 = vrot.lane.b32.xlu0 %v6133, 64
    %v6139 = vpop.permute.xlu0 %6138
    %6140 = vrot.lane.b32.xlu0 %v6134, 64
    %v6141 = vpop.permute.xlu0 %6140
    %v6142 = vsel %vm329, %v6139, %v6141
    %v6144 = vmul.f32 %v6135, %v6142
    %v6145 = vmul.f32 %v6123, %v6029
    %v6146 = vadd.f32 %v6144, %v6145
    %6148 = vrot.lane.b32.xlu0 %v6146, 96
    %v6149 = vpop.permute.xlu0 %6148
    %v6150 = vsel %vm329, %v6149, 0
    %6152 = vmatprep.subr.mxu0 0.0
    %6153 = vmatpush1.msra.mxu0 0.0
    %6154 = vmatprep.subr.mxu0 0.0
    %6155 = vmatpush1.msra.mxu0 0.0
    %6156 = vmatprep.subr.mxu0 0.0
    %6157 = vmatpush1.msra.mxu0 0.0
    %6158 = vmatprep.subr.mxu0 0.0
    %6159 = vmatpush1.msra.mxu0 0.0
    %6160 = vmatprep.subr.mxu0 0.0
    %6161 = vmatpush1.msra.mxu0 0.0
    %6162 = vmatprep.subr.mxu0 0.0
    %6163 = vmatpush1.msra.mxu0 0.0
    %6164 = vmatprep.subr.mxu0 0.0
    %6165 = vmatpush1.msra.mxu0 0.0
    %6166 = vmatprep.subr.mxu0 0.0
    %6167 = vmatpush1.msra.mxu0 0.0
    %6168 = vmatprep.subr.mxu0 %v81
    %6169 = vmatpush1.msra.mxu0 %v80
    %6170 = vmatprep.subr.mxu0 %v79
    %6171 = vmatpush1.msra.mxu0 %v78
    %6172 = vmatprep.subr.mxu0 %v77
    %6173 = vmatpush1.msra.mxu0 %v76
    %6174 = vmatprep.subr.mxu0 %v75
    %6175 = vmatpush1.msra.mxu0 %v74
    %6176 = vmatprep.subr.mxu0 %v73
    %6177 = vmatpush1.msra.mxu0 %v72
    %6178 = vmatprep.subr.mxu0 %v71
    %6179 = vmatpush1.msra.mxu0 %v70
    %6180 = vmatprep.subr.mxu0 %v69
    %6181 = vmatpush1.msra.mxu0 %v68
    %6182 = vmatprep.subr.mxu0 %v67
    %6183 = vmatpush1.msra.mxu0 %v66
    %6184 = vmatprep.subr.mxu0 0.0
    %6185 = vmatpush2.msra.mxu0 0.0
    %6186 = vmatprep.subr.mxu0 0.0
    %6187 = vmatpush2.msra.mxu0 0.0
    %6188 = vmatprep.subr.mxu0 0.0
    %6189 = vmatpush2.msra.mxu0 0.0
    %6190 = vmatprep.subr.mxu0 0.0
    %6191 = vmatpush2.msra.mxu0 0.0
    %6192 = vmatprep.subr.mxu0 0.0
    %6193 = vmatpush2.msra.mxu0 0.0
    %6194 = vmatprep.subr.mxu0 0.0
    %6195 = vmatpush2.msra.mxu0 0.0
    %6196 = vmatprep.subr.mxu0 0.0
    %6197 = vmatpush2.msra.mxu0 0.0
    %6198 = vmatprep.subr.mxu0 0.0
    %6199 = vmatpush2.msra.mxu0 0.0
    %6200 = vmatprep.subr.mxu0 0.0
    %6201 = vmatpush2.msra.mxu0 0.0
    %6202 = vmatprep.subr.mxu0 0.0
    %6203 = vmatpush2.msra.mxu0 0.0
    %6204 = vmatprep.subr.mxu0 0.0
    %6205 = vmatpush2.msra.mxu0 0.0
    %6206 = vmatprep.subr.mxu0 0.0
    %6207 = vmatpush2.msra.mxu0 0.0
    %6208 = vmatprep.subr.mxu0 0.0
    %6209 = vmatpush2.msra.mxu0 0.0
    %6210 = vmatprep.subr.mxu0 0.0
    %6211 = vmatpush2.msra.mxu0 0.0
    %6212 = vmatprep.subr.mxu0 0.0
    %6213 = vmatpush2.msra.mxu0 0.0
    %6214 = vmatprep.subr.mxu0 0.0
    %6215 = vmatpush2.msra.mxu0 0.0
    %6216 = vmatprep.mubr.f32.mxu0 0.0
    %6217 = vmatmul.mubr.f32.gmra.mxu0 %v6150
    %v6218 = vpop.f32.mrf.mxu0
    %v6219 = vadd.f32 0.0, %v6218
    %v6220 = vpop.f32.mrf.mxu0
    %v6221 = vadd.f32 0.0, %v6220
    %6222 = vdwg.mxu0
    %6224 = vrot.lane.b32.xlu0 %v6219, 96
    %v6225 = vpop.permute.xlu0 %6224
    %v6227 = vadd.f32 %v4490, %v6225
    %v6228 = vadd.f32 %v4492, %v6225
    %v6229 = vxor.u32 %v6227, 2147483648
    %v6230 = vxor.u32 %v6228, 2147483648
    %v6231 = vmul.f32 %v6229, 1.442695
    %v6232 = vpow.pop %v6231
    %v6233 = vmul.f32 %v6230, 1.442695
    %v6234 = vpow.pop %v6233
    %v6235 = vadd.f32 %v6232, 1.0
    %v6236 = vadd.f32 %v6234, 1.0
    %v6237 = vrcp.pop %v6235
    %v6238 = vmul.f32 1.0, %v6237
    %v6239 = vrcp.pop %v6236
    %v6240 = vmul.f32 1.0, %v6239
    %v6241 = vadd.f32 %v6221, %v5892
    %6243 = vrot.lane.b32.xlu0 %v6241, 96
    %v6244 = vpop.permute.xlu0 %6243
    %v6246 = vmul.f32 %v6238, %v6244
    %v6247 = vmul.f32 %v6240, %v6244
    %v6248 = vadd.f32 %v4492, %v6246
    %v6249 = vadd.f32 %v4561, %v6247
    %v6250 = vtanh.pop %v6248
    %v6251 = vtanh.pop %v6249
    %v6252 = vsub.f32 1.0, %v6240
    %6255 = vrot.lane.b32.xlu0 %v6250, 64
    %v6256 = vpop.permute.xlu0 %6255
    %6257 = vrot.lane.b32.xlu0 %v6251, 64
    %v6258 = vpop.permute.xlu0 %6257
    %v6259 = vsel %vm329, %v6256, %v6258
    %v6261 = vmul.f32 %v6252, %v6259
    %v6262 = vmul.f32 %v6240, %v6146
    %v6263 = vadd.f32 %v6261, %v6262
    %6265 = vrot.lane.b32.xlu0 %v6263, 64
    %v6266 = vpop.permute.xlu0 %6265
    %v6267 = vsel %vm1128, %v6266, 0
    %6269 = vmatprep.subr.mxu0 0.0
    %6270 = vmatpush1.msra.mxu0 0.0
    %6271 = vmatprep.subr.mxu0 0.0
    %6272 = vmatpush1.msra.mxu0 0.0
    %6273 = vmatprep.subr.mxu0 0.0
    %6274 = vmatpush1.msra.mxu0 0.0
    %6275 = vmatprep.subr.mxu0 0.0
    %6276 = vmatpush1.msra.mxu0 0.0
    %6277 = vmatprep.subr.mxu0 0.0
    %6278 = vmatpush1.msra.mxu0 0.0
    %6279 = vmatprep.subr.mxu0 0.0
    %6280 = vmatpush1.msra.mxu0 0.0
    %6281 = vmatprep.subr.mxu0 0.0
    %6282 = vmatpush1.msra.mxu0 0.0
    %6283 = vmatprep.subr.mxu0 0.0
    %6284 = vmatpush1.msra.mxu0 0.0
    %6285 = vmatprep.subr.mxu0 0.0
    %6286 = vmatpush1.msra.mxu0 0.0
    %6287 = vmatprep.subr.mxu0 0.0
    %6288 = vmatpush1.msra.mxu0 0.0
    %6289 = vmatprep.subr.mxu0 0.0
    %6290 = vmatpush1.msra.mxu0 0.0
    %6291 = vmatprep.subr.mxu0 0.0
    %6292 = vmatpush1.msra.mxu0 0.0
    %6293 = vmatprep.subr.mxu0 0.0
    %6294 = vmatpush1.msra.mxu0 %v145
    %6295 = vmatprep.subr.mxu0 0.0
    %6296 = vmatpush1.msra.mxu0 %v144
    %6297 = vmatprep.subr.mxu0 0.0
    %6298 = vmatpush1.msra.mxu0 %v143
    %6299 = vmatprep.subr.mxu0 0.0
    %6300 = vmatpush1.msra.mxu0 %v142
    %6301 = vmatprep.subr.mxu0 0.0
    %6302 = vmatpush2.msra.mxu0 0.0
    %6303 = vmatprep.subr.mxu0 0.0
    %6304 = vmatpush2.msra.mxu0 0.0
    %6305 = vmatprep.subr.mxu0 0.0
    %6306 = vmatpush2.msra.mxu0 0.0
    %6307 = vmatprep.subr.mxu0 0.0
    %6308 = vmatpush2.msra.mxu0 0.0
    %6309 = vmatprep.subr.mxu0 0.0
    %6310 = vmatpush2.msra.mxu0 0.0
    %6311 = vmatprep.subr.mxu0 0.0
    %6312 = vmatpush2.msra.mxu0 0.0
    %6313 = vmatprep.subr.mxu0 0.0
    %6314 = vmatpush2.msra.mxu0 0.0
    %6315 = vmatprep.subr.mxu0 0.0
    %6316 = vmatpush2.msra.mxu0 0.0
    %6317 = vmatprep.subr.mxu0 0.0
    %6318 = vmatpush2.msra.mxu0 0.0
    %6319 = vmatprep.subr.mxu0 0.0
    %6320 = vmatpush2.msra.mxu0 0.0
    %6321 = vmatprep.subr.mxu0 0.0
    %6322 = vmatpush2.msra.mxu0 0.0
    %6323 = vmatprep.subr.mxu0 0.0
    %6324 = vmatpush2.msra.mxu0 0.0
    %6325 = vmatprep.subr.mxu0 0.0
    %6326 = vmatpush2.msra.mxu0 0.0
    %6327 = vmatprep.subr.mxu0 0.0
    %6328 = vmatpush2.msra.mxu0 0.0
    %6329 = vmatprep.subr.mxu0 0.0
    %6330 = vmatpush2.msra.mxu0 0.0
    %6331 = vmatprep.subr.mxu0 0.0
    %6332 = vmatpush2.msra.mxu0 0.0
    %6333 = vmatprep.mubr.f32.mxu0 0.0
    %6334 = vmatmul.mubr.f32.gmra.mxu0 %v6267
    %v6335 = vpop.f32.mrf.mxu0
    %v6336 = vadd.f32 0.0, %v6335
    %v6337 = vpop.f32.mrf.mxu0
    %6338 = vdwg.mxu0
    %v6339 = vsel %vm1128, %v5915, 0
    %6341 = vmatprep.subr.mxu0 0.0
    %6342 = vmatpush1.msra.mxu0 0.0
    %6343 = vmatprep.subr.mxu0 0.0
    %6344 = vmatpush1.msra.mxu0 0.0
    %6345 = vmatprep.subr.mxu0 0.0
    %6346 = vmatpush1.msra.mxu0 0.0
    %6347 = vmatprep.subr.mxu0 0.0
    %6348 = vmatpush1.msra.mxu0 0.0
    %6349 = vmatprep.subr.mxu0 0.0
    %6350 = vmatpush1.msra.mxu0 0.0
    %6351 = vmatprep.subr.mxu0 0.0
    %6352 = vmatpush1.msra.mxu0 0.0
    %6353 = vmatprep.subr.mxu0 0.0
    %6354 = vmatpush1.msra.mxu0 0.0
    %6355 = vmatprep.subr.mxu0 0.0
    %6356 = vmatpush1.msra.mxu0 0.0
    %6357 = vmatprep.subr.mxu0 0.0
    %6358 = vmatpush1.msra.mxu0 0.0
    %6359 = vmatprep.subr.mxu0 0.0
    %6360 = vmatpush1.msra.mxu0 0.0
    %6361 = vmatprep.subr.mxu0 0.0
    %6362 = vmatpush1.msra.mxu0 0.0
    %6363 = vmatprep.subr.mxu0 0.0
    %6364 = vmatpush1.msra.mxu0 0.0
    %6365 = vmatprep.subr.mxu0 0.0
    %6366 = vmatpush1.msra.mxu0 %v141
    %6367 = vmatprep.subr.mxu0 0.0
    %6368 = vmatpush1.msra.mxu0 %v140
    %6369 = vmatprep.subr.mxu0 0.0
    %6370 = vmatpush1.msra.mxu0 %v139
    %6371 = vmatprep.subr.mxu0 0.0
    %6372 = vmatpush1.msra.mxu0 %v138
    %6373 = vmatprep.subr.mxu0 0.0
    %6374 = vmatpush2.msra.mxu0 0.0
    %6375 = vmatprep.subr.mxu0 0.0
    %6376 = vmatpush2.msra.mxu0 0.0
    %6377 = vmatprep.subr.mxu0 0.0
    %6378 = vmatpush2.msra.mxu0 0.0
    %6379 = vmatprep.subr.mxu0 0.0
    %6380 = vmatpush2.msra.mxu0 0.0
    %6381 = vmatprep.subr.mxu0 0.0
    %6382 = vmatpush2.msra.mxu0 0.0
    %6383 = vmatprep.subr.mxu0 0.0
    %6384 = vmatpush2.msra.mxu0 0.0
    %6385 = vmatprep.subr.mxu0 0.0
    %6386 = vmatpush2.msra.mxu0 0.0
    %6387 = vmatprep.subr.mxu0 0.0
    %6388 = vmatpush2.msra.mxu0 0.0
    %6389 = vmatprep.subr.mxu0 0.0
    %6390 = vmatpush2.msra.mxu0 0.0
    %6391 = vmatprep.subr.mxu0 0.0
    %6392 = vmatpush2.msra.mxu0 0.0
    %6393 = vmatprep.subr.mxu0 0.0
    %6394 = vmatpush2.msra.mxu0 0.0
    %6395 = vmatprep.subr.mxu0 0.0
    %6396 = vmatpush2.msra.mxu0 0.0
    %6397 = vmatprep.subr.mxu0 0.0
    %6398 = vmatpush2.msra.mxu0 0.0
    %6399 = vmatprep.subr.mxu0 0.0
    %6400 = vmatpush2.msra.mxu0 0.0
    %6401 = vmatprep.subr.mxu0 0.0
    %6402 = vmatpush2.msra.mxu0 0.0
    %6403 = vmatprep.subr.mxu0 0.0
    %6404 = vmatpush2.msra.mxu0 0.0
    %6405 = vmatprep.mubr.f32.mxu0 0.0
    %6406 = vmatmul.mubr.f32.gmra.mxu0 %v6339
    %v6407 = vpop.f32.mrf.mxu0
    %v6408 = vadd.f32 %v6336, %v6407
    %v6409 = vpop.f32.mrf.mxu0
    %6410 = vdwg.mxu0
    %v6411 = vlaneseq
    %v6412 = vshrl.u32 %v6411, 7
    %v6413 = vsub.s32 1, %v6412
    %v6414 = vrot.slane %v149, %v6413
    %v6415 = vadd.f32 %v6408, %v6414
    %6416 = vst.msk [vmem:[%s7] sm:$0x3] %vm5379, %v6415
    %6417 = vrot.lane.b32.xlu0 %v6146, 64
    %v6418 = vpop.permute.xlu0 %6417
    %v6419 = vsel %vm1128, %v6418, 0
    %6421 = vmatprep.subr.mxu0 0.0
    %6422 = vmatpush1.msra.mxu0 0.0
    %6423 = vmatprep.subr.mxu0 0.0
    %6424 = vmatpush1.msra.mxu0 0.0
    %6425 = vmatprep.subr.mxu0 0.0
    %6426 = vmatpush1.msra.mxu0 0.0
    %6427 = vmatprep.subr.mxu0 0.0
    %6428 = vmatpush1.msra.mxu0 0.0
    %6429 = vmatprep.subr.mxu0 0.0
    %6430 = vmatpush1.msra.mxu0 0.0
    %6431 = vmatprep.subr.mxu0 0.0
    %6432 = vmatpush1.msra.mxu0 0.0
    %6433 = vmatprep.subr.mxu0 0.0
    %6434 = vmatpush1.msra.mxu0 0.0
    %6435 = vmatprep.subr.mxu0 0.0
    %6436 = vmatpush1.msra.mxu0 0.0
    %6437 = vmatprep.subr.mxu0 0.0
    %6438 = vmatpush1.msra.mxu0 0.0
    %6439 = vmatprep.subr.mxu0 0.0
    %6440 = vmatpush1.msra.mxu0 0.0
    %6441 = vmatprep.subr.mxu0 0.0
    %6442 = vmatpush1.msra.mxu0 0.0
    %6443 = vmatprep.subr.mxu0 0.0
    %6444 = vmatpush1.msra.mxu0 0.0
    %6445 = vmatprep.subr.mxu0 0.0
    %6446 = vmatpush1.msra.mxu0 %v145
    %6447 = vmatprep.subr.mxu0 0.0
    %6448 = vmatpush1.msra.mxu0 %v144
    %6449 = vmatprep.subr.mxu0 0.0
    %6450 = vmatpush1.msra.mxu0 %v143
    %6451 = vmatprep.subr.mxu0 0.0
    %6452 = vmatpush1.msra.mxu0 %v142
    %6453 = vmatprep.subr.mxu0 0.0
    %6454 = vmatpush2.msra.mxu0 0.0
    %6455 = vmatprep.subr.mxu0 0.0
    %6456 = vmatpush2.msra.mxu0 0.0
    %6457 = vmatprep.subr.mxu0 0.0
    %6458 = vmatpush2.msra.mxu0 0.0
    %6459 = vmatprep.subr.mxu0 0.0
    %6460 = vmatpush2.msra.mxu0 0.0
    %6461 = vmatprep.subr.mxu0 0.0
    %6462 = vmatpush2.msra.mxu0 0.0
    %6463 = vmatprep.subr.mxu0 0.0
    %6464 = vmatpush2.msra.mxu0 0.0
    %6465 = vmatprep.subr.mxu0 0.0
    %6466 = vmatpush2.msra.mxu0 0.0
    %6467 = vmatprep.subr.mxu0 0.0
    %6468 = vmatpush2.msra.mxu0 0.0
    %6469 = vmatprep.subr.mxu0 0.0
    %6470 = vmatpush2.msra.mxu0 0.0
    %6471 = vmatprep.subr.mxu0 0.0
    %6472 = vmatpush2.msra.mxu0 0.0
    %6473 = vmatprep.subr.mxu0 0.0
    %6474 = vmatpush2.msra.mxu0 0.0
    %6475 = vmatprep.subr.mxu0 0.0
    %6476 = vmatpush2.msra.mxu0 0.0
    %6477 = vmatprep.subr.mxu0 0.0
    %6478 = vmatpush2.msra.mxu0 0.0
    %6479 = vmatprep.subr.mxu0 0.0
    %6480 = vmatpush2.msra.mxu0 0.0
    %6481 = vmatprep.subr.mxu0 0.0
    %6482 = vmatpush2.msra.mxu0 0.0
    %6483 = vmatprep.subr.mxu0 0.0
    %6484 = vmatpush2.msra.mxu0 0.0
    %6485 = vmatprep.mubr.f32.mxu0 0.0
    %6486 = vmatmul.mubr.f32.gmra.mxu0 %v6419
    %v6487 = vpop.f32.mrf.mxu0
    %v6488 = vadd.f32 0.0, %v6487
    %v6489 = vpop.f32.mrf.mxu0
    %6490 = vdwg.mxu0
    %v6491 = vsel %vm1128, %v6032, 0
    %6493 = vmatprep.subr.mxu0 0.0
    %6494 = vmatpush1.msra.mxu0 0.0
    %6495 = vmatprep.subr.mxu0 0.0
    %6496 = vmatpush1.msra.mxu0 0.0
    %6497 = vmatprep.subr.mxu0 0.0
    %6498 = vmatpush1.msra.mxu0 0.0
    %6499 = vmatprep.subr.mxu0 0.0
    %6500 = vmatpush1.msra.mxu0 0.0
    %6501 = vmatprep.subr.mxu0 0.0
    %6502 = vmatpush1.msra.mxu0 0.0
    %6503 = vmatprep.subr.mxu0 0.0
    %6504 = vmatpush1.msra.mxu0 0.0
    %6505 = vmatprep.subr.mxu0 0.0
    %6506 = vmatpush1.msra.mxu0 0.0
    %6507 = vmatprep.subr.mxu0 0.0
    %6508 = vmatpush1.msra.mxu0 0.0
    %6509 = vmatprep.subr.mxu0 0.0
    %6510 = vmatpush1.msra.mxu0 0.0
    %6511 = vmatprep.subr.mxu0 0.0
    %6512 = vmatpush1.msra.mxu0 0.0
    %6513 = vmatprep.subr.mxu0 0.0
    %6514 = vmatpush1.msra.mxu0 0.0
    %6515 = vmatprep.subr.mxu0 0.0
    %6516 = vmatpush1.msra.mxu0 0.0
    %6517 = vmatprep.subr.mxu0 0.0
    %6518 = vmatpush1.msra.mxu0 %v141
    %6519 = vmatprep.subr.mxu0 0.0
    %6520 = vmatpush1.msra.mxu0 %v140
    %6521 = vmatprep.subr.mxu0 0.0
    %6522 = vmatpush1.msra.mxu0 %v139
    %6523 = vmatprep.subr.mxu0 0.0
    %6524 = vmatpush1.msra.mxu0 %v138
    %6525 = vmatprep.subr.mxu0 0.0
    %6526 = vmatpush2.msra.mxu0 0.0
    %6527 = vmatprep.subr.mxu0 0.0
    %6528 = vmatpush2.msra.mxu0 0.0
    %6529 = vmatprep.subr.mxu0 0.0
    %6530 = vmatpush2.msra.mxu0 0.0
    %6531 = vmatprep.subr.mxu0 0.0
    %6532 = vmatpush2.msra.mxu0 0.0
    %6533 = vmatprep.subr.mxu0 0.0
    %6534 = vmatpush2.msra.mxu0 0.0
    %6535 = vmatprep.subr.mxu0 0.0
    %6536 = vmatpush2.msra.mxu0 0.0
    %6537 = vmatprep.subr.mxu0 0.0
    %6538 = vmatpush2.msra.mxu0 0.0
    %6539 = vmatprep.subr.mxu0 0.0
    %6540 = vmatpush2.msra.mxu0 0.0
    %6541 = vmatprep.subr.mxu0 0.0
    %6542 = vmatpush2.msra.mxu0 0.0
    %6543 = vmatprep.subr.mxu0 0.0
    %6544 = vmatpush2.msra.mxu0 0.0
    %6545 = vmatprep.subr.mxu0 0.0
    %6546 = vmatpush2.msra.mxu0 0.0
    %6547 = vmatprep.subr.mxu0 0.0
    %6548 = vmatpush2.msra.mxu0 0.0
    %6549 = vmatprep.subr.mxu0 0.0
    %6550 = vmatpush2.msra.mxu0 0.0
    %6551 = vmatprep.subr.mxu0 0.0
    %6552 = vmatpush2.msra.mxu0 0.0
    %6553 = vmatprep.subr.mxu0 0.0
    %6554 = vmatpush2.msra.mxu0 0.0
    %6555 = vmatprep.subr.mxu0 0.0
    %6556 = vmatpush2.msra.mxu0 0.0
    %6557 = vmatprep.mubr.f32.mxu0 0.0
    %6558 = vmatmul.mubr.f32.gmra.mxu0 %v6491
    %v6559 = vpop.f32.mrf.mxu0
    %v6560 = vadd.f32 %v6488, %v6559
    %v6561 = vpop.f32.mrf.mxu0
    %6562 = vdwg.mxu0
    %v6563 = vadd.f32 %v6560, %v6414
    %6564 = vst.msk [vmem:[%s7 + $0x2] sm:$0x3] %vm5379, %v6563
    %6565 = vrot.lane.b32.xlu0 %v6029, 64
    %v6566 = vpop.permute.xlu0 %6565
    %v6567 = vsel %vm1128, %v6566, 0
    %6569 = vmatprep.subr.mxu0 0.0
    %6570 = vmatpush1.msra.mxu0 0.0
    %6571 = vmatprep.subr.mxu0 0.0
    %6572 = vmatpush1.msra.mxu0 0.0
    %6573 = vmatprep.subr.mxu0 0.0
    %6574 = vmatpush1.msra.mxu0 0.0
    %6575 = vmatprep.subr.mxu0 0.0
    %6576 = vmatpush1.msra.mxu0 0.0
    %6577 = vmatprep.subr.mxu0 0.0
    %6578 = vmatpush1.msra.mxu0 0.0
    %6579 = vmatprep.subr.mxu0 0.0
    %6580 = vmatpush1.msra.mxu0 0.0
    %6581 = vmatprep.subr.mxu0 0.0
    %6582 = vmatpush1.msra.mxu0 0.0
    %6583 = vmatprep.subr.mxu0 0.0
    %6584 = vmatpush1.msra.mxu0 0.0
    %6585 = vmatprep.subr.mxu0 0.0
    %6586 = vmatpush1.msra.mxu0 0.0
    %6587 = vmatprep.subr.mxu0 0.0
    %6588 = vmatpush1.msra.mxu0 0.0
    %6589 = vmatprep.subr.mxu0 0.0
    %6590 = vmatpush1.msra.mxu0 0.0
    %6591 = vmatprep.subr.mxu0 0.0
    %6592 = vmatpush1.msra.mxu0 0.0
    %6593 = vmatprep.subr.mxu0 0.0
    %6594 = vmatpush1.msra.mxu0 %v145
    %6595 = vmatprep.subr.mxu0 0.0
    %6596 = vmatpush1.msra.mxu0 %v144
    %6597 = vmatprep.subr.mxu0 0.0
    %6598 = vmatpush1.msra.mxu0 %v143
    %6599 = vmatprep.subr.mxu0 0.0
    %6600 = vmatpush1.msra.mxu0 %v142
    %6601 = vmatprep.subr.mxu0 0.0
    %6602 = vmatpush2.msra.mxu0 0.0
    %6603 = vmatprep.subr.mxu0 0.0
    %6604 = vmatpush2.msra.mxu0 0.0
    %6605 = vmatprep.subr.mxu0 0.0
    %6606 = vmatpush2.msra.mxu0 0.0
    %6607 = vmatprep.subr.mxu0 0.0
    %6608 = vmatpush2.msra.mxu0 0.0
    %6609 = vmatprep.subr.mxu0 0.0
    %6610 = vmatpush2.msra.mxu0 0.0
    %6611 = vmatprep.subr.mxu0 0.0
    %6612 = vmatpush2.msra.mxu0 0.0
    %6613 = vmatprep.subr.mxu0 0.0
    %6614 = vmatpush2.msra.mxu0 0.0
    %6615 = vmatprep.subr.mxu0 0.0
    %6616 = vmatpush2.msra.mxu0 0.0
    %6617 = vmatprep.subr.mxu0 0.0
    %6618 = vmatpush2.msra.mxu0 0.0
    %6619 = vmatprep.subr.mxu0 0.0
    %6620 = vmatpush2.msra.mxu0 0.0
    %6621 = vmatprep.subr.mxu0 0.0
    %6622 = vmatpush2.msra.mxu0 0.0
    %6623 = vmatprep.subr.mxu0 0.0
    %6624 = vmatpush2.msra.mxu0 0.0
    %6625 = vmatprep.subr.mxu0 0.0
    %6626 = vmatpush2.msra.mxu0 0.0
    %6627 = vmatprep.subr.mxu0 0.0
    %6628 = vmatpush2.msra.mxu0 0.0
    %6629 = vmatprep.subr.mxu0 0.0
    %6630 = vmatpush2.msra.mxu0 0.0
    %6631 = vmatprep.subr.mxu0 0.0
    %6632 = vmatpush2.msra.mxu0 0.0
    %6633 = vmatprep.mubr.f32.mxu0 0.0
    %6634 = vmatmul.mubr.f32.gmra.mxu0 %v6567
    %v6635 = vpop.f32.mrf.mxu0
    %v6636 = vadd.f32 0.0, %v6635
    %v6637 = vpop.f32.mrf.mxu0
    %6638 = vdwg.mxu0
    %v6639 = vsel %vm1128, %v6149, 0
    %6641 = vmatprep.subr.mxu0 0.0
    %6642 = vmatpush1.msra.mxu0 0.0
    %6643 = vmatprep.subr.mxu0 0.0
    %6644 = vmatpush1.msra.mxu0 0.0
    %6645 = vmatprep.subr.mxu0 0.0
    %6646 = vmatpush1.msra.mxu0 0.0
    %6647 = vmatprep.subr.mxu0 0.0
    %6648 = vmatpush1.msra.mxu0 0.0
    %6649 = vmatprep.subr.mxu0 0.0
    %6650 = vmatpush1.msra.mxu0 0.0
    %6651 = vmatprep.subr.mxu0 0.0
    %6652 = vmatpush1.msra.mxu0 0.0
    %6653 = vmatprep.subr.mxu0 0.0
    %6654 = vmatpush1.msra.mxu0 0.0
    %6655 = vmatprep.subr.mxu0 0.0
    %6656 = vmatpush1.msra.mxu0 0.0
    %6657 = vmatprep.subr.mxu0 0.0
    %6658 = vmatpush1.msra.mxu0 0.0
    %6659 = vmatprep.subr.mxu0 0.0
    %6660 = vmatpush1.msra.mxu0 0.0
    %6661 = vmatprep.subr.mxu0 0.0
    %6662 = vmatpush1.msra.mxu0 0.0
    %6663 = vmatprep.subr.mxu0 0.0
    %6664 = vmatpush1.msra.mxu0 0.0
    %6665 = vmatprep.subr.mxu0 0.0
    %6666 = vmatpush1.msra.mxu0 %v141
    %6667 = vmatprep.subr.mxu0 0.0
    %6668 = vmatpush1.msra.mxu0 %v140
    %6669 = vmatprep.subr.mxu0 0.0
    %6670 = vmatpush1.msra.mxu0 %v139
    %6671 = vmatprep.subr.mxu0 0.0
    %6672 = vmatpush1.msra.mxu0 %v138
    %6673 = vmatprep.subr.mxu0 0.0
    %6674 = vmatpush2.msra.mxu0 0.0
    %6675 = vmatprep.subr.mxu0 0.0
    %6676 = vmatpush2.msra.mxu0 0.0
    %6677 = vmatprep.subr.mxu0 0.0
    %6678 = vmatpush2.msra.mxu0 0.0
    %6679 = vmatprep.subr.mxu0 0.0
    %6680 = vmatpush2.msra.mxu0 0.0
    %6681 = vmatprep.subr.mxu0 0.0
    %6682 = vmatpush2.msra.mxu0 0.0
    %6683 = vmatprep.subr.mxu0 0.0
    %6684 = vmatpush2.msra.mxu0 0.0
    %6685 = vmatprep.subr.mxu0 0.0
    %6686 = vmatpush2.msra.mxu0 0.0
    %6687 = vmatprep.subr.mxu0 0.0
    %6688 = vmatpush2.msra.mxu0 0.0
    %6689 = vmatprep.subr.mxu0 0.0
    %6690 = vmatpush2.msra.mxu0 0.0
    %6691 = vmatprep.subr.mxu0 0.0
    %6692 = vmatpush2.msra.mxu0 0.0
    %6693 = vmatprep.subr.mxu0 0.0
    %6694 = vmatpush2.msra.mxu0 0.0
    %6695 = vmatprep.subr.mxu0 0.0
    %6696 = vmatpush2.msra.mxu0 0.0
    %6697 = vmatprep.subr.mxu0 0.0
    %6698 = vmatpush2.msra.mxu0 0.0
    %6699 = vmatprep.subr.mxu0 0.0
    %6700 = vmatpush2.msra.mxu0 0.0
    %6701 = vmatprep.subr.mxu0 0.0
    %6702 = vmatpush2.msra.mxu0 0.0
    %6703 = vmatprep.subr.mxu0 0.0
    %6704 = vmatpush2.msra.mxu0 0.0
    %6705 = vmatprep.mubr.f32.mxu0 0.0
    %6706 = vmatmul.mubr.f32.gmra.mxu0 %v6639
    %v6707 = vpop.f32.mrf.mxu0
    %v6708 = vadd.f32 %v6636, %v6707
    %v6709 = vpop.f32.mrf.mxu0
    %6710 = vdwg.mxu0
    %v6711 = vadd.f32 %v6708, %v6414
    %6712 = vst.msk [vmem:[%s7 + $0x4] sm:$0x3] %vm5379, %v6711
    %6713 = vrot.lane.b32.xlu0 %v5912, 64
    %v6714 = vpop.permute.xlu0 %6713
    %v6715 = vsel %vm1128, %v6714, 0
    %6717 = vmatprep.subr.mxu0 0.0
    %6718 = vmatpush1.msra.mxu0 0.0
    %6719 = vmatprep.subr.mxu0 0.0
    %6720 = vmatpush1.msra.mxu0 0.0
    %6721 = vmatprep.subr.mxu0 0.0
    %6722 = vmatpush1.msra.mxu0 0.0
    %6723 = vmatprep.subr.mxu0 0.0
    %6724 = vmatpush1.msra.mxu0 0.0
    %6725 = vmatprep.subr.mxu0 0.0
    %6726 = vmatpush1.msra.mxu0 0.0
    %6727 = vmatprep.subr.mxu0 0.0
    %6728 = vmatpush1.msra.mxu0 0.0
    %6729 = vmatprep.subr.mxu0 0.0
    %6730 = vmatpush1.msra.mxu0 0.0
    %6731 = vmatprep.subr.mxu0 0.0
    %6732 = vmatpush1.msra.mxu0 0.0
    %6733 = vmatprep.subr.mxu0 0.0
    %6734 = vmatpush1.msra.mxu0 0.0
    %6735 = vmatprep.subr.mxu0 0.0
    %6736 = vmatpush1.msra.mxu0 0.0
    %6737 = vmatprep.subr.mxu0 0.0
    %6738 = vmatpush1.msra.mxu0 0.0
    %6739 = vmatprep.subr.mxu0 0.0
    %6740 = vmatpush1.msra.mxu0 0.0
    %6741 = vmatprep.subr.mxu0 0.0
    %6742 = vmatpush1.msra.mxu0 %v145
    %6743 = vmatprep.subr.mxu0 0.0
    %6744 = vmatpush1.msra.mxu0 %v144
    %6745 = vmatprep.subr.mxu0 0.0
    %6746 = vmatpush1.msra.mxu0 %v143
    %6747 = vmatprep.subr.mxu0 0.0
    %6748 = vmatpush1.msra.mxu0 %v142
    %6749 = vmatprep.subr.mxu0 0.0
    %6750 = vmatpush2.msra.mxu0 0.0
    %6751 = vmatprep.subr.mxu0 0.0
    %6752 = vmatpush2.msra.mxu0 0.0
    %6753 = vmatprep.subr.mxu0 0.0
    %6754 = vmatpush2.msra.mxu0 0.0
    %6755 = vmatprep.subr.mxu0 0.0
    %6756 = vmatpush2.msra.mxu0 0.0
    %6757 = vmatprep.subr.mxu0 0.0
    %6758 = vmatpush2.msra.mxu0 0.0
    %6759 = vmatprep.subr.mxu0 0.0
    %6760 = vmatpush2.msra.mxu0 0.0
    %6761 = vmatprep.subr.mxu0 0.0
    %6762 = vmatpush2.msra.mxu0 0.0
    %6763 = vmatprep.subr.mxu0 0.0
    %6764 = vmatpush2.msra.mxu0 0.0
    %6765 = vmatprep.subr.mxu0 0.0
    %6766 = vmatpush2.msra.mxu0 0.0
    %6767 = vmatprep.subr.mxu0 0.0
    %6768 = vmatpush2.msra.mxu0 0.0
    %6769 = vmatprep.subr.mxu0 0.0
    %6770 = vmatpush2.msra.mxu0 0.0
    %6771 = vmatprep.subr.mxu0 0.0
    %6772 = vmatpush2.msra.mxu0 0.0
    %6773 = vmatprep.subr.mxu0 0.0
    %6774 = vmatpush2.msra.mxu0 0.0
    %6775 = vmatprep.subr.mxu0 0.0
    %6776 = vmatpush2.msra.mxu0 0.0
    %6777 = vmatprep.subr.mxu0 0.0
    %6778 = vmatpush2.msra.mxu0 0.0
    %6779 = vmatprep.subr.mxu0 0.0
    %6780 = vmatpush2.msra.mxu0 0.0
    %6781 = vmatprep.mubr.f32.mxu0 0.0
    %6782 = vmatmul.mubr.f32.gmra.mxu0 %v6715
    %v6783 = vpop.f32.mrf.mxu0
    %v6784 = vadd.f32 0.0, %v6783
    %v6785 = vpop.f32.mrf.mxu0
    %6786 = vdwg.mxu0
    %6787 = vrot.lane.b32.xlu0 %v6263, 96
    %v6788 = vpop.permute.xlu0 %6787
    %v6789 = vsel %vm1128, %v6788, 0
    %6791 = vmatprep.subr.mxu0 0.0
    %6792 = vmatpush1.msra.mxu0 0.0
    %6793 = vmatprep.subr.mxu0 0.0
    %6794 = vmatpush1.msra.mxu0 0.0
    %6795 = vmatprep.subr.mxu0 0.0
    %6796 = vmatpush1.msra.mxu0 0.0
    %6797 = vmatprep.subr.mxu0 0.0
    %6798 = vmatpush1.msra.mxu0 0.0
    %6799 = vmatprep.subr.mxu0 0.0
    %6800 = vmatpush1.msra.mxu0 0.0
    %6801 = vmatprep.subr.mxu0 0.0
    %6802 = vmatpush1.msra.mxu0 0.0
    %6803 = vmatprep.subr.mxu0 0.0
    %6804 = vmatpush1.msra.mxu0 0.0
    %6805 = vmatprep.subr.mxu0 0.0
    %6806 = vmatpush1.msra.mxu0 0.0
    %6807 = vmatprep.subr.mxu0 0.0
    %6808 = vmatpush1.msra.mxu0 0.0
    %6809 = vmatprep.subr.mxu0 0.0
    %6810 = vmatpush1.msra.mxu0 0.0
    %6811 = vmatprep.subr.mxu0 0.0
    %6812 = vmatpush1.msra.mxu0 0.0
    %6813 = vmatprep.subr.mxu0 0.0
    %6814 = vmatpush1.msra.mxu0 0.0
    %6815 = vmatprep.subr.mxu0 0.0
    %6816 = vmatpush1.msra.mxu0 %v141
    %6817 = vmatprep.subr.mxu0 0.0
    %6818 = vmatpush1.msra.mxu0 %v140
    %6819 = vmatprep.subr.mxu0 0.0
    %6820 = vmatpush1.msra.mxu0 %v139
    %6821 = vmatprep.subr.mxu0 0.0
    %6822 = vmatpush1.msra.mxu0 %v138
    %6823 = vmatprep.subr.mxu0 0.0
    %6824 = vmatpush2.msra.mxu0 0.0
    %6825 = vmatprep.subr.mxu0 0.0
    %6826 = vmatpush2.msra.mxu0 0.0
    %6827 = vmatprep.subr.mxu0 0.0
    %6828 = vmatpush2.msra.mxu0 0.0
    %6829 = vmatprep.subr.mxu0 0.0
    %6830 = vmatpush2.msra.mxu0 0.0
    %6831 = vmatprep.subr.mxu0 0.0
    %6832 = vmatpush2.msra.mxu0 0.0
    %6833 = vmatprep.subr.mxu0 0.0
    %6834 = vmatpush2.msra.mxu0 0.0
    %6835 = vmatprep.subr.mxu0 0.0
    %6836 = vmatpush2.msra.mxu0 0.0
    %6837 = vmatprep.subr.mxu0 0.0
    %6838 = vmatpush2.msra.mxu0 0.0
    %6839 = vmatprep.subr.mxu0 0.0
    %6840 = vmatpush2.msra.mxu0 0.0
    %6841 = vmatprep.subr.mxu0 0.0
    %6842 = vmatpush2.msra.mxu0 0.0
    %6843 = vmatprep.subr.mxu0 0.0
    %6844 = vmatpush2.msra.mxu0 0.0
    %6845 = vmatprep.subr.mxu0 0.0
    %6846 = vmatpush2.msra.mxu0 0.0
    %6847 = vmatprep.subr.mxu0 0.0
    %6848 = vmatpush2.msra.mxu0 0.0
    %6849 = vmatprep.subr.mxu0 0.0
    %6850 = vmatpush2.msra.mxu0 0.0
    %6851 = vmatprep.subr.mxu0 0.0
    %6852 = vmatpush2.msra.mxu0 0.0
    %6853 = vmatprep.subr.mxu0 0.0
    %6854 = vmatpush2.msra.mxu0 0.0
    %6855 = vmatprep.mubr.f32.mxu0 0.0
    %6856 = vmatmul.mubr.f32.gmra.mxu0 %v6789
    %v6857 = vpop.f32.mrf.mxu0
    %v6858 = vadd.f32 %v6784, %v6857
    %v6859 = vpop.f32.mrf.mxu0
    %6860 = vdwg.mxu0
    %v6861 = vadd.f32 %v6858, %v6414
    %6862 = vst.msk [vmem:[%s7 + $0x6] sm:$0x3] %vm5379, %v6861
    // Predicated region
    $region26: #{rnn_vae_legacy_forward.1} parent=1 // pred_check
      _
    $region27: #{rnn_vae_legacy_forward.1} parent=1 // pred_check_branch
      %6864 = sbr.rel (0) target = $region29
    $region28: #{rnn_vae_legacy_forward.1} parent=1 // pred_region
      _
    $region29: #{rnn_vae_legacy_forward.1} parent=1 // pred_fallthru
      _
    // Predicated region
    $region30: #{rnn_vae_legacy_forward.1} parent=1 // pred_check
      _
    $region31: #{rnn_vae_legacy_forward.1} parent=1 // pred_check_branch
      %6866 = sbr.rel (0) target = $region33
    $region32: #{rnn_vae_legacy_forward.1} parent=1 // pred_region
      _
    $region33: #{rnn_vae_legacy_forward.1} parent=1 // pred_fallthru
      _
    // Predicated region
    $region34: #{rnn_vae_legacy_forward.1} parent=1 // pred_check
      _
    $region35: #{rnn_vae_legacy_forward.1} parent=1 // pred_check_branch
      %6868 = sbr.rel (0) target = $region37
    $region36: #{rnn_vae_legacy_forward.1} parent=1 // pred_region
      %s6870 = ssub.s32 32, 32
      %6871 = vsyncadd [#allocation3], %s6870
      %s6873 = sshll.u32 [#allocation2], 4
      %s6874 = int_to_ptr.vmem [resolvable:$true] %s6873
      %6876 = dma.vmem_to_hbm [thread:$0]  %s6874, 32, %s8, [#allocation3]
    $region37: #{rnn_vae_legacy_forward.1} parent=1 // pred_fallthru
      _
    // Predicated region
    $region38: #{rnn_vae_legacy_forward.1} parent=1 // pred_check
      _
    $region39: #{rnn_vae_legacy_forward.1} parent=1 // pred_check_branch
      %6878 = sbr.rel (0) target = $region41
    $region40: #{rnn_vae_legacy_forward.1} parent=1 // pred_region
      %s6880 = ssub.s32 32, 32
      %6881 = vsyncadd [#allocation5], %s6880
      %s6883 = sshll.u32 [#allocation4], 4
      %s6884 = int_to_ptr.vmem [resolvable:$true] %s6883
      %6886 = dma.vmem_to_hbm [thread:$0]  %s6884, 32, %s9, [#allocation5]
    $region41: #{rnn_vae_legacy_forward.1} parent=1 // pred_fallthru
      _
    // Predicated region
    $region42: #{rnn_vae_legacy_forward.1} parent=1 // pred_check
      _
    $region43: #{rnn_vae_legacy_forward.1} parent=1 // pred_check_branch
      %6888 = sbr.rel (0) target = $region45
    $region44: #{rnn_vae_legacy_forward.1} parent=1 // pred_region
      %s6890 = ssub.s32 32, 32
      %6891 = vsyncadd [#allocation5], %s6890
      %s6893 = sshll.u32 [#allocation6], 4
      %s6894 = int_to_ptr.vmem [resolvable:$true] %s6893
      %6896 = dma.vmem_to_hbm [thread:$0]  %s6894, 32, %s10, [#allocation5]
    $region45: #{rnn_vae_legacy_forward.1} parent=1 // pred_fallthru
      _
    // Predicated region
    $region46: #{rnn_vae_legacy_forward.1} parent=1 // pred_check
      _
    $region47: #{rnn_vae_legacy_forward.1} parent=1 // pred_check_branch
      %6898 = sbr.rel (0) target = $region49
    $region48: #{rnn_vae_legacy_forward.1} parent=1 // pred_region
      _
    $region49: #{rnn_vae_legacy_forward.1} parent=1 // pred_fallthru
      _
    // Predicated region
    $region50: #{rnn_vae_legacy_forward.1} parent=1 // pred_check
      _
    $region51: #{rnn_vae_legacy_forward.1} parent=1 // pred_check_branch
      %6900 = sbr.rel (0) target = $region53
    $region52: #{rnn_vae_legacy_forward.1} parent=1 // pred_region
      _
    $region53: #{rnn_vae_legacy_forward.1} parent=1 // pred_fallthru
      _
    // Predicated region
    $region54: #{rnn_vae_legacy_forward.1} parent=1 // pred_check
      _
    $region55: #{rnn_vae_legacy_forward.1} parent=1 // pred_check_branch
      %6902 = sbr.rel (0) target = $region57
    $region56: #{rnn_vae_legacy_forward.1} parent=1 // pred_region
      %6903 = dma.done [#allocation3], 32
    $region57: #{rnn_vae_legacy_forward.1} parent=1 // pred_fallthru
      _
    // Predicated region
    $region58: #{rnn_vae_legacy_forward.1} parent=1 // pred_check
      _
    $region59: #{rnn_vae_legacy_forward.1} parent=1 // pred_check_branch
      %6905 = sbr.rel (0) target = $region61
    $region60: #{rnn_vae_legacy_forward.1} parent=1 // pred_region
      %6906 = dma.done [#allocation5], 32
    $region61: #{rnn_vae_legacy_forward.1} parent=1 // pred_fallthru
      _
    // Predicated region
    $region62: #{rnn_vae_legacy_forward.1} parent=1 // pred_check
      _
    $region63: #{rnn_vae_legacy_forward.1} parent=1 // pred_check_branch
      %6908 = sbr.rel (0) target = $region65
    $region64: #{rnn_vae_legacy_forward.1} parent=1 // pred_region
      %6909 = dma.done [#allocation5], 32
    $region65: #{rnn_vae_legacy_forward.1} parent=1 // pred_fallthru
      _
    %6910 = vsyncpa [#allocation3], 1
    %6911 = vsyncpa [#allocation5], 1

</llo_original>
